<compile_context>
chip_gen: v5e
topology: v5e:2x2
jax: 0.10.0
libtpu: 0.0.40
codegen_flags: <defaults>
</compile_context>

<pallas_src>
import math
from functools import partial

import jax
import jax.numpy as jnp
import numpy as np
from jax import lax
from jax.experimental import pallas as pl
from jax.experimental.pallas import tpu as pltpu


# ----------------------------------------------------------------------------
# Fused kernel: one (core, layer, batch-block) grid step.
# ----------------------------------------------------------------------------
def _fused_kernel(x_ref, ln1w_ref, ln1b_ref, wqkv_ref, bqkv_ref, wo_ref, bo_ref,
                  ln2w_ref, ln2b_ref, w1_ref, b1_ref, w2_ref, b2_ref,
                  o_ref, xs_ref,
                  *, n_head, head_dim, bt, seq_len, l_pad, eps, compute_dtype):
    H, hd = n_head, head_dim
    D = H * hd
    rows = bt * l_pad
    cd = compute_dtype
    exact = np.dtype(compute_dtype) == np.dtype(np.float32)

    layer = pl.program_id(1)
    blk = pl.program_id(2)

    # Layer 0: pull this batch block into the f32 VMEM carry (batch-major rows).
    @pl.when(layer == 0)
    def _():
        xb = jnp.swapaxes(x_ref[...], 0, 1)                 # (bt, Lp, D)
        xs_ref[blk] = xb.reshape(rows, D).astype(jnp.float32)

    x = xs_ref[blk]                                         # (rows, D) f32 residual

    def layernorm(v, w_ref, b_ref):                         # TF-style LN (eps inside sqrt)
        u = jnp.mean(v, axis=-1, keepdims=True)
        c = v - u
        s = jnp.mean(c * c, axis=-1, keepdims=True)
        return w_ref[0] * (c * lax.rsqrt(s + eps)) + b_ref[0]

    def mm(a, w_ref):                                       # bf16 (or f32) MXU, f32 acc
        return jnp.dot(a.astype(cd), w_ref[0], preferred_element_type=jnp.float32)

    def to_heads(t):                                        # (rows, D) -> (H*bt, Lp, hd)
        t3 = t.reshape(bt, l_pad, D)                        # free (Lp % 8 == 0)
        return jnp.concatenate(
            [t3[:, :, h * hd:(h + 1) * hd] for h in range(H)], axis=0)

    # ---- attention branch ----------------------------------------------------
    h1 = layernorm(x, ln1w_ref, ln1b_ref)
    qkv = mm(h1, wqkv_ref) + bqkv_ref[0]                    # (rows, 3D) f32; 1/sqrt(hd)
    qh = to_heads(qkv[:, :D].astype(cd))                    #   pre-folded into Q weights
    kh = to_heads(qkv[:, D:2 * D].astype(cd))
    vh = to_heads(qkv[:, 2 * D:].astype(cd))

    # batched (H*bt) QK^T and P.V on the MXU
    s = lax.dot_general(qh, kh, (((2,), (2,)), ((0,), (0,))),
                        preferred_element_type=jnp.float32)  # (H*bt, Lp, Lp)
    if l_pad != seq_len:                                     # mask padded key positions
        kmask = lax.broadcasted_iota(jnp.int32, (1, 1, l_pad), 2) < seq_len
        s = jnp.where(kmask, s, -1e30)
    s = s - jnp.max(s, axis=-1, keepdims=True)
    p = jnp.exp(s)
    den = jnp.sum(p, axis=-1, keepdims=True)
    if exact:
        p = p / den
    else:
        p = p * pl.reciprocal(den, approx=True)              # EUP slot
    ctx_h = lax.dot_general(p.astype(cd), vh, (((2,), (1,)), ((0,), (0,))),
                            preferred_element_type=jnp.float32).astype(cd)
    ctx = jnp.concatenate([ctx_h[h * bt:(h + 1) * bt] for h in range(H)],
                          axis=-1).reshape(rows, D)          # (rows, D)
    x = x + mm(ctx, wo_ref) + bo_ref[0]

    # ---- MLP branch ----------------------------------------------------------
    h2 = layernorm(x, ln2w_ref, ln2b_ref)
    f = mm(h2, w1_ref) + b1_ref[0]                           # (rows, 4D) f32
    g = f.astype(cd)                                         # QuickGELU in compute dtype
    g = g * jax.nn.sigmoid(1.702 * g)                        #   (keep f32 on v5e)
    x = x + mm(g, w2_ref) + b2_ref[0]

    xs_ref[blk] = x                                          # carry to next layer

    @pl.when(layer == pl.num_programs(1) - 1)
    def _():
        o_ref[...] = jnp.swapaxes(x.reshape(bt, l_pad, D), 0, 1).astype(o_ref.dtype)


# ----------------------------------------------------------------------------
# Host-side helpers.
# ----------------------------------------------------------------------------
def _choose_block_batch(B, L, target_rows=256):
    """Pick bt (divisor of B) so bt*L ~ target MXU rows; bt must be 8-aligned or ==B.

    target_rows: ~128 on v5e, ~256 default, ~512 on v6e for more weight reuse."""
    bt = max(1, min(B, max(1, target_rows // max(L, 1))))
    while bt > 1 and B % bt != 0:
        bt -= 1
    if B // bt < 2:                       # keep >= 2 batch blocks when possible
        for cand in range(bt - 1, 0, -1):
            if B % cand == 0 and B // cand >= 2:
                bt = cand
                break
    if bt != B and bt % 8 != 0:           # block's 2nd-minor dim must be 8-aligned
        ok = [c for c in range(bt, 0, -1) if B % c == 0 and c % 8 == 0]
        bt = ok[0] if ok else B
    return bt


def _vmem_limit_bytes(D, rows, nb_pc, bt, n_head, l_pad, compute_dtype):
    """Generation-aware VMEM budget: estimate the working set, cap at 80% physical."""
    w_item = np.dtype(compute_dtype).itemsize
    wbytes = 12 * D * D * w_item + 22 * D * 4          # per-layer weights + biases/LN
    io_blk = l_pad * bt * D * 4                        # one f32 (Lp, bt, D) block
    carry = nb_pc * rows * D * 4                       # f32 activation carry scratch
    inter = rows * 10 * D * 4 + 2 * (bt * n_head) * l_pad * l_pad * 4
    est = 2 * wbytes + 4 * io_blk + carry + inter      # double-buffered weights / x / out
    try:
        phys = pltpu.get_tpu_info().vmem_capacity_bytes
    except Exception:
        phys = 128 << 20
    cap = int(phys * 0.80)                             # headroom for Mosaic scratch
    return int(min(cap, max(32 << 20, 2 * est)))


def prepare_kernel_params(layer_params, n_head, compute_dtype):
    """Stack per-layer weights, pre-transpose, fold attention scale into Q, cast."""
    D = layer_params[0]["ln1_w"].shape[-1]
    scale = 1.0 / math.sqrt(D // n_head)
    ln1w, ln1b, ln2w, ln2b = [], [], [], []
    wqkv_t, bqkv, wo_t, bo, w1_t, b1, w2_t, b2 = [], [], [], [], [], [], [], []
    for p in layer_params:
        w_in = p["in_proj_weight"]                       # (3D, D)
        b_in = p["in_proj_bias"]                         # (3D,)
        w_in = jnp.concatenate([w_in[:D] * scale, w_in[D:]], axis=0)
        b_in = jnp.concatenate([b_in[:D] * scale, b_in[D:]], axis=0)
        wqkv_t.append(w_in.T);                 bqkv.append(b_in[None, :])
        wo_t.append(p["out_proj_weight"].T);   bo.append(p["out_proj_bias"][None, :])
        w1_t.append(p["c_fc_w"].T);            b1.append(p["c_fc_b"][None, :])
        w2_t.append(p["c_proj_w"].T);          b2.append(p["c_proj_b"][None, :])
        ln1w.append(p["ln1_w"][None, :]);      ln1b.append(p["ln1_b"][None, :])
        ln2w.append(p["ln2_w"][None, :]);      ln2b.append(p["ln2_b"][None, :])
    st = lambda xs: jnp.stack(xs, axis=0)
    cd = compute_dtype
    return dict(
        ln1_w=st(ln1w), ln1_b=st(ln1b), ln2_w=st(ln2w), ln2_b=st(ln2b),
        wqkv_t=st(wqkv_t).astype(cd), bqkv=st(bqkv),
        wo_t=st(wo_t).astype(cd), bo=st(bo),
        w1_t=st(w1_t).astype(cd), b1=st(b1),
        w2_t=st(w2_t).astype(cd), b2=st(b2),
    )


def temporal_transformer(x_lbd, layer_params, n_head, *,
                         compute_dtype=jnp.bfloat16, block_batch=None,
                         target_rows=256, num_core_splits=1):
    """x_lbd: (L, B, D) float32 (PyTorch seq-first layout). attn_mask=None."""
    L, B, D = x_lbd.shape
    assert D % n_head == 0
    head_dim = D // n_head

    # Pad L to a sublane multiple so all in-kernel reshapes are layout-free.
    L_pad = -(-L // 8) * 8
    x_in = x_lbd.astype(jnp.float32)
    if L_pad != L:
        x_in = jnp.concatenate(
            [x_in, jnp.zeros((L_pad - L, B, D), jnp.float32)], axis=0)

    kp = prepare_kernel_params(layer_params, n_head, compute_dtype)
    n_layers = kp["wqkv_t"].shape[0]

    bt = block_batch if block_batch is not None else _choose_block_batch(B, L_pad, target_rows)
    assert B % bt == 0, "block_batch must divide the batch size"
    nb_total = B // bt
    n_core = num_core_splits if (num_core_splits > 0 and nb_total % num_core_splits == 0) else 1
    nb_pc = nb_total // n_core
    rows = bt * L_pad

    def wspec(shape):                                    # per-layer stacked weight
        return pl.BlockSpec((1,) + shape, lambda c, l, b: (l,) + (0,) * len(shape))

    # x is only read at layer 0; for later layers the index_map stays constant so
    # Pallas skips the (redundant) DMA -> one HBM pass over the activations.
    x_spec = pl.BlockSpec(
        (L_pad, bt, D),
        lambda c, l, b: (0, jnp.where(l == 0, c * nb_pc + b, c * nb_pc), 0))
    # Output is only written at the last layer; keep its block index constant before
    # that so no intermediate writebacks hit HBM.
    out_spec = pl.BlockSpec(
        (L_pad, bt, D),
        lambda c, l, b: (0, jnp.where(l == n_layers - 1, c * nb_pc + b, c * nb_pc), 0))

    in_specs = [
        x_spec,
        wspec((1, D)), wspec((1, D)),                    # ln1 w, b
        wspec((D, 3 * D)), wspec((1, 3 * D)),            # Wqkv^T, bqkv
        wspec((D, D)), wspec((1, D)),                    # Wo^T, bo
        wspec((1, D)), wspec((1, D)),                    # ln2 w, b
        wspec((D, 4 * D)), wspec((1, 4 * D)),            # W1^T, b1
        wspec((4 * D, D)), wspec((1, D)),                # W2^T, b2
    ]

    vmem_limit = _vmem_limit_bytes(D, rows, nb_pc, bt, n_head, L_pad, compute_dtype)

    kernel = partial(_fused_kernel, n_head=n_head, head_dim=head_dim, bt=bt,
                     seq_len=L, l_pad=L_pad, eps=1e-12,  # module's TF-style LayerNorm eps
                     compute_dtype=compute_dtype)

    out = pl.pallas_call(
        kernel,
        out_shape=jax.ShapeDtypeStruct((L_pad, B, D), jnp.float32),
        grid=(n_core, n_layers, nb_pc),
        in_specs=in_specs,
        out_specs=out_spec,
        scratch_shapes=[pltpu.VMEM((nb_pc, rows, D), jnp.float32)],  # f32 residual carry
        compiler_params=pltpu.CompilerParams(
            dimension_semantics=("parallel", "arbitrary", "arbitrary"),
            vmem_limit_bytes=vmem_limit),
    )(
        x_in,
        kp["ln1_w"], kp["ln1_b"],
        kp["wqkv_t"], kp["bqkv"],
        kp["wo_t"], kp["bo"],
        kp["ln2_w"], kp["ln2_b"],
        kp["w1_t"], kp["b1"],
        kp["w2_t"], kp["b2"],
    )
    return out[:L] if L_pad != L else out                # (L, B, D), no host transposes


# ----------------------------------------------------------------------------
# Deterministic parameter init (PyTorch-module shapes / orientation).
# ----------------------------------------------------------------------------
def init_params(key, width, layers):
    out = []
    s = 0.02
    for i in range(layers):
        ks = jax.random.split(jax.random.fold_in(key, i), 12)
        out.append(dict(
            ln1_w=1.0 + 0.1 * jax.random.normal(ks[8], (width,), jnp.float32),
            ln1_b=0.1 * jax.random.normal(ks[9], (width,), jnp.float32),
            ln2_w=1.0 + 0.1 * jax.random.normal(ks[10], (width,), jnp.float32),
            ln2_b=0.1 * jax.random.normal(ks[11], (width,), jnp.float32),
            in_proj_weight=s * jax.random.normal(ks[0], (3 * width, width), jnp.float32),
            in_proj_bias=s * jax.random.normal(ks[1], (3 * width,), jnp.float32),
            out_proj_weight=s * jax.random.normal(ks[2], (width, width), jnp.float32),
            out_proj_bias=s * jax.random.normal(ks[3], (width,), jnp.float32),
            c_fc_w=s * jax.random.normal(ks[4], (4 * width, width), jnp.float32),
            c_fc_b=s * jax.random.normal(ks[5], (4 * width,), jnp.float32),
            c_proj_w=s * jax.random.normal(ks[6], (width, 4 * width), jnp.float32),
            c_proj_b=s * jax.random.normal(ks[7], (width,), jnp.float32),
        ))
    return out


# ----------------------------------------------------------------------------
# Pure-JAX f32 reference (same math as the PyTorch module) for verification.
# ----------------------------------------------------------------------------
def _ref_layernorm(x, w, b, eps=1e-12):
    u = jnp.mean(x, -1, keepdims=True)
    s = jnp.mean((x - u) ** 2, -1, keepdims=True)
    return w * ((x - u) / jnp.sqrt(s + eps)) + b


def ref_block(x, p, n_head):
    L, B, D = x.shape
    dh = D // n_head
    h = _ref_layernorm(x, p["ln1_w"], p["ln1_b"])
    qkv = h @ p["in_proj_weight"].T + p["in_proj_bias"]
    q, k, v = qkv[..., :D], qkv[..., D:2 * D], qkv[..., 2 * D:]
    q = q / math.sqrt(dh)
    qh = q.reshape(L, B, n_head, dh)
    kh = k.reshape(L, B, n_head, dh)
    vh = v.reshape(L, B, n_head, dh)
    s = jnp.einsum('lbhd,mbhd->bhlm', qh, kh)
    a = jax.nn.softmax(s, axis=-1)
    ctx = jnp.einsum('bhlm,mbhd->lbhd', a, vh).reshape(L, B, D)
    x = x + ctx @ p["out_proj_weight"].T + p["out_proj_bias"]
    h2 = _ref_layernorm(x, p["ln2_w"], p["ln2_b"])
    f = h2 @ p["c_fc_w"].T + p["c_fc_b"]
    f = f * jax.nn.sigmoid(1.702 * f)
    return x + f @ p["c_proj_w"].T + p["c_proj_b"]


def ref_transformer(x_lbd, layer_params, n_head):
    for p in layer_params:
        x_lbd = ref_block(x_lbd, p, n_head)
    return x_lbd


# ----------------------------------------------------------------------------
if __name__ == "__main__":
    # width multiple of 128 -> lane-dense stores; small but MXU-meaningful shapes.
    L, B, width, heads, layers = 16, 16, 128, 4, 2

    key = jax.random.PRNGKey(0)
    kx, kparams = jax.random.split(key)
    x = jax.random.normal(kx, (L, B, width), jnp.float32)     # (seq, batch, width)
    params = init_params(kparams, width, layers)

    ref = ref_transformer(x, params, heads)

    # 1) verification path: f32 compute vs pure-JAX reference.
    out_f32 = jax.block_until_ready(
        temporal_transformer(x, params, heads, compute_dtype=jnp.float32))
    np.testing.assert_allclose(np.asarray(out_f32), np.asarray(ref),
                               rtol=1e-3, atol=1e-3)

    # 2) performance path: bf16 matmuls / QuickGELU, f32 accumulation & LayerNorm.
    out_bf16 = jax.block_until_ready(
        temporal_transformer(x, params, heads, compute_dtype=jnp.bfloat16))
    np.testing.assert_allclose(np.asarray(out_bf16), np.asarray(ref),
                               rtol=5e-2, atol=5e-2)

    # 3) non-8-aligned sequence (padding + key masking) and a 2-way core split of
    #    the batch axis (runs sequentially on single-TC chips, in parallel on v7x).
    L2 = 12
    x2 = jax.random.normal(jax.random.fold_in(kx, 1), (L2, B, width), jnp.float32)
    ref2 = ref_transformer(x2, params, heads)
    out2 = jax.block_until_ready(
        temporal_transformer(x2, params, heads, compute_dtype=jnp.bfloat16,
                             num_core_splits=2))
    np.testing.assert_allclose(np.asarray(out2), np.asarray(ref2),
                               rtol=5e-2, atol=5e-2)

    assert out_f32.shape == (L, B, width)
    print("KERNEL_OK")
</pallas_src>

<mosaic_0001>
module attributes {stable_mosaic.version = 11 : i64} {
  func.func @_fused_kernel(%arg0: i32, %arg1: i32, %arg2: i32, %arg3: memref<16x8x128xf32, #tpu.memory_space<vmem>>, %arg4: memref<1x1x128xf32, #tpu.memory_space<vmem>>, %arg5: memref<1x1x128xf32, #tpu.memory_space<vmem>>, %arg6: memref<1x128x384xf32, #tpu.memory_space<vmem>>, %arg7: memref<1x1x384xf32, #tpu.memory_space<vmem>>, %arg8: memref<1x128x128xf32, #tpu.memory_space<vmem>>, %arg9: memref<1x1x128xf32, #tpu.memory_space<vmem>>, %arg10: memref<1x1x128xf32, #tpu.memory_space<vmem>>, %arg11: memref<1x1x128xf32, #tpu.memory_space<vmem>>, %arg12: memref<1x128x512xf32, #tpu.memory_space<vmem>>, %arg13: memref<1x1x512xf32, #tpu.memory_space<vmem>>, %arg14: memref<1x512x128xf32, #tpu.memory_space<vmem>>, %arg15: memref<1x1x128xf32, #tpu.memory_space<vmem>>, %arg16: memref<16x8x128xf32, #tpu.memory_space<vmem>>, %arg17: memref<2x128x128xf32, #tpu.memory_space<vmem>>) attributes {dimension_semantics = [#tpu.dimension_semantics<parallel>, #tpu.dimension_semantics<arbitrary>, #tpu.dimension_semantics<arbitrary>], iteration_bounds = array<i64: 1, 2, 2>, scalar_prefetch = 0 : i64, scratch_operands = 1 : i64, tpu.core_type = #tpu.core_type<tc>, window_params = [{transform_indices = @transform_0, window_bounds = array<i64: 16, 8, 128>}, {transform_indices = @transform_1, window_bounds = array<i64: 1, 1, 128>}, {transform_indices = @transform_2, window_bounds = array<i64: 1, 1, 128>}, {transform_indices = @transform_3, window_bounds = array<i64: 1, 128, 384>}, {transform_indices = @transform_4, window_bounds = array<i64: 1, 1, 384>}, {transform_indices = @transform_5, window_bounds = array<i64: 1, 128, 128>}, {transform_indices = @transform_6, window_bounds = array<i64: 1, 1, 128>}, {transform_indices = @transform_7, window_bounds = array<i64: 1, 1, 128>}, {transform_indices = @transform_8, window_bounds = array<i64: 1, 1, 128>}, {transform_indices = @transform_9, window_bounds = array<i64: 1, 128, 512>}, {transform_indices = @transform_10, window_bounds = array<i64: 1, 1, 512>}, {transform_indices = @transform_11, window_bounds = array<i64: 1, 512, 128>}, {transform_indices = @transform_12, window_bounds = array<i64: 1, 1, 128>}, {transform_indices = @transform_13, window_bounds = array<i64: 16, 8, 128>}]} {
    %c0_i32 = arith.constant 0 : i32
    %0 = arith.cmpi eq, %arg1, %c0_i32 : i32
    %1 = arith.extui %0 : i1 to i32
    %c0_i32_0 = arith.constant 0 : i32
    %2 = arith.cmpi ne, %1, %c0_i32_0 : i32
    scf.if %2 {
      %c0_60 = arith.constant 0 : index
      %c0_61 = arith.constant 0 : index
      %c0_62 = arith.constant 0 : index
      %137 = vector.load %arg3[%c0_60, %c0_61, %c0_62] : memref<16x8x128xf32, #tpu.memory_space<vmem>>, vector<16x8x128xf32>
      %138 = tpu.transpose %137, [1, 0, 2] : vector<16x8x128xf32> -> vector<8x16x128xf32>
      %139 = vector.shape_cast %138 : vector<8x16x128xf32> to vector<128x128xf32>
      %140 = arith.index_cast %arg2 : i32 to index
      %c0_63 = arith.constant 0 : index
      %c0_64 = arith.constant 0 : index
      %141 = vector.load %arg17[%140, %c0_63, %c0_64] : memref<2x128x128xf32, #tpu.memory_space<vmem>>, vector<1x128x128xf32>
      %142 = vector.shape_cast %141 : vector<1x128x128xf32> to vector<128x128xf32>
      %143 = vector.shape_cast %139 : vector<128x128xf32> to vector<1x128x128xf32>
      tpu.vector_store %arg17[%140, %c0_63, %c0_64], %143 {strides = array<i32>} : memref<2x128x128xf32, #tpu.memory_space<vmem>>, vector<1x128x128xf32>,
    } else {
    }
    %3 = arith.index_cast %arg2 : i32 to index
    %c0 = arith.constant 0 : index
    %c0_1 = arith.constant 0 : index
    %4 = vector.load %arg17[%3, %c0, %c0_1] : memref<2x128x128xf32, #tpu.memory_space<vmem>>, vector<1x128x128xf32>
    %5 = vector.shape_cast %4 : vector<1x128x128xf32> to vector<128x128xf32>
    %cst = arith.constant dense<0.000000e+00> : vector<128xf32>
    %6 = vector.multi_reduction <add>, %5, %cst [1] : vector<128x128xf32> to vector<128xf32>
    %7 = vector.shape_cast %6 : vector<128xf32> to vector<128x1xf32>
    %cst_2 = arith.constant 1.280000e+02 : f32
    %8 = vector.broadcast %cst_2 : f32 to vector<128x1xf32>
    %9 = arith.divf %7, %8 : vector<128x1xf32>
    %10 = vector.broadcast %9 : vector<128x1xf32> to vector<128x128xf32>
    %11 = arith.subf %5, %10 : vector<128x128xf32>
    %12 = arith.mulf %11, %11 : vector<128x128xf32>
    %cst_3 = arith.constant dense<0.000000e+00> : vector<128xf32>
    %13 = vector.multi_reduction <add>, %12, %cst_3 [1] : vector<128x128xf32> to vector<128xf32>
    %14 = vector.shape_cast %13 : vector<128xf32> to vector<128x1xf32>
    %cst_4 = arith.constant 1.280000e+02 : f32
    %15 = vector.broadcast %cst_4 : f32 to vector<128x1xf32>
    %16 = arith.divf %14, %15 : vector<128x1xf32>
    %c0_5 = arith.constant 0 : index
    %c0_6 = arith.constant 0 : index
    %c0_7 = arith.constant 0 : index
    %17 = vector.load %arg4[%c0_5, %c0_6, %c0_7] : memref<1x1x128xf32, #tpu.memory_space<vmem>>, vector<1x1x128xf32>
    %18 = vector.shape_cast %17 : vector<1x1x128xf32> to vector<1x128xf32>
    %cst_8 = arith.constant 9.99999996E-13 : f32
    %19 = vector.broadcast %cst_8 : f32 to vector<128x1xf32>
    %20 = arith.addf %16, %19 : vector<128x1xf32>
    %21 = math.rsqrt %20 : vector<128x1xf32>
    %22 = vector.broadcast %21 : vector<128x1xf32> to vector<128x128xf32>
    %23 = arith.mulf %11, %22 : vector<128x128xf32>
    %24 = vector.broadcast %18 : vector<1x128xf32> to vector<128x128xf32>
    %25 = arith.mulf %24, %23 : vector<128x128xf32>
    %c0_9 = arith.constant 0 : index
    %c0_10 = arith.constant 0 : index
    %c0_11 = arith.constant 0 : index
    %26 = vector.load %arg5[%c0_9, %c0_10, %c0_11] : memref<1x1x128xf32, #tpu.memory_space<vmem>>, vector<1x1x128xf32>
    %27 = vector.shape_cast %26 : vector<1x1x128xf32> to vector<1x128xf32>
    %28 = vector.broadcast %27 : vector<1x128xf32> to vector<128x128xf32>
    %29 = arith.addf %25, %28 : vector<128x128xf32>
    %c0_12 = arith.constant 0 : index
    %c0_13 = arith.constant 0 : index
    %c0_14 = arith.constant 0 : index
    %30 = vector.load %arg6[%c0_12, %c0_13, %c0_14] : memref<1x128x384xf32, #tpu.memory_space<vmem>>, vector<1x128x384xf32>
    %31 = vector.shape_cast %30 : vector<1x128x384xf32> to vector<128x384xf32>
    %cst_15 = arith.constant dense<0.000000e+00> : vector<128x384xf32>
    %32 = tpu.matmul %29, %31, %cst_15 {dimension_numbers = #tpu.dot_dimension_numbers<[1], [0], [0], [1], [0, 0, 1, 1], [], []>} : vector<128x128xf32>, vector<128x384xf32>, vector<128x384xf32> -> vector<128x384xf32>
    %c0_16 = arith.constant 0 : index
    %c0_17 = arith.constant 0 : index
    %c0_18 = arith.constant 0 : index
    %33 = vector.load %arg7[%c0_16, %c0_17, %c0_18] : memref<1x1x384xf32, #tpu.memory_space<vmem>>, vector<1x1x384xf32>
    %34 = vector.shape_cast %33 : vector<1x1x384xf32> to vector<1x384xf32>
    %35 = vector.broadcast %34 : vector<1x384xf32> to vector<128x384xf32>
    %36 = arith.addf %32, %35 : vector<128x384xf32>
    %37 = vector.extract_strided_slice %36 {offsets = [0, 0], sizes = [128, 128], strides = [1, 1]} : vector<128x384xf32> to vector<128x128xf32>
    %38 = vector.shape_cast %37 : vector<128x128xf32> to vector<8x16x128xf32>
    %39 = vector.extract_strided_slice %38 {offsets = [0, 0, 0], sizes = [8, 16, 32], strides = [1, 1, 1]} : vector<8x16x128xf32> to vector<8x16x32xf32>
    %40 = vector.extract_strided_slice %38 {offsets = [0, 0, 32], sizes = [8, 16, 32], strides = [1, 1, 1]} : vector<8x16x128xf32> to vector<8x16x32xf32>
    %41 = vector.extract_strided_slice %38 {offsets = [0, 0, 64], sizes = [8, 16, 32], strides = [1, 1, 1]} : vector<8x16x128xf32> to vector<8x16x32xf32>
    %42 = vector.extract_strided_slice %38 {offsets = [0, 0, 96], sizes = [8, 16, 32], strides = [1, 1, 1]} : vector<8x16x128xf32> to vector<8x16x32xf32>
    %43 = tpu.concatenate %39, %40, %41, %42 in 0 : vector<8x16x32xf32>, vector<8x16x32xf32>, vector<8x16x32xf32>, vector<8x16x32xf32> -> vector<32x16x32xf32>
    %44 = vector.extract_strided_slice %36 {offsets = [0, 128], sizes = [128, 128], strides = [1, 1]} : vector<128x384xf32> to vector<128x128xf32>
    %45 = vector.shape_cast %44 : vector<128x128xf32> to vector<8x16x128xf32>
    %46 = vector.extract_strided_slice %45 {offsets = [0, 0, 0], sizes = [8, 16, 32], strides = [1, 1, 1]} : vector<8x16x128xf32> to vector<8x16x32xf32>
    %47 = vector.extract_strided_slice %45 {offsets = [0, 0, 32], sizes = [8, 16, 32], strides = [1, 1, 1]} : vector<8x16x128xf32> to vector<8x16x32xf32>
    %48 = vector.extract_strided_slice %45 {offsets = [0, 0, 64], sizes = [8, 16, 32], strides = [1, 1, 1]} : vector<8x16x128xf32> to vector<8x16x32xf32>
    %49 = vector.extract_strided_slice %45 {offsets = [0, 0, 96], sizes = [8, 16, 32], strides = [1, 1, 1]} : vector<8x16x128xf32> to vector<8x16x32xf32>
    %50 = tpu.concatenate %46, %47, %48, %49 in 0 : vector<8x16x32xf32>, vector<8x16x32xf32>, vector<8x16x32xf32>, vector<8x16x32xf32> -> vector<32x16x32xf32>
    %51 = vector.extract_strided_slice %36 {offsets = [0, 256], sizes = [128, 128], strides = [1, 1]} : vector<128x384xf32> to vector<128x128xf32>
    %52 = vector.shape_cast %51 : vector<128x128xf32> to vector<8x16x128xf32>
    %53 = vector.extract_strided_slice %52 {offsets = [0, 0, 0], sizes = [8, 16, 32], strides = [1, 1, 1]} : vector<8x16x128xf32> to vector<8x16x32xf32>
    %54 = vector.extract_strided_slice %52 {offsets = [0, 0, 32], sizes = [8, 16, 32], strides = [1, 1, 1]} : vector<8x16x128xf32> to vector<8x16x32xf32>
    %55 = vector.extract_strided_slice %52 {offsets = [0, 0, 64], sizes = [8, 16, 32], strides = [1, 1, 1]} : vector<8x16x128xf32> to vector<8x16x32xf32>
    %56 = vector.extract_strided_slice %52 {offsets = [0, 0, 96], sizes = [8, 16, 32], strides = [1, 1, 1]} : vector<8x16x128xf32> to vector<8x16x32xf32>
    %57 = tpu.concatenate %53, %54, %55, %56 in 0 : vector<8x16x32xf32>, vector<8x16x32xf32>, vector<8x16x32xf32>, vector<8x16x32xf32> -> vector<32x16x32xf32>
    %cst_19 = arith.constant dense<0.000000e+00> : vector<32x16x16xf32>
    %58 = tpu.matmul %43, %50, %cst_19 {dimension_numbers = #tpu.dot_dimension_numbers<[2], [2], [1], [1], [0, 0, 0, 1, 1, 1], [0], [0]>} : vector<32x16x32xf32>, vector<32x16x32xf32>, vector<32x16x16xf32> -> vector<32x16x16xf32>
    %cst_20 = arith.constant dense<0xFF800000> : vector<32x16xf32>
    %59 = vector.multi_reduction <maximumf>, %58, %cst_20 [2] : vector<32x16x16xf32> to vector<32x16xf32>
    %60 = vector.shape_cast %59 : vector<32x16xf32> to vector<32x16x1xf32>
    %61 = vector.broadcast %60 : vector<32x16x1xf32> to vector<32x16x16xf32>
    %62 = arith.subf %58, %61 : vector<32x16x16xf32>
    %63 = math.exp %62 : vector<32x16x16xf32>
    %cst_21 = arith.constant dense<0.000000e+00> : vector<32x16xf32>
    %64 = vector.multi_reduction <add>, %63, %cst_21 [2] : vector<32x16x16xf32> to vector<32x16xf32>
    %65 = vector.shape_cast %64 : vector<32x16xf32> to vector<32x16x1xf32>
    %66 = vector.broadcast %65 : vector<32x16x1xf32> to vector<32x16x16xf32>
    %67 = arith.divf %63, %66 : vector<32x16x16xf32>
    %cst_22 = arith.constant dense<0.000000e+00> : vector<32x16x32xf32>
    %68 = tpu.matmul %67, %57, %cst_22 {dimension_numbers = #tpu.dot_dimension_numbers<[2], [1], [1], [2], [0, 0, 0, 1, 1, 2], [0], [0]>} : vector<32x16x16xf32>, vector<32x16x32xf32>, vector<32x16x32xf32> -> vector<32x16x32xf32>
    %69 = vector.extract_strided_slice %68 {offsets = [0, 0, 0], sizes = [8, 16, 32], strides = [1, 1, 1]} : vector<32x16x32xf32> to vector<8x16x32xf32>
    %70 = vector.extract_strided_slice %68 {offsets = [8, 0, 0], sizes = [8, 16, 32], strides = [1, 1, 1]} : vector<32x16x32xf32> to vector<8x16x32xf32>
    %71 = vector.extract_strided_slice %68 {offsets = [16, 0, 0], sizes = [8, 16, 32], strides = [1, 1, 1]} : vector<32x16x32xf32> to vector<8x16x32xf32>
    %72 = vector.extract_strided_slice %68 {offsets = [24, 0, 0], sizes = [8, 16, 32], strides = [1, 1, 1]} : vector<32x16x32xf32> to vector<8x16x32xf32>
    %73 = tpu.concatenate %69, %70, %71, %72 in 2 : vector<8x16x32xf32>, vector<8x16x32xf32>, vector<8x16x32xf32>, vector<8x16x32xf32> -> vector<8x16x128xf32>
    %74 = vector.shape_cast %73 : vector<8x16x128xf32> to vector<128x128xf32>
    %c0_23 = arith.constant 0 : index
    %c0_24 = arith.constant 0 : index
    %c0_25 = arith.constant 0 : index
    %75 = vector.load %arg8[%c0_23, %c0_24, %c0_25] : memref<1x128x128xf32, #tpu.memory_space<vmem>>, vector<1x128x128xf32>
    %76 = vector.shape_cast %75 : vector<1x128x128xf32> to vector<128x128xf32>
    %cst_26 = arith.constant dense<0.000000e+00> : vector<128x128xf32>
    %77 = tpu.matmul %74, %76, %cst_26 {dimension_numbers = #tpu.dot_dimension_numbers<[1], [0], [0], [1], [0, 0, 1, 1], [], []>} : vector<128x128xf32>, vector<128x128xf32>, vector<128x128xf32> -> vector<128x128xf32>
    %78 = arith.addf %5, %77 : vector<128x128xf32>
    %c0_27 = arith.constant 0 : index
    %c0_28 = arith.constant 0 : index
    %c0_29 = arith.constant 0 : index
    %79 = vector.load %arg9[%c0_27, %c0_28, %c0_29] : memref<1x1x128xf32, #tpu.memory_space<vmem>>, vector<1x1x128xf32>
    %80 = vector.shape_cast %79 : vector<1x1x128xf32> to vector<1x128xf32>
    %81 = vector.broadcast %80 : vector<1x128xf32> to vector<128x128xf32>
    %82 = arith.addf %78, %81 : vector<128x128xf32>
    %cst_30 = arith.constant dense<0.000000e+00> : vector<128xf32>
    %83 = vector.multi_reduction <add>, %82, %cst_30 [1] : vector<128x128xf32> to vector<128xf32>
    %84 = vector.shape_cast %83 : vector<128xf32> to vector<128x1xf32>
    %cst_31 = arith.constant 1.280000e+02 : f32
    %85 = vector.broadcast %cst_31 : f32 to vector<128x1xf32>
    %86 = arith.divf %84, %85 : vector<128x1xf32>
    %87 = vector.broadcast %86 : vector<128x1xf32> to vector<128x128xf32>
    %88 = arith.subf %82, %87 : vector<128x128xf32>
    %89 = arith.mulf %88, %88 : vector<128x128xf32>
    %cst_32 = arith.constant dense<0.000000e+00> : vector<128xf32>
    %90 = vector.multi_reduction <add>, %89, %cst_32 [1] : vector<128x128xf32> to vector<128xf32>
    %91 = vector.shape_cast %90 : vector<128xf32> to vector<128x1xf32>
    %cst_33 = arith.constant 1.280000e+02 : f32
    %92 = vector.broadcast %cst_33 : f32 to vector<128x1xf32>
    %93 = arith.divf %91, %92 : vector<128x1xf32>
    %c0_34 = arith.constant 0 : index
    %c0_35 = arith.constant 0 : index
    %c0_36 = arith.constant 0 : index
    %94 = vector.load %arg10[%c0_34, %c0_35, %c0_36] : memref<1x1x128xf32, #tpu.memory_space<vmem>>, vector<1x1x128xf32>
    %95 = vector.shape_cast %94 : vector<1x1x128xf32> to vector<1x128xf32>
    %cst_37 = arith.constant 9.99999996E-13 : f32
    %96 = vector.broadcast %cst_37 : f32 to vector<128x1xf32>
    %97 = arith.addf %93, %96 : vector<128x1xf32>
    %98 = math.rsqrt %97 : vector<128x1xf32>
    %99 = vector.broadcast %98 : vector<128x1xf32> to vector<128x128xf32>
    %100 = arith.mulf %88, %99 : vector<128x128xf32>
    %101 = vector.broadcast %95 : vector<1x128xf32> to vector<128x128xf32>
    %102 = arith.mulf %101, %100 : vector<128x128xf32>
    %c0_38 = arith.constant 0 : index
    %c0_39 = arith.constant 0 : index
    %c0_40 = arith.constant 0 : index
    %103 = vector.load %arg11[%c0_38, %c0_39, %c0_40] : memref<1x1x128xf32, #tpu.memory_space<vmem>>, vector<1x1x128xf32>
    %104 = vector.shape_cast %103 : vector<1x1x128xf32> to vector<1x128xf32>
    %105 = vector.broadcast %104 : vector<1x128xf32> to vector<128x128xf32>
    %106 = arith.addf %102, %105 : vector<128x128xf32>
    %c0_41 = arith.constant 0 : index
    %c0_42 = arith.constant 0 : index
    %c0_43 = arith.constant 0 : index
    %107 = vector.load %arg12[%c0_41, %c0_42, %c0_43] : memref<1x128x512xf32, #tpu.memory_space<vmem>>, vector<1x128x512xf32>
    %108 = vector.shape_cast %107 : vector<1x128x512xf32> to vector<128x512xf32>
    %cst_44 = arith.constant dense<0.000000e+00> : vector<128x512xf32>
    %109 = tpu.matmul %106, %108, %cst_44 {dimension_numbers = #tpu.dot_dimension_numbers<[1], [0], [0], [1], [0, 0, 1, 1], [], []>} : vector<128x128xf32>, vector<128x512xf32>, vector<128x512xf32> -> vector<128x512xf32>
    %c0_45 = arith.constant 0 : index
    %c0_46 = arith.constant 0 : index
    %c0_47 = arith.constant 0 : index
    %110 = vector.load %arg13[%c0_45, %c0_46, %c0_47] : memref<1x1x512xf32, #tpu.memory_space<vmem>>, vector<1x1x512xf32>
    %111 = vector.shape_cast %110 : vector<1x1x512xf32> to vector<1x512xf32>
    %112 = vector.broadcast %111 : vector<1x512xf32> to vector<128x512xf32>
    %113 = arith.addf %109, %112 : vector<128x512xf32>
    %cst_48 = arith.constant 1.702000e+00 : f32
    %114 = vector.broadcast %cst_48 : f32 to vector<128x512xf32>
    %115 = arith.mulf %114, %113 : vector<128x512xf32>
    %116 = arith.negf %115 : vector<128x512xf32>
    %117 = math.exp %116 : vector<128x512xf32>
    %cst_49 = arith.constant 1.000000e+00 : f32
    %118 = vector.broadcast %cst_49 : f32 to vector<128x512xf32>
    %119 = arith.addf %118, %117 : vector<128x512xf32>
    %120 = arith.divf %118, %119 : vector<128x512xf32>
    %121 = arith.mulf %113, %120 : vector<128x512xf32>
    %c0_50 = arith.constant 0 : index
    %c0_51 = arith.constant 0 : index
    %c0_52 = arith.constant 0 : index
    %122 = vector.load %arg14[%c0_50, %c0_51, %c0_52] : memref<1x512x128xf32, #tpu.memory_space<vmem>>, vector<1x512x128xf32>
    %123 = vector.shape_cast %122 : vector<1x512x128xf32> to vector<512x128xf32>
    %cst_53 = arith.constant dense<0.000000e+00> : vector<128x128xf32>
    %124 = tpu.matmul %121, %123, %cst_53 {dimension_numbers = #tpu.dot_dimension_numbers<[1], [0], [0], [1], [0, 0, 1, 1], [], []>} : vector<128x512xf32>, vector<512x128xf32>, vector<128x128xf32> -> vector<128x128xf32>
    %125 = arith.addf %82, %124 : vector<128x128xf32>
    %c0_54 = arith.constant 0 : index
    %c0_55 = arith.constant 0 : index
    %c0_56 = arith.constant 0 : index
    %126 = vector.load %arg15[%c0_54, %c0_55, %c0_56] : memref<1x1x128xf32, #tpu.memory_space<vmem>>, vector<1x1x128xf32>
    %127 = vector.shape_cast %126 : vector<1x1x128xf32> to vector<1x128xf32>
    %128 = vector.broadcast %127 : vector<1x128xf32> to vector<128x128xf32>
    %129 = arith.addf %125, %128 : vector<128x128xf32>
    %130 = arith.index_cast %arg2 : i32 to index
    %c0_57 = arith.constant 0 : index
    %c0_58 = arith.constant 0 : index
    %131 = vector.load %arg17[%130, %c0_57, %c0_58] : memref<2x128x128xf32, #tpu.memory_space<vmem>>, vector<1x128x128xf32>
    %132 = vector.shape_cast %131 : vector<1x128x128xf32> to vector<128x128xf32>
    %133 = vector.shape_cast %129 : vector<128x128xf32> to vector<1x128x128xf32>
    tpu.vector_store %arg17[%130, %c0_57, %c0_58], %133 {strides = array<i32>} : memref<2x128x128xf32, #tpu.memory_space<vmem>>, vector<1x128x128xf32>,
    %c1_i32 = arith.constant 1 : i32
    %134 = arith.cmpi eq, %arg1, %c1_i32 : i32
    %135 = arith.extui %134 : i1 to i32
    %c0_i32_59 = arith.constant 0 : i32
    %136 = arith.cmpi ne, %135, %c0_i32_59 : i32
    scf.if %136 {
      %137 = vector.shape_cast %129 : vector<128x128xf32> to vector<8x16x128xf32>
      %138 = tpu.transpose %137, [1, 0, 2] : vector<8x16x128xf32> -> vector<16x8x128xf32>
      %c0_60 = arith.constant 0 : index
      %c0_61 = arith.constant 0 : index
      %c0_62 = arith.constant 0 : index
      %139 = vector.load %arg16[%c0_60, %c0_61, %c0_62] : memref<16x8x128xf32, #tpu.memory_space<vmem>>, vector<16x8x128xf32>
      tpu.vector_store %arg16[%c0_60, %c0_61, %c0_62], %138 {strides = array<i32>} : memref<16x8x128xf32, #tpu.memory_space<vmem>>, vector<16x8x128xf32>,
    } else {
    }
    return
  }
  func.func @transform_0(%arg0: i32, %arg1: i32, %arg2: i32) -> (i32, i32, i32) {
    %c0_i32 = arith.constant 0 : i32
    %0 = arith.cmpi eq, %arg1, %c0_i32 : i32
    %c2_i32 = arith.constant 2 : i32
    %1 = arith.muli %arg0, %c2_i32 : i32
    %2 = arith.addi %1, %arg2 : i32
    %c2_i32_0 = arith.constant 2 : i32
    %3 = arith.muli %arg0, %c2_i32_0 : i32
    %4 = arith.select %0, %2, %3 : i32
    %c0_i32_1 = arith.constant 0 : i32
    %c0_i32_2 = arith.constant 0 : i32
    %c0_i32_3 = arith.constant 0 : i32
    return %c0_i32_1, %4, %c0_i32_2 : i32, i32, i32
  }
  func.func @transform_1(%arg0: i32, %arg1: i32, %arg2: i32) -> (i32, i32, i32) {
    %c0_i32 = arith.constant 0 : i32
    %c0_i32_0 = arith.constant 0 : i32
    %c0_i32_1 = arith.constant 0 : i32
    return %arg1, %c0_i32, %c0_i32_0 : i32, i32, i32
  }
  func.func @transform_2(%arg0: i32, %arg1: i32, %arg2: i32) -> (i32, i32, i32) {
    %c0_i32 = arith.constant 0 : i32
    %c0_i32_0 = arith.constant 0 : i32
    %c0_i32_1 = arith.constant 0 : i32
    return %arg1, %c0_i32, %c0_i32_0 : i32, i32, i32
  }
  func.func @transform_3(%arg0: i32, %arg1: i32, %arg2: i32) -> (i32, i32, i32) {
    %c0_i32 = arith.constant 0 : i32
    %c0_i32_0 = arith.constant 0 : i32
    %c0_i32_1 = arith.constant 0 : i32
    return %arg1, %c0_i32, %c0_i32_0 : i32, i32, i32
  }
  func.func @transform_4(%arg0: i32, %arg1: i32, %arg2: i32) -> (i32, i32, i32) {
    %c0_i32 = arith.constant 0 : i32
    %c0_i32_0 = arith.constant 0 : i32
    %c0_i32_1 = arith.constant 0 : i32
    return %arg1, %c0_i32, %c0_i32_0 : i32, i32, i32
  }
  func.func @transform_5(%arg0: i32, %arg1: i32, %arg2: i32) -> (i32, i32, i32) {
    %c0_i32 = arith.constant 0 : i32
    %c0_i32_0 = arith.constant 0 : i32
    %c0_i32_1 = arith.constant 0 : i32
    return %arg1, %c0_i32, %c0_i32_0 : i32, i32, i32
  }
  func.func @transform_6(%arg0: i32, %arg1: i32, %arg2: i32) -> (i32, i32, i32) {
    %c0_i32 = arith.constant 0 : i32
    %c0_i32_0 = arith.constant 0 : i32
    %c0_i32_1 = arith.constant 0 : i32
    return %arg1, %c0_i32, %c0_i32_0 : i32, i32, i32
  }
  func.func @transform_7(%arg0: i32, %arg1: i32, %arg2: i32) -> (i32, i32, i32) {
    %c0_i32 = arith.constant 0 : i32
    %c0_i32_0 = arith.constant 0 : i32
    %c0_i32_1 = arith.constant 0 : i32
    return %arg1, %c0_i32, %c0_i32_0 : i32, i32, i32
  }
  func.func @transform_8(%arg0: i32, %arg1: i32, %arg2: i32) -> (i32, i32, i32) {
    %c0_i32 = arith.constant 0 : i32
    %c0_i32_0 = arith.constant 0 : i32
    %c0_i32_1 = arith.constant 0 : i32
    return %arg1, %c0_i32, %c0_i32_0 : i32, i32, i32
  }
  func.func @transform_9(%arg0: i32, %arg1: i32, %arg2: i32) -> (i32, i32, i32) {
    %c0_i32 = arith.constant 0 : i32
    %c0_i32_0 = arith.constant 0 : i32
    %c0_i32_1 = arith.constant 0 : i32
    return %arg1, %c0_i32, %c0_i32_0 : i32, i32, i32
  }
  func.func @transform_10(%arg0: i32, %arg1: i32, %arg2: i32) -> (i32, i32, i32) {
    %c0_i32 = arith.constant 0 : i32
    %c0_i32_0 = arith.constant 0 : i32
    %c0_i32_1 = arith.constant 0 : i32
    return %arg1, %c0_i32, %c0_i32_0 : i32, i32, i32
  }
  func.func @transform_11(%arg0: i32, %arg1: i32, %arg2: i32) -> (i32, i32, i32) {
    %c0_i32 = arith.constant 0 : i32
    %c0_i32_0 = arith.constant 0 : i32
    %c0_i32_1 = arith.constant 0 : i32
    return %arg1, %c0_i32, %c0_i32_0 : i32, i32, i32
  }
  func.func @transform_12(%arg0: i32, %arg1: i32, %arg2: i32) -> (i32, i32, i32) {
    %c0_i32 = arith.constant 0 : i32
    %c0_i32_0 = arith.constant 0 : i32
    %c0_i32_1 = arith.constant 0 : i32
    return %arg1, %c0_i32, %c0_i32_0 : i32, i32, i32
  }
  func.func @transform_13(%arg0: i32, %arg1: i32, %arg2: i32) -> (i32, i32, i32) {
    %c1_i32 = arith.constant 1 : i32
    %0 = arith.cmpi eq, %arg1, %c1_i32 : i32
    %c2_i32 = arith.constant 2 : i32
    %1 = arith.muli %arg0, %c2_i32 : i32
    %2 = arith.addi %1, %arg2 : i32
    %c2_i32_0 = arith.constant 2 : i32
    %3 = arith.muli %arg0, %c2_i32_0 : i32
    %4 = arith.select %0, %2, %3 : i32
    %c0_i32 = arith.constant 0 : i32
    %c0_i32_1 = arith.constant 0 : i32
    %c0_i32_2 = arith.constant 0 : i32
    return %c0_i32, %4, %c0_i32_1 : i32, i32, i32
  }
}

</mosaic_0001>

<llo_original>
// kernel: tpu_custom_call.1
$region0: #{tpu_custom_call.1}
  #allocation0 [shape = 'u32[]', space=smem, size = 0x4, offset = 0x4, fixed_abs, tag = 'smem constant byte address 0x4 - core index']
  #allocation1 [shape = 'u32[72,128]{1,0:T(1,128)}', space=vmem, size = 0x9000, scoped, tag = 'internal scratch']
  #allocation2 [shape = 'f32[2,128,128]{2,1,0:T(8,128)}', space=vmem, size = 0x20000, scoped, tag = 'scratch operand']
  %s0 = inlined_call_operand.hbm [shape: f32[16,16,128], index: 0, kind: input, shape index: {}]
  %s1 = inlined_call_operand.hbm [shape: f32[2,1,128], index: 1, kind: input, shape index: {}]
  %s2 = inlined_call_operand.hbm [shape: f32[2,1,128], index: 2, kind: input, shape index: {}]
  %s3 = inlined_call_operand.hbm [shape: f32[2,128,384], index: 3, kind: input, shape index: {}]
  %s4 = inlined_call_operand.hbm [shape: f32[2,1,384], index: 4, kind: input, shape index: {}]
  %s5 = inlined_call_operand.hbm [shape: f32[2,128,128], index: 5, kind: input, shape index: {}]
  %s6 = inlined_call_operand.hbm [shape: f32[2,1,128], index: 6, kind: input, shape index: {}]
  %s7 = inlined_call_operand.hbm [shape: f32[2,1,128], index: 7, kind: input, shape index: {}]
  %s8 = inlined_call_operand.hbm [shape: f32[2,1,128], index: 8, kind: input, shape index: {}]
  %s9 = inlined_call_operand.hbm [shape: f32[2,128,512], index: 9, kind: input, shape index: {}]
  %s10 = inlined_call_operand.vmem [shape: f32[2,1,512], index: 10, kind: input, shape index: {}]
  %s11 = inlined_call_operand.hbm [shape: f32[2,512,128], index: 11, kind: input, shape index: {}]
  %s12 = inlined_call_operand.vmem [shape: f32[2,1,128], index: 12, kind: input, shape index: {}]
  %s13 = inlined_call_operand.hbm [shape: f32[16,16,128], index: 13, kind: output, shape index: {}]
  %s14 = sld [smem:[#allocation0]]
  $region137: #{tpu_custom_call.1} parent=0
    _
  %s16 = ssub.s32 1, %s14
  %s17 = scalar_select 0, %s16, %s14
  $region1: #{tpu_custom_call.1} parent=0
    #allocation3 [shape = 'u8[131072]{0}', space=vmem, size = 0x20000, scoped, tag = 'input window, operand 0']
    #allocation4 [shape = 's32[2]{0}', space=sflag, size = 0x8, scoped, tag = 'scoped memory for tpu_custom_call.1']
    #allocation5 [shape = 's32[2]{0}', space=sflag, size = 0x8, scoped, tag = 'scoped memory for tpu_custom_call.1']
    #allocation6 [shape = 'u8[1024]{0}', space=vmem, size = 0x400, scoped, tag = 'input window, operand 1']
    #allocation7 [shape = 's32[2]{0}', space=sflag, size = 0x8, scoped, tag = 'scoped memory for tpu_custom_call.1']
    #allocation8 [shape = 'u8[1024]{0}', space=vmem, size = 0x400, scoped, tag = 'input window, operand 2']
    #allocation9 [shape = 'u8[393216]{0}', space=vmem, size = 0x60000, scoped, tag = 'input window, operand 3']
    #allocation10 [shape = 's32[2]{0}', space=sflag, size = 0x8, scoped, tag = 'scoped memory for tpu_custom_call.1']
    #allocation11 [shape = 'u8[3072]{0}', space=vmem, size = 0xc00, scoped, tag = 'input window, operand 4']
    #allocation12 [shape = 'u8[131072]{0}', space=vmem, size = 0x20000, scoped, tag = 'input window, operand 5']
    #allocation13 [shape = 's32[2]{0}', space=sflag, size = 0x8, scoped, tag = 'scoped memory for tpu_custom_call.1']
    #allocation14 [shape = 'u8[1024]{0}', space=vmem, size = 0x400, scoped, tag = 'input window, operand 6']
    #allocation15 [shape = 'u8[1024]{0}', space=vmem, size = 0x400, scoped, tag = 'input window, operand 7']
    #allocation16 [shape = 's32[2]{0}', space=sflag, size = 0x8, scoped, tag = 'scoped memory for tpu_custom_call.1']
    #allocation17 [shape = 'u8[1024]{0}', space=vmem, size = 0x400, scoped, tag = 'input window, operand 8']
    #allocation18 [shape = 'u8[524288]{0}', space=vmem, size = 0x80000, scoped, tag = 'input window, operand 9']
    #allocation19 [shape = 's32[2]{0}', space=sflag, size = 0x8, scoped, tag = 'scoped memory for tpu_custom_call.1']
    #allocation20 [shape = 'u8[524288]{0}', space=vmem, size = 0x80000, scoped, tag = 'input window, operand 11']
    #allocation21 [shape = 'u8[131072]{0}', space=vmem, size = 0x20000, scoped, tag = 'output window, operand 0']
    %18 = vsyncpa [#allocation4], 0
    %s19 = scalar_lea.sflag [#allocation4], 1
    %20 = vsyncpa %s19, 0
    %21 = vsyncpa [#allocation7], 0
    %s22 = scalar_lea.sflag [#allocation7], 1
    %23 = vsyncpa %s22, 0
    %24 = vsyncpa [#allocation10], 0
    %s25 = scalar_lea.sflag [#allocation10], 1
    %26 = vsyncpa %s25, 0
    %27 = vsyncpa [#allocation13], 0
    %s28 = scalar_lea.sflag [#allocation13], 1
    %29 = vsyncpa %s28, 0
    %30 = vsyncpa [#allocation16], 0
    %s31 = scalar_lea.sflag [#allocation16], 1
    %32 = vsyncpa %s31, 0
    %33 = vsyncpa [#allocation19], 0
    %s34 = scalar_lea.sflag [#allocation19], 1
    %35 = vsyncpa %s34, 0
    %36 = vsyncpa [#allocation5], 0
    %s37 = scalar_lea.sflag [#allocation5], 1
    %38 = vsyncpa %s37, 0
    loop: start=0, step=1, limit=6
    $region2: #{tpu_custom_call.1} parent=1 // loop_pre_header
      _
    $region3: #{tpu_custom_call.1} parent=1 // loop_header
      %s40 = sphi 0, %s44
      %p41 = scmp.ge.s32.totalorder %s40, 6
      %s47 = sphi 0, %s66
      %s48 = sphi 0, %s62
      %s49 = sphi 0, %s58
      %s50 = sphi 0, %s47
      %s51 = sphi 0, %s48
      %s52 = sphi 0, %s49
      %s53 = sphi 0, %s50
      %s54 = sphi 0, %s51
      %s55 = sphi 0, %s52
      %s77 = sphi 0, %s79
      %s80 = sphi 0, %s77
      %s81 = sphi 0, %s80
      %s97 = sphi 0, %s81
      %s103 = sphi 0, %s105
      %s106 = sphi 0, %s103
      %s107 = sphi 0, %s106
      %s123 = sphi 0, %s107
      %s129 = sphi 0, %s131
      %s132 = sphi 0, %s129
      %s133 = sphi 0, %s132
      %s149 = sphi 0, %s133
      %s155 = sphi 0, %s157
      %s158 = sphi 0, %s155
      %s159 = sphi 0, %s158
      %s175 = sphi 0, %s159
      %s181 = sphi 0, %s183
      %s184 = sphi 0, %s181
      %s185 = sphi 0, %s184
      %s201 = sphi 0, %s185
      %s207 = sphi 0, %s209
      %s210 = sphi 0, %s207
      %s211 = sphi 0, %s210
      %s227 = sphi 0, %s211
      %s233 = sphi 0, %s235
      %s236 = sphi 0, %s233
      %s237 = sphi 0, %s236
      %s253 = sphi 0, %s237
      %s259 = sphi 0, %s261
      %s262 = sphi 0, %s259
      %s263 = sphi 0, %s262
      %s279 = sphi 0, %s263
      %s285 = sphi 0, %s287
      %s288 = sphi 0, %s285
      %s289 = sphi 0, %s288
      %s305 = sphi 0, %s289
      %s311 = sphi 0, %s313
      %s314 = sphi 0, %s311
      %s315 = sphi 0, %s314
      %s331 = sphi 0, %s315
      %s337 = sphi 0, %s339
      %s340 = sphi 0, %s337
      %s341 = sphi 0, %s340
      %s357 = sphi 0, %s341
      %s363 = sphi 0, %s365
      %s366 = sphi 0, %s363
      %s367 = sphi 0, %s366
      %s383 = sphi 0, %s367
      %s389 = sphi 0, %s391
      %s392 = sphi 0, %s389
      %s393 = sphi 0, %s392
      %s409 = sphi 0, %s393
      %s423 = sphi 0, %s425
      %s426 = sphi 0, %s423
      %s427 = sphi 0, %s426
      %s443 = sphi 0, %s427
    $region4: #{tpu_custom_call.1} parent=1 // loop_header_branch
      %43 = sbr.rel (%p41) target = $region8
    $region5: #{tpu_custom_call.1} parent=1 // loop_body
      %s45 = ssub.s32 %s40, 1
      %s46 = ssub.s32 %s40, 2
      %s56 = sadd.s32 1, %s49
      %p57 = scmp.ge.s32.totalorder %s56, 2
      %s58 = scalar_select %p57, 0, %s56
      %s59 = sadd.s32 1, %s48
      %s60 = scalar_select %p57, %s59, %s48
      %p61 = scmp.ge.s32.totalorder %s60, 2
      %s62 = scalar_select %p61, 0, %s60
      %s63 = sadd.s32 1, %s47
      %s64 = scalar_select %p61, %s63, %s47
      %p65 = scmp.ge.s32.totalorder %s64, 1
      %s66 = scalar_select %p65, 0, %s64
      %p67 = scmp.eq.s32.totalorder %s48, 0
      %s68 = smul.u32 %s47, 2
      %s69 = sadd.s32 %s68, %s49
      %s70 = scalar_select %p67, %s69, %s68
      %p71 = scmp.eq.s32.totalorder %s62, 0
      %s72 = smul.u32 %s66, 2
      %s73 = sadd.s32 %s72, %s58
      %s74 = scalar_select %p71, %s73, %s72
      %s75 = ssub.s32 %s70, %s74
      %p76 = scmp.eq.s32.totalorder %s75, 0
      %s78 = sadd.s32 %s77, 1
      %s79 = scalar_select %p76, %s77, %s78
      %p82 = pneg %p76
      %p83 = scmp.eq.s32.totalorder %s40, 3
      %p84 = por %p82, %p83
      %p85 = scmp.ne.s32.totalorder %s77, %s80
      %p86 = scmp.eq.s32.totalorder %s40, 0
      %p87 = por %p85, %p86
      %p88 = scmp.ne.s32.totalorder %s77, %s80
      %p89 = scmp.eq.s32.totalorder %s45, 3
      %p90 = por %p88, %p89
      %p91 = scmp.ne.s32.totalorder %s80, %s81
      %p92 = scmp.eq.s32.totalorder %s45, 0
      %p93 = por %p91, %p92
      %p94 = scmp.ne.s32.totalorder %s80, %s81
      %p95 = scmp.eq.s32.totalorder %s46, 3
      %p96 = por %p94, %p95
      %p98 = scmp.ne.s32.totalorder %s81, %s97
      %p99 = scmp.eq.s32.totalorder %s46, 0
      %p100 = por %p98, %p99
      %s101 = ssub.s32 %s48, %s62
      %p102 = scmp.eq.s32.totalorder %s101, 0
      %s104 = sadd.s32 %s103, 1
      %s105 = scalar_select %p102, %s103, %s104
      %p108 = pneg %p102
      %p109 = scmp.eq.s32.totalorder %s40, 3
      %p110 = por %p108, %p109
      %p111 = scmp.ne.s32.totalorder %s103, %s106
      %p112 = scmp.eq.s32.totalorder %s40, 0
      %p113 = por %p111, %p112
      %p114 = scmp.ne.s32.totalorder %s103, %s106
      %p115 = scmp.eq.s32.totalorder %s45, 3
      %p116 = por %p114, %p115
      %p117 = scmp.ne.s32.totalorder %s106, %s107
      %p118 = scmp.eq.s32.totalorder %s45, 0
      %p119 = por %p117, %p118
      %p120 = scmp.ne.s32.totalorder %s106, %s107
      %p121 = scmp.eq.s32.totalorder %s46, 3
      %p122 = por %p120, %p121
      %p124 = scmp.ne.s32.totalorder %s107, %s123
      %p125 = scmp.eq.s32.totalorder %s46, 0
      %p126 = por %p124, %p125
      %s127 = ssub.s32 %s48, %s62
      %p128 = scmp.eq.s32.totalorder %s127, 0
      %s130 = sadd.s32 %s129, 1
      %s131 = scalar_select %p128, %s129, %s130
      %p134 = pneg %p128
      %p135 = scmp.eq.s32.totalorder %s40, 3
      %p136 = por %p134, %p135
      %p137 = scmp.ne.s32.totalorder %s129, %s132
      %p138 = scmp.eq.s32.totalorder %s40, 0
      %p139 = por %p137, %p138
      %p140 = scmp.ne.s32.totalorder %s129, %s132
      %p141 = scmp.eq.s32.totalorder %s45, 3
      %p142 = por %p140, %p141
      %p143 = scmp.ne.s32.totalorder %s132, %s133
      %p144 = scmp.eq.s32.totalorder %s45, 0
      %p145 = por %p143, %p144
      %p146 = scmp.ne.s32.totalorder %s132, %s133
      %p147 = scmp.eq.s32.totalorder %s46, 3
      %p148 = por %p146, %p147
      %p150 = scmp.ne.s32.totalorder %s133, %s149
      %p151 = scmp.eq.s32.totalorder %s46, 0
      %p152 = por %p150, %p151
      %s153 = ssub.s32 %s48, %s62
      %p154 = scmp.eq.s32.totalorder %s153, 0
      %s156 = sadd.s32 %s155, 1
      %s157 = scalar_select %p154, %s155, %s156
      %p160 = pneg %p154
      %p161 = scmp.eq.s32.totalorder %s40, 3
      %p162 = por %p160, %p161
      %p163 = scmp.ne.s32.totalorder %s155, %s158
      %p164 = scmp.eq.s32.totalorder %s40, 0
      %p165 = por %p163, %p164
      %p166 = scmp.ne.s32.totalorder %s155, %s158
      %p167 = scmp.eq.s32.totalorder %s45, 3
      %p168 = por %p166, %p167
      %p169 = scmp.ne.s32.totalorder %s158, %s159
      %p170 = scmp.eq.s32.totalorder %s45, 0
      %p171 = por %p169, %p170
      %p172 = scmp.ne.s32.totalorder %s158, %s159
      %p173 = scmp.eq.s32.totalorder %s46, 3
      %p174 = por %p172, %p173
      %p176 = scmp.ne.s32.totalorder %s159, %s175
      %p177 = scmp.eq.s32.totalorder %s46, 0
      %p178 = por %p176, %p177
      %s179 = ssub.s32 %s48, %s62
      %p180 = scmp.eq.s32.totalorder %s179, 0
      %s182 = sadd.s32 %s181, 1
      %s183 = scalar_select %p180, %s181, %s182
      %p186 = pneg %p180
      %p187 = scmp.eq.s32.totalorder %s40, 3
      %p188 = por %p186, %p187
      %p189 = scmp.ne.s32.totalorder %s181, %s184
      %p190 = scmp.eq.s32.totalorder %s40, 0
      %p191 = por %p189, %p190
      %p192 = scmp.ne.s32.totalorder %s181, %s184
      %p193 = scmp.eq.s32.totalorder %s45, 3
      %p194 = por %p192, %p193
      %p195 = scmp.ne.s32.totalorder %s184, %s185
      %p196 = scmp.eq.s32.totalorder %s45, 0
      %p197 = por %p195, %p196
      %p198 = scmp.ne.s32.totalorder %s184, %s185
      %p199 = scmp.eq.s32.totalorder %s46, 3
      %p200 = por %p198, %p199
      %p202 = scmp.ne.s32.totalorder %s185, %s201
      %p203 = scmp.eq.s32.totalorder %s46, 0
      %p204 = por %p202, %p203
      %s205 = ssub.s32 %s48, %s62
      %p206 = scmp.eq.s32.totalorder %s205, 0
      %s208 = sadd.s32 %s207, 1
      %s209 = scalar_select %p206, %s207, %s208
      %p212 = pneg %p206
      %p213 = scmp.eq.s32.totalorder %s40, 3
      %p214 = por %p212, %p213
      %p215 = scmp.ne.s32.totalorder %s207, %s210
      %p216 = scmp.eq.s32.totalorder %s40, 0
      %p217 = por %p215, %p216
      %p218 = scmp.ne.s32.totalorder %s207, %s210
      %p219 = scmp.eq.s32.totalorder %s45, 3
      %p220 = por %p218, %p219
      %p221 = scmp.ne.s32.totalorder %s210, %s211
      %p222 = scmp.eq.s32.totalorder %s45, 0
      %p223 = por %p221, %p222
      %p224 = scmp.ne.s32.totalorder %s210, %s211
      %p225 = scmp.eq.s32.totalorder %s46, 3
      %p226 = por %p224, %p225
      %p228 = scmp.ne.s32.totalorder %s211, %s227
      %p229 = scmp.eq.s32.totalorder %s46, 0
      %p230 = por %p228, %p229
      %s231 = ssub.s32 %s48, %s62
      %p232 = scmp.eq.s32.totalorder %s231, 0
      %s234 = sadd.s32 %s233, 1
      %s235 = scalar_select %p232, %s233, %s234
      %p238 = pneg %p232
      %p239 = scmp.eq.s32.totalorder %s40, 3
      %p240 = por %p238, %p239
      %p241 = scmp.ne.s32.totalorder %s233, %s236
      %p242 = scmp.eq.s32.totalorder %s40, 0
      %p243 = por %p241, %p242
      %p244 = scmp.ne.s32.totalorder %s233, %s236
      %p245 = scmp.eq.s32.totalorder %s45, 3
      %p246 = por %p244, %p245
      %p247 = scmp.ne.s32.totalorder %s236, %s237
      %p248 = scmp.eq.s32.totalorder %s45, 0
      %p249 = por %p247, %p248
      %p250 = scmp.ne.s32.totalorder %s236, %s237
      %p251 = scmp.eq.s32.totalorder %s46, 3
      %p252 = por %p250, %p251
      %p254 = scmp.ne.s32.totalorder %s237, %s253
      %p255 = scmp.eq.s32.totalorder %s46, 0
      %p256 = por %p254, %p255
      %s257 = ssub.s32 %s48, %s62
      %p258 = scmp.eq.s32.totalorder %s257, 0
      %s260 = sadd.s32 %s259, 1
      %s261 = scalar_select %p258, %s259, %s260
      %p264 = pneg %p258
      %p265 = scmp.eq.s32.totalorder %s40, 3
      %p266 = por %p264, %p265
      %p267 = scmp.ne.s32.totalorder %s259, %s262
      %p268 = scmp.eq.s32.totalorder %s40, 0
      %p269 = por %p267, %p268
      %p270 = scmp.ne.s32.totalorder %s259, %s262
      %p271 = scmp.eq.s32.totalorder %s45, 3
      %p272 = por %p270, %p271
      %p273 = scmp.ne.s32.totalorder %s262, %s263
      %p274 = scmp.eq.s32.totalorder %s45, 0
      %p275 = por %p273, %p274
      %p276 = scmp.ne.s32.totalorder %s262, %s263
      %p277 = scmp.eq.s32.totalorder %s46, 3
      %p278 = por %p276, %p277
      %p280 = scmp.ne.s32.totalorder %s263, %s279
      %p281 = scmp.eq.s32.totalorder %s46, 0
      %p282 = por %p280, %p281
      %s283 = ssub.s32 %s48, %s62
      %p284 = scmp.eq.s32.totalorder %s283, 0
      %s286 = sadd.s32 %s285, 1
      %s287 = scalar_select %p284, %s285, %s286
      %p290 = pneg %p284
      %p291 = scmp.eq.s32.totalorder %s40, 3
      %p292 = por %p290, %p291
      %p293 = scmp.ne.s32.totalorder %s285, %s288
      %p294 = scmp.eq.s32.totalorder %s40, 0
      %p295 = por %p293, %p294
      %p296 = scmp.ne.s32.totalorder %s285, %s288
      %p297 = scmp.eq.s32.totalorder %s45, 3
      %p298 = por %p296, %p297
      %p299 = scmp.ne.s32.totalorder %s288, %s289
      %p300 = scmp.eq.s32.totalorder %s45, 0
      %p301 = por %p299, %p300
      %p302 = scmp.ne.s32.totalorder %s288, %s289
      %p303 = scmp.eq.s32.totalorder %s46, 3
      %p304 = por %p302, %p303
      %p306 = scmp.ne.s32.totalorder %s289, %s305
      %p307 = scmp.eq.s32.totalorder %s46, 0
      %p308 = por %p306, %p307
      %s309 = ssub.s32 %s48, %s62
      %p310 = scmp.eq.s32.totalorder %s309, 0
      %s312 = sadd.s32 %s311, 1
      %s313 = scalar_select %p310, %s311, %s312
      %p316 = pneg %p310
      %p317 = scmp.eq.s32.totalorder %s40, 3
      %p318 = por %p316, %p317
      %p319 = scmp.ne.s32.totalorder %s311, %s314
      %p320 = scmp.eq.s32.totalorder %s40, 0
      %p321 = por %p319, %p320
      %p322 = scmp.ne.s32.totalorder %s311, %s314
      %p323 = scmp.eq.s32.totalorder %s45, 3
      %p324 = por %p322, %p323
      %p325 = scmp.ne.s32.totalorder %s314, %s315
      %p326 = scmp.eq.s32.totalorder %s45, 0
      %p327 = por %p325, %p326
      %p328 = scmp.ne.s32.totalorder %s314, %s315
      %p329 = scmp.eq.s32.totalorder %s46, 3
      %p330 = por %p328, %p329
      %p332 = scmp.ne.s32.totalorder %s315, %s331
      %p333 = scmp.eq.s32.totalorder %s46, 0
      %p334 = por %p332, %p333
      %s335 = ssub.s32 %s48, %s62
      %p336 = scmp.eq.s32.totalorder %s335, 0
      %s338 = sadd.s32 %s337, 1
      %s339 = scalar_select %p336, %s337, %s338
      %p342 = pneg %p336
      %p343 = scmp.eq.s32.totalorder %s40, 3
      %p344 = por %p342, %p343
      %p345 = scmp.ne.s32.totalorder %s337, %s340
      %p346 = scmp.eq.s32.totalorder %s40, 0
      %p347 = por %p345, %p346
      %p348 = scmp.ne.s32.totalorder %s337, %s340
      %p349 = scmp.eq.s32.totalorder %s45, 3
      %p350 = por %p348, %p349
      %p351 = scmp.ne.s32.totalorder %s340, %s341
      %p352 = scmp.eq.s32.totalorder %s45, 0
      %p353 = por %p351, %p352
      %p354 = scmp.ne.s32.totalorder %s340, %s341
      %p355 = scmp.eq.s32.totalorder %s46, 3
      %p356 = por %p354, %p355
      %p358 = scmp.ne.s32.totalorder %s341, %s357
      %p359 = scmp.eq.s32.totalorder %s46, 0
      %p360 = por %p358, %p359
      %s361 = ssub.s32 %s48, %s62
      %p362 = scmp.eq.s32.totalorder %s361, 0
      %s364 = sadd.s32 %s363, 1
      %s365 = scalar_select %p362, %s363, %s364
      %p368 = pneg %p362
      %p369 = scmp.eq.s32.totalorder %s40, 3
      %p370 = por %p368, %p369
      %p371 = scmp.ne.s32.totalorder %s363, %s366
      %p372 = scmp.eq.s32.totalorder %s40, 0
      %p373 = por %p371, %p372
      %p374 = scmp.ne.s32.totalorder %s363, %s366
      %p375 = scmp.eq.s32.totalorder %s45, 3
      %p376 = por %p374, %p375
      %p377 = scmp.ne.s32.totalorder %s366, %s367
      %p378 = scmp.eq.s32.totalorder %s45, 0
      %p379 = por %p377, %p378
      %p380 = scmp.ne.s32.totalorder %s366, %s367
      %p381 = scmp.eq.s32.totalorder %s46, 3
      %p382 = por %p380, %p381
      %p384 = scmp.ne.s32.totalorder %s367, %s383
      %p385 = scmp.eq.s32.totalorder %s46, 0
      %p386 = por %p384, %p385
      %s387 = ssub.s32 %s48, %s62
      %p388 = scmp.eq.s32.totalorder %s387, 0
      %s390 = sadd.s32 %s389, 1
      %s391 = scalar_select %p388, %s389, %s390
      %p394 = pneg %p388
      %p395 = scmp.eq.s32.totalorder %s40, 3
      %p396 = por %p394, %p395
      %p397 = scmp.ne.s32.totalorder %s389, %s392
      %p398 = scmp.eq.s32.totalorder %s40, 0
      %p399 = por %p397, %p398
      %p400 = scmp.ne.s32.totalorder %s389, %s392
      %p401 = scmp.eq.s32.totalorder %s45, 3
      %p402 = por %p400, %p401
      %p403 = scmp.ne.s32.totalorder %s392, %s393
      %p404 = scmp.eq.s32.totalorder %s45, 0
      %p405 = por %p403, %p404
      %p406 = scmp.ne.s32.totalorder %s392, %s393
      %p407 = scmp.eq.s32.totalorder %s46, 3
      %p408 = por %p406, %p407
      %p410 = scmp.ne.s32.totalorder %s393, %s409
      %p411 = scmp.eq.s32.totalorder %s46, 0
      %p412 = por %p410, %p411
      %p413 = scmp.eq.s32.totalorder %s48, 1
      %s414 = smul.u32 %s47, 2
      %s415 = sadd.s32 %s414, %s49
      %s416 = scalar_select %p413, %s415, %s414
      %p417 = scmp.eq.s32.totalorder %s62, 1
      %s418 = smul.u32 %s66, 2
      %s419 = sadd.s32 %s418, %s58
      %s420 = scalar_select %p417, %s419, %s418
      %s421 = ssub.s32 %s416, %s420
      %p422 = scmp.eq.s32.totalorder %s421, 0
      %s424 = sadd.s32 %s423, 1
      %s425 = scalar_select %p422, %s423, %s424
      %p428 = pneg %p422
      %p429 = scmp.eq.s32.totalorder %s40, 3
      %p430 = por %p428, %p429
      %p431 = scmp.ne.s32.totalorder %s423, %s426
      %p432 = scmp.eq.s32.totalorder %s40, 0
      %p433 = por %p431, %p432
      %p434 = scmp.ne.s32.totalorder %s423, %s426
      %p435 = scmp.eq.s32.totalorder %s45, 3
      %p436 = por %p434, %p435
      %p437 = scmp.ne.s32.totalorder %s426, %s427
      %p438 = scmp.eq.s32.totalorder %s45, 0
      %p439 = por %p437, %p438
      %p440 = scmp.ne.s32.totalorder %s426, %s427
      %p441 = scmp.eq.s32.totalorder %s46, 3
      %p442 = por %p440, %p441
      %p444 = scmp.ne.s32.totalorder %s427, %s443
      %p445 = scmp.eq.s32.totalorder %s46, 0
      %p446 = por %p444, %p445
      %p447 = scmp.le.s32.totalorder 1, %s40
      %p448 = scmp.lt.s32.totalorder %s40, 5
      %p449 = pnand %p447, %p448
      %p450 = pneg %p449
      // Predicated region
      $region9: #{tpu_custom_call.1} parent=5 // pred_check
        _
      $region10: #{tpu_custom_call.1} parent=5 // pred_check_branch
        %452 = sbr.rel (%p449) target = $region12
      $region11: #{tpu_custom_call.1} parent=5 // pred_region
        %s453 = ssub.s32 %s40, 1
      $region12: #{tpu_custom_call.1} parent=5 // pred_fallthru
        _
      %p454 = scmp.lt.s32.totalorder %s40, 4
      // Predicated region
      $region13: #{tpu_custom_call.1} parent=5 // pred_check
        %p455 = pneg %p454
      $region14: #{tpu_custom_call.1} parent=5 // pred_check_branch
        %457 = sbr.rel (%p455) target = $region16
      $region15: #{tpu_custom_call.1} parent=5 // pred_region
        // Predicated region
        $region17: #{tpu_custom_call.1} parent=15 // pred_check
          %p458 = pneg %p87
        $region18: #{tpu_custom_call.1} parent=15 // pred_check_branch
          %460 = sbr.rel (%p458) target = $region20
        $region19: #{tpu_custom_call.1} parent=15 // pred_region
          %s461 = sand.u32 %s77, 1
          %s462 = scalar_lea.sflag [#allocation4], %s461
          %s463 = sand.u32 %s77, 1
          %s464 = smul.addr %s463, 128
          %s465 = scalar_lea.vmem [#allocation3], %s464
          %p466 = scmp.eq.s32.totalorder %s48, 0
          %s467 = smul.u32 %s47, 2
          %s468 = sadd.s32 %s467, %s49
          %s469 = scalar_select %p466, %s468, %s467
          %471 = vsyncadd %s462, 0
          %s472 = smul.addr %s469, 8
          %s473 = scalar_lea.hbm %s0, %s472
          %s474 = sshll.u32 %s473, 4
          %s475 = int_to_ptr.hbm [resolvable:$true] %s474
          %s476 = sshll.u32 %s465, 4
          %s477 = int_to_ptr.vmem [resolvable:$true] %s476
          %482 = dma.hbm_to_vmem [thread:$0]  %s475, 2048, %s477, %s462, 256, 128, 8
        $region20: #{tpu_custom_call.1} parent=15 // pred_fallthru
          _
        // Predicated region
        $region21: #{tpu_custom_call.1} parent=15 // pred_check
          %p483 = pneg %p113
        $region22: #{tpu_custom_call.1} parent=15 // pred_check_branch
          %485 = sbr.rel (%p483) target = $region24
        $region23: #{tpu_custom_call.1} parent=15 // pred_region
          %s486 = sand.u32 %s40, 1
          %s487 = scalar_lea.sflag [#allocation7], %s486
          %s488 = sand.u32 %s103, 1
          %s489 = scalar_lea.vmem [#allocation6], %s488
          %491 = vsyncadd %s487, 0
          %s492 = scalar_lea.hbm %s1, %s48
          %s494 = sshll.u32 %s492, 4
          %s495 = int_to_ptr.hbm [resolvable:$true] %s494
          %s496 = sshll.u32 %s489, 4
          %s497 = int_to_ptr.vmem [resolvable:$true] %s496
          %499 = dma.hbm_to_vmem [thread:$0]  %s495, 16, %s497, %s487
        $region24: #{tpu_custom_call.1} parent=15 // pred_fallthru
          _
        // Predicated region
        $region25: #{tpu_custom_call.1} parent=15 // pred_check
          %p500 = pneg %p139
        $region26: #{tpu_custom_call.1} parent=15 // pred_check_branch
          %502 = sbr.rel (%p500) target = $region28
        $region27: #{tpu_custom_call.1} parent=15 // pred_region
          %s503 = sand.u32 %s40, 1
          %s504 = scalar_lea.sflag [#allocation7], %s503
          %s505 = sand.u32 %s129, 1
          %s506 = scalar_lea.vmem [#allocation8], %s505
          %508 = vsyncadd %s504, 0
          %s509 = scalar_lea.hbm %s2, %s48
          %s511 = sshll.u32 %s509, 4
          %s512 = int_to_ptr.hbm [resolvable:$true] %s511
          %s513 = sshll.u32 %s506, 4
          %s514 = int_to_ptr.vmem [resolvable:$true] %s513
          %516 = dma.hbm_to_vmem [thread:$0]  %s512, 16, %s514, %s504
        $region28: #{tpu_custom_call.1} parent=15 // pred_fallthru
          _
        // Predicated region
        $region29: #{tpu_custom_call.1} parent=15 // pred_check
          %p517 = pneg %p165
        $region30: #{tpu_custom_call.1} parent=15 // pred_check_branch
          %519 = sbr.rel (%p517) target = $region32
        $region31: #{tpu_custom_call.1} parent=15 // pred_region
          %s520 = sand.u32 %s40, 1
          %s521 = scalar_lea.sflag [#allocation10], %s520
          %s522 = sand.u32 %s155, 1
          %s523 = smul.addr %s522, 384
          %s524 = scalar_lea.vmem [#allocation9], %s523
          %526 = vsyncadd %s521, 0
          %s527 = smul.addr %s48, 48
          %s528 = smul.addr %s527, 8
          %s529 = scalar_lea.hbm %s3, %s528
          %s530 = sshll.u32 %s529, 4
          %s531 = int_to_ptr.hbm [resolvable:$true] %s530
          %s532 = sshll.u32 %s524, 4
          %s533 = int_to_ptr.vmem [resolvable:$true] %s532
          %538 = dma.hbm_to_vmem [thread:$0]  %s531, 6144, %s533, %s521, 384, 384, 24
        $region32: #{tpu_custom_call.1} parent=15 // pred_fallthru
          _
        // Predicated region
        $region33: #{tpu_custom_call.1} parent=15 // pred_check
          %p539 = pneg %p191
        $region34: #{tpu_custom_call.1} parent=15 // pred_check_branch
          %541 = sbr.rel (%p539) target = $region36
        $region35: #{tpu_custom_call.1} parent=15 // pred_region
          %s542 = sand.u32 %s40, 1
          %s543 = scalar_lea.sflag [#allocation10], %s542
          %s544 = sand.u32 %s181, 1
          %s545 = smul.addr %s544, 3
          %s546 = scalar_lea.vmem [#allocation11], %s545
          %548 = vsyncadd %s543, 0
          %s549 = smul.addr %s48, 3
          %s550 = scalar_lea.hbm %s4, %s549
          %s552 = sshll.u32 %s550, 4
          %s553 = int_to_ptr.hbm [resolvable:$true] %s552
          %s554 = sshll.u32 %s546, 4
          %s555 = int_to_ptr.vmem [resolvable:$true] %s554
          %557 = dma.hbm_to_vmem [thread:$0]  %s553, 48, %s555, %s543
        $region36: #{tpu_custom_call.1} parent=15 // pred_fallthru
          _
        // Predicated region
        $region37: #{tpu_custom_call.1} parent=15 // pred_check
          %p558 = pneg %p217
        $region38: #{tpu_custom_call.1} parent=15 // pred_check_branch
          %560 = sbr.rel (%p558) target = $region40
        $region39: #{tpu_custom_call.1} parent=15 // pred_region
          %s561 = sand.u32 %s40, 1
          %s562 = scalar_lea.sflag [#allocation13], %s561
          %s563 = sand.u32 %s207, 1
          %s564 = smul.addr %s563, 128
          %s565 = scalar_lea.vmem [#allocation12], %s564
          %567 = vsyncadd %s562, 0
          %s568 = smul.addr %s48, 16
          %s569 = smul.addr %s568, 8
          %s570 = scalar_lea.hbm %s5, %s569
          %s571 = sshll.u32 %s570, 4
          %s572 = int_to_ptr.hbm [resolvable:$true] %s571
          %s573 = sshll.u32 %s565, 4
          %s574 = int_to_ptr.vmem [resolvable:$true] %s573
          %579 = dma.hbm_to_vmem [thread:$0]  %s572, 2048, %s574, %s562, 128, 128, 8
        $region40: #{tpu_custom_call.1} parent=15 // pred_fallthru
          _
        // Predicated region
        $region41: #{tpu_custom_call.1} parent=15 // pred_check
          %p580 = pneg %p243
        $region42: #{tpu_custom_call.1} parent=15 // pred_check_branch
          %582 = sbr.rel (%p580) target = $region44
        $region43: #{tpu_custom_call.1} parent=15 // pred_region
          %s583 = sand.u32 %s40, 1
          %s584 = scalar_lea.sflag [#allocation13], %s583
          %s585 = sand.u32 %s233, 1
          %s586 = scalar_lea.vmem [#allocation14], %s585
          %588 = vsyncadd %s584, 0
          %s589 = scalar_lea.hbm %s6, %s48
          %s591 = sshll.u32 %s589, 4
          %s592 = int_to_ptr.hbm [resolvable:$true] %s591
          %s593 = sshll.u32 %s586, 4
          %s594 = int_to_ptr.vmem [resolvable:$true] %s593
          %596 = dma.hbm_to_vmem [thread:$0]  %s592, 16, %s594, %s584
        $region44: #{tpu_custom_call.1} parent=15 // pred_fallthru
          _
        // Predicated region
        $region45: #{tpu_custom_call.1} parent=15 // pred_check
          %p597 = pneg %p269
        $region46: #{tpu_custom_call.1} parent=15 // pred_check_branch
          %599 = sbr.rel (%p597) target = $region48
        $region47: #{tpu_custom_call.1} parent=15 // pred_region
          %s600 = sand.u32 %s40, 1
          %s601 = scalar_lea.sflag [#allocation16], %s600
          %s602 = sand.u32 %s259, 1
          %s603 = scalar_lea.vmem [#allocation15], %s602
          %605 = vsyncadd %s601, 0
          %s606 = scalar_lea.hbm %s7, %s48
          %s608 = sshll.u32 %s606, 4
          %s609 = int_to_ptr.hbm [resolvable:$true] %s608
          %s610 = sshll.u32 %s603, 4
          %s611 = int_to_ptr.vmem [resolvable:$true] %s610
          %613 = dma.hbm_to_vmem [thread:$0]  %s609, 16, %s611, %s601
        $region48: #{tpu_custom_call.1} parent=15 // pred_fallthru
          _
        // Predicated region
        $region49: #{tpu_custom_call.1} parent=15 // pred_check
          %p614 = pneg %p295
        $region50: #{tpu_custom_call.1} parent=15 // pred_check_branch
          %616 = sbr.rel (%p614) target = $region52
        $region51: #{tpu_custom_call.1} parent=15 // pred_region
          %s617 = sand.u32 %s40, 1
          %s618 = scalar_lea.sflag [#allocation16], %s617
          %s619 = sand.u32 %s285, 1
          %s620 = scalar_lea.vmem [#allocation17], %s619
          %622 = vsyncadd %s618, 0
          %s623 = scalar_lea.hbm %s8, %s48
          %s625 = sshll.u32 %s623, 4
          %s626 = int_to_ptr.hbm [resolvable:$true] %s625
          %s627 = sshll.u32 %s620, 4
          %s628 = int_to_ptr.vmem [resolvable:$true] %s627
          %630 = dma.hbm_to_vmem [thread:$0]  %s626, 16, %s628, %s618
        $region52: #{tpu_custom_call.1} parent=15 // pred_fallthru
          _
        // Predicated region
        $region53: #{tpu_custom_call.1} parent=15 // pred_check
          %p631 = pneg %p321
        $region54: #{tpu_custom_call.1} parent=15 // pred_check_branch
          %633 = sbr.rel (%p631) target = $region56
        $region55: #{tpu_custom_call.1} parent=15 // pred_region
          %s634 = sand.u32 %s40, 1
          %s635 = scalar_lea.sflag [#allocation19], %s634
          %s636 = sand.u32 %s311, 1
          %s637 = smul.addr %s636, 512
          %s638 = scalar_lea.vmem [#allocation18], %s637
          %640 = vsyncadd %s635, 0
          %s641 = smul.addr %s48, 64
          %s642 = smul.addr %s641, 8
          %s643 = scalar_lea.hbm %s9, %s642
          %s644 = sshll.u32 %s643, 4
          %s645 = int_to_ptr.hbm [resolvable:$true] %s644
          %s646 = sshll.u32 %s638, 4
          %s647 = int_to_ptr.vmem [resolvable:$true] %s646
          %652 = dma.hbm_to_vmem [thread:$0]  %s645, 8192, %s647, %s635, 512, 512, 32
        $region56: #{tpu_custom_call.1} parent=15 // pred_fallthru
          _
        // Predicated region
        $region57: #{tpu_custom_call.1} parent=15 // pred_check
          %p653 = pneg %p347
        $region58: #{tpu_custom_call.1} parent=15 // pred_check_branch
          %655 = sbr.rel (%p653) target = $region60
        $region59: #{tpu_custom_call.1} parent=15 // pred_region
          %p656 = scmp.lt.s32.totalorder %s48, 1
          %s657 = scalar_select %p656, %s48, 1
          %s658 = smul.addr %s657, 4
          %s659 = scalar_lea.vmem %s10, %s658
        $region60: #{tpu_custom_call.1} parent=15 // pred_fallthru
          _
        // Predicated region
        $region61: #{tpu_custom_call.1} parent=15 // pred_check
          %p660 = pneg %p373
        $region62: #{tpu_custom_call.1} parent=15 // pred_check_branch
          %662 = sbr.rel (%p660) target = $region64
        $region63: #{tpu_custom_call.1} parent=15 // pred_region
          %s663 = sand.u32 %s40, 1
          %s664 = scalar_lea.sflag [#allocation19], %s663
          %s665 = sand.u32 %s363, 1
          %s666 = smul.addr %s665, 512
          %s667 = scalar_lea.vmem [#allocation20], %s666
          %669 = vsyncadd %s664, 0
          %s670 = smul.addr %s48, 64
          %s671 = smul.addr %s670, 8
          %s672 = scalar_lea.hbm %s11, %s671
          %s673 = sshll.u32 %s672, 4
          %s674 = int_to_ptr.hbm [resolvable:$true] %s673
          %s675 = sshll.u32 %s667, 4
          %s676 = int_to_ptr.vmem [resolvable:$true] %s675
          %681 = dma.hbm_to_vmem [thread:$0]  %s674, 8192, %s676, %s664, 128, 128, 8
        $region64: #{tpu_custom_call.1} parent=15 // pred_fallthru
          _
        // Predicated region
        $region65: #{tpu_custom_call.1} parent=15 // pred_check
          %p682 = pneg %p399
        $region66: #{tpu_custom_call.1} parent=15 // pred_check_branch
          %684 = sbr.rel (%p682) target = $region68
        $region67: #{tpu_custom_call.1} parent=15 // pred_region
          %p685 = scmp.lt.s32.totalorder %s48, 1
          %s686 = scalar_select %p685, %s48, 1
          %s687 = scalar_lea.vmem %s12, %s686
        $region68: #{tpu_custom_call.1} parent=15 // pred_fallthru
          _
      $region16: #{tpu_custom_call.1} parent=5 // pred_fallthru
        _
      %p688 = scmp.le.s32.totalorder 1, %s40
      %p689 = scmp.lt.s32.totalorder %s40, 5
      %p690 = pnand %p688, %p689
      %p691 = pneg %p690
      // Predicated region
      $region69: #{tpu_custom_call.1} parent=5 // pred_check
        _
      $region70: #{tpu_custom_call.1} parent=5 // pred_check_branch
        %693 = sbr.rel (%p690) target = $region72
      $region71: #{tpu_custom_call.1} parent=5 // pred_region
        %s694 = ssub.s32 %s40, 1
        %s695 = sand.u32 %s80, 1
        %s696 = scalar_lea.sflag [#allocation4], %s695
        %s697 = sand.u32 %s80, 1
        %s698 = smul.addr %s697, 128
        %s699 = scalar_lea.vmem [#allocation3], %s698
        // Predicated region
        $region73: #{tpu_custom_call.1} parent=71 // pred_check
          %p700 = pneg %p93
        $region74: #{tpu_custom_call.1} parent=71 // pred_check_branch
          %702 = sbr.rel (%p700) target = $region76
        $region75: #{tpu_custom_call.1} parent=71 // pred_region
          %704 = dma.done %s696, 2048
        $region76: #{tpu_custom_call.1} parent=71 // pred_fallthru
          _
        %s705 = sand.u32 %s45, 1
        %s706 = scalar_lea.sflag [#allocation7], %s705
        %s707 = sand.u32 %s106, 1
        %s708 = scalar_lea.vmem [#allocation6], %s707
        // Predicated region
        $region77: #{tpu_custom_call.1} parent=71 // pred_check
          %p709 = pneg %p119
        $region78: #{tpu_custom_call.1} parent=71 // pred_check_branch
          %711 = sbr.rel (%p709) target = $region80
        $region79: #{tpu_custom_call.1} parent=71 // pred_region
          %713 = dma.done %s706, 16
        $region80: #{tpu_custom_call.1} parent=71 // pred_fallthru
          _
        %s714 = sand.u32 %s45, 1
        %s715 = scalar_lea.sflag [#allocation7], %s714
        %s716 = sand.u32 %s132, 1
        %s717 = scalar_lea.vmem [#allocation8], %s716
        // Predicated region
        $region81: #{tpu_custom_call.1} parent=71 // pred_check
          %p718 = pneg %p145
        $region82: #{tpu_custom_call.1} parent=71 // pred_check_branch
          %720 = sbr.rel (%p718) target = $region84
        $region83: #{tpu_custom_call.1} parent=71 // pred_region
          %722 = dma.done %s715, 16
        $region84: #{tpu_custom_call.1} parent=71 // pred_fallthru
          _
        %s723 = sand.u32 %s45, 1
        %s724 = scalar_lea.sflag [#allocation10], %s723
        %s725 = sand.u32 %s158, 1
        %s726 = smul.addr %s725, 384
        %s727 = scalar_lea.vmem [#allocation9], %s726
        // Predicated region
        $region85: #{tpu_custom_call.1} parent=71 // pred_check
          %p728 = pneg %p171
        $region86: #{tpu_custom_call.1} parent=71 // pred_check_branch
          %730 = sbr.rel (%p728) target = $region88
        $region87: #{tpu_custom_call.1} parent=71 // pred_region
          %732 = dma.done %s724, 6144
        $region88: #{tpu_custom_call.1} parent=71 // pred_fallthru
          _
        %s733 = sand.u32 %s45, 1
        %s734 = scalar_lea.sflag [#allocation10], %s733
        %s735 = sand.u32 %s184, 1
        %s736 = smul.addr %s735, 3
        %s737 = scalar_lea.vmem [#allocation11], %s736
        // Predicated region
        $region89: #{tpu_custom_call.1} parent=71 // pred_check
          %p738 = pneg %p197
        $region90: #{tpu_custom_call.1} parent=71 // pred_check_branch
          %740 = sbr.rel (%p738) target = $region92
        $region91: #{tpu_custom_call.1} parent=71 // pred_region
          %742 = dma.done %s734, 48
        $region92: #{tpu_custom_call.1} parent=71 // pred_fallthru
          _
        %s743 = sand.u32 %s45, 1
        %s744 = scalar_lea.sflag [#allocation13], %s743
        %s745 = sand.u32 %s210, 1
        %s746 = smul.addr %s745, 128
        %s747 = scalar_lea.vmem [#allocation12], %s746
        // Predicated region
        $region93: #{tpu_custom_call.1} parent=71 // pred_check
          %p748 = pneg %p223
        $region94: #{tpu_custom_call.1} parent=71 // pred_check_branch
          %750 = sbr.rel (%p748) target = $region96
        $region95: #{tpu_custom_call.1} parent=71 // pred_region
          %752 = dma.done %s744, 2048
        $region96: #{tpu_custom_call.1} parent=71 // pred_fallthru
          _
        %s753 = sand.u32 %s45, 1
        %s754 = scalar_lea.sflag [#allocation13], %s753
        %s755 = sand.u32 %s236, 1
        %s756 = scalar_lea.vmem [#allocation14], %s755
        // Predicated region
        $region97: #{tpu_custom_call.1} parent=71 // pred_check
          %p757 = pneg %p249
        $region98: #{tpu_custom_call.1} parent=71 // pred_check_branch
          %759 = sbr.rel (%p757) target = $region100
        $region99: #{tpu_custom_call.1} parent=71 // pred_region
          %761 = dma.done %s754, 16
        $region100: #{tpu_custom_call.1} parent=71 // pred_fallthru
          _
        %s762 = sand.u32 %s45, 1
        %s763 = scalar_lea.sflag [#allocation16], %s762
        %s764 = sand.u32 %s262, 1
        %s765 = scalar_lea.vmem [#allocation15], %s764
        // Predicated region
        $region101: #{tpu_custom_call.1} parent=71 // pred_check
          %p766 = pneg %p275
        $region102: #{tpu_custom_call.1} parent=71 // pred_check_branch
          %768 = sbr.rel (%p766) target = $region104
        $region103: #{tpu_custom_call.1} parent=71 // pred_region
          %770 = dma.done %s763, 16
        $region104: #{tpu_custom_call.1} parent=71 // pred_fallthru
          _
        %s771 = sand.u32 %s45, 1
        %s772 = scalar_lea.sflag [#allocation16], %s771
        %s773 = sand.u32 %s288, 1
        %s774 = scalar_lea.vmem [#allocation17], %s773
        // Predicated region
        $region105: #{tpu_custom_call.1} parent=71 // pred_check
          %p775 = pneg %p301
        $region106: #{tpu_custom_call.1} parent=71 // pred_check_branch
          %777 = sbr.rel (%p775) target = $region108
        $region107: #{tpu_custom_call.1} parent=71 // pred_region
          %779 = dma.done %s772, 16
        $region108: #{tpu_custom_call.1} parent=71 // pred_fallthru
          _
        %s780 = sand.u32 %s45, 1
        %s781 = scalar_lea.sflag [#allocation19], %s780
        %s782 = sand.u32 %s314, 1
        %s783 = smul.addr %s782, 512
        %s784 = scalar_lea.vmem [#allocation18], %s783
        // Predicated region
        $region109: #{tpu_custom_call.1} parent=71 // pred_check
          %p785 = pneg %p327
        $region110: #{tpu_custom_call.1} parent=71 // pred_check_branch
          %787 = sbr.rel (%p785) target = $region112
        $region111: #{tpu_custom_call.1} parent=71 // pred_region
          %789 = dma.done %s781, 8192
        $region112: #{tpu_custom_call.1} parent=71 // pred_fallthru
          _
        %s790 = sand.u32 %s45, 1
        %s791 = scalar_lea.sflag [#allocation19], %s790
        %s792 = sand.u32 %s366, 1
        %s793 = smul.addr %s792, 512
        %s794 = scalar_lea.vmem [#allocation20], %s793
        // Predicated region
        $region113: #{tpu_custom_call.1} parent=71 // pred_check
          %p795 = pneg %p379
        $region114: #{tpu_custom_call.1} parent=71 // pred_check_branch
          %797 = sbr.rel (%p795) target = $region116
        $region115: #{tpu_custom_call.1} parent=71 // pred_region
          %799 = dma.done %s791, 8192
        $region116: #{tpu_custom_call.1} parent=71 // pred_fallthru
          _
        %s800 = sand.u32 %s80, 1
        %s801 = scalar_lea.sflag [#allocation4], %s800
        %s802 = sand.u32 %s80, 1
        %s803 = smul.addr %s802, 128
        %s804 = scalar_lea.vmem [#allocation3], %s803
        %p805 = pneg %p93
        %p806 = pneg %p90
        %s807 = sand.u32 %s45, 1
        %s808 = scalar_lea.sflag [#allocation7], %s807
        %s809 = sand.u32 %s106, 1
        %s810 = scalar_lea.vmem [#allocation6], %s809
        %p811 = pneg %p119
        %p812 = pneg %p116
        %s813 = sand.u32 %s45, 1
        %s814 = scalar_lea.sflag [#allocation7], %s813
        %s815 = sand.u32 %s132, 1
        %s816 = scalar_lea.vmem [#allocation8], %s815
        %p817 = pneg %p145
        %p818 = pneg %p142
        %s819 = sand.u32 %s45, 1
        %s820 = scalar_lea.sflag [#allocation10], %s819
        %s821 = sand.u32 %s158, 1
        %s822 = smul.addr %s821, 384
        %s823 = scalar_lea.vmem [#allocation9], %s822
        %p824 = pneg %p171
        %p825 = pneg %p168
        %s826 = sand.u32 %s45, 1
        %s827 = scalar_lea.sflag [#allocation10], %s826
        %s828 = sand.u32 %s184, 1
        %s829 = smul.addr %s828, 3
        %s830 = scalar_lea.vmem [#allocation11], %s829
        %p831 = pneg %p197
        %p832 = pneg %p194
        %s833 = sand.u32 %s45, 1
        %s834 = scalar_lea.sflag [#allocation13], %s833
        %s835 = sand.u32 %s210, 1
        %s836 = smul.addr %s835, 128
        %s837 = scalar_lea.vmem [#allocation12], %s836
        %p838 = pneg %p223
        %p839 = pneg %p220
        %s840 = sand.u32 %s45, 1
        %s841 = scalar_lea.sflag [#allocation13], %s840
        %s842 = sand.u32 %s236, 1
        %s843 = scalar_lea.vmem [#allocation14], %s842
        %p844 = pneg %p249
        %p845 = pneg %p246
        %s846 = sand.u32 %s45, 1
        %s847 = scalar_lea.sflag [#allocation16], %s846
        %s848 = sand.u32 %s262, 1
        %s849 = scalar_lea.vmem [#allocation15], %s848
        %p850 = pneg %p275
        %p851 = pneg %p272
        %s852 = sand.u32 %s45, 1
        %s853 = scalar_lea.sflag [#allocation16], %s852
        %s854 = sand.u32 %s288, 1
        %s855 = scalar_lea.vmem [#allocation17], %s854
        %p856 = pneg %p301
        %p857 = pneg %p298
        %s858 = sand.u32 %s45, 1
        %s859 = scalar_lea.sflag [#allocation19], %s858
        %s860 = sand.u32 %s314, 1
        %s861 = smul.addr %s860, 512
        %s862 = scalar_lea.vmem [#allocation18], %s861
        %p863 = pneg %p327
        %p864 = pneg %p324
        %p865 = scmp.lt.s32.totalorder %s51, 1
        %s866 = scalar_select %p865, %s51, 1
        %s867 = smul.addr %s866, 4
        %s868 = scalar_lea.vmem %s10, %s867
        %p869 = pneg %p353
        %p870 = pneg %p350
        %s871 = sand.u32 %s45, 1
        %s872 = scalar_lea.sflag [#allocation19], %s871
        %s873 = sand.u32 %s366, 1
        %s874 = smul.addr %s873, 512
        %s875 = scalar_lea.vmem [#allocation20], %s874
        %p876 = pneg %p379
        %p877 = pneg %p376
        %p878 = scmp.lt.s32.totalorder %s51, 1
        %s879 = scalar_select %p878, %s51, 1
        %s880 = scalar_lea.vmem %s12, %s879
        %p881 = pneg %p405
        %p882 = pneg %p402
        %p883 = pneg %p439
        %p884 = pneg %p436
        %s885 = sand.u32 %s426, 1
        %s886 = scalar_lea.sflag [#allocation5], %s885
        %s887 = sand.u32 %s426, 1
        %s888 = smul.addr %s887, 128
        %s889 = scalar_lea.vmem [#allocation21], %s888
        %p890 = scmp.eq.s32.totalorder %s51, 0
        %s891 = smul.u32 %s50, 2
        %s892 = sadd.s32 %s891, %s52
        %s893 = scalar_select %p890, %s892, %s891
        %p894 = scmp.lt.s32.totalorder %s51, 1
        %s895 = scalar_select %p894, %s51, 1
        %s896 = smul.addr %s895, 4
        %s897 = scalar_lea.vmem %s10, %s896
        %p898 = scmp.lt.s32.totalorder %s51, 1
        %s899 = scalar_select %p898, %s51, 1
        %s900 = scalar_lea.vmem %s12, %s899
        %p901 = scmp.eq.s32.totalorder %s51, 1
        %s902 = smul.u32 %s50, 2
        %s903 = sadd.s32 %s902, %s52
        %s904 = scalar_select %p901, %s903, %s902
        %p905 = scmp.eq.s32.totalorder %s51, 0
        // Predicated region
        $region117: #{tpu_custom_call.1} parent=71 // pred_check
          %p906 = pneg %p905
        $region118: #{tpu_custom_call.1} parent=71 // pred_check_branch
          %908 = sbr.rel (%p906) target = $region120
        $region119: #{tpu_custom_call.1} parent=71 // pred_region
          %v909 = vld [vmem:[%s699] sm:$0xff]
          %v910 = vld [vmem:[%s699 + $0x8] sm:$0xff]
          %v911 = vld [vmem:[%s699 + $0x10] sm:$0xff]
          %v912 = vld [vmem:[%s699 + $0x18] sm:$0xff]
          %v913 = vld [vmem:[%s699 + $0x20] sm:$0xff]
          %v914 = vld [vmem:[%s699 + $0x28] sm:$0xff]
          %v915 = vld [vmem:[%s699 + $0x30] sm:$0xff]
          %v916 = vld [vmem:[%s699 + $0x38] sm:$0xff]
          %v917 = vld [vmem:[%s699 + $0x40] sm:$0xff]
          %v918 = vld [vmem:[%s699 + $0x48] sm:$0xff]
          %v919 = vld [vmem:[%s699 + $0x50] sm:$0xff]
          %v920 = vld [vmem:[%s699 + $0x58] sm:$0xff]
          %v921 = vld [vmem:[%s699 + $0x60] sm:$0xff]
          %v922 = vld [vmem:[%s699 + $0x68] sm:$0xff]
          %v923 = vld [vmem:[%s699 + $0x70] sm:$0xff]
          %v924 = vld [vmem:[%s699 + $0x78] sm:$0xff]
          %v925 = vrot.slane %v911, 4
          %vm926 = vcmask 1047556
          %v927 = vsel %vm926, %v925, %v909
          %v928 = vrot.slane %v909, 4
          %v929 = vsel %vm926, %v911, %v928
          %v931 = vunpack.c.l.s4 1983009808
          %v932 = vunpack.c.0.s8 %v931
          %v933 = vperm.slane %v927, %v932
          %v935 = vunpack.c.l.s4 1983009808
          %v936 = vunpack.c.0.s8 %v935
          %v937 = vperm.slane %v929, %v936
          %v938 = vrot.slane %v912, 4
          %v939 = vsel %vm926, %v938, %v910
          %v940 = vrot.slane %v910, 4
          %v941 = vsel %vm926, %v912, %v940
          %v943 = vunpack.c.l.s4 1983009808
          %v944 = vunpack.c.0.s8 %v943
          %v945 = vperm.slane %v939, %v944
          %v947 = vunpack.c.l.s4 1983009808
          %v948 = vunpack.c.0.s8 %v947
          %v949 = vperm.slane %v941, %v948
          %v950 = vrot.slane %v915, 4
          %v951 = vsel %vm926, %v950, %v913
          %v952 = vrot.slane %v913, 4
          %v953 = vsel %vm926, %v915, %v952
          %v955 = vunpack.c.l.s4 1983009808
          %v956 = vunpack.c.0.s8 %v955
          %v957 = vperm.slane %v951, %v956
          %v959 = vunpack.c.l.s4 1983009808
          %v960 = vunpack.c.0.s8 %v959
          %v961 = vperm.slane %v953, %v960
          %v962 = vrot.slane %v916, 4
          %v963 = vsel %vm926, %v962, %v914
          %v964 = vrot.slane %v914, 4
          %v965 = vsel %vm926, %v916, %v964
          %v967 = vunpack.c.l.s4 1983009808
          %v968 = vunpack.c.0.s8 %v967
          %v969 = vperm.slane %v963, %v968
          %v971 = vunpack.c.l.s4 1983009808
          %v972 = vunpack.c.0.s8 %v971
          %v973 = vperm.slane %v965, %v972
          %v974 = vrot.slane %v945, 4
          %v975 = vsel %vm926, %v974, %v933
          %v976 = vrot.slane %v933, 4
          %v977 = vsel %vm926, %v945, %v976
          %v979 = vunpack.c.l.s4 1934713408
          %v980 = vunpack.c.0.s8 %v979
          %v981 = vperm.slane %v975, %v980
          %v983 = vunpack.c.l.s4 1934713408
          %v984 = vunpack.c.0.s8 %v983
          %v985 = vperm.slane %v977, %v984
          %v986 = vrot.slane %v949, 4
          %v987 = vsel %vm926, %v986, %v937
          %v988 = vrot.slane %v937, 4
          %v989 = vsel %vm926, %v949, %v988
          %v991 = vunpack.c.l.s4 1934713408
          %v992 = vunpack.c.0.s8 %v991
          %v993 = vperm.slane %v987, %v992
          %v995 = vunpack.c.l.s4 1934713408
          %v996 = vunpack.c.0.s8 %v995
          %v997 = vperm.slane %v989, %v996
          %v998 = vrot.slane %v969, 4
          %v999 = vsel %vm926, %v998, %v957
          %v1000 = vrot.slane %v957, 4
          %v1001 = vsel %vm926, %v969, %v1000
          %v1003 = vunpack.c.l.s4 1934713408
          %v1004 = vunpack.c.0.s8 %v1003
          %v1005 = vperm.slane %v999, %v1004
          %v1007 = vunpack.c.l.s4 1934713408
          %v1008 = vunpack.c.0.s8 %v1007
          %v1009 = vperm.slane %v1001, %v1008
          %v1010 = vrot.slane %v973, 4
          %v1011 = vsel %vm926, %v1010, %v961
          %v1012 = vrot.slane %v961, 4
          %v1013 = vsel %vm926, %v973, %v1012
          %v1015 = vunpack.c.l.s4 1934713408
          %v1016 = vunpack.c.0.s8 %v1015
          %v1017 = vperm.slane %v1011, %v1016
          %v1019 = vunpack.c.l.s4 1934713408
          %v1020 = vunpack.c.0.s8 %v1019
          %v1021 = vperm.slane %v1013, %v1020
          %v1022 = vrot.slane %v1005, 4
          %v1023 = vsel %vm926, %v1022, %v981
          %v1024 = vrot.slane %v981, 4
          %v1025 = vsel %vm926, %v1005, %v1024
          %v1026 = vrot.slane %v1009, 4
          %v1027 = vsel %vm926, %v1026, %v985
          %v1028 = vrot.slane %v985, 4
          %v1029 = vsel %vm926, %v1009, %v1028
          %v1030 = vrot.slane %v1017, 4
          %v1031 = vsel %vm926, %v1030, %v993
          %v1032 = vrot.slane %v993, 4
          %v1033 = vsel %vm926, %v1017, %v1032
          %v1034 = vrot.slane %v1021, 4
          %v1035 = vsel %vm926, %v1034, %v997
          %v1036 = vrot.slane %v997, 4
          %v1037 = vsel %vm926, %v1021, %v1036
          %v1038 = vrot.slane %v919, 4
          %v1039 = vsel %vm926, %v1038, %v917
          %v1040 = vrot.slane %v917, 4
          %v1041 = vsel %vm926, %v919, %v1040
          %v1043 = vunpack.c.l.s4 1983009808
          %v1044 = vunpack.c.0.s8 %v1043
          %v1045 = vperm.slane %v1039, %v1044
          %v1047 = vunpack.c.l.s4 1983009808
          %v1048 = vunpack.c.0.s8 %v1047
          %v1049 = vperm.slane %v1041, %v1048
          %v1050 = vrot.slane %v920, 4
          %v1051 = vsel %vm926, %v1050, %v918
          %v1052 = vrot.slane %v918, 4
          %v1053 = vsel %vm926, %v920, %v1052
          %v1055 = vunpack.c.l.s4 1983009808
          %v1056 = vunpack.c.0.s8 %v1055
          %v1057 = vperm.slane %v1051, %v1056
          %v1059 = vunpack.c.l.s4 1983009808
          %v1060 = vunpack.c.0.s8 %v1059
          %v1061 = vperm.slane %v1053, %v1060
          %v1062 = vrot.slane %v923, 4
          %v1063 = vsel %vm926, %v1062, %v921
          %v1064 = vrot.slane %v921, 4
          %v1065 = vsel %vm926, %v923, %v1064
          %v1067 = vunpack.c.l.s4 1983009808
          %v1068 = vunpack.c.0.s8 %v1067
          %v1069 = vperm.slane %v1063, %v1068
          %v1071 = vunpack.c.l.s4 1983009808
          %v1072 = vunpack.c.0.s8 %v1071
          %v1073 = vperm.slane %v1065, %v1072
          %v1074 = vrot.slane %v924, 4
          %v1075 = vsel %vm926, %v1074, %v922
          %v1076 = vrot.slane %v922, 4
          %v1077 = vsel %vm926, %v924, %v1076
          %v1079 = vunpack.c.l.s4 1983009808
          %v1080 = vunpack.c.0.s8 %v1079
          %v1081 = vperm.slane %v1075, %v1080
          %v1083 = vunpack.c.l.s4 1983009808
          %v1084 = vunpack.c.0.s8 %v1083
          %v1085 = vperm.slane %v1077, %v1084
          %v1086 = vrot.slane %v1057, 4
          %v1087 = vsel %vm926, %v1086, %v1045
          %v1088 = vrot.slane %v1045, 4
          %v1089 = vsel %vm926, %v1057, %v1088
          %v1091 = vunpack.c.l.s4 1934713408
          %v1092 = vunpack.c.0.s8 %v1091
          %v1093 = vperm.slane %v1087, %v1092
          %v1095 = vunpack.c.l.s4 1934713408
          %v1096 = vunpack.c.0.s8 %v1095
          %v1097 = vperm.slane %v1089, %v1096
          %v1098 = vrot.slane %v1061, 4
          %v1099 = vsel %vm926, %v1098, %v1049
          %v1100 = vrot.slane %v1049, 4
          %v1101 = vsel %vm926, %v1061, %v1100
          %v1103 = vunpack.c.l.s4 1934713408
          %v1104 = vunpack.c.0.s8 %v1103
          %v1105 = vperm.slane %v1099, %v1104
          %v1107 = vunpack.c.l.s4 1934713408
          %v1108 = vunpack.c.0.s8 %v1107
          %v1109 = vperm.slane %v1101, %v1108
          %v1110 = vrot.slane %v1081, 4
          %v1111 = vsel %vm926, %v1110, %v1069
          %v1112 = vrot.slane %v1069, 4
          %v1113 = vsel %vm926, %v1081, %v1112
          %v1115 = vunpack.c.l.s4 1934713408
          %v1116 = vunpack.c.0.s8 %v1115
          %v1117 = vperm.slane %v1111, %v1116
          %v1119 = vunpack.c.l.s4 1934713408
          %v1120 = vunpack.c.0.s8 %v1119
          %v1121 = vperm.slane %v1113, %v1120
          %v1122 = vrot.slane %v1085, 4
          %v1123 = vsel %vm926, %v1122, %v1073
          %v1124 = vrot.slane %v1073, 4
          %v1125 = vsel %vm926, %v1085, %v1124
          %v1127 = vunpack.c.l.s4 1934713408
          %v1128 = vunpack.c.0.s8 %v1127
          %v1129 = vperm.slane %v1123, %v1128
          %v1131 = vunpack.c.l.s4 1934713408
          %v1132 = vunpack.c.0.s8 %v1131
          %v1133 = vperm.slane %v1125, %v1132
          %v1134 = vrot.slane %v1117, 4
          %v1135 = vsel %vm926, %v1134, %v1093
          %v1136 = vrot.slane %v1093, 4
          %v1137 = vsel %vm926, %v1117, %v1136
          %v1138 = vrot.slane %v1121, 4
          %v1139 = vsel %vm926, %v1138, %v1097
          %v1140 = vrot.slane %v1097, 4
          %v1141 = vsel %vm926, %v1121, %v1140
          %v1142 = vrot.slane %v1129, 4
          %v1143 = vsel %vm926, %v1142, %v1105
          %v1144 = vrot.slane %v1105, 4
          %v1145 = vsel %vm926, %v1129, %v1144
          %v1146 = vrot.slane %v1133, 4
          %v1147 = vsel %vm926, %v1146, %v1109
          %v1148 = vrot.slane %v1109, 4
          %v1149 = vsel %vm926, %v1133, %v1148
          %s1150 = smul.u32 %s52, 128
          %s1151 = scalar_lea.vmem [#allocation2], %s1150
          %1152 = vst [vmem:[%s1151] sm:$0xff] %v1023
          %1153 = vst [vmem:[%s1151 + $0x8] sm:$0xff] %v1135
          %1154 = vst [vmem:[%s1151 + $0x10] sm:$0xff] %v1025
          %1155 = vst [vmem:[%s1151 + $0x18] sm:$0xff] %v1137
          %1156 = vst [vmem:[%s1151 + $0x20] sm:$0xff] %v1027
          %1157 = vst [vmem:[%s1151 + $0x28] sm:$0xff] %v1139
          %1158 = vst [vmem:[%s1151 + $0x30] sm:$0xff] %v1029
          %1159 = vst [vmem:[%s1151 + $0x38] sm:$0xff] %v1141
          %1160 = vst [vmem:[%s1151 + $0x40] sm:$0xff] %v1031
          %1161 = vst [vmem:[%s1151 + $0x48] sm:$0xff] %v1143
          %1162 = vst [vmem:[%s1151 + $0x50] sm:$0xff] %v1033
          %1163 = vst [vmem:[%s1151 + $0x58] sm:$0xff] %v1145
          %1164 = vst [vmem:[%s1151 + $0x60] sm:$0xff] %v1035
          %1165 = vst [vmem:[%s1151 + $0x68] sm:$0xff] %v1147
          %1166 = vst [vmem:[%s1151 + $0x70] sm:$0xff] %v1037
          %1167 = vst [vmem:[%s1151 + $0x78] sm:$0xff] %v1149
        $region120: #{tpu_custom_call.1} parent=71 // pred_fallthru
          _
        %s1168 = smul.u32 %s52, 128
        %s1169 = scalar_lea.vmem [#allocation2], %s1168
        %v1170 = vld [vmem:[%s1169] sm:$0xff]
        %v1171 = vld [vmem:[%s1169 + $0x8] sm:$0xff]
        %v1172 = vld [vmem:[%s1169 + $0x10] sm:$0xff]
        %v1173 = vld [vmem:[%s1169 + $0x18] sm:$0xff]
        %v1174 = vld [vmem:[%s1169 + $0x20] sm:$0xff]
        %v1175 = vld [vmem:[%s1169 + $0x28] sm:$0xff]
        %v1176 = vld [vmem:[%s1169 + $0x30] sm:$0xff]
        %v1177 = vld [vmem:[%s1169 + $0x38] sm:$0xff]
        %v1178 = vld [vmem:[%s1169 + $0x40] sm:$0xff]
        %v1179 = vld [vmem:[%s1169 + $0x48] sm:$0xff]
        %v1180 = vld [vmem:[%s1169 + $0x50] sm:$0xff]
        %v1181 = vld [vmem:[%s1169 + $0x58] sm:$0xff]
        %v1182 = vld [vmem:[%s1169 + $0x60] sm:$0xff]
        %v1183 = vld [vmem:[%s1169 + $0x68] sm:$0xff]
        %v1184 = vld [vmem:[%s1169 + $0x70] sm:$0xff]
        %v1185 = vld [vmem:[%s1169 + $0x78] sm:$0xff]
        %1186 = vadd.xlane.f32.xlu0 %v1170
        %v1187 = vpop.xlane.xlu0 %1186
        %1188 = vadd.xlane.f32.xlu0 %v1171
        %v1189 = vpop.xlane.xlu0 %1188
        %1190 = vadd.xlane.f32.xlu0 %v1172
        %v1191 = vpop.xlane.xlu0 %1190
        %1192 = vadd.xlane.f32.xlu0 %v1173
        %v1193 = vpop.xlane.xlu0 %1192
        %1194 = vadd.xlane.f32.xlu0 %v1174
        %v1195 = vpop.xlane.xlu0 %1194
        %1196 = vadd.xlane.f32.xlu0 %v1175
        %v1197 = vpop.xlane.xlu0 %1196
        %1198 = vadd.xlane.f32.xlu0 %v1176
        %v1199 = vpop.xlane.xlu0 %1198
        %1200 = vadd.xlane.f32.xlu0 %v1177
        %v1201 = vpop.xlane.xlu0 %1200
        %1202 = vadd.xlane.f32.xlu0 %v1178
        %v1203 = vpop.xlane.xlu0 %1202
        %1204 = vadd.xlane.f32.xlu0 %v1179
        %v1205 = vpop.xlane.xlu0 %1204
        %1206 = vadd.xlane.f32.xlu0 %v1180
        %v1207 = vpop.xlane.xlu0 %1206
        %1208 = vadd.xlane.f32.xlu0 %v1181
        %v1209 = vpop.xlane.xlu0 %1208
        %1210 = vadd.xlane.f32.xlu0 %v1182
        %v1211 = vpop.xlane.xlu0 %1210
        %1212 = vadd.xlane.f32.xlu0 %v1183
        %v1213 = vpop.xlane.xlu0 %1212
        %1214 = vadd.xlane.f32.xlu0 %v1184
        %v1215 = vpop.xlane.xlu0 %1214
        %1216 = vadd.xlane.f32.xlu0 %v1185
        %v1217 = vpop.xlane.xlu0 %1216
        %v1218 = vrcp.pop 128.0
        %v1219 = vmul.f32 128.0, %v1218
        %v1220 = vsub.f32 1.0, %v1219
        %v1221 = vmul.f32 %v1218, %v1220
        %v1222 = vadd.f32 %v1218, %v1221
        %vm1223 = vweird.f32 %v1218
        %v1224 = vsel %vm1223, %v1218, %v1222
        %v1225 = vmul.f32 %v1187, %v1224
        %v1226 = vmul.f32 %v1189, %v1224
        %v1227 = vmul.f32 %v1191, %v1224
        %v1228 = vmul.f32 %v1193, %v1224
        %v1229 = vmul.f32 %v1195, %v1224
        %v1230 = vmul.f32 %v1197, %v1224
        %v1231 = vmul.f32 %v1199, %v1224
        %v1232 = vmul.f32 %v1201, %v1224
        %v1233 = vmul.f32 %v1203, %v1224
        %v1234 = vmul.f32 %v1205, %v1224
        %v1235 = vmul.f32 %v1207, %v1224
        %v1236 = vmul.f32 %v1209, %v1224
        %v1237 = vmul.f32 %v1211, %v1224
        %v1238 = vmul.f32 %v1213, %v1224
        %v1239 = vmul.f32 %v1215, %v1224
        %v1240 = vmul.f32 %v1217, %v1224
        %v1241 = vsub.f32 %v1170, %v1225
        %v1242 = vsub.f32 %v1171, %v1226
        %v1243 = vsub.f32 %v1172, %v1227
        %v1244 = vsub.f32 %v1173, %v1228
        %v1245 = vsub.f32 %v1174, %v1229
        %v1246 = vsub.f32 %v1175, %v1230
        %v1247 = vsub.f32 %v1176, %v1231
        %v1248 = vsub.f32 %v1177, %v1232
        %v1249 = vsub.f32 %v1178, %v1233
        %v1250 = vsub.f32 %v1179, %v1234
        %v1251 = vsub.f32 %v1180, %v1235
        %v1252 = vsub.f32 %v1181, %v1236
        %v1253 = vsub.f32 %v1182, %v1237
        %v1254 = vsub.f32 %v1183, %v1238
        %v1255 = vsub.f32 %v1184, %v1239
        %v1256 = vsub.f32 %v1185, %v1240
        %v1257 = vmul.f32 %v1241, %v1241
        %v1258 = vmul.f32 %v1242, %v1242
        %v1259 = vmul.f32 %v1243, %v1243
        %v1260 = vmul.f32 %v1244, %v1244
        %v1261 = vmul.f32 %v1245, %v1245
        %v1262 = vmul.f32 %v1246, %v1246
        %v1263 = vmul.f32 %v1247, %v1247
        %v1264 = vmul.f32 %v1248, %v1248
        %v1265 = vmul.f32 %v1249, %v1249
        %v1266 = vmul.f32 %v1250, %v1250
        %v1267 = vmul.f32 %v1251, %v1251
        %v1268 = vmul.f32 %v1252, %v1252
        %v1269 = vmul.f32 %v1253, %v1253
        %v1270 = vmul.f32 %v1254, %v1254
        %v1271 = vmul.f32 %v1255, %v1255
        %v1272 = vmul.f32 %v1256, %v1256
        %1273 = vadd.xlane.f32.xlu0 %v1257
        %v1274 = vpop.xlane.xlu0 %1273
        %1275 = vadd.xlane.f32.xlu0 %v1258
        %v1276 = vpop.xlane.xlu0 %1275
        %1277 = vadd.xlane.f32.xlu0 %v1259
        %v1278 = vpop.xlane.xlu0 %1277
        %1279 = vadd.xlane.f32.xlu0 %v1260
        %v1280 = vpop.xlane.xlu0 %1279
        %1281 = vadd.xlane.f32.xlu0 %v1261
        %v1282 = vpop.xlane.xlu0 %1281
        %1283 = vadd.xlane.f32.xlu0 %v1262
        %v1284 = vpop.xlane.xlu0 %1283
        %1285 = vadd.xlane.f32.xlu0 %v1263
        %v1286 = vpop.xlane.xlu0 %1285
        %1287 = vadd.xlane.f32.xlu0 %v1264
        %v1288 = vpop.xlane.xlu0 %1287
        %1289 = vadd.xlane.f32.xlu0 %v1265
        %v1290 = vpop.xlane.xlu0 %1289
        %1291 = vadd.xlane.f32.xlu0 %v1266
        %v1292 = vpop.xlane.xlu0 %1291
        %1293 = vadd.xlane.f32.xlu0 %v1267
        %v1294 = vpop.xlane.xlu0 %1293
        %1295 = vadd.xlane.f32.xlu0 %v1268
        %v1296 = vpop.xlane.xlu0 %1295
        %1297 = vadd.xlane.f32.xlu0 %v1269
        %v1298 = vpop.xlane.xlu0 %1297
        %1299 = vadd.xlane.f32.xlu0 %v1270
        %v1300 = vpop.xlane.xlu0 %1299
        %1301 = vadd.xlane.f32.xlu0 %v1271
        %v1302 = vpop.xlane.xlu0 %1301
        %1303 = vadd.xlane.f32.xlu0 %v1272
        %v1304 = vpop.xlane.xlu0 %1303
        %v1305 = vmul.f32 %v1274, %v1224
        %v1306 = vmul.f32 %v1276, %v1224
        %v1307 = vmul.f32 %v1278, %v1224
        %v1308 = vmul.f32 %v1280, %v1224
        %v1309 = vmul.f32 %v1282, %v1224
        %v1310 = vmul.f32 %v1284, %v1224
        %v1311 = vmul.f32 %v1286, %v1224
        %v1312 = vmul.f32 %v1288, %v1224
        %v1313 = vmul.f32 %v1290, %v1224
        %v1314 = vmul.f32 %v1292, %v1224
        %v1315 = vmul.f32 %v1294, %v1224
        %v1316 = vmul.f32 %v1296, %v1224
        %v1317 = vmul.f32 %v1298, %v1224
        %v1318 = vmul.f32 %v1300, %v1224
        %v1319 = vmul.f32 %v1302, %v1224
        %v1320 = vmul.f32 %v1304, %v1224
        %v1321 = vld [vmem:[%s708] sm:$0x1]
        %v1322 = vadd.f32 %v1305, 1e-12
        %v1323 = vadd.f32 %v1306, 1e-12
        %v1324 = vadd.f32 %v1307, 1e-12
        %v1325 = vadd.f32 %v1308, 1e-12
        %v1326 = vadd.f32 %v1309, 1e-12
        %v1327 = vadd.f32 %v1310, 1e-12
        %v1328 = vadd.f32 %v1311, 1e-12
        %v1329 = vadd.f32 %v1312, 1e-12
        %v1330 = vadd.f32 %v1313, 1e-12
        %v1331 = vadd.f32 %v1314, 1e-12
        %v1332 = vadd.f32 %v1315, 1e-12
        %v1333 = vadd.f32 %v1316, 1e-12
        %v1334 = vadd.f32 %v1317, 1e-12
        %v1335 = vadd.f32 %v1318, 1e-12
        %v1336 = vadd.f32 %v1319, 1e-12
        %v1337 = vadd.f32 %v1320, 1e-12
        %v1338 = vrsqrt.pop %v1322
        %v1339 = vmul.f32 %v1338, %v1322
        %v1340 = vmul.f32 %v1339, %v1338
        %v1341 = vmul.f32 0.5, %v1340
        %v1342 = vsub.f32 1.5, %v1341
        %v1343 = vmul.f32 %v1338, %v1342
        %vm1344 = vweird.f32 %v1322
        %vm1345 = vweird.f32 %v1338
        %vm1346 = vmor %vm1344, %vm1345
        %v1347 = vsel %vm1346, %v1338, %v1343
        %v1348 = vrsqrt.pop %v1323
        %v1349 = vmul.f32 %v1348, %v1323
        %v1350 = vmul.f32 %v1349, %v1348
        %v1351 = vmul.f32 0.5, %v1350
        %v1352 = vsub.f32 1.5, %v1351
        %v1353 = vmul.f32 %v1348, %v1352
        %vm1354 = vweird.f32 %v1323
        %vm1355 = vweird.f32 %v1348
        %vm1356 = vmor %vm1354, %vm1355
        %v1357 = vsel %vm1356, %v1348, %v1353
        %v1358 = vrsqrt.pop %v1324
        %v1359 = vmul.f32 %v1358, %v1324
        %v1360 = vmul.f32 %v1359, %v1358
        %v1361 = vmul.f32 0.5, %v1360
        %v1362 = vsub.f32 1.5, %v1361
        %v1363 = vmul.f32 %v1358, %v1362
        %vm1364 = vweird.f32 %v1324
        %vm1365 = vweird.f32 %v1358
        %vm1366 = vmor %vm1364, %vm1365
        %v1367 = vsel %vm1366, %v1358, %v1363
        %v1368 = vrsqrt.pop %v1325
        %v1369 = vmul.f32 %v1368, %v1325
        %v1370 = vmul.f32 %v1369, %v1368
        %v1371 = vmul.f32 0.5, %v1370
        %v1372 = vsub.f32 1.5, %v1371
        %v1373 = vmul.f32 %v1368, %v1372
        %vm1374 = vweird.f32 %v1325
        %vm1375 = vweird.f32 %v1368
        %vm1376 = vmor %vm1374, %vm1375
        %v1377 = vsel %vm1376, %v1368, %v1373
        %v1378 = vrsqrt.pop %v1326
        %v1379 = vmul.f32 %v1378, %v1326
        %v1380 = vmul.f32 %v1379, %v1378
        %v1381 = vmul.f32 0.5, %v1380
        %v1382 = vsub.f32 1.5, %v1381
        %v1383 = vmul.f32 %v1378, %v1382
        %vm1384 = vweird.f32 %v1326
        %vm1385 = vweird.f32 %v1378
        %vm1386 = vmor %vm1384, %vm1385
        %v1387 = vsel %vm1386, %v1378, %v1383
        %v1388 = vrsqrt.pop %v1327
        %v1389 = vmul.f32 %v1388, %v1327
        %v1390 = vmul.f32 %v1389, %v1388
        %v1391 = vmul.f32 0.5, %v1390
        %v1392 = vsub.f32 1.5, %v1391
        %v1393 = vmul.f32 %v1388, %v1392
        %vm1394 = vweird.f32 %v1327
        %vm1395 = vweird.f32 %v1388
        %vm1396 = vmor %vm1394, %vm1395
        %v1397 = vsel %vm1396, %v1388, %v1393
        %v1398 = vrsqrt.pop %v1328
        %v1399 = vmul.f32 %v1398, %v1328
        %v1400 = vmul.f32 %v1399, %v1398
        %v1401 = vmul.f32 0.5, %v1400
        %v1402 = vsub.f32 1.5, %v1401
        %v1403 = vmul.f32 %v1398, %v1402
        %vm1404 = vweird.f32 %v1328
        %vm1405 = vweird.f32 %v1398
        %vm1406 = vmor %vm1404, %vm1405
        %v1407 = vsel %vm1406, %v1398, %v1403
        %v1408 = vrsqrt.pop %v1329
        %v1409 = vmul.f32 %v1408, %v1329
        %v1410 = vmul.f32 %v1409, %v1408
        %v1411 = vmul.f32 0.5, %v1410
        %v1412 = vsub.f32 1.5, %v1411
        %v1413 = vmul.f32 %v1408, %v1412
        %vm1414 = vweird.f32 %v1329
        %vm1415 = vweird.f32 %v1408
        %vm1416 = vmor %vm1414, %vm1415
        %v1417 = vsel %vm1416, %v1408, %v1413
        %v1418 = vrsqrt.pop %v1330
        %v1419 = vmul.f32 %v1418, %v1330
        %v1420 = vmul.f32 %v1419, %v1418
        %v1421 = vmul.f32 0.5, %v1420
        %v1422 = vsub.f32 1.5, %v1421
        %v1423 = vmul.f32 %v1418, %v1422
        %vm1424 = vweird.f32 %v1330
        %vm1425 = vweird.f32 %v1418
        %vm1426 = vmor %vm1424, %vm1425
        %v1427 = vsel %vm1426, %v1418, %v1423
        %v1428 = vrsqrt.pop %v1331
        %v1429 = vmul.f32 %v1428, %v1331
        %v1430 = vmul.f32 %v1429, %v1428
        %v1431 = vmul.f32 0.5, %v1430
        %v1432 = vsub.f32 1.5, %v1431
        %v1433 = vmul.f32 %v1428, %v1432
        %vm1434 = vweird.f32 %v1331
        %vm1435 = vweird.f32 %v1428
        %vm1436 = vmor %vm1434, %vm1435
        %v1437 = vsel %vm1436, %v1428, %v1433
        %v1438 = vrsqrt.pop %v1332
        %v1439 = vmul.f32 %v1438, %v1332
        %v1440 = vmul.f32 %v1439, %v1438
        %v1441 = vmul.f32 0.5, %v1440
        %v1442 = vsub.f32 1.5, %v1441
        %v1443 = vmul.f32 %v1438, %v1442
        %vm1444 = vweird.f32 %v1332
        %vm1445 = vweird.f32 %v1438
        %vm1446 = vmor %vm1444, %vm1445
        %v1447 = vsel %vm1446, %v1438, %v1443
        %v1448 = vrsqrt.pop %v1333
        %v1449 = vmul.f32 %v1448, %v1333
        %v1450 = vmul.f32 %v1449, %v1448
        %v1451 = vmul.f32 0.5, %v1450
        %v1452 = vsub.f32 1.5, %v1451
        %v1453 = vmul.f32 %v1448, %v1452
        %vm1454 = vweird.f32 %v1333
        %vm1455 = vweird.f32 %v1448
        %vm1456 = vmor %vm1454, %vm1455
        %v1457 = vsel %vm1456, %v1448, %v1453
        %v1458 = vrsqrt.pop %v1334
        %v1459 = vmul.f32 %v1458, %v1334
        %v1460 = vmul.f32 %v1459, %v1458
        %v1461 = vmul.f32 0.5, %v1460
        %v1462 = vsub.f32 1.5, %v1461
        %v1463 = vmul.f32 %v1458, %v1462
        %vm1464 = vweird.f32 %v1334
        %vm1465 = vweird.f32 %v1458
        %vm1466 = vmor %vm1464, %vm1465
        %v1467 = vsel %vm1466, %v1458, %v1463
        %v1468 = vrsqrt.pop %v1335
        %v1469 = vmul.f32 %v1468, %v1335
        %v1470 = vmul.f32 %v1469, %v1468
        %v1471 = vmul.f32 0.5, %v1470
        %v1472 = vsub.f32 1.5, %v1471
        %v1473 = vmul.f32 %v1468, %v1472
        %vm1474 = vweird.f32 %v1335
        %vm1475 = vweird.f32 %v1468
        %vm1476 = vmor %vm1474, %vm1475
        %v1477 = vsel %vm1476, %v1468, %v1473
        %v1478 = vrsqrt.pop %v1336
        %v1479 = vmul.f32 %v1478, %v1336
        %v1480 = vmul.f32 %v1479, %v1478
        %v1481 = vmul.f32 0.5, %v1480
        %v1482 = vsub.f32 1.5, %v1481
        %v1483 = vmul.f32 %v1478, %v1482
        %vm1484 = vweird.f32 %v1336
        %vm1485 = vweird.f32 %v1478
        %vm1486 = vmor %vm1484, %vm1485
        %v1487 = vsel %vm1486, %v1478, %v1483
        %v1488 = vrsqrt.pop %v1337
        %v1489 = vmul.f32 %v1488, %v1337
        %v1490 = vmul.f32 %v1489, %v1488
        %v1491 = vmul.f32 0.5, %v1490
        %v1492 = vsub.f32 1.5, %v1491
        %v1493 = vmul.f32 %v1488, %v1492
        %vm1494 = vweird.f32 %v1337
        %vm1495 = vweird.f32 %v1488
        %vm1496 = vmor %vm1494, %vm1495
        %v1497 = vsel %vm1496, %v1488, %v1493
        %v1498 = vmul.f32 %v1241, %v1347
        %v1499 = vmul.f32 %v1242, %v1357
        %v1500 = vmul.f32 %v1243, %v1367
        %v1501 = vmul.f32 %v1244, %v1377
        %v1502 = vmul.f32 %v1245, %v1387
        %v1503 = vmul.f32 %v1246, %v1397
        %v1504 = vmul.f32 %v1247, %v1407
        %v1505 = vmul.f32 %v1248, %v1417
        %v1506 = vmul.f32 %v1249, %v1427
        %v1507 = vmul.f32 %v1250, %v1437
        %v1508 = vmul.f32 %v1251, %v1447
        %v1509 = vmul.f32 %v1252, %v1457
        %v1510 = vmul.f32 %v1253, %v1467
        %v1511 = vmul.f32 %v1254, %v1477
        %v1512 = vmul.f32 %v1255, %v1487
        %v1513 = vmul.f32 %v1256, %v1497
        %v1515 = vperm.slane %v1321, 0
        %v1517 = vmul.f32 %v1515, %v1498
        %v1518 = vmul.f32 %v1515, %v1499
        %v1519 = vmul.f32 %v1515, %v1500
        %v1520 = vmul.f32 %v1515, %v1501
        %v1521 = vmul.f32 %v1515, %v1502
        %v1522 = vmul.f32 %v1515, %v1503
        %v1523 = vmul.f32 %v1515, %v1504
        %v1524 = vmul.f32 %v1515, %v1505
        %v1525 = vmul.f32 %v1515, %v1506
        %v1526 = vmul.f32 %v1515, %v1507
        %v1527 = vmul.f32 %v1515, %v1508
        %v1528 = vmul.f32 %v1515, %v1509
        %v1529 = vmul.f32 %v1515, %v1510
        %v1530 = vmul.f32 %v1515, %v1511
        %v1531 = vmul.f32 %v1515, %v1512
        %v1532 = vmul.f32 %v1515, %v1513
        %v1533 = vld [vmem:[%s717] sm:$0x1]
        %v1535 = vperm.slane %v1533, 0
        %v1537 = vadd.f32 %v1517, %v1535
        %v1538 = vadd.f32 %v1518, %v1535
        %v1539 = vadd.f32 %v1519, %v1535
        %v1540 = vadd.f32 %v1520, %v1535
        %v1541 = vadd.f32 %v1521, %v1535
        %v1542 = vadd.f32 %v1522, %v1535
        %v1543 = vadd.f32 %v1523, %v1535
        %v1544 = vadd.f32 %v1524, %v1535
        %v1545 = vadd.f32 %v1525, %v1535
        %v1546 = vadd.f32 %v1526, %v1535
        %v1547 = vadd.f32 %v1527, %v1535
        %v1548 = vadd.f32 %v1528, %v1535
        %v1549 = vadd.f32 %v1529, %v1535
        %v1550 = vadd.f32 %v1530, %v1535
        %v1551 = vadd.f32 %v1531, %v1535
        %v1552 = vadd.f32 %v1532, %v1535
        %v1553 = vld [vmem:[%s727] sm:$0xff]
        %v1554 = vld [vmem:[%s727 + $0x8] sm:$0xff]
        %v1555 = vld [vmem:[%s727 + $0x10] sm:$0xff]
        %v1556 = vld [vmem:[%s727 + $0x18] sm:$0xff]
        %v1557 = vld [vmem:[%s727 + $0x20] sm:$0xff]
        %v1558 = vld [vmem:[%s727 + $0x28] sm:$0xff]
        %v1559 = vld [vmem:[%s727 + $0x30] sm:$0xff]
        %v1560 = vld [vmem:[%s727 + $0x38] sm:$0xff]
        %v1561 = vld [vmem:[%s727 + $0x40] sm:$0xff]
        %v1562 = vld [vmem:[%s727 + $0x48] sm:$0xff]
        %v1563 = vld [vmem:[%s727 + $0x50] sm:$0xff]
        %v1564 = vld [vmem:[%s727 + $0x58] sm:$0xff]
        %v1565 = vld [vmem:[%s727 + $0x60] sm:$0xff]
        %v1566 = vld [vmem:[%s727 + $0x68] sm:$0xff]
        %v1567 = vld [vmem:[%s727 + $0x70] sm:$0xff]
        %v1568 = vld [vmem:[%s727 + $0x78] sm:$0xff]
        %v1569 = vld [vmem:[%s727 + $0x80] sm:$0xff]
        %v1570 = vld [vmem:[%s727 + $0x88] sm:$0xff]
        %v1571 = vld [vmem:[%s727 + $0x90] sm:$0xff]
        %v1572 = vld [vmem:[%s727 + $0x98] sm:$0xff]
        %v1573 = vld [vmem:[%s727 + $0xa0] sm:$0xff]
        %v1574 = vld [vmem:[%s727 + $0xa8] sm:$0xff]
        %v1575 = vld [vmem:[%s727 + $0xb0] sm:$0xff]
        %v1576 = vld [vmem:[%s727 + $0xb8] sm:$0xff]
        %v1577 = vld [vmem:[%s727 + $0xc0] sm:$0xff]
        %v1578 = vld [vmem:[%s727 + $0xc8] sm:$0xff]
        %v1579 = vld [vmem:[%s727 + $0xd0] sm:$0xff]
        %v1580 = vld [vmem:[%s727 + $0xd8] sm:$0xff]
        %v1581 = vld [vmem:[%s727 + $0xe0] sm:$0xff]
        %v1582 = vld [vmem:[%s727 + $0xe8] sm:$0xff]
        %v1583 = vld [vmem:[%s727 + $0xf0] sm:$0xff]
        %v1584 = vld [vmem:[%s727 + $0xf8] sm:$0xff]
        %v1585 = vld [vmem:[%s727 + $0x100] sm:$0xff]
        %v1586 = vld [vmem:[%s727 + $0x108] sm:$0xff]
        %v1587 = vld [vmem:[%s727 + $0x110] sm:$0xff]
        %v1588 = vld [vmem:[%s727 + $0x118] sm:$0xff]
        %v1589 = vld [vmem:[%s727 + $0x120] sm:$0xff]
        %v1590 = vld [vmem:[%s727 + $0x128] sm:$0xff]
        %v1591 = vld [vmem:[%s727 + $0x130] sm:$0xff]
        %v1592 = vld [vmem:[%s727 + $0x138] sm:$0xff]
        %v1593 = vld [vmem:[%s727 + $0x140] sm:$0xff]
        %v1594 = vld [vmem:[%s727 + $0x148] sm:$0xff]
        %v1595 = vld [vmem:[%s727 + $0x150] sm:$0xff]
        %v1596 = vld [vmem:[%s727 + $0x158] sm:$0xff]
        %v1597 = vld [vmem:[%s727 + $0x160] sm:$0xff]
        %v1598 = vld [vmem:[%s727 + $0x168] sm:$0xff]
        %v1599 = vld [vmem:[%s727 + $0x170] sm:$0xff]
        %v1600 = vld [vmem:[%s727 + $0x178] sm:$0xff]
        %v1601 = vld [vmem:[%s737] sm:$0x7]
        %v1603 = vperm.slane %v1601, 0
        %v1604 = vperm.slane %v1601, 1
        %v1605 = vperm.slane %v1601, 2
        %1609 = vmatpush.msra.mxu0 %v1598
        %1610 = vmatpush.msra.mxu0 %v1595
        %1611 = vmatpush.msra.mxu0 %v1592
        %1612 = vmatpush.msra.mxu0 %v1589
        %1613 = vmatpush.msra.mxu0 %v1586
        %1614 = vmatpush.msra.mxu0 %v1583
        %1615 = vmatpush.msra.mxu0 %v1580
        %1616 = vmatpush.msra.mxu0 %v1577
        %1617 = vmatpush.msra.mxu0 %v1574
        %1618 = vmatpush.msra.mxu0 %v1571
        %1619 = vmatpush.msra.mxu0 %v1568
        %1620 = vmatpush.msra.mxu0 %v1565
        %1621 = vmatpush.msra.mxu0 %v1562
        %1622 = vmatpush.msra.mxu0 %v1559
        %1623 = vmatpush.msra.mxu0 %v1556
        %1624 = vmatpush.msra.mxu0 %v1553
        %1625 = vmatmul.f32.gmra.mxu0 %v1537
        %v1626 = vpop.f32.mrf.mxu0
        %v1627 = vadd.f32 %v1603, %v1626
        %1628 = vmatmul.f32.gmra.mxu0 %v1538
        %v1629 = vpop.f32.mrf.mxu0
        %v1630 = vadd.f32 %v1603, %v1629
        %1631 = vmatmul.f32.gmra.mxu0 %v1539
        %v1632 = vpop.f32.mrf.mxu0
        %v1633 = vadd.f32 %v1603, %v1632
        %1634 = vmatmul.f32.gmra.mxu0 %v1540
        %v1635 = vpop.f32.mrf.mxu0
        %v1636 = vadd.f32 %v1603, %v1635
        %1637 = vmatmul.f32.gmra.mxu0 %v1541
        %v1638 = vpop.f32.mrf.mxu0
        %v1639 = vadd.f32 %v1603, %v1638
        %1640 = vmatmul.f32.gmra.mxu0 %v1542
        %v1641 = vpop.f32.mrf.mxu0
        %v1642 = vadd.f32 %v1603, %v1641
        %1643 = vmatmul.f32.gmra.mxu0 %v1543
        %v1644 = vpop.f32.mrf.mxu0
        %v1645 = vadd.f32 %v1603, %v1644
        %1646 = vmatmul.f32.gmra.mxu0 %v1544
        %v1647 = vpop.f32.mrf.mxu0
        %v1648 = vadd.f32 %v1603, %v1647
        %1649 = vmatmul.f32.gmra.mxu0 %v1545
        %v1650 = vpop.f32.mrf.mxu0
        %v1651 = vadd.f32 %v1603, %v1650
        %1652 = vmatmul.f32.gmra.mxu0 %v1546
        %v1653 = vpop.f32.mrf.mxu0
        %v1654 = vadd.f32 %v1603, %v1653
        %1655 = vmatmul.f32.gmra.mxu0 %v1547
        %v1656 = vpop.f32.mrf.mxu0
        %v1657 = vadd.f32 %v1603, %v1656
        %1658 = vmatmul.f32.gmra.mxu0 %v1548
        %v1659 = vpop.f32.mrf.mxu0
        %v1660 = vadd.f32 %v1603, %v1659
        %1661 = vmatmul.f32.gmra.mxu0 %v1549
        %v1662 = vpop.f32.mrf.mxu0
        %v1663 = vadd.f32 %v1603, %v1662
        %1664 = vmatmul.f32.gmra.mxu0 %v1550
        %v1665 = vpop.f32.mrf.mxu0
        %v1666 = vadd.f32 %v1603, %v1665
        %1667 = vmatmul.f32.gmra.mxu0 %v1551
        %v1668 = vpop.f32.mrf.mxu0
        %v1669 = vadd.f32 %v1603, %v1668
        %1670 = vmatmul.f32.gmra.mxu0 %v1552
        %v1671 = vpop.f32.mrf.mxu0
        %v1672 = vadd.f32 %v1603, %v1671
        %1673 = vdwg.mxu0
        %1674 = vmatpush.msra.mxu0 %v1599
        %1675 = vmatpush.msra.mxu0 %v1596
        %1676 = vmatpush.msra.mxu0 %v1593
        %1677 = vmatpush.msra.mxu0 %v1590
        %1678 = vmatpush.msra.mxu0 %v1587
        %1679 = vmatpush.msra.mxu0 %v1584
        %1680 = vmatpush.msra.mxu0 %v1581
        %1681 = vmatpush.msra.mxu0 %v1578
        %1682 = vmatpush.msra.mxu0 %v1575
        %1683 = vmatpush.msra.mxu0 %v1572
        %1684 = vmatpush.msra.mxu0 %v1569
        %1685 = vmatpush.msra.mxu0 %v1566
        %1686 = vmatpush.msra.mxu0 %v1563
        %1687 = vmatpush.msra.mxu0 %v1560
        %1688 = vmatpush.msra.mxu0 %v1557
        %1689 = vmatpush.msra.mxu0 %v1554
        %1690 = vmatmul.f32.gmra.mxu0 %v1537
        %v1691 = vpop.f32.mrf.mxu0
        %v1692 = vadd.f32 %v1604, %v1691
        %1693 = vmatmul.f32.gmra.mxu0 %v1538
        %v1694 = vpop.f32.mrf.mxu0
        %v1695 = vadd.f32 %v1604, %v1694
        %1696 = vmatmul.f32.gmra.mxu0 %v1539
        %v1697 = vpop.f32.mrf.mxu0
        %v1698 = vadd.f32 %v1604, %v1697
        %1699 = vmatmul.f32.gmra.mxu0 %v1540
        %v1700 = vpop.f32.mrf.mxu0
        %v1701 = vadd.f32 %v1604, %v1700
        %1702 = vmatmul.f32.gmra.mxu0 %v1541
        %v1703 = vpop.f32.mrf.mxu0
        %v1704 = vadd.f32 %v1604, %v1703
        %1705 = vmatmul.f32.gmra.mxu0 %v1542
        %v1706 = vpop.f32.mrf.mxu0
        %v1707 = vadd.f32 %v1604, %v1706
        %1708 = vmatmul.f32.gmra.mxu0 %v1543
        %v1709 = vpop.f32.mrf.mxu0
        %v1710 = vadd.f32 %v1604, %v1709
        %1711 = vmatmul.f32.gmra.mxu0 %v1544
        %v1712 = vpop.f32.mrf.mxu0
        %v1713 = vadd.f32 %v1604, %v1712
        %1714 = vmatmul.f32.gmra.mxu0 %v1545
        %v1715 = vpop.f32.mrf.mxu0
        %v1716 = vadd.f32 %v1604, %v1715
        %1717 = vmatmul.f32.gmra.mxu0 %v1546
        %v1718 = vpop.f32.mrf.mxu0
        %v1719 = vadd.f32 %v1604, %v1718
        %1720 = vmatmul.f32.gmra.mxu0 %v1547
        %v1721 = vpop.f32.mrf.mxu0
        %v1722 = vadd.f32 %v1604, %v1721
        %1723 = vmatmul.f32.gmra.mxu0 %v1548
        %v1724 = vpop.f32.mrf.mxu0
        %v1725 = vadd.f32 %v1604, %v1724
        %1726 = vmatmul.f32.gmra.mxu0 %v1549
        %v1727 = vpop.f32.mrf.mxu0
        %v1728 = vadd.f32 %v1604, %v1727
        %1729 = vmatmul.f32.gmra.mxu0 %v1550
        %v1730 = vpop.f32.mrf.mxu0
        %v1731 = vadd.f32 %v1604, %v1730
        %1732 = vmatmul.f32.gmra.mxu0 %v1551
        %v1733 = vpop.f32.mrf.mxu0
        %v1734 = vadd.f32 %v1604, %v1733
        %1735 = vmatmul.f32.gmra.mxu0 %v1552
        %v1736 = vpop.f32.mrf.mxu0
        %v1737 = vadd.f32 %v1604, %v1736
        %1738 = vdwg.mxu0
        %1739 = vmatpush.msra.mxu0 %v1600
        %1740 = vmatpush.msra.mxu0 %v1597
        %1741 = vmatpush.msra.mxu0 %v1594
        %1742 = vmatpush.msra.mxu0 %v1591
        %1743 = vmatpush.msra.mxu0 %v1588
        %1744 = vmatpush.msra.mxu0 %v1585
        %1745 = vmatpush.msra.mxu0 %v1582
        %1746 = vmatpush.msra.mxu0 %v1579
        %1747 = vmatpush.msra.mxu0 %v1576
        %1748 = vmatpush.msra.mxu0 %v1573
        %1749 = vmatpush.msra.mxu0 %v1570
        %1750 = vmatpush.msra.mxu0 %v1567
        %1751 = vmatpush.msra.mxu0 %v1564
        %1752 = vmatpush.msra.mxu0 %v1561
        %1753 = vmatpush.msra.mxu0 %v1558
        %1754 = vmatpush.msra.mxu0 %v1555
        %1755 = vmatmul.f32.gmra.mxu0 %v1537
        %v1756 = vpop.f32.mrf.mxu0
        %v1757 = vadd.f32 %v1605, %v1756
        %1758 = vmatmul.f32.gmra.mxu0 %v1538
        %v1759 = vpop.f32.mrf.mxu0
        %v1760 = vadd.f32 %v1605, %v1759
        %1761 = vmatmul.f32.gmra.mxu0 %v1539
        %v1762 = vpop.f32.mrf.mxu0
        %v1763 = vadd.f32 %v1605, %v1762
        %1764 = vmatmul.f32.gmra.mxu0 %v1540
        %v1765 = vpop.f32.mrf.mxu0
        %v1766 = vadd.f32 %v1605, %v1765
        %1767 = vmatmul.f32.gmra.mxu0 %v1541
        %v1768 = vpop.f32.mrf.mxu0
        %v1769 = vadd.f32 %v1605, %v1768
        %1770 = vmatmul.f32.gmra.mxu0 %v1542
        %v1771 = vpop.f32.mrf.mxu0
        %v1772 = vadd.f32 %v1605, %v1771
        %1773 = vmatmul.f32.gmra.mxu0 %v1543
        %v1774 = vpop.f32.mrf.mxu0
        %v1775 = vadd.f32 %v1605, %v1774
        %1776 = vmatmul.f32.gmra.mxu0 %v1544
        %v1777 = vpop.f32.mrf.mxu0
        %v1778 = vadd.f32 %v1605, %v1777
        %1779 = vmatmul.f32.gmra.mxu0 %v1545
        %v1780 = vpop.f32.mrf.mxu0
        %v1781 = vadd.f32 %v1605, %v1780
        %1782 = vmatmul.f32.gmra.mxu0 %v1546
        %v1783 = vpop.f32.mrf.mxu0
        %v1784 = vadd.f32 %v1605, %v1783
        %1785 = vmatmul.f32.gmra.mxu0 %v1547
        %v1786 = vpop.f32.mrf.mxu0
        %v1787 = vadd.f32 %v1605, %v1786
        %1788 = vmatmul.f32.gmra.mxu0 %v1548
        %v1789 = vpop.f32.mrf.mxu0
        %v1790 = vadd.f32 %v1605, %v1789
        %1791 = vmatmul.f32.gmra.mxu0 %v1549
        %v1792 = vpop.f32.mrf.mxu0
        %v1793 = vadd.f32 %v1605, %v1792
        %1794 = vmatmul.f32.gmra.mxu0 %v1550
        %v1795 = vpop.f32.mrf.mxu0
        %v1796 = vadd.f32 %v1605, %v1795
        %1797 = vmatmul.f32.gmra.mxu0 %v1551
        %v1798 = vpop.f32.mrf.mxu0
        %v1799 = vadd.f32 %v1605, %v1798
        %1800 = vmatmul.f32.gmra.mxu0 %v1552
        %v1801 = vpop.f32.mrf.mxu0
        %v1802 = vadd.f32 %v1605, %v1801
        %1803 = vdwg.mxu0
        %1820 = vrot.lane.b32.xlu0 %v1627, 96
        %v1821 = vpop.permute.xlu0 %1820
        %1822 = vrot.lane.b32.xlu0 %v1630, 96
        %v1823 = vpop.permute.xlu0 %1822
        %1824 = vrot.lane.b32.xlu0 %v1633, 96
        %v1825 = vpop.permute.xlu0 %1824
        %1826 = vrot.lane.b32.xlu0 %v1636, 96
        %v1827 = vpop.permute.xlu0 %1826
        %1828 = vrot.lane.b32.xlu0 %v1639, 96
        %v1829 = vpop.permute.xlu0 %1828
        %1830 = vrot.lane.b32.xlu0 %v1642, 96
        %v1831 = vpop.permute.xlu0 %1830
        %1832 = vrot.lane.b32.xlu0 %v1645, 96
        %v1833 = vpop.permute.xlu0 %1832
        %1834 = vrot.lane.b32.xlu0 %v1648, 96
        %v1835 = vpop.permute.xlu0 %1834
        %1836 = vrot.lane.b32.xlu0 %v1651, 96
        %v1837 = vpop.permute.xlu0 %1836
        %1838 = vrot.lane.b32.xlu0 %v1654, 96
        %v1839 = vpop.permute.xlu0 %1838
        %1840 = vrot.lane.b32.xlu0 %v1657, 96
        %v1841 = vpop.permute.xlu0 %1840
        %1842 = vrot.lane.b32.xlu0 %v1660, 96
        %v1843 = vpop.permute.xlu0 %1842
        %1844 = vrot.lane.b32.xlu0 %v1663, 96
        %v1845 = vpop.permute.xlu0 %1844
        %1846 = vrot.lane.b32.xlu0 %v1666, 96
        %v1847 = vpop.permute.xlu0 %1846
        %1848 = vrot.lane.b32.xlu0 %v1669, 96
        %v1849 = vpop.permute.xlu0 %1848
        %1850 = vrot.lane.b32.xlu0 %v1672, 96
        %v1851 = vpop.permute.xlu0 %1850
        %1852 = vrot.lane.b32.xlu0 %v1627, 64
        %v1853 = vpop.permute.xlu0 %1852
        %1854 = vrot.lane.b32.xlu0 %v1630, 64
        %v1855 = vpop.permute.xlu0 %1854
        %1856 = vrot.lane.b32.xlu0 %v1633, 64
        %v1857 = vpop.permute.xlu0 %1856
        %1858 = vrot.lane.b32.xlu0 %v1636, 64
        %v1859 = vpop.permute.xlu0 %1858
        %1860 = vrot.lane.b32.xlu0 %v1639, 64
        %v1861 = vpop.permute.xlu0 %1860
        %1862 = vrot.lane.b32.xlu0 %v1642, 64
        %v1863 = vpop.permute.xlu0 %1862
        %1864 = vrot.lane.b32.xlu0 %v1645, 64
        %v1865 = vpop.permute.xlu0 %1864
        %1866 = vrot.lane.b32.xlu0 %v1648, 64
        %v1867 = vpop.permute.xlu0 %1866
        %1868 = vrot.lane.b32.xlu0 %v1651, 64
        %v1869 = vpop.permute.xlu0 %1868
        %1870 = vrot.lane.b32.xlu0 %v1654, 64
        %v1871 = vpop.permute.xlu0 %1870
        %1872 = vrot.lane.b32.xlu0 %v1657, 64
        %v1873 = vpop.permute.xlu0 %1872
        %1874 = vrot.lane.b32.xlu0 %v1660, 64
        %v1875 = vpop.permute.xlu0 %1874
        %1876 = vrot.lane.b32.xlu0 %v1663, 64
        %v1877 = vpop.permute.xlu0 %1876
        %1878 = vrot.lane.b32.xlu0 %v1666, 64
        %v1879 = vpop.permute.xlu0 %1878
        %1880 = vrot.lane.b32.xlu0 %v1669, 64
        %v1881 = vpop.permute.xlu0 %1880
        %1882 = vrot.lane.b32.xlu0 %v1672, 64
        %v1883 = vpop.permute.xlu0 %1882
        %1884 = vrot.lane.b32.xlu0 %v1627, 32
        %v1885 = vpop.permute.xlu0 %1884
        %1886 = vrot.lane.b32.xlu0 %v1630, 32
        %v1887 = vpop.permute.xlu0 %1886
        %1888 = vrot.lane.b32.xlu0 %v1633, 32
        %v1889 = vpop.permute.xlu0 %1888
        %1890 = vrot.lane.b32.xlu0 %v1636, 32
        %v1891 = vpop.permute.xlu0 %1890
        %1892 = vrot.lane.b32.xlu0 %v1639, 32
        %v1893 = vpop.permute.xlu0 %1892
        %1894 = vrot.lane.b32.xlu0 %v1642, 32
        %v1895 = vpop.permute.xlu0 %1894
        %1896 = vrot.lane.b32.xlu0 %v1645, 32
        %v1897 = vpop.permute.xlu0 %1896
        %1898 = vrot.lane.b32.xlu0 %v1648, 32
        %v1899 = vpop.permute.xlu0 %1898
        %1900 = vrot.lane.b32.xlu0 %v1651, 32
        %v1901 = vpop.permute.xlu0 %1900
        %1902 = vrot.lane.b32.xlu0 %v1654, 32
        %v1903 = vpop.permute.xlu0 %1902
        %1904 = vrot.lane.b32.xlu0 %v1657, 32
        %v1905 = vpop.permute.xlu0 %1904
        %1906 = vrot.lane.b32.xlu0 %v1660, 32
        %v1907 = vpop.permute.xlu0 %1906
        %1908 = vrot.lane.b32.xlu0 %v1663, 32
        %v1909 = vpop.permute.xlu0 %1908
        %1910 = vrot.lane.b32.xlu0 %v1666, 32
        %v1911 = vpop.permute.xlu0 %1910
        %1912 = vrot.lane.b32.xlu0 %v1669, 32
        %v1913 = vpop.permute.xlu0 %1912
        %1914 = vrot.lane.b32.xlu0 %v1672, 32
        %v1915 = vpop.permute.xlu0 %1914
        %1932 = vrot.lane.b32.xlu0 %v1692, 96
        %v1933 = vpop.permute.xlu0 %1932
        %1934 = vrot.lane.b32.xlu0 %v1695, 96
        %v1935 = vpop.permute.xlu0 %1934
        %1936 = vrot.lane.b32.xlu0 %v1698, 96
        %v1937 = vpop.permute.xlu0 %1936
        %1938 = vrot.lane.b32.xlu0 %v1701, 96
        %v1939 = vpop.permute.xlu0 %1938
        %1940 = vrot.lane.b32.xlu0 %v1704, 96
        %v1941 = vpop.permute.xlu0 %1940
        %1942 = vrot.lane.b32.xlu0 %v1707, 96
        %v1943 = vpop.permute.xlu0 %1942
        %1944 = vrot.lane.b32.xlu0 %v1710, 96
        %v1945 = vpop.permute.xlu0 %1944
        %1946 = vrot.lane.b32.xlu0 %v1713, 96
        %v1947 = vpop.permute.xlu0 %1946
        %1948 = vrot.lane.b32.xlu0 %v1716, 96
        %v1949 = vpop.permute.xlu0 %1948
        %1950 = vrot.lane.b32.xlu0 %v1719, 96
        %v1951 = vpop.permute.xlu0 %1950
        %1952 = vrot.lane.b32.xlu0 %v1722, 96
        %v1953 = vpop.permute.xlu0 %1952
        %1954 = vrot.lane.b32.xlu0 %v1725, 96
        %v1955 = vpop.permute.xlu0 %1954
        %1956 = vrot.lane.b32.xlu0 %v1728, 96
        %v1957 = vpop.permute.xlu0 %1956
        %1958 = vrot.lane.b32.xlu0 %v1731, 96
        %v1959 = vpop.permute.xlu0 %1958
        %1960 = vrot.lane.b32.xlu0 %v1734, 96
        %v1961 = vpop.permute.xlu0 %1960
        %1962 = vrot.lane.b32.xlu0 %v1737, 96
        %v1963 = vpop.permute.xlu0 %1962
        %1964 = vrot.lane.b32.xlu0 %v1692, 64
        %v1965 = vpop.permute.xlu0 %1964
        %1966 = vrot.lane.b32.xlu0 %v1695, 64
        %v1967 = vpop.permute.xlu0 %1966
        %1968 = vrot.lane.b32.xlu0 %v1698, 64
        %v1969 = vpop.permute.xlu0 %1968
        %1970 = vrot.lane.b32.xlu0 %v1701, 64
        %v1971 = vpop.permute.xlu0 %1970
        %1972 = vrot.lane.b32.xlu0 %v1704, 64
        %v1973 = vpop.permute.xlu0 %1972
        %1974 = vrot.lane.b32.xlu0 %v1707, 64
        %v1975 = vpop.permute.xlu0 %1974
        %1976 = vrot.lane.b32.xlu0 %v1710, 64
        %v1977 = vpop.permute.xlu0 %1976
        %1978 = vrot.lane.b32.xlu0 %v1713, 64
        %v1979 = vpop.permute.xlu0 %1978
        %1980 = vrot.lane.b32.xlu0 %v1716, 64
        %v1981 = vpop.permute.xlu0 %1980
        %1982 = vrot.lane.b32.xlu0 %v1719, 64
        %v1983 = vpop.permute.xlu0 %1982
        %1984 = vrot.lane.b32.xlu0 %v1722, 64
        %v1985 = vpop.permute.xlu0 %1984
        %1986 = vrot.lane.b32.xlu0 %v1725, 64
        %v1987 = vpop.permute.xlu0 %1986
        %1988 = vrot.lane.b32.xlu0 %v1728, 64
        %v1989 = vpop.permute.xlu0 %1988
        %1990 = vrot.lane.b32.xlu0 %v1731, 64
        %v1991 = vpop.permute.xlu0 %1990
        %1992 = vrot.lane.b32.xlu0 %v1734, 64
        %v1993 = vpop.permute.xlu0 %1992
        %1994 = vrot.lane.b32.xlu0 %v1737, 64
        %v1995 = vpop.permute.xlu0 %1994
        %1996 = vrot.lane.b32.xlu0 %v1692, 32
        %v1997 = vpop.permute.xlu0 %1996
        %1998 = vrot.lane.b32.xlu0 %v1695, 32
        %v1999 = vpop.permute.xlu0 %1998
        %2000 = vrot.lane.b32.xlu0 %v1698, 32
        %v2001 = vpop.permute.xlu0 %2000
        %2002 = vrot.lane.b32.xlu0 %v1701, 32
        %v2003 = vpop.permute.xlu0 %2002
        %2004 = vrot.lane.b32.xlu0 %v1704, 32
        %v2005 = vpop.permute.xlu0 %2004
        %2006 = vrot.lane.b32.xlu0 %v1707, 32
        %v2007 = vpop.permute.xlu0 %2006
        %2008 = vrot.lane.b32.xlu0 %v1710, 32
        %v2009 = vpop.permute.xlu0 %2008
        %2010 = vrot.lane.b32.xlu0 %v1713, 32
        %v2011 = vpop.permute.xlu0 %2010
        %2012 = vrot.lane.b32.xlu0 %v1716, 32
        %v2013 = vpop.permute.xlu0 %2012
        %2014 = vrot.lane.b32.xlu0 %v1719, 32
        %v2015 = vpop.permute.xlu0 %2014
        %2016 = vrot.lane.b32.xlu0 %v1722, 32
        %v2017 = vpop.permute.xlu0 %2016
        %2018 = vrot.lane.b32.xlu0 %v1725, 32
        %v2019 = vpop.permute.xlu0 %2018
        %2020 = vrot.lane.b32.xlu0 %v1728, 32
        %v2021 = vpop.permute.xlu0 %2020
        %2022 = vrot.lane.b32.xlu0 %v1731, 32
        %v2023 = vpop.permute.xlu0 %2022
        %2024 = vrot.lane.b32.xlu0 %v1734, 32
        %v2025 = vpop.permute.xlu0 %2024
        %2026 = vrot.lane.b32.xlu0 %v1737, 32
        %v2027 = vpop.permute.xlu0 %2026
        %2044 = vrot.lane.b32.xlu0 %v1757, 96
        %v2045 = vpop.permute.xlu0 %2044
        %2046 = vrot.lane.b32.xlu0 %v1760, 96
        %v2047 = vpop.permute.xlu0 %2046
        %2048 = vrot.lane.b32.xlu0 %v1763, 96
        %v2049 = vpop.permute.xlu0 %2048
        %2050 = vrot.lane.b32.xlu0 %v1766, 96
        %v2051 = vpop.permute.xlu0 %2050
        %2052 = vrot.lane.b32.xlu0 %v1769, 96
        %v2053 = vpop.permute.xlu0 %2052
        %2054 = vrot.lane.b32.xlu0 %v1772, 96
        %v2055 = vpop.permute.xlu0 %2054
        %2056 = vrot.lane.b32.xlu0 %v1775, 96
        %v2057 = vpop.permute.xlu0 %2056
        %2058 = vrot.lane.b32.xlu0 %v1778, 96
        %v2059 = vpop.permute.xlu0 %2058
        %2060 = vrot.lane.b32.xlu0 %v1781, 96
        %v2061 = vpop.permute.xlu0 %2060
        %2062 = vrot.lane.b32.xlu0 %v1784, 96
        %v2063 = vpop.permute.xlu0 %2062
        %2064 = vrot.lane.b32.xlu0 %v1787, 96
        %v2065 = vpop.permute.xlu0 %2064
        %2066 = vrot.lane.b32.xlu0 %v1790, 96
        %v2067 = vpop.permute.xlu0 %2066
        %2068 = vrot.lane.b32.xlu0 %v1793, 96
        %v2069 = vpop.permute.xlu0 %2068
        %2070 = vrot.lane.b32.xlu0 %v1796, 96
        %v2071 = vpop.permute.xlu0 %2070
        %2072 = vrot.lane.b32.xlu0 %v1799, 96
        %v2073 = vpop.permute.xlu0 %2072
        %2074 = vrot.lane.b32.xlu0 %v1802, 96
        %v2075 = vpop.permute.xlu0 %2074
        %2092 = vrot.lane.b32.xlu0 %v1757, 64
        %v2093 = vpop.permute.xlu0 %2092
        %2094 = vrot.lane.b32.xlu0 %v1760, 64
        %v2095 = vpop.permute.xlu0 %2094
        %2096 = vrot.lane.b32.xlu0 %v1763, 64
        %v2097 = vpop.permute.xlu0 %2096
        %2098 = vrot.lane.b32.xlu0 %v1766, 64
        %v2099 = vpop.permute.xlu0 %2098
        %2100 = vrot.lane.b32.xlu0 %v1769, 64
        %v2101 = vpop.permute.xlu0 %2100
        %2102 = vrot.lane.b32.xlu0 %v1772, 64
        %v2103 = vpop.permute.xlu0 %2102
        %2104 = vrot.lane.b32.xlu0 %v1775, 64
        %v2105 = vpop.permute.xlu0 %2104
        %2106 = vrot.lane.b32.xlu0 %v1778, 64
        %v2107 = vpop.permute.xlu0 %2106
        %2108 = vrot.lane.b32.xlu0 %v1781, 64
        %v2109 = vpop.permute.xlu0 %2108
        %2110 = vrot.lane.b32.xlu0 %v1784, 64
        %v2111 = vpop.permute.xlu0 %2110
        %2112 = vrot.lane.b32.xlu0 %v1787, 64
        %v2113 = vpop.permute.xlu0 %2112
        %2114 = vrot.lane.b32.xlu0 %v1790, 64
        %v2115 = vpop.permute.xlu0 %2114
        %2116 = vrot.lane.b32.xlu0 %v1793, 64
        %v2117 = vpop.permute.xlu0 %2116
        %2118 = vrot.lane.b32.xlu0 %v1796, 64
        %v2119 = vpop.permute.xlu0 %2118
        %2120 = vrot.lane.b32.xlu0 %v1799, 64
        %v2121 = vpop.permute.xlu0 %2120
        %2122 = vrot.lane.b32.xlu0 %v1802, 64
        %v2123 = vpop.permute.xlu0 %2122
        %2140 = vrot.lane.b32.xlu0 %v1757, 32
        %v2141 = vpop.permute.xlu0 %2140
        %2142 = vrot.lane.b32.xlu0 %v1760, 32
        %v2143 = vpop.permute.xlu0 %2142
        %2144 = vrot.lane.b32.xlu0 %v1763, 32
        %v2145 = vpop.permute.xlu0 %2144
        %2146 = vrot.lane.b32.xlu0 %v1766, 32
        %v2147 = vpop.permute.xlu0 %2146
        %2148 = vrot.lane.b32.xlu0 %v1769, 32
        %v2149 = vpop.permute.xlu0 %2148
        %2150 = vrot.lane.b32.xlu0 %v1772, 32
        %v2151 = vpop.permute.xlu0 %2150
        %2152 = vrot.lane.b32.xlu0 %v1775, 32
        %v2153 = vpop.permute.xlu0 %2152
        %2154 = vrot.lane.b32.xlu0 %v1778, 32
        %v2155 = vpop.permute.xlu0 %2154
        %2156 = vrot.lane.b32.xlu0 %v1781, 32
        %v2157 = vpop.permute.xlu0 %2156
        %2158 = vrot.lane.b32.xlu0 %v1784, 32
        %v2159 = vpop.permute.xlu0 %2158
        %2160 = vrot.lane.b32.xlu0 %v1787, 32
        %v2161 = vpop.permute.xlu0 %2160
        %2162 = vrot.lane.b32.xlu0 %v1790, 32
        %v2163 = vpop.permute.xlu0 %2162
        %2164 = vrot.lane.b32.xlu0 %v1793, 32
        %v2165 = vpop.permute.xlu0 %2164
        %2166 = vrot.lane.b32.xlu0 %v1796, 32
        %v2167 = vpop.permute.xlu0 %2166
        %2168 = vrot.lane.b32.xlu0 %v1799, 32
        %v2169 = vpop.permute.xlu0 %2168
        %2170 = vrot.lane.b32.xlu0 %v1802, 32
        %v2171 = vpop.permute.xlu0 %2170
        %vm2188 = vcmask 261120
        %v2189 = vsel %vm2188, %v1627, 0
        %v2191 = vsel %vm2188, %v1630, 0
        %v2193 = vsel %vm2188, %v1692, 0
        %v2195 = vsel %vm2188, %v1695, 0
        %2197 = vmatpush.xpose.msra.mxu0 0.0
        %2198 = vmatpush.xpose.msra.mxu0 0.0
        %2199 = vmatpush.xpose.msra.mxu0 0.0
        %2200 = vmatpush.xpose.msra.mxu0 0.0
        %2201 = vmatpush.xpose.msra.mxu0 0.0
        %2202 = vmatpush.xpose.msra.mxu0 0.0
        %2203 = vmatpush.xpose.msra.mxu0 0.0
        %2204 = vmatpush.xpose.msra.mxu0 0.0
        %2205 = vmatpush.xpose.msra.mxu0 0.0
        %2206 = vmatpush.xpose.msra.mxu0 0.0
        %2207 = vmatpush.xpose.msra.mxu0 0.0
        %2208 = vmatpush.xpose.msra.mxu0 0.0
        %2209 = vmatpush.xpose.msra.mxu0 0.0
        %2210 = vmatpush.xpose.msra.mxu0 0.0
        %2211 = vmatpush.xpose.msra.mxu0 %v2195
        %2212 = vmatpush.xpose.msra.mxu0 %v2193
        %2213 = vmatmul.f32.gmra.mxu0 %v2189
        %v2214 = vpop.f32.mrf.mxu0
        %v2215 = vadd.f32 0.0, %v2214
        %2216 = vmatmul.f32.gmra.mxu0 %v2191
        %v2217 = vpop.f32.mrf.mxu0
        %v2218 = vadd.f32 0.0, %v2217
        %2219 = vdwg.mxu0
        %v2220 = vsel %vm2188, %v1633, 0
        %v2222 = vsel %vm2188, %v1636, 0
        %v2224 = vsel %vm2188, %v1698, 0
        %v2226 = vsel %vm2188, %v1701, 0
        %2228 = vmatpush.xpose.msra.mxu0 0.0
        %2229 = vmatpush.xpose.msra.mxu0 0.0
        %2230 = vmatpush.xpose.msra.mxu0 0.0
        %2231 = vmatpush.xpose.msra.mxu0 0.0
        %2232 = vmatpush.xpose.msra.mxu0 0.0
        %2233 = vmatpush.xpose.msra.mxu0 0.0
        %2234 = vmatpush.xpose.msra.mxu0 0.0
        %2235 = vmatpush.xpose.msra.mxu0 0.0
        %2236 = vmatpush.xpose.msra.mxu0 0.0
        %2237 = vmatpush.xpose.msra.mxu0 0.0
        %2238 = vmatpush.xpose.msra.mxu0 0.0
        %2239 = vmatpush.xpose.msra.mxu0 0.0
        %2240 = vmatpush.xpose.msra.mxu0 0.0
        %2241 = vmatpush.xpose.msra.mxu0 0.0
        %2242 = vmatpush.xpose.msra.mxu0 %v2226
        %2243 = vmatpush.xpose.msra.mxu0 %v2224
        %2244 = vmatmul.f32.gmra.mxu0 %v2220
        %v2245 = vpop.f32.mrf.mxu0
        %v2246 = vadd.f32 0.0, %v2245
        %2247 = vmatmul.f32.gmra.mxu0 %v2222
        %v2248 = vpop.f32.mrf.mxu0
        %v2249 = vadd.f32 0.0, %v2248
        %2250 = vdwg.mxu0
        %v2251 = vsel %vm2188, %v1639, 0
        %v2253 = vsel %vm2188, %v1642, 0
        %v2255 = vsel %vm2188, %v1704, 0
        %v2257 = vsel %vm2188, %v1707, 0
        %2259 = vmatpush.xpose.msra.mxu0 0.0
        %2260 = vmatpush.xpose.msra.mxu0 0.0
        %2261 = vmatpush.xpose.msra.mxu0 0.0
        %2262 = vmatpush.xpose.msra.mxu0 0.0
        %2263 = vmatpush.xpose.msra.mxu0 0.0
        %2264 = vmatpush.xpose.msra.mxu0 0.0
        %2265 = vmatpush.xpose.msra.mxu0 0.0
        %2266 = vmatpush.xpose.msra.mxu0 0.0
        %2267 = vmatpush.xpose.msra.mxu0 0.0
        %2268 = vmatpush.xpose.msra.mxu0 0.0
        %2269 = vmatpush.xpose.msra.mxu0 0.0
        %2270 = vmatpush.xpose.msra.mxu0 0.0
        %2271 = vmatpush.xpose.msra.mxu0 0.0
        %2272 = vmatpush.xpose.msra.mxu0 0.0
        %2273 = vmatpush.xpose.msra.mxu0 %v2257
        %2274 = vmatpush.xpose.msra.mxu0 %v2255
        %2275 = vmatmul.f32.gmra.mxu0 %v2251
        %v2276 = vpop.f32.mrf.mxu0
        %v2277 = vadd.f32 0.0, %v2276
        %2278 = vmatmul.f32.gmra.mxu0 %v2253
        %v2279 = vpop.f32.mrf.mxu0
        %v2280 = vadd.f32 0.0, %v2279
        %2281 = vdwg.mxu0
        %v2282 = vsel %vm2188, %v1645, 0
        %v2284 = vsel %vm2188, %v1648, 0
        %v2286 = vsel %vm2188, %v1710, 0
        %v2288 = vsel %vm2188, %v1713, 0
        %2290 = vmatpush.xpose.msra.mxu0 0.0
        %2291 = vmatpush.xpose.msra.mxu0 0.0
        %2292 = vmatpush.xpose.msra.mxu0 0.0
        %2293 = vmatpush.xpose.msra.mxu0 0.0
        %2294 = vmatpush.xpose.msra.mxu0 0.0
        %2295 = vmatpush.xpose.msra.mxu0 0.0
        %2296 = vmatpush.xpose.msra.mxu0 0.0
        %2297 = vmatpush.xpose.msra.mxu0 0.0
        %2298 = vmatpush.xpose.msra.mxu0 0.0
        %2299 = vmatpush.xpose.msra.mxu0 0.0
        %2300 = vmatpush.xpose.msra.mxu0 0.0
        %2301 = vmatpush.xpose.msra.mxu0 0.0
        %2302 = vmatpush.xpose.msra.mxu0 0.0
        %2303 = vmatpush.xpose.msra.mxu0 0.0
        %2304 = vmatpush.xpose.msra.mxu0 %v2288
        %2305 = vmatpush.xpose.msra.mxu0 %v2286
        %2306 = vmatmul.f32.gmra.mxu0 %v2282
        %v2307 = vpop.f32.mrf.mxu0
        %v2308 = vadd.f32 0.0, %v2307
        %2309 = vmatmul.f32.gmra.mxu0 %v2284
        %v2310 = vpop.f32.mrf.mxu0
        %v2311 = vadd.f32 0.0, %v2310
        %2312 = vdwg.mxu0
        %v2313 = vsel %vm2188, %v1651, 0
        %v2315 = vsel %vm2188, %v1654, 0
        %v2317 = vsel %vm2188, %v1716, 0
        %v2319 = vsel %vm2188, %v1719, 0
        %2321 = vmatpush.xpose.msra.mxu0 0.0
        %2322 = vmatpush.xpose.msra.mxu0 0.0
        %2323 = vmatpush.xpose.msra.mxu0 0.0
        %2324 = vmatpush.xpose.msra.mxu0 0.0
        %2325 = vmatpush.xpose.msra.mxu0 0.0
        %2326 = vmatpush.xpose.msra.mxu0 0.0
        %2327 = vmatpush.xpose.msra.mxu0 0.0
        %2328 = vmatpush.xpose.msra.mxu0 0.0
        %2329 = vmatpush.xpose.msra.mxu0 0.0
        %2330 = vmatpush.xpose.msra.mxu0 0.0
        %2331 = vmatpush.xpose.msra.mxu0 0.0
        %2332 = vmatpush.xpose.msra.mxu0 0.0
        %2333 = vmatpush.xpose.msra.mxu0 0.0
        %2334 = vmatpush.xpose.msra.mxu0 0.0
        %2335 = vmatpush.xpose.msra.mxu0 %v2319
        %2336 = vmatpush.xpose.msra.mxu0 %v2317
        %2337 = vmatmul.f32.gmra.mxu0 %v2313
        %v2338 = vpop.f32.mrf.mxu0
        %v2339 = vadd.f32 0.0, %v2338
        %2340 = vmatmul.f32.gmra.mxu0 %v2315
        %v2341 = vpop.f32.mrf.mxu0
        %v2342 = vadd.f32 0.0, %v2341
        %2343 = vdwg.mxu0
        %v2344 = vsel %vm2188, %v1657, 0
        %v2346 = vsel %vm2188, %v1660, 0
        %v2348 = vsel %vm2188, %v1722, 0
        %v2350 = vsel %vm2188, %v1725, 0
        %2352 = vmatpush.xpose.msra.mxu0 0.0
        %2353 = vmatpush.xpose.msra.mxu0 0.0
        %2354 = vmatpush.xpose.msra.mxu0 0.0
        %2355 = vmatpush.xpose.msra.mxu0 0.0
        %2356 = vmatpush.xpose.msra.mxu0 0.0
        %2357 = vmatpush.xpose.msra.mxu0 0.0
        %2358 = vmatpush.xpose.msra.mxu0 0.0
        %2359 = vmatpush.xpose.msra.mxu0 0.0
        %2360 = vmatpush.xpose.msra.mxu0 0.0
        %2361 = vmatpush.xpose.msra.mxu0 0.0
        %2362 = vmatpush.xpose.msra.mxu0 0.0
        %2363 = vmatpush.xpose.msra.mxu0 0.0
        %2364 = vmatpush.xpose.msra.mxu0 0.0
        %2365 = vmatpush.xpose.msra.mxu0 0.0
        %2366 = vmatpush.xpose.msra.mxu0 %v2350
        %2367 = vmatpush.xpose.msra.mxu0 %v2348
        %2368 = vmatmul.f32.gmra.mxu0 %v2344
        %v2369 = vpop.f32.mrf.mxu0
        %v2370 = vadd.f32 0.0, %v2369
        %2371 = vmatmul.f32.gmra.mxu0 %v2346
        %v2372 = vpop.f32.mrf.mxu0
        %v2373 = vadd.f32 0.0, %v2372
        %2374 = vdwg.mxu0
        %v2375 = vsel %vm2188, %v1663, 0
        %v2377 = vsel %vm2188, %v1666, 0
        %v2379 = vsel %vm2188, %v1728, 0
        %v2381 = vsel %vm2188, %v1731, 0
        %2383 = vmatpush.xpose.msra.mxu0 0.0
        %2384 = vmatpush.xpose.msra.mxu0 0.0
        %2385 = vmatpush.xpose.msra.mxu0 0.0
        %2386 = vmatpush.xpose.msra.mxu0 0.0
        %2387 = vmatpush.xpose.msra.mxu0 0.0
        %2388 = vmatpush.xpose.msra.mxu0 0.0
        %2389 = vmatpush.xpose.msra.mxu0 0.0
        %2390 = vmatpush.xpose.msra.mxu0 0.0
        %2391 = vmatpush.xpose.msra.mxu0 0.0
        %2392 = vmatpush.xpose.msra.mxu0 0.0
        %2393 = vmatpush.xpose.msra.mxu0 0.0
        %2394 = vmatpush.xpose.msra.mxu0 0.0
        %2395 = vmatpush.xpose.msra.mxu0 0.0
        %2396 = vmatpush.xpose.msra.mxu0 0.0
        %2397 = vmatpush.xpose.msra.mxu0 %v2381
        %2398 = vmatpush.xpose.msra.mxu0 %v2379
        %2399 = vmatmul.f32.gmra.mxu0 %v2375
        %v2400 = vpop.f32.mrf.mxu0
        %v2401 = vadd.f32 0.0, %v2400
        %2402 = vmatmul.f32.gmra.mxu0 %v2377
        %v2403 = vpop.f32.mrf.mxu0
        %v2404 = vadd.f32 0.0, %v2403
        %2405 = vdwg.mxu0
        %v2406 = vsel %vm2188, %v1669, 0
        %v2408 = vsel %vm2188, %v1672, 0
        %v2410 = vsel %vm2188, %v1734, 0
        %v2412 = vsel %vm2188, %v1737, 0
        %2414 = vmatpush.xpose.msra.mxu0 0.0
        %2415 = vmatpush.xpose.msra.mxu0 0.0
        %2416 = vmatpush.xpose.msra.mxu0 0.0
        %2417 = vmatpush.xpose.msra.mxu0 0.0
        %2418 = vmatpush.xpose.msra.mxu0 0.0
        %2419 = vmatpush.xpose.msra.mxu0 0.0
        %2420 = vmatpush.xpose.msra.mxu0 0.0
        %2421 = vmatpush.xpose.msra.mxu0 0.0
        %2422 = vmatpush.xpose.msra.mxu0 0.0
        %2423 = vmatpush.xpose.msra.mxu0 0.0
        %2424 = vmatpush.xpose.msra.mxu0 0.0
        %2425 = vmatpush.xpose.msra.mxu0 0.0
        %2426 = vmatpush.xpose.msra.mxu0 0.0
        %2427 = vmatpush.xpose.msra.mxu0 0.0
        %2428 = vmatpush.xpose.msra.mxu0 %v2412
        %2429 = vmatpush.xpose.msra.mxu0 %v2410
        %2430 = vmatmul.f32.gmra.mxu0 %v2406
        %v2431 = vpop.f32.mrf.mxu0
        %v2432 = vadd.f32 0.0, %v2431
        %2433 = vmatmul.f32.gmra.mxu0 %v2408
        %v2434 = vpop.f32.mrf.mxu0
        %v2435 = vadd.f32 0.0, %v2434
        %2436 = vdwg.mxu0
        %v2437 = vsel %vm2188, %v1821, 0
        %v2439 = vsel %vm2188, %v1823, 0
        %v2441 = vsel %vm2188, %v1933, 0
        %v2443 = vsel %vm2188, %v1935, 0
        %2445 = vmatpush.xpose.msra.mxu0 0.0
        %2446 = vmatpush.xpose.msra.mxu0 0.0
        %2447 = vmatpush.xpose.msra.mxu0 0.0
        %2448 = vmatpush.xpose.msra.mxu0 0.0
        %2449 = vmatpush.xpose.msra.mxu0 0.0
        %2450 = vmatpush.xpose.msra.mxu0 0.0
        %2451 = vmatpush.xpose.msra.mxu0 0.0
        %2452 = vmatpush.xpose.msra.mxu0 0.0
        %2453 = vmatpush.xpose.msra.mxu0 0.0
        %2454 = vmatpush.xpose.msra.mxu0 0.0
        %2455 = vmatpush.xpose.msra.mxu0 0.0
        %2456 = vmatpush.xpose.msra.mxu0 0.0
        %2457 = vmatpush.xpose.msra.mxu0 0.0
        %2458 = vmatpush.xpose.msra.mxu0 0.0
        %2459 = vmatpush.xpose.msra.mxu0 %v2443
        %2460 = vmatpush.xpose.msra.mxu0 %v2441
        %2461 = vmatmul.f32.gmra.mxu0 %v2437
        %v2462 = vpop.f32.mrf.mxu0
        %v2463 = vadd.f32 0.0, %v2462
        %2464 = vmatmul.f32.gmra.mxu0 %v2439
        %v2465 = vpop.f32.mrf.mxu0
        %v2466 = vadd.f32 0.0, %v2465
        %2467 = vdwg.mxu0
        %v2468 = vsel %vm2188, %v1825, 0
        %v2470 = vsel %vm2188, %v1827, 0
        %v2472 = vsel %vm2188, %v1937, 0
        %v2474 = vsel %vm2188, %v1939, 0
        %2476 = vmatpush.xpose.msra.mxu0 0.0
        %2477 = vmatpush.xpose.msra.mxu0 0.0
        %2478 = vmatpush.xpose.msra.mxu0 0.0
        %2479 = vmatpush.xpose.msra.mxu0 0.0
        %2480 = vmatpush.xpose.msra.mxu0 0.0
        %2481 = vmatpush.xpose.msra.mxu0 0.0
        %2482 = vmatpush.xpose.msra.mxu0 0.0
        %2483 = vmatpush.xpose.msra.mxu0 0.0
        %2484 = vmatpush.xpose.msra.mxu0 0.0
        %2485 = vmatpush.xpose.msra.mxu0 0.0
        %2486 = vmatpush.xpose.msra.mxu0 0.0
        %2487 = vmatpush.xpose.msra.mxu0 0.0
        %2488 = vmatpush.xpose.msra.mxu0 0.0
        %2489 = vmatpush.xpose.msra.mxu0 0.0
        %2490 = vmatpush.xpose.msra.mxu0 %v2474
        %2491 = vmatpush.xpose.msra.mxu0 %v2472
        %2492 = vmatmul.f32.gmra.mxu0 %v2468
        %v2493 = vpop.f32.mrf.mxu0
        %v2494 = vadd.f32 0.0, %v2493
        %2495 = vmatmul.f32.gmra.mxu0 %v2470
        %v2496 = vpop.f32.mrf.mxu0
        %v2497 = vadd.f32 0.0, %v2496
        %2498 = vdwg.mxu0
        %v2499 = vsel %vm2188, %v1829, 0
        %v2501 = vsel %vm2188, %v1831, 0
        %v2503 = vsel %vm2188, %v1941, 0
        %v2505 = vsel %vm2188, %v1943, 0
        %2507 = vmatpush.xpose.msra.mxu0 0.0
        %2508 = vmatpush.xpose.msra.mxu0 0.0
        %2509 = vmatpush.xpose.msra.mxu0 0.0
        %2510 = vmatpush.xpose.msra.mxu0 0.0
        %2511 = vmatpush.xpose.msra.mxu0 0.0
        %2512 = vmatpush.xpose.msra.mxu0 0.0
        %2513 = vmatpush.xpose.msra.mxu0 0.0
        %2514 = vmatpush.xpose.msra.mxu0 0.0
        %2515 = vmatpush.xpose.msra.mxu0 0.0
        %2516 = vmatpush.xpose.msra.mxu0 0.0
        %2517 = vmatpush.xpose.msra.mxu0 0.0
        %2518 = vmatpush.xpose.msra.mxu0 0.0
        %2519 = vmatpush.xpose.msra.mxu0 0.0
        %2520 = vmatpush.xpose.msra.mxu0 0.0
        %2521 = vmatpush.xpose.msra.mxu0 %v2505
        %2522 = vmatpush.xpose.msra.mxu0 %v2503
        %2523 = vmatmul.f32.gmra.mxu0 %v2499
        %v2524 = vpop.f32.mrf.mxu0
        %v2525 = vadd.f32 0.0, %v2524
        %2526 = vmatmul.f32.gmra.mxu0 %v2501
        %v2527 = vpop.f32.mrf.mxu0
        %v2528 = vadd.f32 0.0, %v2527
        %2529 = vdwg.mxu0
        %v2530 = vsel %vm2188, %v1833, 0
        %v2532 = vsel %vm2188, %v1835, 0
        %v2534 = vsel %vm2188, %v1945, 0
        %v2536 = vsel %vm2188, %v1947, 0
        %2538 = vmatpush.xpose.msra.mxu0 0.0
        %2539 = vmatpush.xpose.msra.mxu0 0.0
        %2540 = vmatpush.xpose.msra.mxu0 0.0
        %2541 = vmatpush.xpose.msra.mxu0 0.0
        %2542 = vmatpush.xpose.msra.mxu0 0.0
        %2543 = vmatpush.xpose.msra.mxu0 0.0
        %2544 = vmatpush.xpose.msra.mxu0 0.0
        %2545 = vmatpush.xpose.msra.mxu0 0.0
        %2546 = vmatpush.xpose.msra.mxu0 0.0
        %2547 = vmatpush.xpose.msra.mxu0 0.0
        %2548 = vmatpush.xpose.msra.mxu0 0.0
        %2549 = vmatpush.xpose.msra.mxu0 0.0
        %2550 = vmatpush.xpose.msra.mxu0 0.0
        %2551 = vmatpush.xpose.msra.mxu0 0.0
        %2552 = vmatpush.xpose.msra.mxu0 %v2536
        %2553 = vmatpush.xpose.msra.mxu0 %v2534
        %2554 = vmatmul.f32.gmra.mxu0 %v2530
        %v2555 = vpop.f32.mrf.mxu0
        %v2556 = vadd.f32 0.0, %v2555
        %2557 = vmatmul.f32.gmra.mxu0 %v2532
        %v2558 = vpop.f32.mrf.mxu0
        %v2559 = vadd.f32 0.0, %v2558
        %2560 = vdwg.mxu0
        %v2561 = vsel %vm2188, %v1837, 0
        %v2563 = vsel %vm2188, %v1839, 0
        %v2565 = vsel %vm2188, %v1949, 0
        %v2567 = vsel %vm2188, %v1951, 0
        %2569 = vmatpush.xpose.msra.mxu0 0.0
        %2570 = vmatpush.xpose.msra.mxu0 0.0
        %2571 = vmatpush.xpose.msra.mxu0 0.0
        %2572 = vmatpush.xpose.msra.mxu0 0.0
        %2573 = vmatpush.xpose.msra.mxu0 0.0
        %2574 = vmatpush.xpose.msra.mxu0 0.0
        %2575 = vmatpush.xpose.msra.mxu0 0.0
        %2576 = vmatpush.xpose.msra.mxu0 0.0
        %2577 = vmatpush.xpose.msra.mxu0 0.0
        %2578 = vmatpush.xpose.msra.mxu0 0.0
        %2579 = vmatpush.xpose.msra.mxu0 0.0
        %2580 = vmatpush.xpose.msra.mxu0 0.0
        %2581 = vmatpush.xpose.msra.mxu0 0.0
        %2582 = vmatpush.xpose.msra.mxu0 0.0
        %2583 = vmatpush.xpose.msra.mxu0 %v2567
        %2584 = vmatpush.xpose.msra.mxu0 %v2565
        %2585 = vmatmul.f32.gmra.mxu0 %v2561
        %v2586 = vpop.f32.mrf.mxu0
        %v2587 = vadd.f32 0.0, %v2586
        %2588 = vmatmul.f32.gmra.mxu0 %v2563
        %v2589 = vpop.f32.mrf.mxu0
        %v2590 = vadd.f32 0.0, %v2589
        %2591 = vdwg.mxu0
        %v2592 = vsel %vm2188, %v1841, 0
        %v2594 = vsel %vm2188, %v1843, 0
        %v2596 = vsel %vm2188, %v1953, 0
        %v2598 = vsel %vm2188, %v1955, 0
        %2600 = vmatpush.xpose.msra.mxu0 0.0
        %2601 = vmatpush.xpose.msra.mxu0 0.0
        %2602 = vmatpush.xpose.msra.mxu0 0.0
        %2603 = vmatpush.xpose.msra.mxu0 0.0
        %2604 = vmatpush.xpose.msra.mxu0 0.0
        %2605 = vmatpush.xpose.msra.mxu0 0.0
        %2606 = vmatpush.xpose.msra.mxu0 0.0
        %2607 = vmatpush.xpose.msra.mxu0 0.0
        %2608 = vmatpush.xpose.msra.mxu0 0.0
        %2609 = vmatpush.xpose.msra.mxu0 0.0
        %2610 = vmatpush.xpose.msra.mxu0 0.0
        %2611 = vmatpush.xpose.msra.mxu0 0.0
        %2612 = vmatpush.xpose.msra.mxu0 0.0
        %2613 = vmatpush.xpose.msra.mxu0 0.0
        %2614 = vmatpush.xpose.msra.mxu0 %v2598
        %2615 = vmatpush.xpose.msra.mxu0 %v2596
        %2616 = vmatmul.f32.gmra.mxu0 %v2592
        %v2617 = vpop.f32.mrf.mxu0
        %v2618 = vadd.f32 0.0, %v2617
        %2619 = vmatmul.f32.gmra.mxu0 %v2594
        %v2620 = vpop.f32.mrf.mxu0
        %v2621 = vadd.f32 0.0, %v2620
        %2622 = vdwg.mxu0
        %v2623 = vsel %vm2188, %v1845, 0
        %v2625 = vsel %vm2188, %v1847, 0
        %v2627 = vsel %vm2188, %v1957, 0
        %v2629 = vsel %vm2188, %v1959, 0
        %2631 = vmatpush.xpose.msra.mxu0 0.0
        %2632 = vmatpush.xpose.msra.mxu0 0.0
        %2633 = vmatpush.xpose.msra.mxu0 0.0
        %2634 = vmatpush.xpose.msra.mxu0 0.0
        %2635 = vmatpush.xpose.msra.mxu0 0.0
        %2636 = vmatpush.xpose.msra.mxu0 0.0
        %2637 = vmatpush.xpose.msra.mxu0 0.0
        %2638 = vmatpush.xpose.msra.mxu0 0.0
        %2639 = vmatpush.xpose.msra.mxu0 0.0
        %2640 = vmatpush.xpose.msra.mxu0 0.0
        %2641 = vmatpush.xpose.msra.mxu0 0.0
        %2642 = vmatpush.xpose.msra.mxu0 0.0
        %2643 = vmatpush.xpose.msra.mxu0 0.0
        %2644 = vmatpush.xpose.msra.mxu0 0.0
        %2645 = vmatpush.xpose.msra.mxu0 %v2629
        %2646 = vmatpush.xpose.msra.mxu0 %v2627
        %2647 = vmatmul.f32.gmra.mxu0 %v2623
        %v2648 = vpop.f32.mrf.mxu0
        %v2649 = vadd.f32 0.0, %v2648
        %2650 = vmatmul.f32.gmra.mxu0 %v2625
        %v2651 = vpop.f32.mrf.mxu0
        %v2652 = vadd.f32 0.0, %v2651
        %2653 = vdwg.mxu0
        %v2654 = vsel %vm2188, %v1849, 0
        %v2656 = vsel %vm2188, %v1851, 0
        %v2658 = vsel %vm2188, %v1961, 0
        %v2660 = vsel %vm2188, %v1963, 0
        %2662 = vmatpush.xpose.msra.mxu0 0.0
        %2663 = vmatpush.xpose.msra.mxu0 0.0
        %2664 = vmatpush.xpose.msra.mxu0 0.0
        %2665 = vmatpush.xpose.msra.mxu0 0.0
        %2666 = vmatpush.xpose.msra.mxu0 0.0
        %2667 = vmatpush.xpose.msra.mxu0 0.0
        %2668 = vmatpush.xpose.msra.mxu0 0.0
        %2669 = vmatpush.xpose.msra.mxu0 0.0
        %2670 = vmatpush.xpose.msra.mxu0 0.0
        %2671 = vmatpush.xpose.msra.mxu0 0.0
        %2672 = vmatpush.xpose.msra.mxu0 0.0
        %2673 = vmatpush.xpose.msra.mxu0 0.0
        %2674 = vmatpush.xpose.msra.mxu0 0.0
        %2675 = vmatpush.xpose.msra.mxu0 0.0
        %2676 = vmatpush.xpose.msra.mxu0 %v2660
        %2677 = vmatpush.xpose.msra.mxu0 %v2658
        %2678 = vmatmul.f32.gmra.mxu0 %v2654
        %v2679 = vpop.f32.mrf.mxu0
        %v2680 = vadd.f32 0.0, %v2679
        %2681 = vmatmul.f32.gmra.mxu0 %v2656
        %v2682 = vpop.f32.mrf.mxu0
        %v2683 = vadd.f32 0.0, %v2682
        %2684 = vdwg.mxu0
        %v2685 = vsel %vm2188, %v1853, 0
        %v2687 = vsel %vm2188, %v1855, 0
        %v2689 = vsel %vm2188, %v1965, 0
        %v2691 = vsel %vm2188, %v1967, 0
        %2693 = vmatpush.xpose.msra.mxu0 0.0
        %2694 = vmatpush.xpose.msra.mxu0 0.0
        %2695 = vmatpush.xpose.msra.mxu0 0.0
        %2696 = vmatpush.xpose.msra.mxu0 0.0
        %2697 = vmatpush.xpose.msra.mxu0 0.0
        %2698 = vmatpush.xpose.msra.mxu0 0.0
        %2699 = vmatpush.xpose.msra.mxu0 0.0
        %2700 = vmatpush.xpose.msra.mxu0 0.0
        %2701 = vmatpush.xpose.msra.mxu0 0.0
        %2702 = vmatpush.xpose.msra.mxu0 0.0
        %2703 = vmatpush.xpose.msra.mxu0 0.0
        %2704 = vmatpush.xpose.msra.mxu0 0.0
        %2705 = vmatpush.xpose.msra.mxu0 0.0
        %2706 = vmatpush.xpose.msra.mxu0 0.0
        %2707 = vmatpush.xpose.msra.mxu0 %v2691
        %2708 = vmatpush.xpose.msra.mxu0 %v2689
        %2709 = vmatmul.f32.gmra.mxu0 %v2685
        %v2710 = vpop.f32.mrf.mxu0
        %v2711 = vadd.f32 0.0, %v2710
        %2712 = vmatmul.f32.gmra.mxu0 %v2687
        %v2713 = vpop.f32.mrf.mxu0
        %v2714 = vadd.f32 0.0, %v2713
        %2715 = vdwg.mxu0
        %v2716 = vsel %vm2188, %v1857, 0
        %v2718 = vsel %vm2188, %v1859, 0
        %v2720 = vsel %vm2188, %v1969, 0
        %v2722 = vsel %vm2188, %v1971, 0
        %2724 = vmatpush.xpose.msra.mxu0 0.0
        %2725 = vmatpush.xpose.msra.mxu0 0.0
        %2726 = vmatpush.xpose.msra.mxu0 0.0
        %2727 = vmatpush.xpose.msra.mxu0 0.0
        %2728 = vmatpush.xpose.msra.mxu0 0.0
        %2729 = vmatpush.xpose.msra.mxu0 0.0
        %2730 = vmatpush.xpose.msra.mxu0 0.0
        %2731 = vmatpush.xpose.msra.mxu0 0.0
        %2732 = vmatpush.xpose.msra.mxu0 0.0
        %2733 = vmatpush.xpose.msra.mxu0 0.0
        %2734 = vmatpush.xpose.msra.mxu0 0.0
        %2735 = vmatpush.xpose.msra.mxu0 0.0
        %2736 = vmatpush.xpose.msra.mxu0 0.0
        %2737 = vmatpush.xpose.msra.mxu0 0.0
        %2738 = vmatpush.xpose.msra.mxu0 %v2722
        %2739 = vmatpush.xpose.msra.mxu0 %v2720
        %2740 = vmatmul.f32.gmra.mxu0 %v2716
        %v2741 = vpop.f32.mrf.mxu0
        %v2742 = vadd.f32 0.0, %v2741
        %2743 = vmatmul.f32.gmra.mxu0 %v2718
        %v2744 = vpop.f32.mrf.mxu0
        %v2745 = vadd.f32 0.0, %v2744
        %2746 = vdwg.mxu0
        %v2747 = vsel %vm2188, %v1861, 0
        %v2749 = vsel %vm2188, %v1863, 0
        %v2751 = vsel %vm2188, %v1973, 0
        %v2753 = vsel %vm2188, %v1975, 0
        %2755 = vmatpush.xpose.msra.mxu0 0.0
        %2756 = vmatpush.xpose.msra.mxu0 0.0
        %2757 = vmatpush.xpose.msra.mxu0 0.0
        %2758 = vmatpush.xpose.msra.mxu0 0.0
        %2759 = vmatpush.xpose.msra.mxu0 0.0
        %2760 = vmatpush.xpose.msra.mxu0 0.0
        %2761 = vmatpush.xpose.msra.mxu0 0.0
        %2762 = vmatpush.xpose.msra.mxu0 0.0
        %2763 = vmatpush.xpose.msra.mxu0 0.0
        %2764 = vmatpush.xpose.msra.mxu0 0.0
        %2765 = vmatpush.xpose.msra.mxu0 0.0
        %2766 = vmatpush.xpose.msra.mxu0 0.0
        %2767 = vmatpush.xpose.msra.mxu0 0.0
        %2768 = vmatpush.xpose.msra.mxu0 0.0
        %2769 = vmatpush.xpose.msra.mxu0 %v2753
        %2770 = vmatpush.xpose.msra.mxu0 %v2751
        %2771 = vmatmul.f32.gmra.mxu0 %v2747
        %v2772 = vpop.f32.mrf.mxu0
        %v2773 = vadd.f32 0.0, %v2772
        %2774 = vmatmul.f32.gmra.mxu0 %v2749
        %v2775 = vpop.f32.mrf.mxu0
        %v2776 = vadd.f32 0.0, %v2775
        %2777 = vdwg.mxu0
        %v2778 = vsel %vm2188, %v1865, 0
        %v2780 = vsel %vm2188, %v1867, 0
        %v2782 = vsel %vm2188, %v1977, 0
        %v2784 = vsel %vm2188, %v1979, 0
        %2786 = vmatpush.xpose.msra.mxu0 0.0
        %2787 = vmatpush.xpose.msra.mxu0 0.0
        %2788 = vmatpush.xpose.msra.mxu0 0.0
        %2789 = vmatpush.xpose.msra.mxu0 0.0
        %2790 = vmatpush.xpose.msra.mxu0 0.0
        %2791 = vmatpush.xpose.msra.mxu0 0.0
        %2792 = vmatpush.xpose.msra.mxu0 0.0
        %2793 = vmatpush.xpose.msra.mxu0 0.0
        %2794 = vmatpush.xpose.msra.mxu0 0.0
        %2795 = vmatpush.xpose.msra.mxu0 0.0
        %2796 = vmatpush.xpose.msra.mxu0 0.0
        %2797 = vmatpush.xpose.msra.mxu0 0.0
        %2798 = vmatpush.xpose.msra.mxu0 0.0
        %2799 = vmatpush.xpose.msra.mxu0 0.0
        %2800 = vmatpush.xpose.msra.mxu0 %v2784
        %2801 = vmatpush.xpose.msra.mxu0 %v2782
        %2802 = vmatmul.f32.gmra.mxu0 %v2778
        %v2803 = vpop.f32.mrf.mxu0
        %v2804 = vadd.f32 0.0, %v2803
        %2805 = vmatmul.f32.gmra.mxu0 %v2780
        %v2806 = vpop.f32.mrf.mxu0
        %v2807 = vadd.f32 0.0, %v2806
        %2808 = vdwg.mxu0
        %v2809 = vsel %vm2188, %v1869, 0
        %v2811 = vsel %vm2188, %v1871, 0
        %v2813 = vsel %vm2188, %v1981, 0
        %v2815 = vsel %vm2188, %v1983, 0
        %2817 = vmatpush.xpose.msra.mxu0 0.0
        %2818 = vmatpush.xpose.msra.mxu0 0.0
        %2819 = vmatpush.xpose.msra.mxu0 0.0
        %2820 = vmatpush.xpose.msra.mxu0 0.0
        %2821 = vmatpush.xpose.msra.mxu0 0.0
        %2822 = vmatpush.xpose.msra.mxu0 0.0
        %2823 = vmatpush.xpose.msra.mxu0 0.0
        %2824 = vmatpush.xpose.msra.mxu0 0.0
        %2825 = vmatpush.xpose.msra.mxu0 0.0
        %2826 = vmatpush.xpose.msra.mxu0 0.0
        %2827 = vmatpush.xpose.msra.mxu0 0.0
        %2828 = vmatpush.xpose.msra.mxu0 0.0
        %2829 = vmatpush.xpose.msra.mxu0 0.0
        %2830 = vmatpush.xpose.msra.mxu0 0.0
        %2831 = vmatpush.xpose.msra.mxu0 %v2815
        %2832 = vmatpush.xpose.msra.mxu0 %v2813
        %2833 = vmatmul.f32.gmra.mxu0 %v2809
        %v2834 = vpop.f32.mrf.mxu0
        %v2835 = vadd.f32 0.0, %v2834
        %2836 = vmatmul.f32.gmra.mxu0 %v2811
        %v2837 = vpop.f32.mrf.mxu0
        %v2838 = vadd.f32 0.0, %v2837
        %2839 = vdwg.mxu0
        %v2840 = vsel %vm2188, %v1873, 0
        %v2842 = vsel %vm2188, %v1875, 0
        %v2844 = vsel %vm2188, %v1985, 0
        %v2846 = vsel %vm2188, %v1987, 0
        %2848 = vmatpush.xpose.msra.mxu0 0.0
        %2849 = vmatpush.xpose.msra.mxu0 0.0
        %2850 = vmatpush.xpose.msra.mxu0 0.0
        %2851 = vmatpush.xpose.msra.mxu0 0.0
        %2852 = vmatpush.xpose.msra.mxu0 0.0
        %2853 = vmatpush.xpose.msra.mxu0 0.0
        %2854 = vmatpush.xpose.msra.mxu0 0.0
        %2855 = vmatpush.xpose.msra.mxu0 0.0
        %2856 = vmatpush.xpose.msra.mxu0 0.0
        %2857 = vmatpush.xpose.msra.mxu0 0.0
        %2858 = vmatpush.xpose.msra.mxu0 0.0
        %2859 = vmatpush.xpose.msra.mxu0 0.0
        %2860 = vmatpush.xpose.msra.mxu0 0.0
        %2861 = vmatpush.xpose.msra.mxu0 0.0
        %2862 = vmatpush.xpose.msra.mxu0 %v2846
        %2863 = vmatpush.xpose.msra.mxu0 %v2844
        %2864 = vmatmul.f32.gmra.mxu0 %v2840
        %v2865 = vpop.f32.mrf.mxu0
        %v2866 = vadd.f32 0.0, %v2865
        %2867 = vmatmul.f32.gmra.mxu0 %v2842
        %v2868 = vpop.f32.mrf.mxu0
        %v2869 = vadd.f32 0.0, %v2868
        %2870 = vdwg.mxu0
        %v2871 = vsel %vm2188, %v1877, 0
        %v2873 = vsel %vm2188, %v1879, 0
        %v2875 = vsel %vm2188, %v1989, 0
        %v2877 = vsel %vm2188, %v1991, 0
        %2879 = vmatpush.xpose.msra.mxu0 0.0
        %2880 = vmatpush.xpose.msra.mxu0 0.0
        %2881 = vmatpush.xpose.msra.mxu0 0.0
        %2882 = vmatpush.xpose.msra.mxu0 0.0
        %2883 = vmatpush.xpose.msra.mxu0 0.0
        %2884 = vmatpush.xpose.msra.mxu0 0.0
        %2885 = vmatpush.xpose.msra.mxu0 0.0
        %2886 = vmatpush.xpose.msra.mxu0 0.0
        %2887 = vmatpush.xpose.msra.mxu0 0.0
        %2888 = vmatpush.xpose.msra.mxu0 0.0
        %2889 = vmatpush.xpose.msra.mxu0 0.0
        %2890 = vmatpush.xpose.msra.mxu0 0.0
        %2891 = vmatpush.xpose.msra.mxu0 0.0
        %2892 = vmatpush.xpose.msra.mxu0 0.0
        %2893 = vmatpush.xpose.msra.mxu0 %v2877
        %2894 = vmatpush.xpose.msra.mxu0 %v2875
        %2895 = vmatmul.f32.gmra.mxu0 %v2871
        %v2896 = vpop.f32.mrf.mxu0
        %v2897 = vadd.f32 0.0, %v2896
        %2898 = vmatmul.f32.gmra.mxu0 %v2873
        %v2899 = vpop.f32.mrf.mxu0
        %v2900 = vadd.f32 0.0, %v2899
        %2901 = vdwg.mxu0
        %v2902 = vsel %vm2188, %v1881, 0
        %v2904 = vsel %vm2188, %v1883, 0
        %v2906 = vsel %vm2188, %v1993, 0
        %v2908 = vsel %vm2188, %v1995, 0
        %2910 = vmatpush.xpose.msra.mxu0 0.0
        %2911 = vmatpush.xpose.msra.mxu0 0.0
        %2912 = vmatpush.xpose.msra.mxu0 0.0
        %2913 = vmatpush.xpose.msra.mxu0 0.0
        %2914 = vmatpush.xpose.msra.mxu0 0.0
        %2915 = vmatpush.xpose.msra.mxu0 0.0
        %2916 = vmatpush.xpose.msra.mxu0 0.0
        %2917 = vmatpush.xpose.msra.mxu0 0.0
        %2918 = vmatpush.xpose.msra.mxu0 0.0
        %2919 = vmatpush.xpose.msra.mxu0 0.0
        %2920 = vmatpush.xpose.msra.mxu0 0.0
        %2921 = vmatpush.xpose.msra.mxu0 0.0
        %2922 = vmatpush.xpose.msra.mxu0 0.0
        %2923 = vmatpush.xpose.msra.mxu0 0.0
        %2924 = vmatpush.xpose.msra.mxu0 %v2908
        %2925 = vmatpush.xpose.msra.mxu0 %v2906
        %2926 = vmatmul.f32.gmra.mxu0 %v2902
        %v2927 = vpop.f32.mrf.mxu0
        %v2928 = vadd.f32 0.0, %v2927
        %2929 = vmatmul.f32.gmra.mxu0 %v2904
        %v2930 = vpop.f32.mrf.mxu0
        %v2931 = vadd.f32 0.0, %v2930
        %2932 = vdwg.mxu0
        %v2933 = vsel %vm2188, %v1885, 0
        %v2935 = vsel %vm2188, %v1887, 0
        %v2937 = vsel %vm2188, %v1997, 0
        %v2939 = vsel %vm2188, %v1999, 0
        %2941 = vmatpush.xpose.msra.mxu0 0.0
        %2942 = vmatpush.xpose.msra.mxu0 0.0
        %2943 = vmatpush.xpose.msra.mxu0 0.0
        %2944 = vmatpush.xpose.msra.mxu0 0.0
        %2945 = vmatpush.xpose.msra.mxu0 0.0
        %2946 = vmatpush.xpose.msra.mxu0 0.0
        %2947 = vmatpush.xpose.msra.mxu0 0.0
        %2948 = vmatpush.xpose.msra.mxu0 0.0
        %2949 = vmatpush.xpose.msra.mxu0 0.0
        %2950 = vmatpush.xpose.msra.mxu0 0.0
        %2951 = vmatpush.xpose.msra.mxu0 0.0
        %2952 = vmatpush.xpose.msra.mxu0 0.0
        %2953 = vmatpush.xpose.msra.mxu0 0.0
        %2954 = vmatpush.xpose.msra.mxu0 0.0
        %2955 = vmatpush.xpose.msra.mxu0 %v2939
        %2956 = vmatpush.xpose.msra.mxu0 %v2937
        %2957 = vmatmul.f32.gmra.mxu0 %v2933
        %v2958 = vpop.f32.mrf.mxu0
        %v2959 = vadd.f32 0.0, %v2958
        %2960 = vmatmul.f32.gmra.mxu0 %v2935
        %v2961 = vpop.f32.mrf.mxu0
        %v2962 = vadd.f32 0.0, %v2961
        %2963 = vdwg.mxu0
        %v2964 = vsel %vm2188, %v1889, 0
        %v2966 = vsel %vm2188, %v1891, 0
        %v2968 = vsel %vm2188, %v2001, 0
        %v2970 = vsel %vm2188, %v2003, 0
        %2972 = vmatpush.xpose.msra.mxu0 0.0
        %2973 = vmatpush.xpose.msra.mxu0 0.0
        %2974 = vmatpush.xpose.msra.mxu0 0.0
        %2975 = vmatpush.xpose.msra.mxu0 0.0
        %2976 = vmatpush.xpose.msra.mxu0 0.0
        %2977 = vmatpush.xpose.msra.mxu0 0.0
        %2978 = vmatpush.xpose.msra.mxu0 0.0
        %2979 = vmatpush.xpose.msra.mxu0 0.0
        %2980 = vmatpush.xpose.msra.mxu0 0.0
        %2981 = vmatpush.xpose.msra.mxu0 0.0
        %2982 = vmatpush.xpose.msra.mxu0 0.0
        %2983 = vmatpush.xpose.msra.mxu0 0.0
        %2984 = vmatpush.xpose.msra.mxu0 0.0
        %2985 = vmatpush.xpose.msra.mxu0 0.0
        %2986 = vmatpush.xpose.msra.mxu0 %v2970
        %2987 = vmatpush.xpose.msra.mxu0 %v2968
        %2988 = vmatmul.f32.gmra.mxu0 %v2964
        %v2989 = vpop.f32.mrf.mxu0
        %v2990 = vadd.f32 0.0, %v2989
        %2991 = vmatmul.f32.gmra.mxu0 %v2966
        %v2992 = vpop.f32.mrf.mxu0
        %v2993 = vadd.f32 0.0, %v2992
        %2994 = vdwg.mxu0
        %v2995 = vsel %vm2188, %v1893, 0
        %v2997 = vsel %vm2188, %v1895, 0
        %v2999 = vsel %vm2188, %v2005, 0
        %v3001 = vsel %vm2188, %v2007, 0
        %3003 = vmatpush.xpose.msra.mxu0 0.0
        %3004 = vmatpush.xpose.msra.mxu0 0.0
        %3005 = vmatpush.xpose.msra.mxu0 0.0
        %3006 = vmatpush.xpose.msra.mxu0 0.0
        %3007 = vmatpush.xpose.msra.mxu0 0.0
        %3008 = vmatpush.xpose.msra.mxu0 0.0
        %3009 = vmatpush.xpose.msra.mxu0 0.0
        %3010 = vmatpush.xpose.msra.mxu0 0.0
        %3011 = vmatpush.xpose.msra.mxu0 0.0
        %3012 = vmatpush.xpose.msra.mxu0 0.0
        %3013 = vmatpush.xpose.msra.mxu0 0.0
        %3014 = vmatpush.xpose.msra.mxu0 0.0
        %3015 = vmatpush.xpose.msra.mxu0 0.0
        %3016 = vmatpush.xpose.msra.mxu0 0.0
        %3017 = vmatpush.xpose.msra.mxu0 %v3001
        %3018 = vmatpush.xpose.msra.mxu0 %v2999
        %3019 = vmatmul.f32.gmra.mxu0 %v2995
        %v3020 = vpop.f32.mrf.mxu0
        %v3021 = vadd.f32 0.0, %v3020
        %3022 = vmatmul.f32.gmra.mxu0 %v2997
        %v3023 = vpop.f32.mrf.mxu0
        %v3024 = vadd.f32 0.0, %v3023
        %3025 = vdwg.mxu0
        %v3026 = vsel %vm2188, %v1897, 0
        %v3028 = vsel %vm2188, %v1899, 0
        %v3030 = vsel %vm2188, %v2009, 0
        %v3032 = vsel %vm2188, %v2011, 0
        %3034 = vmatpush.xpose.msra.mxu0 0.0
        %3035 = vmatpush.xpose.msra.mxu0 0.0
        %3036 = vmatpush.xpose.msra.mxu0 0.0
        %3037 = vmatpush.xpose.msra.mxu0 0.0
        %3038 = vmatpush.xpose.msra.mxu0 0.0
        %3039 = vmatpush.xpose.msra.mxu0 0.0
        %3040 = vmatpush.xpose.msra.mxu0 0.0
        %3041 = vmatpush.xpose.msra.mxu0 0.0
        %3042 = vmatpush.xpose.msra.mxu0 0.0
        %3043 = vmatpush.xpose.msra.mxu0 0.0
        %3044 = vmatpush.xpose.msra.mxu0 0.0
        %3045 = vmatpush.xpose.msra.mxu0 0.0
        %3046 = vmatpush.xpose.msra.mxu0 0.0
        %3047 = vmatpush.xpose.msra.mxu0 0.0
        %3048 = vmatpush.xpose.msra.mxu0 %v3032
        %3049 = vmatpush.xpose.msra.mxu0 %v3030
        %3050 = vmatmul.f32.gmra.mxu0 %v3026
        %v3051 = vpop.f32.mrf.mxu0
        %v3052 = vadd.f32 0.0, %v3051
        %3053 = vmatmul.f32.gmra.mxu0 %v3028
        %v3054 = vpop.f32.mrf.mxu0
        %v3055 = vadd.f32 0.0, %v3054
        %3056 = vdwg.mxu0
        %v3057 = vsel %vm2188, %v1901, 0
        %v3059 = vsel %vm2188, %v1903, 0
        %v3061 = vsel %vm2188, %v2013, 0
        %v3063 = vsel %vm2188, %v2015, 0
        %3065 = vmatpush.xpose.msra.mxu0 0.0
        %3066 = vmatpush.xpose.msra.mxu0 0.0
        %3067 = vmatpush.xpose.msra.mxu0 0.0
        %3068 = vmatpush.xpose.msra.mxu0 0.0
        %3069 = vmatpush.xpose.msra.mxu0 0.0
        %3070 = vmatpush.xpose.msra.mxu0 0.0
        %3071 = vmatpush.xpose.msra.mxu0 0.0
        %3072 = vmatpush.xpose.msra.mxu0 0.0
        %3073 = vmatpush.xpose.msra.mxu0 0.0
        %3074 = vmatpush.xpose.msra.mxu0 0.0
        %3075 = vmatpush.xpose.msra.mxu0 0.0
        %3076 = vmatpush.xpose.msra.mxu0 0.0
        %3077 = vmatpush.xpose.msra.mxu0 0.0
        %3078 = vmatpush.xpose.msra.mxu0 0.0
        %3079 = vmatpush.xpose.msra.mxu0 %v3063
        %3080 = vmatpush.xpose.msra.mxu0 %v3061
        %3081 = vmatmul.f32.gmra.mxu0 %v3057
        %v3082 = vpop.f32.mrf.mxu0
        %v3083 = vadd.f32 0.0, %v3082
        %3084 = vmatmul.f32.gmra.mxu0 %v3059
        %v3085 = vpop.f32.mrf.mxu0
        %v3086 = vadd.f32 0.0, %v3085
        %3087 = vdwg.mxu0
        %v3088 = vsel %vm2188, %v1905, 0
        %v3090 = vsel %vm2188, %v1907, 0
        %v3092 = vsel %vm2188, %v2017, 0
        %v3094 = vsel %vm2188, %v2019, 0
        %3096 = vmatpush.xpose.msra.mxu0 0.0
        %3097 = vmatpush.xpose.msra.mxu0 0.0
        %3098 = vmatpush.xpose.msra.mxu0 0.0
        %3099 = vmatpush.xpose.msra.mxu0 0.0
        %3100 = vmatpush.xpose.msra.mxu0 0.0
        %3101 = vmatpush.xpose.msra.mxu0 0.0
        %3102 = vmatpush.xpose.msra.mxu0 0.0
        %3103 = vmatpush.xpose.msra.mxu0 0.0
        %3104 = vmatpush.xpose.msra.mxu0 0.0
        %3105 = vmatpush.xpose.msra.mxu0 0.0
        %3106 = vmatpush.xpose.msra.mxu0 0.0
        %3107 = vmatpush.xpose.msra.mxu0 0.0
        %3108 = vmatpush.xpose.msra.mxu0 0.0
        %3109 = vmatpush.xpose.msra.mxu0 0.0
        %3110 = vmatpush.xpose.msra.mxu0 %v3094
        %3111 = vmatpush.xpose.msra.mxu0 %v3092
        %3112 = vmatmul.f32.gmra.mxu0 %v3088
        %v3113 = vpop.f32.mrf.mxu0
        %v3114 = vadd.f32 0.0, %v3113
        %3115 = vmatmul.f32.gmra.mxu0 %v3090
        %v3116 = vpop.f32.mrf.mxu0
        %v3117 = vadd.f32 0.0, %v3116
        %3118 = vdwg.mxu0
        %v3119 = vsel %vm2188, %v1909, 0
        %v3121 = vsel %vm2188, %v1911, 0
        %v3123 = vsel %vm2188, %v2021, 0
        %v3125 = vsel %vm2188, %v2023, 0
        %3127 = vmatpush.xpose.msra.mxu0 0.0
        %3128 = vmatpush.xpose.msra.mxu0 0.0
        %3129 = vmatpush.xpose.msra.mxu0 0.0
        %3130 = vmatpush.xpose.msra.mxu0 0.0
        %3131 = vmatpush.xpose.msra.mxu0 0.0
        %3132 = vmatpush.xpose.msra.mxu0 0.0
        %3133 = vmatpush.xpose.msra.mxu0 0.0
        %3134 = vmatpush.xpose.msra.mxu0 0.0
        %3135 = vmatpush.xpose.msra.mxu0 0.0
        %3136 = vmatpush.xpose.msra.mxu0 0.0
        %3137 = vmatpush.xpose.msra.mxu0 0.0
        %3138 = vmatpush.xpose.msra.mxu0 0.0
        %3139 = vmatpush.xpose.msra.mxu0 0.0
        %3140 = vmatpush.xpose.msra.mxu0 0.0
        %3141 = vmatpush.xpose.msra.mxu0 %v3125
        %3142 = vmatpush.xpose.msra.mxu0 %v3123
        %3143 = vmatmul.f32.gmra.mxu0 %v3119
        %v3144 = vpop.f32.mrf.mxu0
        %v3145 = vadd.f32 0.0, %v3144
        %3146 = vmatmul.f32.gmra.mxu0 %v3121
        %v3147 = vpop.f32.mrf.mxu0
        %v3148 = vadd.f32 0.0, %v3147
        %3149 = vdwg.mxu0
        %v3150 = vsel %vm2188, %v1913, 0
        %v3152 = vsel %vm2188, %v1915, 0
        %v3154 = vsel %vm2188, %v2025, 0
        %v3156 = vsel %vm2188, %v2027, 0
        %3158 = vmatpush.xpose.msra.mxu0 0.0
        %3159 = vmatpush.xpose.msra.mxu0 0.0
        %3160 = vmatpush.xpose.msra.mxu0 0.0
        %3161 = vmatpush.xpose.msra.mxu0 0.0
        %3162 = vmatpush.xpose.msra.mxu0 0.0
        %3163 = vmatpush.xpose.msra.mxu0 0.0
        %3164 = vmatpush.xpose.msra.mxu0 0.0
        %3165 = vmatpush.xpose.msra.mxu0 0.0
        %3166 = vmatpush.xpose.msra.mxu0 0.0
        %3167 = vmatpush.xpose.msra.mxu0 0.0
        %3168 = vmatpush.xpose.msra.mxu0 0.0
        %3169 = vmatpush.xpose.msra.mxu0 0.0
        %3170 = vmatpush.xpose.msra.mxu0 0.0
        %3171 = vmatpush.xpose.msra.mxu0 0.0
        %3172 = vmatpush.xpose.msra.mxu0 %v3156
        %3173 = vmatpush.xpose.msra.mxu0 %v3154
        %3174 = vmatmul.f32.gmra.mxu0 %v3150
        %v3175 = vpop.f32.mrf.mxu0
        %v3176 = vadd.f32 0.0, %v3175
        %3177 = vmatmul.f32.gmra.mxu0 %v3152
        %v3178 = vpop.f32.mrf.mxu0
        %v3179 = vadd.f32 0.0, %v3178
        %3180 = vdwg.mxu0
        %vm3181 = vcmask 130048
        %v3182 = vsel %vm3181, %v2215, -inf
        %3183 = vmax.xlane.f32.xlu0 %v3182
        %v3184 = vpop.xlane.xlu0 %3183
        %v3185 = vsel %vm3181, %v2218, -inf
        %3186 = vmax.xlane.f32.xlu0 %v3185
        %v3187 = vpop.xlane.xlu0 %3186
        %v3188 = vsel %vm3181, %v2246, -inf
        %3189 = vmax.xlane.f32.xlu0 %v3188
        %v3190 = vpop.xlane.xlu0 %3189
        %v3191 = vsel %vm3181, %v2249, -inf
        %3192 = vmax.xlane.f32.xlu0 %v3191
        %v3193 = vpop.xlane.xlu0 %3192
        %v3194 = vsel %vm3181, %v2277, -inf
        %3195 = vmax.xlane.f32.xlu0 %v3194
        %v3196 = vpop.xlane.xlu0 %3195
        %v3197 = vsel %vm3181, %v2280, -inf
        %3198 = vmax.xlane.f32.xlu0 %v3197
        %v3199 = vpop.xlane.xlu0 %3198
        %v3200 = vsel %vm3181, %v2308, -inf
        %3201 = vmax.xlane.f32.xlu0 %v3200
        %v3202 = vpop.xlane.xlu0 %3201
        %v3203 = vsel %vm3181, %v2311, -inf
        %3204 = vmax.xlane.f32.xlu0 %v3203
        %v3205 = vpop.xlane.xlu0 %3204
        %v3206 = vsel %vm3181, %v2339, -inf
        %3207 = vmax.xlane.f32.xlu0 %v3206
        %v3208 = vpop.xlane.xlu0 %3207
        %v3209 = vsel %vm3181, %v2342, -inf
        %3210 = vmax.xlane.f32.xlu0 %v3209
        %v3211 = vpop.xlane.xlu0 %3210
        %v3212 = vsel %vm3181, %v2370, -inf
        %3213 = vmax.xlane.f32.xlu0 %v3212
        %v3214 = vpop.xlane.xlu0 %3213
        %v3215 = vsel %vm3181, %v2373, -inf
        %3216 = vmax.xlane.f32.xlu0 %v3215
        %v3217 = vpop.xlane.xlu0 %3216
        %v3218 = vsel %vm3181, %v2401, -inf
        %3219 = vmax.xlane.f32.xlu0 %v3218
        %v3220 = vpop.xlane.xlu0 %3219
        %v3221 = vsel %vm3181, %v2404, -inf
        %3222 = vmax.xlane.f32.xlu0 %v3221
        %v3223 = vpop.xlane.xlu0 %3222
        %v3224 = vsel %vm3181, %v2432, -inf
        %3225 = vmax.xlane.f32.xlu0 %v3224
        %v3226 = vpop.xlane.xlu0 %3225
        %v3227 = vsel %vm3181, %v2435, -inf
        %3228 = vmax.xlane.f32.xlu0 %v3227
        %v3229 = vpop.xlane.xlu0 %3228
        %v3230 = vsel %vm3181, %v2463, -inf
        %3231 = vmax.xlane.f32.xlu0 %v3230
        %v3232 = vpop.xlane.xlu0 %3231
        %v3233 = vsel %vm3181, %v2466, -inf
        %3234 = vmax.xlane.f32.xlu0 %v3233
        %v3235 = vpop.xlane.xlu0 %3234
        %v3236 = vsel %vm3181, %v2494, -inf
        %3237 = vmax.xlane.f32.xlu0 %v3236
        %v3238 = vpop.xlane.xlu0 %3237
        %v3239 = vsel %vm3181, %v2497, -inf
        %3240 = vmax.xlane.f32.xlu0 %v3239
        %v3241 = vpop.xlane.xlu0 %3240
        %v3242 = vsel %vm3181, %v2525, -inf
        %3243 = vmax.xlane.f32.xlu0 %v3242
        %v3244 = vpop.xlane.xlu0 %3243
        %v3245 = vsel %vm3181, %v2528, -inf
        %3246 = vmax.xlane.f32.xlu0 %v3245
        %v3247 = vpop.xlane.xlu0 %3246
        %v3248 = vsel %vm3181, %v2556, -inf
        %3249 = vmax.xlane.f32.xlu0 %v3248
        %v3250 = vpop.xlane.xlu0 %3249
        %v3251 = vsel %vm3181, %v2559, -inf
        %3252 = vmax.xlane.f32.xlu0 %v3251
        %v3253 = vpop.xlane.xlu0 %3252
        %v3254 = vsel %vm3181, %v2587, -inf
        %3255 = vmax.xlane.f32.xlu0 %v3254
        %v3256 = vpop.xlane.xlu0 %3255
        %v3257 = vsel %vm3181, %v2590, -inf
        %3258 = vmax.xlane.f32.xlu0 %v3257
        %v3259 = vpop.xlane.xlu0 %3258
        %v3260 = vsel %vm3181, %v2618, -inf
        %3261 = vmax.xlane.f32.xlu0 %v3260
        %v3262 = vpop.xlane.xlu0 %3261
        %v3263 = vsel %vm3181, %v2621, -inf
        %3264 = vmax.xlane.f32.xlu0 %v3263
        %v3265 = vpop.xlane.xlu0 %3264
        %v3266 = vsel %vm3181, %v2649, -inf
        %3267 = vmax.xlane.f32.xlu0 %v3266
        %v3268 = vpop.xlane.xlu0 %3267
        %v3269 = vsel %vm3181, %v2652, -inf
        %3270 = vmax.xlane.f32.xlu0 %v3269
        %v3271 = vpop.xlane.xlu0 %3270
        %v3272 = vsel %vm3181, %v2680, -inf
        %3273 = vmax.xlane.f32.xlu0 %v3272
        %v3274 = vpop.xlane.xlu0 %3273
        %v3275 = vsel %vm3181, %v2683, -inf
        %3276 = vmax.xlane.f32.xlu0 %v3275
        %v3277 = vpop.xlane.xlu0 %3276
        %v3278 = vsel %vm3181, %v2711, -inf
        %3279 = vmax.xlane.f32.xlu0 %v3278
        %v3280 = vpop.xlane.xlu0 %3279
        %v3281 = vsel %vm3181, %v2714, -inf
        %3282 = vmax.xlane.f32.xlu0 %v3281
        %v3283 = vpop.xlane.xlu0 %3282
        %v3284 = vsel %vm3181, %v2742, -inf
        %3285 = vmax.xlane.f32.xlu0 %v3284
        %v3286 = vpop.xlane.xlu0 %3285
        %v3287 = vsel %vm3181, %v2745, -inf
        %3288 = vmax.xlane.f32.xlu0 %v3287
        %v3289 = vpop.xlane.xlu0 %3288
        %v3290 = vsel %vm3181, %v2773, -inf
        %3291 = vmax.xlane.f32.xlu0 %v3290
        %v3292 = vpop.xlane.xlu0 %3291
        %v3293 = vsel %vm3181, %v2776, -inf
        %3294 = vmax.xlane.f32.xlu0 %v3293
        %v3295 = vpop.xlane.xlu0 %3294
        %v3296 = vsel %vm3181, %v2804, -inf
        %3297 = vmax.xlane.f32.xlu0 %v3296
        %v3298 = vpop.xlane.xlu0 %3297
        %v3299 = vsel %vm3181, %v2807, -inf
        %3300 = vmax.xlane.f32.xlu0 %v3299
        %v3301 = vpop.xlane.xlu0 %3300
        %v3302 = vsel %vm3181, %v2835, -inf
        %3303 = vmax.xlane.f32.xlu0 %v3302
        %v3304 = vpop.xlane.xlu0 %3303
        %v3305 = vsel %vm3181, %v2838, -inf
        %3306 = vmax.xlane.f32.xlu0 %v3305
        %v3307 = vpop.xlane.xlu0 %3306
        %v3308 = vsel %vm3181, %v2866, -inf
        %3309 = vmax.xlane.f32.xlu0 %v3308
        %v3310 = vpop.xlane.xlu0 %3309
        %v3311 = vsel %vm3181, %v2869, -inf
        %3312 = vmax.xlane.f32.xlu0 %v3311
        %v3313 = vpop.xlane.xlu0 %3312
        %v3314 = vsel %vm3181, %v2897, -inf
        %3315 = vmax.xlane.f32.xlu0 %v3314
        %v3316 = vpop.xlane.xlu0 %3315
        %v3317 = vsel %vm3181, %v2900, -inf
        %3318 = vmax.xlane.f32.xlu0 %v3317
        %v3319 = vpop.xlane.xlu0 %3318
        %v3320 = vsel %vm3181, %v2928, -inf
        %3321 = vmax.xlane.f32.xlu0 %v3320
        %v3322 = vpop.xlane.xlu0 %3321
        %v3323 = vsel %vm3181, %v2931, -inf
        %3324 = vmax.xlane.f32.xlu0 %v3323
        %v3325 = vpop.xlane.xlu0 %3324
        %v3326 = vsel %vm3181, %v2959, -inf
        %3327 = vmax.xlane.f32.xlu0 %v3326
        %v3328 = vpop.xlane.xlu0 %3327
        %v3329 = vsel %vm3181, %v2962, -inf
        %3330 = vmax.xlane.f32.xlu0 %v3329
        %v3331 = vpop.xlane.xlu0 %3330
        %v3332 = vsel %vm3181, %v2990, -inf
        %3333 = vmax.xlane.f32.xlu0 %v3332
        %v3334 = vpop.xlane.xlu0 %3333
        %v3335 = vsel %vm3181, %v2993, -inf
        %3336 = vmax.xlane.f32.xlu0 %v3335
        %v3337 = vpop.xlane.xlu0 %3336
        %v3338 = vsel %vm3181, %v3021, -inf
        %3339 = vmax.xlane.f32.xlu0 %v3338
        %v3340 = vpop.xlane.xlu0 %3339
        %v3341 = vsel %vm3181, %v3024, -inf
        %3342 = vmax.xlane.f32.xlu0 %v3341
        %v3343 = vpop.xlane.xlu0 %3342
        %v3344 = vsel %vm3181, %v3052, -inf
        %3345 = vmax.xlane.f32.xlu0 %v3344
        %v3346 = vpop.xlane.xlu0 %3345
        %v3347 = vsel %vm3181, %v3055, -inf
        %3348 = vmax.xlane.f32.xlu0 %v3347
        %v3349 = vpop.xlane.xlu0 %3348
        %v3350 = vsel %vm3181, %v3083, -inf
        %3351 = vmax.xlane.f32.xlu0 %v3350
        %v3352 = vpop.xlane.xlu0 %3351
        %v3353 = vsel %vm3181, %v3086, -inf
        %3354 = vmax.xlane.f32.xlu0 %v3353
        %v3355 = vpop.xlane.xlu0 %3354
        %v3356 = vsel %vm3181, %v3114, -inf
        %3357 = vmax.xlane.f32.xlu0 %v3356
        %v3358 = vpop.xlane.xlu0 %3357
        %v3359 = vsel %vm3181, %v3117, -inf
        %3360 = vmax.xlane.f32.xlu0 %v3359
        %v3361 = vpop.xlane.xlu0 %3360
        %v3362 = vsel %vm3181, %v3145, -inf
        %3363 = vmax.xlane.f32.xlu0 %v3362
        %v3364 = vpop.xlane.xlu0 %3363
        %v3365 = vsel %vm3181, %v3148, -inf
        %3366 = vmax.xlane.f32.xlu0 %v3365
        %v3367 = vpop.xlane.xlu0 %3366
        %v3368 = vsel %vm3181, %v3176, -inf
        %3369 = vmax.xlane.f32.xlu0 %v3368
        %v3370 = vpop.xlane.xlu0 %3369
        %v3371 = vsel %vm3181, %v3179, -inf
        %3372 = vmax.xlane.f32.xlu0 %v3371
        %v3373 = vpop.xlane.xlu0 %3372
        %v3374 = vsub.f32 %v2215, %v3184
        %v3375 = vsub.f32 %v2218, %v3187
        %v3376 = vsub.f32 %v2246, %v3190
        %v3377 = vsub.f32 %v2249, %v3193
        %v3378 = vsub.f32 %v2277, %v3196
        %v3379 = vsub.f32 %v2280, %v3199
        %v3380 = vsub.f32 %v2308, %v3202
        %v3381 = vsub.f32 %v2311, %v3205
        %v3382 = vsub.f32 %v2339, %v3208
        %v3383 = vsub.f32 %v2342, %v3211
        %v3384 = vsub.f32 %v2370, %v3214
        %v3385 = vsub.f32 %v2373, %v3217
        %v3386 = vsub.f32 %v2401, %v3220
        %v3387 = vsub.f32 %v2404, %v3223
        %v3388 = vsub.f32 %v2432, %v3226
        %v3389 = vsub.f32 %v2435, %v3229
        %v3390 = vsub.f32 %v2463, %v3232
        %v3391 = vsub.f32 %v2466, %v3235
        %v3392 = vsub.f32 %v2494, %v3238
        %v3393 = vsub.f32 %v2497, %v3241
        %v3394 = vsub.f32 %v2525, %v3244
        %v3395 = vsub.f32 %v2528, %v3247
        %v3396 = vsub.f32 %v2556, %v3250
        %v3397 = vsub.f32 %v2559, %v3253
        %v3398 = vsub.f32 %v2587, %v3256
        %v3399 = vsub.f32 %v2590, %v3259
        %v3400 = vsub.f32 %v2618, %v3262
        %v3401 = vsub.f32 %v2621, %v3265
        %v3402 = vsub.f32 %v2649, %v3268
        %v3403 = vsub.f32 %v2652, %v3271
        %v3404 = vsub.f32 %v2680, %v3274
        %v3405 = vsub.f32 %v2683, %v3277
        %v3406 = vsub.f32 %v2711, %v3280
        %v3407 = vsub.f32 %v2714, %v3283
        %v3408 = vsub.f32 %v2742, %v3286
        %v3409 = vsub.f32 %v2745, %v3289
        %v3410 = vsub.f32 %v2773, %v3292
        %v3411 = vsub.f32 %v2776, %v3295
        %v3412 = vsub.f32 %v2804, %v3298
        %v3413 = vsub.f32 %v2807, %v3301
        %v3414 = vsub.f32 %v2835, %v3304
        %v3415 = vsub.f32 %v2838, %v3307
        %v3416 = vsub.f32 %v2866, %v3310
        %v3417 = vsub.f32 %v2869, %v3313
        %v3418 = vsub.f32 %v2897, %v3316
        %v3419 = vsub.f32 %v2900, %v3319
        %v3420 = vsub.f32 %v2928, %v3322
        %v3421 = vsub.f32 %v2931, %v3325
        %v3422 = vsub.f32 %v2959, %v3328
        %v3423 = vsub.f32 %v2962, %v3331
        %v3424 = vsub.f32 %v2990, %v3334
        %v3425 = vsub.f32 %v2993, %v3337
        %v3426 = vsub.f32 %v3021, %v3340
        %v3427 = vsub.f32 %v3024, %v3343
        %v3428 = vsub.f32 %v3052, %v3346
        %v3429 = vsub.f32 %v3055, %v3349
        %v3430 = vsub.f32 %v3083, %v3352
        %v3431 = vsub.f32 %v3086, %v3355
        %v3432 = vsub.f32 %v3114, %v3358
        %v3433 = vsub.f32 %v3117, %v3361
        %v3434 = vsub.f32 %v3145, %v3364
        %v3435 = vsub.f32 %v3148, %v3367
        %v3436 = vsub.f32 %v3176, %v3370
        %v3437 = vsub.f32 %v3179, %v3373
        %v3438 = vmul.f32 %v3374, 1.442695
        %v3439 = vpow.pop %v3438
        %v3440 = vmul.f32 %v3375, 1.442695
        %v3441 = vpow.pop %v3440
        %v3442 = vmul.f32 %v3376, 1.442695
        %v3443 = vpow.pop %v3442
        %v3444 = vmul.f32 %v3377, 1.442695
        %v3445 = vpow.pop %v3444
        %v3446 = vmul.f32 %v3378, 1.442695
        %v3447 = vpow.pop %v3446
        %v3448 = vmul.f32 %v3379, 1.442695
        %v3449 = vpow.pop %v3448
        %v3450 = vmul.f32 %v3380, 1.442695
        %v3451 = vpow.pop %v3450
        %v3452 = vmul.f32 %v3381, 1.442695
        %v3453 = vpow.pop %v3452
        %v3454 = vmul.f32 %v3382, 1.442695
        %v3455 = vpow.pop %v3454
        %v3456 = vmul.f32 %v3383, 1.442695
        %v3457 = vpow.pop %v3456
        %v3458 = vmul.f32 %v3384, 1.442695
        %v3459 = vpow.pop %v3458
        %v3460 = vmul.f32 %v3385, 1.442695
        %v3461 = vpow.pop %v3460
        %v3462 = vmul.f32 %v3386, 1.442695
        %v3463 = vpow.pop %v3462
        %v3464 = vmul.f32 %v3387, 1.442695
        %v3465 = vpow.pop %v3464
        %v3466 = vmul.f32 %v3388, 1.442695
        %v3467 = vpow.pop %v3466
        %v3468 = vmul.f32 %v3389, 1.442695
        %v3469 = vpow.pop %v3468
        %v3470 = vmul.f32 %v3390, 1.442695
        %v3471 = vpow.pop %v3470
        %v3472 = vmul.f32 %v3391, 1.442695
        %v3473 = vpow.pop %v3472
        %v3474 = vmul.f32 %v3392, 1.442695
        %v3475 = vpow.pop %v3474
        %v3476 = vmul.f32 %v3393, 1.442695
        %v3477 = vpow.pop %v3476
        %v3478 = vmul.f32 %v3394, 1.442695
        %v3479 = vpow.pop %v3478
        %v3480 = vmul.f32 %v3395, 1.442695
        %v3481 = vpow.pop %v3480
        %v3482 = vmul.f32 %v3396, 1.442695
        %v3483 = vpow.pop %v3482
        %v3484 = vmul.f32 %v3397, 1.442695
        %v3485 = vpow.pop %v3484
        %v3486 = vmul.f32 %v3398, 1.442695
        %v3487 = vpow.pop %v3486
        %v3488 = vmul.f32 %v3399, 1.442695
        %v3489 = vpow.pop %v3488
        %v3490 = vmul.f32 %v3400, 1.442695
        %v3491 = vpow.pop %v3490
        %v3492 = vmul.f32 %v3401, 1.442695
        %v3493 = vpow.pop %v3492
        %v3494 = vmul.f32 %v3402, 1.442695
        %v3495 = vpow.pop %v3494
        %v3496 = vmul.f32 %v3403, 1.442695
        %v3497 = vpow.pop %v3496
        %v3498 = vmul.f32 %v3404, 1.442695
        %v3499 = vpow.pop %v3498
        %v3500 = vmul.f32 %v3405, 1.442695
        %v3501 = vpow.pop %v3500
        %v3502 = vmul.f32 %v3406, 1.442695
        %v3503 = vpow.pop %v3502
        %v3504 = vmul.f32 %v3407, 1.442695
        %v3505 = vpow.pop %v3504
        %v3506 = vmul.f32 %v3408, 1.442695
        %v3507 = vpow.pop %v3506
        %v3508 = vmul.f32 %v3409, 1.442695
        %v3509 = vpow.pop %v3508
        %v3510 = vmul.f32 %v3410, 1.442695
        %v3511 = vpow.pop %v3510
        %v3512 = vmul.f32 %v3411, 1.442695
        %v3513 = vpow.pop %v3512
        %v3514 = vmul.f32 %v3412, 1.442695
        %v3515 = vpow.pop %v3514
        %v3516 = vmul.f32 %v3413, 1.442695
        %v3517 = vpow.pop %v3516
        %v3518 = vmul.f32 %v3414, 1.442695
        %v3519 = vpow.pop %v3518
        %v3520 = vmul.f32 %v3415, 1.442695
        %v3521 = vpow.pop %v3520
        %v3522 = vmul.f32 %v3416, 1.442695
        %v3523 = vpow.pop %v3522
        %v3524 = vmul.f32 %v3417, 1.442695
        %v3525 = vpow.pop %v3524
        %v3526 = vmul.f32 %v3418, 1.442695
        %v3527 = vpow.pop %v3526
        %v3528 = vmul.f32 %v3419, 1.442695
        %v3529 = vpow.pop %v3528
        %v3530 = vmul.f32 %v3420, 1.442695
        %v3531 = vpow.pop %v3530
        %v3532 = vmul.f32 %v3421, 1.442695
        %v3533 = vpow.pop %v3532
        %v3534 = vmul.f32 %v3422, 1.442695
        %v3535 = vpow.pop %v3534
        %v3536 = vmul.f32 %v3423, 1.442695
        %v3537 = vpow.pop %v3536
        %v3538 = vmul.f32 %v3424, 1.442695
        %v3539 = vpow.pop %v3538
        %v3540 = vmul.f32 %v3425, 1.442695
        %v3541 = vpow.pop %v3540
        %v3542 = vmul.f32 %v3426, 1.442695
        %v3543 = vpow.pop %v3542
        %v3544 = vmul.f32 %v3427, 1.442695
        %v3545 = vpow.pop %v3544
        %v3546 = vmul.f32 %v3428, 1.442695
        %v3547 = vpow.pop %v3546
        %v3548 = vmul.f32 %v3429, 1.442695
        %v3549 = vpow.pop %v3548
        %v3550 = vmul.f32 %v3430, 1.442695
        %v3551 = vpow.pop %v3550
        %v3552 = vmul.f32 %v3431, 1.442695
        %v3553 = vpow.pop %v3552
        %v3554 = vmul.f32 %v3432, 1.442695
        %v3555 = vpow.pop %v3554
        %v3556 = vmul.f32 %v3433, 1.442695
        %v3557 = vpow.pop %v3556
        %v3558 = vmul.f32 %v3434, 1.442695
        %v3559 = vpow.pop %v3558
        %v3560 = vmul.f32 %v3435, 1.442695
        %v3561 = vpow.pop %v3560
        %v3562 = vmul.f32 %v3436, 1.442695
        %v3563 = vpow.pop %v3562
        %v3564 = vmul.f32 %v3437, 1.442695
        %v3565 = vpow.pop %v3564
        %v3566 = vsel %vm3181, %v3439, 0.0
        %3567 = vadd.xlane.f32.xlu0 %v3566
        %v3568 = vpop.xlane.xlu0 %3567
        %v3569 = vsel %vm3181, %v3441, 0.0
        %3570 = vadd.xlane.f32.xlu0 %v3569
        %v3571 = vpop.xlane.xlu0 %3570
        %v3572 = vsel %vm3181, %v3443, 0.0
        %3573 = vadd.xlane.f32.xlu0 %v3572
        %v3574 = vpop.xlane.xlu0 %3573
        %v3575 = vsel %vm3181, %v3445, 0.0
        %3576 = vadd.xlane.f32.xlu0 %v3575
        %v3577 = vpop.xlane.xlu0 %3576
        %v3578 = vsel %vm3181, %v3447, 0.0
        %3579 = vadd.xlane.f32.xlu0 %v3578
        %v3580 = vpop.xlane.xlu0 %3579
        %v3581 = vsel %vm3181, %v3449, 0.0
        %3582 = vadd.xlane.f32.xlu0 %v3581
        %v3583 = vpop.xlane.xlu0 %3582
        %v3584 = vsel %vm3181, %v3451, 0.0
        %3585 = vadd.xlane.f32.xlu0 %v3584
        %v3586 = vpop.xlane.xlu0 %3585
        %v3587 = vsel %vm3181, %v3453, 0.0
        %3588 = vadd.xlane.f32.xlu0 %v3587
        %v3589 = vpop.xlane.xlu0 %3588
        %v3590 = vsel %vm3181, %v3455, 0.0
        %3591 = vadd.xlane.f32.xlu0 %v3590
        %v3592 = vpop.xlane.xlu0 %3591
        %v3593 = vsel %vm3181, %v3457, 0.0
        %3594 = vadd.xlane.f32.xlu0 %v3593
        %v3595 = vpop.xlane.xlu0 %3594
        %v3596 = vsel %vm3181, %v3459, 0.0
        %3597 = vadd.xlane.f32.xlu0 %v3596
        %v3598 = vpop.xlane.xlu0 %3597
        %v3599 = vsel %vm3181, %v3461, 0.0
        %3600 = vadd.xlane.f32.xlu0 %v3599
        %v3601 = vpop.xlane.xlu0 %3600
        %v3602 = vsel %vm3181, %v3463, 0.0
        %3603 = vadd.xlane.f32.xlu0 %v3602
        %v3604 = vpop.xlane.xlu0 %3603
        %v3605 = vsel %vm3181, %v3465, 0.0
        %3606 = vadd.xlane.f32.xlu0 %v3605
        %v3607 = vpop.xlane.xlu0 %3606
        %v3608 = vsel %vm3181, %v3467, 0.0
        %3609 = vadd.xlane.f32.xlu0 %v3608
        %v3610 = vpop.xlane.xlu0 %3609
        %v3611 = vsel %vm3181, %v3469, 0.0
        %3612 = vadd.xlane.f32.xlu0 %v3611
        %v3613 = vpop.xlane.xlu0 %3612
        %v3614 = vsel %vm3181, %v3471, 0.0
        %3615 = vadd.xlane.f32.xlu0 %v3614
        %v3616 = vpop.xlane.xlu0 %3615
        %v3617 = vsel %vm3181, %v3473, 0.0
        %3618 = vadd.xlane.f32.xlu0 %v3617
        %v3619 = vpop.xlane.xlu0 %3618
        %v3620 = vsel %vm3181, %v3475, 0.0
        %3621 = vadd.xlane.f32.xlu0 %v3620
        %v3622 = vpop.xlane.xlu0 %3621
        %v3623 = vsel %vm3181, %v3477, 0.0
        %3624 = vadd.xlane.f32.xlu0 %v3623
        %v3625 = vpop.xlane.xlu0 %3624
        %v3626 = vsel %vm3181, %v3479, 0.0
        %3627 = vadd.xlane.f32.xlu0 %v3626
        %v3628 = vpop.xlane.xlu0 %3627
        %v3629 = vsel %vm3181, %v3481, 0.0
        %3630 = vadd.xlane.f32.xlu0 %v3629
        %v3631 = vpop.xlane.xlu0 %3630
        %v3632 = vsel %vm3181, %v3483, 0.0
        %3633 = vadd.xlane.f32.xlu0 %v3632
        %v3634 = vpop.xlane.xlu0 %3633
        %v3635 = vsel %vm3181, %v3485, 0.0
        %3636 = vadd.xlane.f32.xlu0 %v3635
        %v3637 = vpop.xlane.xlu0 %3636
        %v3638 = vsel %vm3181, %v3487, 0.0
        %3639 = vadd.xlane.f32.xlu0 %v3638
        %v3640 = vpop.xlane.xlu0 %3639
        %v3641 = vsel %vm3181, %v3489, 0.0
        %3642 = vadd.xlane.f32.xlu0 %v3641
        %v3643 = vpop.xlane.xlu0 %3642
        %v3644 = vsel %vm3181, %v3491, 0.0
        %3645 = vadd.xlane.f32.xlu0 %v3644
        %v3646 = vpop.xlane.xlu0 %3645
        %v3647 = vsel %vm3181, %v3493, 0.0
        %3648 = vadd.xlane.f32.xlu0 %v3647
        %v3649 = vpop.xlane.xlu0 %3648
        %v3650 = vsel %vm3181, %v3495, 0.0
        %3651 = vadd.xlane.f32.xlu0 %v3650
        %v3652 = vpop.xlane.xlu0 %3651
        %v3653 = vsel %vm3181, %v3497, 0.0
        %3654 = vadd.xlane.f32.xlu0 %v3653
        %v3655 = vpop.xlane.xlu0 %3654
        %v3656 = vsel %vm3181, %v3499, 0.0
        %3657 = vadd.xlane.f32.xlu0 %v3656
        %v3658 = vpop.xlane.xlu0 %3657
        %v3659 = vsel %vm3181, %v3501, 0.0
        %3660 = vadd.xlane.f32.xlu0 %v3659
        %v3661 = vpop.xlane.xlu0 %3660
        %v3662 = vsel %vm3181, %v3503, 0.0
        %3663 = vadd.xlane.f32.xlu0 %v3662
        %v3664 = vpop.xlane.xlu0 %3663
        %v3665 = vsel %vm3181, %v3505, 0.0
        %3666 = vadd.xlane.f32.xlu0 %v3665
        %v3667 = vpop.xlane.xlu0 %3666
        %v3668 = vsel %vm3181, %v3507, 0.0
        %3669 = vadd.xlane.f32.xlu0 %v3668
        %v3670 = vpop.xlane.xlu0 %3669
        %v3671 = vsel %vm3181, %v3509, 0.0
        %3672 = vadd.xlane.f32.xlu0 %v3671
        %v3673 = vpop.xlane.xlu0 %3672
        %v3674 = vsel %vm3181, %v3511, 0.0
        %3675 = vadd.xlane.f32.xlu0 %v3674
        %v3676 = vpop.xlane.xlu0 %3675
        %v3677 = vsel %vm3181, %v3513, 0.0
        %3678 = vadd.xlane.f32.xlu0 %v3677
        %v3679 = vpop.xlane.xlu0 %3678
        %v3680 = vsel %vm3181, %v3515, 0.0
        %3681 = vadd.xlane.f32.xlu0 %v3680
        %v3682 = vpop.xlane.xlu0 %3681
        %v3683 = vsel %vm3181, %v3517, 0.0
        %3684 = vadd.xlane.f32.xlu0 %v3683
        %v3685 = vpop.xlane.xlu0 %3684
        %v3686 = vsel %vm3181, %v3519, 0.0
        %3687 = vadd.xlane.f32.xlu0 %v3686
        %v3688 = vpop.xlane.xlu0 %3687
        %v3689 = vsel %vm3181, %v3521, 0.0
        %3690 = vadd.xlane.f32.xlu0 %v3689
        %v3691 = vpop.xlane.xlu0 %3690
        %v3692 = vsel %vm3181, %v3523, 0.0
        %3693 = vadd.xlane.f32.xlu0 %v3692
        %v3694 = vpop.xlane.xlu0 %3693
        %v3695 = vsel %vm3181, %v3525, 0.0
        %3696 = vadd.xlane.f32.xlu0 %v3695
        %v3697 = vpop.xlane.xlu0 %3696
        %v3698 = vsel %vm3181, %v3527, 0.0
        %3699 = vadd.xlane.f32.xlu0 %v3698
        %v3700 = vpop.xlane.xlu0 %3699
        %v3701 = vsel %vm3181, %v3529, 0.0
        %3702 = vadd.xlane.f32.xlu0 %v3701
        %v3703 = vpop.xlane.xlu0 %3702
        %v3704 = vsel %vm3181, %v3531, 0.0
        %3705 = vadd.xlane.f32.xlu0 %v3704
        %v3706 = vpop.xlane.xlu0 %3705
        %v3707 = vsel %vm3181, %v3533, 0.0
        %3708 = vadd.xlane.f32.xlu0 %v3707
        %v3709 = vpop.xlane.xlu0 %3708
        %v3710 = vsel %vm3181, %v3535, 0.0
        %3711 = vadd.xlane.f32.xlu0 %v3710
        %v3712 = vpop.xlane.xlu0 %3711
        %v3713 = vsel %vm3181, %v3537, 0.0
        %3714 = vadd.xlane.f32.xlu0 %v3713
        %v3715 = vpop.xlane.xlu0 %3714
        %v3716 = vsel %vm3181, %v3539, 0.0
        %3717 = vadd.xlane.f32.xlu0 %v3716
        %v3718 = vpop.xlane.xlu0 %3717
        %v3719 = vsel %vm3181, %v3541, 0.0
        %3720 = vadd.xlane.f32.xlu0 %v3719
        %v3721 = vpop.xlane.xlu0 %3720
        %v3722 = vsel %vm3181, %v3543, 0.0
        %3723 = vadd.xlane.f32.xlu0 %v3722
        %v3724 = vpop.xlane.xlu0 %3723
        %v3725 = vsel %vm3181, %v3545, 0.0
        %3726 = vadd.xlane.f32.xlu0 %v3725
        %v3727 = vpop.xlane.xlu0 %3726
        %v3728 = vsel %vm3181, %v3547, 0.0
        %3729 = vadd.xlane.f32.xlu0 %v3728
        %v3730 = vpop.xlane.xlu0 %3729
        %v3731 = vsel %vm3181, %v3549, 0.0
        %3732 = vadd.xlane.f32.xlu0 %v3731
        %v3733 = vpop.xlane.xlu0 %3732
        %v3734 = vsel %vm3181, %v3551, 0.0
        %3735 = vadd.xlane.f32.xlu0 %v3734
        %v3736 = vpop.xlane.xlu0 %3735
        %v3737 = vsel %vm3181, %v3553, 0.0
        %3738 = vadd.xlane.f32.xlu0 %v3737
        %v3739 = vpop.xlane.xlu0 %3738
        %v3740 = vsel %vm3181, %v3555, 0.0
        %3741 = vadd.xlane.f32.xlu0 %v3740
        %v3742 = vpop.xlane.xlu0 %3741
        %v3743 = vsel %vm3181, %v3557, 0.0
        %3744 = vadd.xlane.f32.xlu0 %v3743
        %v3745 = vpop.xlane.xlu0 %3744
        %v3746 = vsel %vm3181, %v3559, 0.0
        %3747 = vadd.xlane.f32.xlu0 %v3746
        %v3748 = vpop.xlane.xlu0 %3747
        %v3749 = vsel %vm3181, %v3561, 0.0
        %3750 = vadd.xlane.f32.xlu0 %v3749
        %v3751 = vpop.xlane.xlu0 %3750
        %v3752 = vsel %vm3181, %v3563, 0.0
        %3753 = vadd.xlane.f32.xlu0 %v3752
        %v3754 = vpop.xlane.xlu0 %3753
        %v3755 = vsel %vm3181, %v3565, 0.0
        %3756 = vadd.xlane.f32.xlu0 %v3755
        %v3757 = vpop.xlane.xlu0 %3756
        %v3758 = vrcp.pop %v3568
        %v3759 = vmul.f32 %v3568, %v3758
        %v3760 = vsub.f32 1.0, %v3759
        %v3761 = vmul.f32 %v3758, %v3760
        %v3762 = vadd.f32 %v3758, %v3761
        %vm3763 = vweird.f32 %v3568
        %vm3764 = vweird.f32 %v3758
        %vm3765 = vmor %vm3763, %vm3764
        %v3766 = vsel %vm3765, %v3758, %v3762
        %v3767 = vand.u32 2147483647, %v3568
        %vm3768 = vcmp.eq.f32.partialorder %v3767, 8.507059e+37
        %v3769 = vand.u32 %v3568, 2147483648
        %v3770 = vor.u32 1.1754944e-38, %v3769
        %v3771 = vsel %vm3768, %v3770, %v3766
        %v3772 = vmul.f32 %v3439, %v3771
        %v3773 = vrcp.pop %v3571
        %v3774 = vmul.f32 %v3571, %v3773
        %v3775 = vsub.f32 1.0, %v3774
        %v3776 = vmul.f32 %v3773, %v3775
        %v3777 = vadd.f32 %v3773, %v3776
        %vm3778 = vweird.f32 %v3571
        %vm3779 = vweird.f32 %v3773
        %vm3780 = vmor %vm3778, %vm3779
        %v3781 = vsel %vm3780, %v3773, %v3777
        %v3782 = vand.u32 2147483647, %v3571
        %vm3783 = vcmp.eq.f32.partialorder %v3782, 8.507059e+37
        %v3784 = vand.u32 %v3571, 2147483648
        %v3785 = vor.u32 1.1754944e-38, %v3784
        %v3786 = vsel %vm3783, %v3785, %v3781
        %v3787 = vmul.f32 %v3441, %v3786
        %v3788 = vrcp.pop %v3574
        %v3789 = vmul.f32 %v3574, %v3788
        %v3790 = vsub.f32 1.0, %v3789
        %v3791 = vmul.f32 %v3788, %v3790
        %v3792 = vadd.f32 %v3788, %v3791
        %vm3793 = vweird.f32 %v3574
        %vm3794 = vweird.f32 %v3788
        %vm3795 = vmor %vm3793, %vm3794
        %v3796 = vsel %vm3795, %v3788, %v3792
        %v3797 = vand.u32 2147483647, %v3574
        %vm3798 = vcmp.eq.f32.partialorder %v3797, 8.507059e+37
        %v3799 = vand.u32 %v3574, 2147483648
        %v3800 = vor.u32 1.1754944e-38, %v3799
        %v3801 = vsel %vm3798, %v3800, %v3796
        %v3802 = vmul.f32 %v3443, %v3801
        %v3803 = vrcp.pop %v3577
        %v3804 = vmul.f32 %v3577, %v3803
        %v3805 = vsub.f32 1.0, %v3804
        %v3806 = vmul.f32 %v3803, %v3805
        %v3807 = vadd.f32 %v3803, %v3806
        %vm3808 = vweird.f32 %v3577
        %vm3809 = vweird.f32 %v3803
        %vm3810 = vmor %vm3808, %vm3809
        %v3811 = vsel %vm3810, %v3803, %v3807
        %v3812 = vand.u32 2147483647, %v3577
        %vm3813 = vcmp.eq.f32.partialorder %v3812, 8.507059e+37
        %v3814 = vand.u32 %v3577, 2147483648
        %v3815 = vor.u32 1.1754944e-38, %v3814
        %v3816 = vsel %vm3813, %v3815, %v3811
        %v3817 = vmul.f32 %v3445, %v3816
        %v3818 = vrcp.pop %v3580
        %v3819 = vmul.f32 %v3580, %v3818
        %v3820 = vsub.f32 1.0, %v3819
        %v3821 = vmul.f32 %v3818, %v3820
        %v3822 = vadd.f32 %v3818, %v3821
        %vm3823 = vweird.f32 %v3580
        %vm3824 = vweird.f32 %v3818
        %vm3825 = vmor %vm3823, %vm3824
        %v3826 = vsel %vm3825, %v3818, %v3822
        %v3827 = vand.u32 2147483647, %v3580
        %vm3828 = vcmp.eq.f32.partialorder %v3827, 8.507059e+37
        %v3829 = vand.u32 %v3580, 2147483648
        %v3830 = vor.u32 1.1754944e-38, %v3829
        %v3831 = vsel %vm3828, %v3830, %v3826
        %v3832 = vmul.f32 %v3447, %v3831
        %v3833 = vrcp.pop %v3583
        %v3834 = vmul.f32 %v3583, %v3833
        %v3835 = vsub.f32 1.0, %v3834
        %v3836 = vmul.f32 %v3833, %v3835
        %v3837 = vadd.f32 %v3833, %v3836
        %vm3838 = vweird.f32 %v3583
        %vm3839 = vweird.f32 %v3833
        %vm3840 = vmor %vm3838, %vm3839
        %v3841 = vsel %vm3840, %v3833, %v3837
        %v3842 = vand.u32 2147483647, %v3583
        %vm3843 = vcmp.eq.f32.partialorder %v3842, 8.507059e+37
        %v3844 = vand.u32 %v3583, 2147483648
        %v3845 = vor.u32 1.1754944e-38, %v3844
        %v3846 = vsel %vm3843, %v3845, %v3841
        %v3847 = vmul.f32 %v3449, %v3846
        %v3848 = vrcp.pop %v3586
        %v3849 = vmul.f32 %v3586, %v3848
        %v3850 = vsub.f32 1.0, %v3849
        %v3851 = vmul.f32 %v3848, %v3850
        %v3852 = vadd.f32 %v3848, %v3851
        %vm3853 = vweird.f32 %v3586
        %vm3854 = vweird.f32 %v3848
        %vm3855 = vmor %vm3853, %vm3854
        %v3856 = vsel %vm3855, %v3848, %v3852
        %v3857 = vand.u32 2147483647, %v3586
        %vm3858 = vcmp.eq.f32.partialorder %v3857, 8.507059e+37
        %v3859 = vand.u32 %v3586, 2147483648
        %v3860 = vor.u32 1.1754944e-38, %v3859
        %v3861 = vsel %vm3858, %v3860, %v3856
        %v3862 = vmul.f32 %v3451, %v3861
        %v3863 = vrcp.pop %v3589
        %v3864 = vmul.f32 %v3589, %v3863
        %v3865 = vsub.f32 1.0, %v3864
        %v3866 = vmul.f32 %v3863, %v3865
        %v3867 = vadd.f32 %v3863, %v3866
        %vm3868 = vweird.f32 %v3589
        %vm3869 = vweird.f32 %v3863
        %vm3870 = vmor %vm3868, %vm3869
        %v3871 = vsel %vm3870, %v3863, %v3867
        %v3872 = vand.u32 2147483647, %v3589
        %vm3873 = vcmp.eq.f32.partialorder %v3872, 8.507059e+37
        %v3874 = vand.u32 %v3589, 2147483648
        %v3875 = vor.u32 1.1754944e-38, %v3874
        %v3876 = vsel %vm3873, %v3875, %v3871
        %v3877 = vmul.f32 %v3453, %v3876
        %v3878 = vrcp.pop %v3592
        %v3879 = vmul.f32 %v3592, %v3878
        %v3880 = vsub.f32 1.0, %v3879
        %v3881 = vmul.f32 %v3878, %v3880
        %v3882 = vadd.f32 %v3878, %v3881
        %vm3883 = vweird.f32 %v3592
        %vm3884 = vweird.f32 %v3878
        %vm3885 = vmor %vm3883, %vm3884
        %v3886 = vsel %vm3885, %v3878, %v3882
        %v3887 = vand.u32 2147483647, %v3592
        %vm3888 = vcmp.eq.f32.partialorder %v3887, 8.507059e+37
        %v3889 = vand.u32 %v3592, 2147483648
        %v3890 = vor.u32 1.1754944e-38, %v3889
        %v3891 = vsel %vm3888, %v3890, %v3886
        %v3892 = vmul.f32 %v3455, %v3891
        %v3893 = vrcp.pop %v3595
        %v3894 = vmul.f32 %v3595, %v3893
        %v3895 = vsub.f32 1.0, %v3894
        %v3896 = vmul.f32 %v3893, %v3895
        %v3897 = vadd.f32 %v3893, %v3896
        %vm3898 = vweird.f32 %v3595
        %vm3899 = vweird.f32 %v3893
        %vm3900 = vmor %vm3898, %vm3899
        %v3901 = vsel %vm3900, %v3893, %v3897
        %v3902 = vand.u32 2147483647, %v3595
        %vm3903 = vcmp.eq.f32.partialorder %v3902, 8.507059e+37
        %v3904 = vand.u32 %v3595, 2147483648
        %v3905 = vor.u32 1.1754944e-38, %v3904
        %v3906 = vsel %vm3903, %v3905, %v3901
        %v3907 = vmul.f32 %v3457, %v3906
        %v3908 = vrcp.pop %v3598
        %v3909 = vmul.f32 %v3598, %v3908
        %v3910 = vsub.f32 1.0, %v3909
        %v3911 = vmul.f32 %v3908, %v3910
        %v3912 = vadd.f32 %v3908, %v3911
        %vm3913 = vweird.f32 %v3598
        %vm3914 = vweird.f32 %v3908
        %vm3915 = vmor %vm3913, %vm3914
        %v3916 = vsel %vm3915, %v3908, %v3912
        %v3917 = vand.u32 2147483647, %v3598
        %vm3918 = vcmp.eq.f32.partialorder %v3917, 8.507059e+37
        %v3919 = vand.u32 %v3598, 2147483648
        %v3920 = vor.u32 1.1754944e-38, %v3919
        %v3921 = vsel %vm3918, %v3920, %v3916
        %v3922 = vmul.f32 %v3459, %v3921
        %v3923 = vrcp.pop %v3601
        %v3924 = vmul.f32 %v3601, %v3923
        %v3925 = vsub.f32 1.0, %v3924
        %v3926 = vmul.f32 %v3923, %v3925
        %v3927 = vadd.f32 %v3923, %v3926
        %vm3928 = vweird.f32 %v3601
        %vm3929 = vweird.f32 %v3923
        %vm3930 = vmor %vm3928, %vm3929
        %v3931 = vsel %vm3930, %v3923, %v3927
        %v3932 = vand.u32 2147483647, %v3601
        %vm3933 = vcmp.eq.f32.partialorder %v3932, 8.507059e+37
        %v3934 = vand.u32 %v3601, 2147483648
        %v3935 = vor.u32 1.1754944e-38, %v3934
        %v3936 = vsel %vm3933, %v3935, %v3931
        %v3937 = vmul.f32 %v3461, %v3936
        %v3938 = vrcp.pop %v3604
        %v3939 = vmul.f32 %v3604, %v3938
        %v3940 = vsub.f32 1.0, %v3939
        %v3941 = vmul.f32 %v3938, %v3940
        %v3942 = vadd.f32 %v3938, %v3941
        %vm3943 = vweird.f32 %v3604
        %vm3944 = vweird.f32 %v3938
        %vm3945 = vmor %vm3943, %vm3944
        %v3946 = vsel %vm3945, %v3938, %v3942
        %v3947 = vand.u32 2147483647, %v3604
        %vm3948 = vcmp.eq.f32.partialorder %v3947, 8.507059e+37
        %v3949 = vand.u32 %v3604, 2147483648
        %v3950 = vor.u32 1.1754944e-38, %v3949
        %v3951 = vsel %vm3948, %v3950, %v3946
        %v3952 = vmul.f32 %v3463, %v3951
        %v3953 = vrcp.pop %v3607
        %v3954 = vmul.f32 %v3607, %v3953
        %v3955 = vsub.f32 1.0, %v3954
        %v3956 = vmul.f32 %v3953, %v3955
        %v3957 = vadd.f32 %v3953, %v3956
        %vm3958 = vweird.f32 %v3607
        %vm3959 = vweird.f32 %v3953
        %vm3960 = vmor %vm3958, %vm3959
        %v3961 = vsel %vm3960, %v3953, %v3957
        %v3962 = vand.u32 2147483647, %v3607
        %vm3963 = vcmp.eq.f32.partialorder %v3962, 8.507059e+37
        %v3964 = vand.u32 %v3607, 2147483648
        %v3965 = vor.u32 1.1754944e-38, %v3964
        %v3966 = vsel %vm3963, %v3965, %v3961
        %v3967 = vmul.f32 %v3465, %v3966
        %v3968 = vrcp.pop %v3610
        %v3969 = vmul.f32 %v3610, %v3968
        %v3970 = vsub.f32 1.0, %v3969
        %v3971 = vmul.f32 %v3968, %v3970
        %v3972 = vadd.f32 %v3968, %v3971
        %vm3973 = vweird.f32 %v3610
        %vm3974 = vweird.f32 %v3968
        %vm3975 = vmor %vm3973, %vm3974
        %v3976 = vsel %vm3975, %v3968, %v3972
        %v3977 = vand.u32 2147483647, %v3610
        %vm3978 = vcmp.eq.f32.partialorder %v3977, 8.507059e+37
        %v3979 = vand.u32 %v3610, 2147483648
        %v3980 = vor.u32 1.1754944e-38, %v3979
        %v3981 = vsel %vm3978, %v3980, %v3976
        %v3982 = vmul.f32 %v3467, %v3981
        %v3983 = vrcp.pop %v3613
        %v3984 = vmul.f32 %v3613, %v3983
        %v3985 = vsub.f32 1.0, %v3984
        %v3986 = vmul.f32 %v3983, %v3985
        %v3987 = vadd.f32 %v3983, %v3986
        %vm3988 = vweird.f32 %v3613
        %vm3989 = vweird.f32 %v3983
        %vm3990 = vmor %vm3988, %vm3989
        %v3991 = vsel %vm3990, %v3983, %v3987
        %v3992 = vand.u32 2147483647, %v3613
        %vm3993 = vcmp.eq.f32.partialorder %v3992, 8.507059e+37
        %v3994 = vand.u32 %v3613, 2147483648
        %v3995 = vor.u32 1.1754944e-38, %v3994
        %v3996 = vsel %vm3993, %v3995, %v3991
        %v3997 = vmul.f32 %v3469, %v3996
        %v3998 = vrcp.pop %v3616
        %v3999 = vmul.f32 %v3616, %v3998
        %v4000 = vsub.f32 1.0, %v3999
        %v4001 = vmul.f32 %v3998, %v4000
        %v4002 = vadd.f32 %v3998, %v4001
        %vm4003 = vweird.f32 %v3616
        %vm4004 = vweird.f32 %v3998
        %vm4005 = vmor %vm4003, %vm4004
        %v4006 = vsel %vm4005, %v3998, %v4002
        %v4007 = vand.u32 2147483647, %v3616
        %vm4008 = vcmp.eq.f32.partialorder %v4007, 8.507059e+37
        %v4009 = vand.u32 %v3616, 2147483648
        %v4010 = vor.u32 1.1754944e-38, %v4009
        %v4011 = vsel %vm4008, %v4010, %v4006
        %v4012 = vmul.f32 %v3471, %v4011
        %v4013 = vrcp.pop %v3619
        %v4014 = vmul.f32 %v3619, %v4013
        %v4015 = vsub.f32 1.0, %v4014
        %v4016 = vmul.f32 %v4013, %v4015
        %v4017 = vadd.f32 %v4013, %v4016
        %vm4018 = vweird.f32 %v3619
        %vm4019 = vweird.f32 %v4013
        %vm4020 = vmor %vm4018, %vm4019
        %v4021 = vsel %vm4020, %v4013, %v4017
        %v4022 = vand.u32 2147483647, %v3619
        %vm4023 = vcmp.eq.f32.partialorder %v4022, 8.507059e+37
        %v4024 = vand.u32 %v3619, 2147483648
        %v4025 = vor.u32 1.1754944e-38, %v4024
        %v4026 = vsel %vm4023, %v4025, %v4021
        %v4027 = vmul.f32 %v3473, %v4026
        %v4028 = vrcp.pop %v3622
        %v4029 = vmul.f32 %v3622, %v4028
        %v4030 = vsub.f32 1.0, %v4029
        %v4031 = vmul.f32 %v4028, %v4030
        %v4032 = vadd.f32 %v4028, %v4031
        %vm4033 = vweird.f32 %v3622
        %vm4034 = vweird.f32 %v4028
        %vm4035 = vmor %vm4033, %vm4034
        %v4036 = vsel %vm4035, %v4028, %v4032
        %v4037 = vand.u32 2147483647, %v3622
        %vm4038 = vcmp.eq.f32.partialorder %v4037, 8.507059e+37
        %v4039 = vand.u32 %v3622, 2147483648
        %v4040 = vor.u32 1.1754944e-38, %v4039
        %v4041 = vsel %vm4038, %v4040, %v4036
        %v4042 = vmul.f32 %v3475, %v4041
        %v4043 = vrcp.pop %v3625
        %v4044 = vmul.f32 %v3625, %v4043
        %v4045 = vsub.f32 1.0, %v4044
        %v4046 = vmul.f32 %v4043, %v4045
        %v4047 = vadd.f32 %v4043, %v4046
        %vm4048 = vweird.f32 %v3625
        %vm4049 = vweird.f32 %v4043
        %vm4050 = vmor %vm4048, %vm4049
        %v4051 = vsel %vm4050, %v4043, %v4047
        %v4052 = vand.u32 2147483647, %v3625
        %vm4053 = vcmp.eq.f32.partialorder %v4052, 8.507059e+37
        %v4054 = vand.u32 %v3625, 2147483648
        %v4055 = vor.u32 1.1754944e-38, %v4054
        %v4056 = vsel %vm4053, %v4055, %v4051
        %v4057 = vmul.f32 %v3477, %v4056
        %v4058 = vrcp.pop %v3628
        %v4059 = vmul.f32 %v3628, %v4058
        %v4060 = vsub.f32 1.0, %v4059
        %v4061 = vmul.f32 %v4058, %v4060
        %v4062 = vadd.f32 %v4058, %v4061
        %vm4063 = vweird.f32 %v3628
        %vm4064 = vweird.f32 %v4058
        %vm4065 = vmor %vm4063, %vm4064
        %v4066 = vsel %vm4065, %v4058, %v4062
        %v4067 = vand.u32 2147483647, %v3628
        %vm4068 = vcmp.eq.f32.partialorder %v4067, 8.507059e+37
        %v4069 = vand.u32 %v3628, 2147483648
        %v4070 = vor.u32 1.1754944e-38, %v4069
        %v4071 = vsel %vm4068, %v4070, %v4066
        %v4072 = vmul.f32 %v3479, %v4071
        %v4073 = vrcp.pop %v3631
        %v4074 = vmul.f32 %v3631, %v4073
        %v4075 = vsub.f32 1.0, %v4074
        %v4076 = vmul.f32 %v4073, %v4075
        %v4077 = vadd.f32 %v4073, %v4076
        %vm4078 = vweird.f32 %v3631
        %vm4079 = vweird.f32 %v4073
        %vm4080 = vmor %vm4078, %vm4079
        %v4081 = vsel %vm4080, %v4073, %v4077
        %v4082 = vand.u32 2147483647, %v3631
        %vm4083 = vcmp.eq.f32.partialorder %v4082, 8.507059e+37
        %v4084 = vand.u32 %v3631, 2147483648
        %v4085 = vor.u32 1.1754944e-38, %v4084
        %v4086 = vsel %vm4083, %v4085, %v4081
        %v4087 = vmul.f32 %v3481, %v4086
        %v4088 = vrcp.pop %v3634
        %v4089 = vmul.f32 %v3634, %v4088
        %v4090 = vsub.f32 1.0, %v4089
        %v4091 = vmul.f32 %v4088, %v4090
        %v4092 = vadd.f32 %v4088, %v4091
        %vm4093 = vweird.f32 %v3634
        %vm4094 = vweird.f32 %v4088
        %vm4095 = vmor %vm4093, %vm4094
        %v4096 = vsel %vm4095, %v4088, %v4092
        %v4097 = vand.u32 2147483647, %v3634
        %vm4098 = vcmp.eq.f32.partialorder %v4097, 8.507059e+37
        %v4099 = vand.u32 %v3634, 2147483648
        %v4100 = vor.u32 1.1754944e-38, %v4099
        %v4101 = vsel %vm4098, %v4100, %v4096
        %v4102 = vmul.f32 %v3483, %v4101
        %v4103 = vrcp.pop %v3637
        %v4104 = vmul.f32 %v3637, %v4103
        %v4105 = vsub.f32 1.0, %v4104
        %v4106 = vmul.f32 %v4103, %v4105
        %v4107 = vadd.f32 %v4103, %v4106
        %vm4108 = vweird.f32 %v3637
        %vm4109 = vweird.f32 %v4103
        %vm4110 = vmor %vm4108, %vm4109
        %v4111 = vsel %vm4110, %v4103, %v4107
        %v4112 = vand.u32 2147483647, %v3637
        %vm4113 = vcmp.eq.f32.partialorder %v4112, 8.507059e+37
        %v4114 = vand.u32 %v3637, 2147483648
        %v4115 = vor.u32 1.1754944e-38, %v4114
        %v4116 = vsel %vm4113, %v4115, %v4111
        %v4117 = vmul.f32 %v3485, %v4116
        %v4118 = vrcp.pop %v3640
        %v4119 = vmul.f32 %v3640, %v4118
        %v4120 = vsub.f32 1.0, %v4119
        %v4121 = vmul.f32 %v4118, %v4120
        %v4122 = vadd.f32 %v4118, %v4121
        %vm4123 = vweird.f32 %v3640
        %vm4124 = vweird.f32 %v4118
        %vm4125 = vmor %vm4123, %vm4124
        %v4126 = vsel %vm4125, %v4118, %v4122
        %v4127 = vand.u32 2147483647, %v3640
        %vm4128 = vcmp.eq.f32.partialorder %v4127, 8.507059e+37
        %v4129 = vand.u32 %v3640, 2147483648
        %v4130 = vor.u32 1.1754944e-38, %v4129
        %v4131 = vsel %vm4128, %v4130, %v4126
        %v4132 = vmul.f32 %v3487, %v4131
        %v4133 = vrcp.pop %v3643
        %v4134 = vmul.f32 %v3643, %v4133
        %v4135 = vsub.f32 1.0, %v4134
        %v4136 = vmul.f32 %v4133, %v4135
        %v4137 = vadd.f32 %v4133, %v4136
        %vm4138 = vweird.f32 %v3643
        %vm4139 = vweird.f32 %v4133
        %vm4140 = vmor %vm4138, %vm4139
        %v4141 = vsel %vm4140, %v4133, %v4137
        %v4142 = vand.u32 2147483647, %v3643
        %vm4143 = vcmp.eq.f32.partialorder %v4142, 8.507059e+37
        %v4144 = vand.u32 %v3643, 2147483648
        %v4145 = vor.u32 1.1754944e-38, %v4144
        %v4146 = vsel %vm4143, %v4145, %v4141
        %v4147 = vmul.f32 %v3489, %v4146
        %v4148 = vrcp.pop %v3646
        %v4149 = vmul.f32 %v3646, %v4148
        %v4150 = vsub.f32 1.0, %v4149
        %v4151 = vmul.f32 %v4148, %v4150
        %v4152 = vadd.f32 %v4148, %v4151
        %vm4153 = vweird.f32 %v3646
        %vm4154 = vweird.f32 %v4148
        %vm4155 = vmor %vm4153, %vm4154
        %v4156 = vsel %vm4155, %v4148, %v4152
        %v4157 = vand.u32 2147483647, %v3646
        %vm4158 = vcmp.eq.f32.partialorder %v4157, 8.507059e+37
        %v4159 = vand.u32 %v3646, 2147483648
        %v4160 = vor.u32 1.1754944e-38, %v4159
        %v4161 = vsel %vm4158, %v4160, %v4156
        %v4162 = vmul.f32 %v3491, %v4161
        %v4163 = vrcp.pop %v3649
        %v4164 = vmul.f32 %v3649, %v4163
        %v4165 = vsub.f32 1.0, %v4164
        %v4166 = vmul.f32 %v4163, %v4165
        %v4167 = vadd.f32 %v4163, %v4166
        %vm4168 = vweird.f32 %v3649
        %vm4169 = vweird.f32 %v4163
        %vm4170 = vmor %vm4168, %vm4169
        %v4171 = vsel %vm4170, %v4163, %v4167
        %v4172 = vand.u32 2147483647, %v3649
        %vm4173 = vcmp.eq.f32.partialorder %v4172, 8.507059e+37
        %v4174 = vand.u32 %v3649, 2147483648
        %v4175 = vor.u32 1.1754944e-38, %v4174
        %v4176 = vsel %vm4173, %v4175, %v4171
        %v4177 = vmul.f32 %v3493, %v4176
        %v4178 = vrcp.pop %v3652
        %v4179 = vmul.f32 %v3652, %v4178
        %v4180 = vsub.f32 1.0, %v4179
        %v4181 = vmul.f32 %v4178, %v4180
        %v4182 = vadd.f32 %v4178, %v4181
        %vm4183 = vweird.f32 %v3652
        %vm4184 = vweird.f32 %v4178
        %vm4185 = vmor %vm4183, %vm4184
        %v4186 = vsel %vm4185, %v4178, %v4182
        %v4187 = vand.u32 2147483647, %v3652
        %vm4188 = vcmp.eq.f32.partialorder %v4187, 8.507059e+37
        %v4189 = vand.u32 %v3652, 2147483648
        %v4190 = vor.u32 1.1754944e-38, %v4189
        %v4191 = vsel %vm4188, %v4190, %v4186
        %v4192 = vmul.f32 %v3495, %v4191
        %v4193 = vrcp.pop %v3655
        %v4194 = vmul.f32 %v3655, %v4193
        %v4195 = vsub.f32 1.0, %v4194
        %v4196 = vmul.f32 %v4193, %v4195
        %v4197 = vadd.f32 %v4193, %v4196
        %vm4198 = vweird.f32 %v3655
        %vm4199 = vweird.f32 %v4193
        %vm4200 = vmor %vm4198, %vm4199
        %v4201 = vsel %vm4200, %v4193, %v4197
        %v4202 = vand.u32 2147483647, %v3655
        %vm4203 = vcmp.eq.f32.partialorder %v4202, 8.507059e+37
        %v4204 = vand.u32 %v3655, 2147483648
        %v4205 = vor.u32 1.1754944e-38, %v4204
        %v4206 = vsel %vm4203, %v4205, %v4201
        %v4207 = vmul.f32 %v3497, %v4206
        %v4208 = vrcp.pop %v3658
        %v4209 = vmul.f32 %v3658, %v4208
        %v4210 = vsub.f32 1.0, %v4209
        %v4211 = vmul.f32 %v4208, %v4210
        %v4212 = vadd.f32 %v4208, %v4211
        %vm4213 = vweird.f32 %v3658
        %vm4214 = vweird.f32 %v4208
        %vm4215 = vmor %vm4213, %vm4214
        %v4216 = vsel %vm4215, %v4208, %v4212
        %v4217 = vand.u32 2147483647, %v3658
        %vm4218 = vcmp.eq.f32.partialorder %v4217, 8.507059e+37
        %v4219 = vand.u32 %v3658, 2147483648
        %v4220 = vor.u32 1.1754944e-38, %v4219
        %v4221 = vsel %vm4218, %v4220, %v4216
        %v4222 = vmul.f32 %v3499, %v4221
        %v4223 = vrcp.pop %v3661
        %v4224 = vmul.f32 %v3661, %v4223
        %v4225 = vsub.f32 1.0, %v4224
        %v4226 = vmul.f32 %v4223, %v4225
        %v4227 = vadd.f32 %v4223, %v4226
        %vm4228 = vweird.f32 %v3661
        %vm4229 = vweird.f32 %v4223
        %vm4230 = vmor %vm4228, %vm4229
        %v4231 = vsel %vm4230, %v4223, %v4227
        %v4232 = vand.u32 2147483647, %v3661
        %vm4233 = vcmp.eq.f32.partialorder %v4232, 8.507059e+37
        %v4234 = vand.u32 %v3661, 2147483648
        %v4235 = vor.u32 1.1754944e-38, %v4234
        %v4236 = vsel %vm4233, %v4235, %v4231
        %v4237 = vmul.f32 %v3501, %v4236
        %v4238 = vrcp.pop %v3664
        %v4239 = vmul.f32 %v3664, %v4238
        %v4240 = vsub.f32 1.0, %v4239
        %v4241 = vmul.f32 %v4238, %v4240
        %v4242 = vadd.f32 %v4238, %v4241
        %vm4243 = vweird.f32 %v3664
        %vm4244 = vweird.f32 %v4238
        %vm4245 = vmor %vm4243, %vm4244
        %v4246 = vsel %vm4245, %v4238, %v4242
        %v4247 = vand.u32 2147483647, %v3664
        %vm4248 = vcmp.eq.f32.partialorder %v4247, 8.507059e+37
        %v4249 = vand.u32 %v3664, 2147483648
        %v4250 = vor.u32 1.1754944e-38, %v4249
        %v4251 = vsel %vm4248, %v4250, %v4246
        %v4252 = vmul.f32 %v3503, %v4251
        %v4253 = vrcp.pop %v3667
        %v4254 = vmul.f32 %v3667, %v4253
        %v4255 = vsub.f32 1.0, %v4254
        %v4256 = vmul.f32 %v4253, %v4255
        %v4257 = vadd.f32 %v4253, %v4256
        %vm4258 = vweird.f32 %v3667
        %vm4259 = vweird.f32 %v4253
        %vm4260 = vmor %vm4258, %vm4259
        %v4261 = vsel %vm4260, %v4253, %v4257
        %v4262 = vand.u32 2147483647, %v3667
        %vm4263 = vcmp.eq.f32.partialorder %v4262, 8.507059e+37
        %v4264 = vand.u32 %v3667, 2147483648
        %v4265 = vor.u32 1.1754944e-38, %v4264
        %v4266 = vsel %vm4263, %v4265, %v4261
        %v4267 = vmul.f32 %v3505, %v4266
        %v4268 = vrcp.pop %v3670
        %v4269 = vmul.f32 %v3670, %v4268
        %v4270 = vsub.f32 1.0, %v4269
        %v4271 = vmul.f32 %v4268, %v4270
        %v4272 = vadd.f32 %v4268, %v4271
        %vm4273 = vweird.f32 %v3670
        %vm4274 = vweird.f32 %v4268
        %vm4275 = vmor %vm4273, %vm4274
        %v4276 = vsel %vm4275, %v4268, %v4272
        %v4277 = vand.u32 2147483647, %v3670
        %vm4278 = vcmp.eq.f32.partialorder %v4277, 8.507059e+37
        %v4279 = vand.u32 %v3670, 2147483648
        %v4280 = vor.u32 1.1754944e-38, %v4279
        %v4281 = vsel %vm4278, %v4280, %v4276
        %v4282 = vmul.f32 %v3507, %v4281
        %v4283 = vrcp.pop %v3673
        %v4284 = vmul.f32 %v3673, %v4283
        %v4285 = vsub.f32 1.0, %v4284
        %v4286 = vmul.f32 %v4283, %v4285
        %v4287 = vadd.f32 %v4283, %v4286
        %vm4288 = vweird.f32 %v3673
        %vm4289 = vweird.f32 %v4283
        %vm4290 = vmor %vm4288, %vm4289
        %v4291 = vsel %vm4290, %v4283, %v4287
        %v4292 = vand.u32 2147483647, %v3673
        %vm4293 = vcmp.eq.f32.partialorder %v4292, 8.507059e+37
        %v4294 = vand.u32 %v3673, 2147483648
        %v4295 = vor.u32 1.1754944e-38, %v4294
        %v4296 = vsel %vm4293, %v4295, %v4291
        %v4297 = vmul.f32 %v3509, %v4296
        %v4298 = vrcp.pop %v3676
        %v4299 = vmul.f32 %v3676, %v4298
        %v4300 = vsub.f32 1.0, %v4299
        %v4301 = vmul.f32 %v4298, %v4300
        %v4302 = vadd.f32 %v4298, %v4301
        %vm4303 = vweird.f32 %v3676
        %vm4304 = vweird.f32 %v4298
        %vm4305 = vmor %vm4303, %vm4304
        %v4306 = vsel %vm4305, %v4298, %v4302
        %v4307 = vand.u32 2147483647, %v3676
        %vm4308 = vcmp.eq.f32.partialorder %v4307, 8.507059e+37
        %v4309 = vand.u32 %v3676, 2147483648
        %v4310 = vor.u32 1.1754944e-38, %v4309
        %v4311 = vsel %vm4308, %v4310, %v4306
        %v4312 = vmul.f32 %v3511, %v4311
        %v4313 = vrcp.pop %v3679
        %v4314 = vmul.f32 %v3679, %v4313
        %v4315 = vsub.f32 1.0, %v4314
        %v4316 = vmul.f32 %v4313, %v4315
        %v4317 = vadd.f32 %v4313, %v4316
        %vm4318 = vweird.f32 %v3679
        %vm4319 = vweird.f32 %v4313
        %vm4320 = vmor %vm4318, %vm4319
        %v4321 = vsel %vm4320, %v4313, %v4317
        %v4322 = vand.u32 2147483647, %v3679
        %vm4323 = vcmp.eq.f32.partialorder %v4322, 8.507059e+37
        %v4324 = vand.u32 %v3679, 2147483648
        %v4325 = vor.u32 1.1754944e-38, %v4324
        %v4326 = vsel %vm4323, %v4325, %v4321
        %v4327 = vmul.f32 %v3513, %v4326
        %v4328 = vrcp.pop %v3682
        %v4329 = vmul.f32 %v3682, %v4328
        %v4330 = vsub.f32 1.0, %v4329
        %v4331 = vmul.f32 %v4328, %v4330
        %v4332 = vadd.f32 %v4328, %v4331
        %vm4333 = vweird.f32 %v3682
        %vm4334 = vweird.f32 %v4328
        %vm4335 = vmor %vm4333, %vm4334
        %v4336 = vsel %vm4335, %v4328, %v4332
        %v4337 = vand.u32 2147483647, %v3682
        %vm4338 = vcmp.eq.f32.partialorder %v4337, 8.507059e+37
        %v4339 = vand.u32 %v3682, 2147483648
        %v4340 = vor.u32 1.1754944e-38, %v4339
        %v4341 = vsel %vm4338, %v4340, %v4336
        %v4342 = vmul.f32 %v3515, %v4341
        %v4343 = vrcp.pop %v3685
        %v4344 = vmul.f32 %v3685, %v4343
        %v4345 = vsub.f32 1.0, %v4344
        %v4346 = vmul.f32 %v4343, %v4345
        %v4347 = vadd.f32 %v4343, %v4346
        %vm4348 = vweird.f32 %v3685
        %vm4349 = vweird.f32 %v4343
        %vm4350 = vmor %vm4348, %vm4349
        %v4351 = vsel %vm4350, %v4343, %v4347
        %v4352 = vand.u32 2147483647, %v3685
        %vm4353 = vcmp.eq.f32.partialorder %v4352, 8.507059e+37
        %v4354 = vand.u32 %v3685, 2147483648
        %v4355 = vor.u32 1.1754944e-38, %v4354
        %v4356 = vsel %vm4353, %v4355, %v4351
        %v4357 = vmul.f32 %v3517, %v4356
        %v4358 = vrcp.pop %v3688
        %v4359 = vmul.f32 %v3688, %v4358
        %v4360 = vsub.f32 1.0, %v4359
        %v4361 = vmul.f32 %v4358, %v4360
        %v4362 = vadd.f32 %v4358, %v4361
        %vm4363 = vweird.f32 %v3688
        %vm4364 = vweird.f32 %v4358
        %vm4365 = vmor %vm4363, %vm4364
        %v4366 = vsel %vm4365, %v4358, %v4362
        %v4367 = vand.u32 2147483647, %v3688
        %vm4368 = vcmp.eq.f32.partialorder %v4367, 8.507059e+37
        %v4369 = vand.u32 %v3688, 2147483648
        %v4370 = vor.u32 1.1754944e-38, %v4369
        %v4371 = vsel %vm4368, %v4370, %v4366
        %v4372 = vmul.f32 %v3519, %v4371
        %v4373 = vrcp.pop %v3691
        %v4374 = vmul.f32 %v3691, %v4373
        %v4375 = vsub.f32 1.0, %v4374
        %v4376 = vmul.f32 %v4373, %v4375
        %v4377 = vadd.f32 %v4373, %v4376
        %vm4378 = vweird.f32 %v3691
        %vm4379 = vweird.f32 %v4373
        %vm4380 = vmor %vm4378, %vm4379
        %v4381 = vsel %vm4380, %v4373, %v4377
        %v4382 = vand.u32 2147483647, %v3691
        %vm4383 = vcmp.eq.f32.partialorder %v4382, 8.507059e+37
        %v4384 = vand.u32 %v3691, 2147483648
        %v4385 = vor.u32 1.1754944e-38, %v4384
        %v4386 = vsel %vm4383, %v4385, %v4381
        %v4387 = vmul.f32 %v3521, %v4386
        %v4388 = vrcp.pop %v3694
        %v4389 = vmul.f32 %v3694, %v4388
        %v4390 = vsub.f32 1.0, %v4389
        %v4391 = vmul.f32 %v4388, %v4390
        %v4392 = vadd.f32 %v4388, %v4391
        %vm4393 = vweird.f32 %v3694
        %vm4394 = vweird.f32 %v4388
        %vm4395 = vmor %vm4393, %vm4394
        %v4396 = vsel %vm4395, %v4388, %v4392
        %v4397 = vand.u32 2147483647, %v3694
        %vm4398 = vcmp.eq.f32.partialorder %v4397, 8.507059e+37
        %v4399 = vand.u32 %v3694, 2147483648
        %v4400 = vor.u32 1.1754944e-38, %v4399
        %v4401 = vsel %vm4398, %v4400, %v4396
        %v4402 = vmul.f32 %v3523, %v4401
        %v4403 = vrcp.pop %v3697
        %v4404 = vmul.f32 %v3697, %v4403
        %v4405 = vsub.f32 1.0, %v4404
        %v4406 = vmul.f32 %v4403, %v4405
        %v4407 = vadd.f32 %v4403, %v4406
        %vm4408 = vweird.f32 %v3697
        %vm4409 = vweird.f32 %v4403
        %vm4410 = vmor %vm4408, %vm4409
        %v4411 = vsel %vm4410, %v4403, %v4407
        %v4412 = vand.u32 2147483647, %v3697
        %vm4413 = vcmp.eq.f32.partialorder %v4412, 8.507059e+37
        %v4414 = vand.u32 %v3697, 2147483648
        %v4415 = vor.u32 1.1754944e-38, %v4414
        %v4416 = vsel %vm4413, %v4415, %v4411
        %v4417 = vmul.f32 %v3525, %v4416
        %v4418 = vrcp.pop %v3700
        %v4419 = vmul.f32 %v3700, %v4418
        %v4420 = vsub.f32 1.0, %v4419
        %v4421 = vmul.f32 %v4418, %v4420
        %v4422 = vadd.f32 %v4418, %v4421
        %vm4423 = vweird.f32 %v3700
        %vm4424 = vweird.f32 %v4418
        %vm4425 = vmor %vm4423, %vm4424
        %v4426 = vsel %vm4425, %v4418, %v4422
        %v4427 = vand.u32 2147483647, %v3700
        %vm4428 = vcmp.eq.f32.partialorder %v4427, 8.507059e+37
        %v4429 = vand.u32 %v3700, 2147483648
        %v4430 = vor.u32 1.1754944e-38, %v4429
        %v4431 = vsel %vm4428, %v4430, %v4426
        %v4432 = vmul.f32 %v3527, %v4431
        %v4433 = vrcp.pop %v3703
        %v4434 = vmul.f32 %v3703, %v4433
        %v4435 = vsub.f32 1.0, %v4434
        %v4436 = vmul.f32 %v4433, %v4435
        %v4437 = vadd.f32 %v4433, %v4436
        %vm4438 = vweird.f32 %v3703
        %vm4439 = vweird.f32 %v4433
        %vm4440 = vmor %vm4438, %vm4439
        %v4441 = vsel %vm4440, %v4433, %v4437
        %v4442 = vand.u32 2147483647, %v3703
        %vm4443 = vcmp.eq.f32.partialorder %v4442, 8.507059e+37
        %v4444 = vand.u32 %v3703, 2147483648
        %v4445 = vor.u32 1.1754944e-38, %v4444
        %v4446 = vsel %vm4443, %v4445, %v4441
        %v4447 = vmul.f32 %v3529, %v4446
        %v4448 = vrcp.pop %v3706
        %v4449 = vmul.f32 %v3706, %v4448
        %v4450 = vsub.f32 1.0, %v4449
        %v4451 = vmul.f32 %v4448, %v4450
        %v4452 = vadd.f32 %v4448, %v4451
        %vm4453 = vweird.f32 %v3706
        %vm4454 = vweird.f32 %v4448
        %vm4455 = vmor %vm4453, %vm4454
        %v4456 = vsel %vm4455, %v4448, %v4452
        %v4457 = vand.u32 2147483647, %v3706
        %vm4458 = vcmp.eq.f32.partialorder %v4457, 8.507059e+37
        %v4459 = vand.u32 %v3706, 2147483648
        %v4460 = vor.u32 1.1754944e-38, %v4459
        %v4461 = vsel %vm4458, %v4460, %v4456
        %v4462 = vmul.f32 %v3531, %v4461
        %v4463 = vrcp.pop %v3709
        %v4464 = vmul.f32 %v3709, %v4463
        %v4465 = vsub.f32 1.0, %v4464
        %v4466 = vmul.f32 %v4463, %v4465
        %v4467 = vadd.f32 %v4463, %v4466
        %vm4468 = vweird.f32 %v3709
        %vm4469 = vweird.f32 %v4463
        %vm4470 = vmor %vm4468, %vm4469
        %v4471 = vsel %vm4470, %v4463, %v4467
        %v4472 = vand.u32 2147483647, %v3709
        %vm4473 = vcmp.eq.f32.partialorder %v4472, 8.507059e+37
        %v4474 = vand.u32 %v3709, 2147483648
        %v4475 = vor.u32 1.1754944e-38, %v4474
        %v4476 = vsel %vm4473, %v4475, %v4471
        %v4477 = vmul.f32 %v3533, %v4476
        %v4478 = vrcp.pop %v3712
        %v4479 = vmul.f32 %v3712, %v4478
        %v4480 = vsub.f32 1.0, %v4479
        %v4481 = vmul.f32 %v4478, %v4480
        %v4482 = vadd.f32 %v4478, %v4481
        %vm4483 = vweird.f32 %v3712
        %vm4484 = vweird.f32 %v4478
        %vm4485 = vmor %vm4483, %vm4484
        %v4486 = vsel %vm4485, %v4478, %v4482
        %v4487 = vand.u32 2147483647, %v3712
        %vm4488 = vcmp.eq.f32.partialorder %v4487, 8.507059e+37
        %v4489 = vand.u32 %v3712, 2147483648
        %v4490 = vor.u32 1.1754944e-38, %v4489
        %v4491 = vsel %vm4488, %v4490, %v4486
        %v4492 = vmul.f32 %v3535, %v4491
        %v4493 = vrcp.pop %v3715
        %v4494 = vmul.f32 %v3715, %v4493
        %v4495 = vsub.f32 1.0, %v4494
        %v4496 = vmul.f32 %v4493, %v4495
        %v4497 = vadd.f32 %v4493, %v4496
        %vm4498 = vweird.f32 %v3715
        %vm4499 = vweird.f32 %v4493
        %vm4500 = vmor %vm4498, %vm4499
        %v4501 = vsel %vm4500, %v4493, %v4497
        %v4502 = vand.u32 2147483647, %v3715
        %vm4503 = vcmp.eq.f32.partialorder %v4502, 8.507059e+37
        %v4504 = vand.u32 %v3715, 2147483648
        %v4505 = vor.u32 1.1754944e-38, %v4504
        %v4506 = vsel %vm4503, %v4505, %v4501
        %v4507 = vmul.f32 %v3537, %v4506
        %v4508 = vrcp.pop %v3718
        %v4509 = vmul.f32 %v3718, %v4508
        %v4510 = vsub.f32 1.0, %v4509
        %v4511 = vmul.f32 %v4508, %v4510
        %v4512 = vadd.f32 %v4508, %v4511
        %vm4513 = vweird.f32 %v3718
        %vm4514 = vweird.f32 %v4508
        %vm4515 = vmor %vm4513, %vm4514
        %v4516 = vsel %vm4515, %v4508, %v4512
        %v4517 = vand.u32 2147483647, %v3718
        %vm4518 = vcmp.eq.f32.partialorder %v4517, 8.507059e+37
        %v4519 = vand.u32 %v3718, 2147483648
        %v4520 = vor.u32 1.1754944e-38, %v4519
        %v4521 = vsel %vm4518, %v4520, %v4516
        %v4522 = vmul.f32 %v3539, %v4521
        %v4523 = vrcp.pop %v3721
        %v4524 = vmul.f32 %v3721, %v4523
        %v4525 = vsub.f32 1.0, %v4524
        %v4526 = vmul.f32 %v4523, %v4525
        %v4527 = vadd.f32 %v4523, %v4526
        %vm4528 = vweird.f32 %v3721
        %vm4529 = vweird.f32 %v4523
        %vm4530 = vmor %vm4528, %vm4529
        %v4531 = vsel %vm4530, %v4523, %v4527
        %v4532 = vand.u32 2147483647, %v3721
        %vm4533 = vcmp.eq.f32.partialorder %v4532, 8.507059e+37
        %v4534 = vand.u32 %v3721, 2147483648
        %v4535 = vor.u32 1.1754944e-38, %v4534
        %v4536 = vsel %vm4533, %v4535, %v4531
        %v4537 = vmul.f32 %v3541, %v4536
        %v4538 = vrcp.pop %v3724
        %v4539 = vmul.f32 %v3724, %v4538
        %v4540 = vsub.f32 1.0, %v4539
        %v4541 = vmul.f32 %v4538, %v4540
        %v4542 = vadd.f32 %v4538, %v4541
        %vm4543 = vweird.f32 %v3724
        %vm4544 = vweird.f32 %v4538
        %vm4545 = vmor %vm4543, %vm4544
        %v4546 = vsel %vm4545, %v4538, %v4542
        %v4547 = vand.u32 2147483647, %v3724
        %vm4548 = vcmp.eq.f32.partialorder %v4547, 8.507059e+37
        %v4549 = vand.u32 %v3724, 2147483648
        %v4550 = vor.u32 1.1754944e-38, %v4549
        %v4551 = vsel %vm4548, %v4550, %v4546
        %v4552 = vmul.f32 %v3543, %v4551
        %v4553 = vrcp.pop %v3727
        %v4554 = vmul.f32 %v3727, %v4553
        %v4555 = vsub.f32 1.0, %v4554
        %v4556 = vmul.f32 %v4553, %v4555
        %v4557 = vadd.f32 %v4553, %v4556
        %vm4558 = vweird.f32 %v3727
        %vm4559 = vweird.f32 %v4553
        %vm4560 = vmor %vm4558, %vm4559
        %v4561 = vsel %vm4560, %v4553, %v4557
        %v4562 = vand.u32 2147483647, %v3727
        %vm4563 = vcmp.eq.f32.partialorder %v4562, 8.507059e+37
        %v4564 = vand.u32 %v3727, 2147483648
        %v4565 = vor.u32 1.1754944e-38, %v4564
        %v4566 = vsel %vm4563, %v4565, %v4561
        %v4567 = vmul.f32 %v3545, %v4566
        %v4568 = vrcp.pop %v3730
        %v4569 = vmul.f32 %v3730, %v4568
        %v4570 = vsub.f32 1.0, %v4569
        %v4571 = vmul.f32 %v4568, %v4570
        %v4572 = vadd.f32 %v4568, %v4571
        %vm4573 = vweird.f32 %v3730
        %vm4574 = vweird.f32 %v4568
        %vm4575 = vmor %vm4573, %vm4574
        %v4576 = vsel %vm4575, %v4568, %v4572
        %v4577 = vand.u32 2147483647, %v3730
        %vm4578 = vcmp.eq.f32.partialorder %v4577, 8.507059e+37
        %v4579 = vand.u32 %v3730, 2147483648
        %v4580 = vor.u32 1.1754944e-38, %v4579
        %v4581 = vsel %vm4578, %v4580, %v4576
        %v4582 = vmul.f32 %v3547, %v4581
        %v4583 = vrcp.pop %v3733
        %v4584 = vmul.f32 %v3733, %v4583
        %v4585 = vsub.f32 1.0, %v4584
        %v4586 = vmul.f32 %v4583, %v4585
        %v4587 = vadd.f32 %v4583, %v4586
        %vm4588 = vweird.f32 %v3733
        %vm4589 = vweird.f32 %v4583
        %vm4590 = vmor %vm4588, %vm4589
        %v4591 = vsel %vm4590, %v4583, %v4587
        %v4592 = vand.u32 2147483647, %v3733
        %vm4593 = vcmp.eq.f32.partialorder %v4592, 8.507059e+37
        %v4594 = vand.u32 %v3733, 2147483648
        %v4595 = vor.u32 1.1754944e-38, %v4594
        %v4596 = vsel %vm4593, %v4595, %v4591
        %v4597 = vmul.f32 %v3549, %v4596
        %v4598 = vrcp.pop %v3736
        %v4599 = vmul.f32 %v3736, %v4598
        %v4600 = vsub.f32 1.0, %v4599
        %v4601 = vmul.f32 %v4598, %v4600
        %v4602 = vadd.f32 %v4598, %v4601
        %vm4603 = vweird.f32 %v3736
        %vm4604 = vweird.f32 %v4598
        %vm4605 = vmor %vm4603, %vm4604
        %v4606 = vsel %vm4605, %v4598, %v4602
        %v4607 = vand.u32 2147483647, %v3736
        %vm4608 = vcmp.eq.f32.partialorder %v4607, 8.507059e+37
        %v4609 = vand.u32 %v3736, 2147483648
        %v4610 = vor.u32 1.1754944e-38, %v4609
        %v4611 = vsel %vm4608, %v4610, %v4606
        %v4612 = vmul.f32 %v3551, %v4611
        %v4613 = vrcp.pop %v3739
        %v4614 = vmul.f32 %v3739, %v4613
        %v4615 = vsub.f32 1.0, %v4614
        %v4616 = vmul.f32 %v4613, %v4615
        %v4617 = vadd.f32 %v4613, %v4616
        %vm4618 = vweird.f32 %v3739
        %vm4619 = vweird.f32 %v4613
        %vm4620 = vmor %vm4618, %vm4619
        %v4621 = vsel %vm4620, %v4613, %v4617
        %v4622 = vand.u32 2147483647, %v3739
        %vm4623 = vcmp.eq.f32.partialorder %v4622, 8.507059e+37
        %v4624 = vand.u32 %v3739, 2147483648
        %v4625 = vor.u32 1.1754944e-38, %v4624
        %v4626 = vsel %vm4623, %v4625, %v4621
        %v4627 = vmul.f32 %v3553, %v4626
        %v4628 = vrcp.pop %v3742
        %v4629 = vmul.f32 %v3742, %v4628
        %v4630 = vsub.f32 1.0, %v4629
        %v4631 = vmul.f32 %v4628, %v4630
        %v4632 = vadd.f32 %v4628, %v4631
        %vm4633 = vweird.f32 %v3742
        %vm4634 = vweird.f32 %v4628
        %vm4635 = vmor %vm4633, %vm4634
        %v4636 = vsel %vm4635, %v4628, %v4632
        %v4637 = vand.u32 2147483647, %v3742
        %vm4638 = vcmp.eq.f32.partialorder %v4637, 8.507059e+37
        %v4639 = vand.u32 %v3742, 2147483648
        %v4640 = vor.u32 1.1754944e-38, %v4639
        %v4641 = vsel %vm4638, %v4640, %v4636
        %v4642 = vmul.f32 %v3555, %v4641
        %v4643 = vrcp.pop %v3745
        %v4644 = vmul.f32 %v3745, %v4643
        %v4645 = vsub.f32 1.0, %v4644
        %v4646 = vmul.f32 %v4643, %v4645
        %v4647 = vadd.f32 %v4643, %v4646
        %vm4648 = vweird.f32 %v3745
        %vm4649 = vweird.f32 %v4643
        %vm4650 = vmor %vm4648, %vm4649
        %v4651 = vsel %vm4650, %v4643, %v4647
        %v4652 = vand.u32 2147483647, %v3745
        %vm4653 = vcmp.eq.f32.partialorder %v4652, 8.507059e+37
        %v4654 = vand.u32 %v3745, 2147483648
        %v4655 = vor.u32 1.1754944e-38, %v4654
        %v4656 = vsel %vm4653, %v4655, %v4651
        %v4657 = vmul.f32 %v3557, %v4656
        %v4658 = vrcp.pop %v3748
        %v4659 = vmul.f32 %v3748, %v4658
        %v4660 = vsub.f32 1.0, %v4659
        %v4661 = vmul.f32 %v4658, %v4660
        %v4662 = vadd.f32 %v4658, %v4661
        %vm4663 = vweird.f32 %v3748
        %vm4664 = vweird.f32 %v4658
        %vm4665 = vmor %vm4663, %vm4664
        %v4666 = vsel %vm4665, %v4658, %v4662
        %v4667 = vand.u32 2147483647, %v3748
        %vm4668 = vcmp.eq.f32.partialorder %v4667, 8.507059e+37
        %v4669 = vand.u32 %v3748, 2147483648
        %v4670 = vor.u32 1.1754944e-38, %v4669
        %v4671 = vsel %vm4668, %v4670, %v4666
        %v4672 = vmul.f32 %v3559, %v4671
        %v4673 = vrcp.pop %v3751
        %v4674 = vmul.f32 %v3751, %v4673
        %v4675 = vsub.f32 1.0, %v4674
        %v4676 = vmul.f32 %v4673, %v4675
        %v4677 = vadd.f32 %v4673, %v4676
        %vm4678 = vweird.f32 %v3751
        %vm4679 = vweird.f32 %v4673
        %vm4680 = vmor %vm4678, %vm4679
        %v4681 = vsel %vm4680, %v4673, %v4677
        %v4682 = vand.u32 2147483647, %v3751
        %vm4683 = vcmp.eq.f32.partialorder %v4682, 8.507059e+37
        %v4684 = vand.u32 %v3751, 2147483648
        %v4685 = vor.u32 1.1754944e-38, %v4684
        %v4686 = vsel %vm4683, %v4685, %v4681
        %v4687 = vmul.f32 %v3561, %v4686
        %v4688 = vrcp.pop %v3754
        %v4689 = vmul.f32 %v3754, %v4688
        %v4690 = vsub.f32 1.0, %v4689
        %v4691 = vmul.f32 %v4688, %v4690
        %v4692 = vadd.f32 %v4688, %v4691
        %vm4693 = vweird.f32 %v3754
        %vm4694 = vweird.f32 %v4688
        %vm4695 = vmor %vm4693, %vm4694
        %v4696 = vsel %vm4695, %v4688, %v4692
        %v4697 = vand.u32 2147483647, %v3754
        %vm4698 = vcmp.eq.f32.partialorder %v4697, 8.507059e+37
        %v4699 = vand.u32 %v3754, 2147483648
        %v4700 = vor.u32 1.1754944e-38, %v4699
        %v4701 = vsel %vm4698, %v4700, %v4696
        %v4702 = vmul.f32 %v3563, %v4701
        %v4703 = vrcp.pop %v3757
        %v4704 = vmul.f32 %v3757, %v4703
        %v4705 = vsub.f32 1.0, %v4704
        %v4706 = vmul.f32 %v4703, %v4705
        %v4707 = vadd.f32 %v4703, %v4706
        %vm4708 = vweird.f32 %v3757
        %vm4709 = vweird.f32 %v4703
        %vm4710 = vmor %vm4708, %vm4709
        %v4711 = vsel %vm4710, %v4703, %v4707
        %v4712 = vand.u32 2147483647, %v3757
        %vm4713 = vcmp.eq.f32.partialorder %v4712, 8.507059e+37
        %v4714 = vand.u32 %v3757, 2147483648
        %v4715 = vor.u32 1.1754944e-38, %v4714
        %v4716 = vsel %vm4713, %v4715, %v4711
        %v4717 = vmul.f32 %v3565, %v4716
        %v4719 = vsel %vm3181, %v3772, 0
        %v4722 = vsel %vm3181, %v3787, 0
        %4724 = vmatpush.msra.mxu0 0.0
        %4725 = vmatpush.msra.mxu0 0.0
        %4726 = vmatpush.msra.mxu0 0.0
        %4727 = vmatpush.msra.mxu0 0.0
        %4728 = vmatpush.msra.mxu0 0.0
        %4729 = vmatpush.msra.mxu0 0.0
        %4730 = vmatpush.msra.mxu0 0.0
        %4731 = vmatpush.msra.mxu0 0.0
        %4732 = vmatpush.msra.mxu0 0.0
        %4733 = vmatpush.msra.mxu0 0.0
        %4734 = vmatpush.msra.mxu0 0.0
        %4735 = vmatpush.msra.mxu0 0.0
        %4736 = vmatpush.msra.mxu0 0.0
        %4737 = vmatpush.msra.mxu0 0.0
        %4738 = vmatpush.msra.mxu0 %v1760
        %4739 = vmatpush.msra.mxu0 %v1757
        %4740 = vmatmul.f32.gmra.mxu0 %v4719
        %v4741 = vpop.f32.mrf.mxu0
        %v4742 = vadd.f32 0.0, %v4741
        %4743 = vmatmul.f32.gmra.mxu0 %v4722
        %v4744 = vpop.f32.mrf.mxu0
        %v4745 = vadd.f32 0.0, %v4744
        %4746 = vdwg.mxu0
        %v4748 = vsel %vm3181, %v3802, 0
        %v4751 = vsel %vm3181, %v3817, 0
        %4753 = vmatpush.msra.mxu0 0.0
        %4754 = vmatpush.msra.mxu0 0.0
        %4755 = vmatpush.msra.mxu0 0.0
        %4756 = vmatpush.msra.mxu0 0.0
        %4757 = vmatpush.msra.mxu0 0.0
        %4758 = vmatpush.msra.mxu0 0.0
        %4759 = vmatpush.msra.mxu0 0.0
        %4760 = vmatpush.msra.mxu0 0.0
        %4761 = vmatpush.msra.mxu0 0.0
        %4762 = vmatpush.msra.mxu0 0.0
        %4763 = vmatpush.msra.mxu0 0.0
        %4764 = vmatpush.msra.mxu0 0.0
        %4765 = vmatpush.msra.mxu0 0.0
        %4766 = vmatpush.msra.mxu0 0.0
        %4767 = vmatpush.msra.mxu0 %v1766
        %4768 = vmatpush.msra.mxu0 %v1763
        %4769 = vmatmul.f32.gmra.mxu0 %v4748
        %v4770 = vpop.f32.mrf.mxu0
        %v4771 = vadd.f32 0.0, %v4770
        %4772 = vmatmul.f32.gmra.mxu0 %v4751
        %v4773 = vpop.f32.mrf.mxu0
        %v4774 = vadd.f32 0.0, %v4773
        %4775 = vdwg.mxu0
        %v4777 = vsel %vm3181, %v3832, 0
        %v4780 = vsel %vm3181, %v3847, 0
        %4782 = vmatpush.msra.mxu0 0.0
        %4783 = vmatpush.msra.mxu0 0.0
        %4784 = vmatpush.msra.mxu0 0.0
        %4785 = vmatpush.msra.mxu0 0.0
        %4786 = vmatpush.msra.mxu0 0.0
        %4787 = vmatpush.msra.mxu0 0.0
        %4788 = vmatpush.msra.mxu0 0.0
        %4789 = vmatpush.msra.mxu0 0.0
        %4790 = vmatpush.msra.mxu0 0.0
        %4791 = vmatpush.msra.mxu0 0.0
        %4792 = vmatpush.msra.mxu0 0.0
        %4793 = vmatpush.msra.mxu0 0.0
        %4794 = vmatpush.msra.mxu0 0.0
        %4795 = vmatpush.msra.mxu0 0.0
        %4796 = vmatpush.msra.mxu0 %v1772
        %4797 = vmatpush.msra.mxu0 %v1769
        %4798 = vmatmul.f32.gmra.mxu0 %v4777
        %v4799 = vpop.f32.mrf.mxu0
        %v4800 = vadd.f32 0.0, %v4799
        %4801 = vmatmul.f32.gmra.mxu0 %v4780
        %v4802 = vpop.f32.mrf.mxu0
        %v4803 = vadd.f32 0.0, %v4802
        %4804 = vdwg.mxu0
        %v4806 = vsel %vm3181, %v3862, 0
        %v4809 = vsel %vm3181, %v3877, 0
        %4811 = vmatpush.msra.mxu0 0.0
        %4812 = vmatpush.msra.mxu0 0.0
        %4813 = vmatpush.msra.mxu0 0.0
        %4814 = vmatpush.msra.mxu0 0.0
        %4815 = vmatpush.msra.mxu0 0.0
        %4816 = vmatpush.msra.mxu0 0.0
        %4817 = vmatpush.msra.mxu0 0.0
        %4818 = vmatpush.msra.mxu0 0.0
        %4819 = vmatpush.msra.mxu0 0.0
        %4820 = vmatpush.msra.mxu0 0.0
        %4821 = vmatpush.msra.mxu0 0.0
        %4822 = vmatpush.msra.mxu0 0.0
        %4823 = vmatpush.msra.mxu0 0.0
        %4824 = vmatpush.msra.mxu0 0.0
        %4825 = vmatpush.msra.mxu0 %v1778
        %4826 = vmatpush.msra.mxu0 %v1775
        %4827 = vmatmul.f32.gmra.mxu0 %v4806
        %v4828 = vpop.f32.mrf.mxu0
        %v4829 = vadd.f32 0.0, %v4828
        %4830 = vmatmul.f32.gmra.mxu0 %v4809
        %v4831 = vpop.f32.mrf.mxu0
        %v4832 = vadd.f32 0.0, %v4831
        %4833 = vdwg.mxu0
        %v4835 = vsel %vm3181, %v3892, 0
        %v4838 = vsel %vm3181, %v3907, 0
        %4840 = vmatpush.msra.mxu0 0.0
        %4841 = vmatpush.msra.mxu0 0.0
        %4842 = vmatpush.msra.mxu0 0.0
        %4843 = vmatpush.msra.mxu0 0.0
        %4844 = vmatpush.msra.mxu0 0.0
        %4845 = vmatpush.msra.mxu0 0.0
        %4846 = vmatpush.msra.mxu0 0.0
        %4847 = vmatpush.msra.mxu0 0.0
        %4848 = vmatpush.msra.mxu0 0.0
        %4849 = vmatpush.msra.mxu0 0.0
        %4850 = vmatpush.msra.mxu0 0.0
        %4851 = vmatpush.msra.mxu0 0.0
        %4852 = vmatpush.msra.mxu0 0.0
        %4853 = vmatpush.msra.mxu0 0.0
        %4854 = vmatpush.msra.mxu0 %v1784
        %4855 = vmatpush.msra.mxu0 %v1781
        %4856 = vmatmul.f32.gmra.mxu0 %v4835
        %v4857 = vpop.f32.mrf.mxu0
        %v4858 = vadd.f32 0.0, %v4857
        %4859 = vmatmul.f32.gmra.mxu0 %v4838
        %v4860 = vpop.f32.mrf.mxu0
        %v4861 = vadd.f32 0.0, %v4860
        %4862 = vdwg.mxu0
        %v4864 = vsel %vm3181, %v3922, 0
        %v4867 = vsel %vm3181, %v3937, 0
        %4869 = vmatpush.msra.mxu0 0.0
        %4870 = vmatpush.msra.mxu0 0.0
        %4871 = vmatpush.msra.mxu0 0.0
        %4872 = vmatpush.msra.mxu0 0.0
        %4873 = vmatpush.msra.mxu0 0.0
        %4874 = vmatpush.msra.mxu0 0.0
        %4875 = vmatpush.msra.mxu0 0.0
        %4876 = vmatpush.msra.mxu0 0.0
        %4877 = vmatpush.msra.mxu0 0.0
        %4878 = vmatpush.msra.mxu0 0.0
        %4879 = vmatpush.msra.mxu0 0.0
        %4880 = vmatpush.msra.mxu0 0.0
        %4881 = vmatpush.msra.mxu0 0.0
        %4882 = vmatpush.msra.mxu0 0.0
        %4883 = vmatpush.msra.mxu0 %v1790
        %4884 = vmatpush.msra.mxu0 %v1787
        %4885 = vmatmul.f32.gmra.mxu0 %v4864
        %v4886 = vpop.f32.mrf.mxu0
        %v4887 = vadd.f32 0.0, %v4886
        %4888 = vmatmul.f32.gmra.mxu0 %v4867
        %v4889 = vpop.f32.mrf.mxu0
        %v4890 = vadd.f32 0.0, %v4889
        %4891 = vdwg.mxu0
        %v4893 = vsel %vm3181, %v3952, 0
        %v4896 = vsel %vm3181, %v3967, 0
        %4898 = vmatpush.msra.mxu0 0.0
        %4899 = vmatpush.msra.mxu0 0.0
        %4900 = vmatpush.msra.mxu0 0.0
        %4901 = vmatpush.msra.mxu0 0.0
        %4902 = vmatpush.msra.mxu0 0.0
        %4903 = vmatpush.msra.mxu0 0.0
        %4904 = vmatpush.msra.mxu0 0.0
        %4905 = vmatpush.msra.mxu0 0.0
        %4906 = vmatpush.msra.mxu0 0.0
        %4907 = vmatpush.msra.mxu0 0.0
        %4908 = vmatpush.msra.mxu0 0.0
        %4909 = vmatpush.msra.mxu0 0.0
        %4910 = vmatpush.msra.mxu0 0.0
        %4911 = vmatpush.msra.mxu0 0.0
        %4912 = vmatpush.msra.mxu0 %v1796
        %4913 = vmatpush.msra.mxu0 %v1793
        %4914 = vmatmul.f32.gmra.mxu0 %v4893
        %v4915 = vpop.f32.mrf.mxu0
        %v4916 = vadd.f32 0.0, %v4915
        %4917 = vmatmul.f32.gmra.mxu0 %v4896
        %v4918 = vpop.f32.mrf.mxu0
        %v4919 = vadd.f32 0.0, %v4918
        %4920 = vdwg.mxu0
        %v4922 = vsel %vm3181, %v3982, 0
        %v4925 = vsel %vm3181, %v3997, 0
        %4927 = vmatpush.msra.mxu0 0.0
        %4928 = vmatpush.msra.mxu0 0.0
        %4929 = vmatpush.msra.mxu0 0.0
        %4930 = vmatpush.msra.mxu0 0.0
        %4931 = vmatpush.msra.mxu0 0.0
        %4932 = vmatpush.msra.mxu0 0.0
        %4933 = vmatpush.msra.mxu0 0.0
        %4934 = vmatpush.msra.mxu0 0.0
        %4935 = vmatpush.msra.mxu0 0.0
        %4936 = vmatpush.msra.mxu0 0.0
        %4937 = vmatpush.msra.mxu0 0.0
        %4938 = vmatpush.msra.mxu0 0.0
        %4939 = vmatpush.msra.mxu0 0.0
        %4940 = vmatpush.msra.mxu0 0.0
        %4941 = vmatpush.msra.mxu0 %v1802
        %4942 = vmatpush.msra.mxu0 %v1799
        %4943 = vmatmul.f32.gmra.mxu0 %v4922
        %v4944 = vpop.f32.mrf.mxu0
        %v4945 = vadd.f32 0.0, %v4944
        %4946 = vmatmul.f32.gmra.mxu0 %v4925
        %v4947 = vpop.f32.mrf.mxu0
        %v4948 = vadd.f32 0.0, %v4947
        %4949 = vdwg.mxu0
        %v4951 = vsel %vm3181, %v4012, 0
        %v4954 = vsel %vm3181, %v4027, 0
        %4956 = vmatpush.msra.mxu0 0.0
        %4957 = vmatpush.msra.mxu0 0.0
        %4958 = vmatpush.msra.mxu0 0.0
        %4959 = vmatpush.msra.mxu0 0.0
        %4960 = vmatpush.msra.mxu0 0.0
        %4961 = vmatpush.msra.mxu0 0.0
        %4962 = vmatpush.msra.mxu0 0.0
        %4963 = vmatpush.msra.mxu0 0.0
        %4964 = vmatpush.msra.mxu0 0.0
        %4965 = vmatpush.msra.mxu0 0.0
        %4966 = vmatpush.msra.mxu0 0.0
        %4967 = vmatpush.msra.mxu0 0.0
        %4968 = vmatpush.msra.mxu0 0.0
        %4969 = vmatpush.msra.mxu0 0.0
        %4970 = vmatpush.msra.mxu0 %v2047
        %4971 = vmatpush.msra.mxu0 %v2045
        %4972 = vmatmul.f32.gmra.mxu0 %v4951
        %v4973 = vpop.f32.mrf.mxu0
        %v4974 = vadd.f32 0.0, %v4973
        %4975 = vmatmul.f32.gmra.mxu0 %v4954
        %v4976 = vpop.f32.mrf.mxu0
        %v4977 = vadd.f32 0.0, %v4976
        %4978 = vdwg.mxu0
        %v4980 = vsel %vm3181, %v4042, 0
        %v4983 = vsel %vm3181, %v4057, 0
        %4985 = vmatpush.msra.mxu0 0.0
        %4986 = vmatpush.msra.mxu0 0.0
        %4987 = vmatpush.msra.mxu0 0.0
        %4988 = vmatpush.msra.mxu0 0.0
        %4989 = vmatpush.msra.mxu0 0.0
        %4990 = vmatpush.msra.mxu0 0.0
        %4991 = vmatpush.msra.mxu0 0.0
        %4992 = vmatpush.msra.mxu0 0.0
        %4993 = vmatpush.msra.mxu0 0.0
        %4994 = vmatpush.msra.mxu0 0.0
        %4995 = vmatpush.msra.mxu0 0.0
        %4996 = vmatpush.msra.mxu0 0.0
        %4997 = vmatpush.msra.mxu0 0.0
        %4998 = vmatpush.msra.mxu0 0.0
        %4999 = vmatpush.msra.mxu0 %v2051
        %5000 = vmatpush.msra.mxu0 %v2049
        %5001 = vmatmul.f32.gmra.mxu0 %v4980
        %v5002 = vpop.f32.mrf.mxu0
        %v5003 = vadd.f32 0.0, %v5002
        %5004 = vmatmul.f32.gmra.mxu0 %v4983
        %v5005 = vpop.f32.mrf.mxu0
        %v5006 = vadd.f32 0.0, %v5005
        %5007 = vdwg.mxu0
        %v5009 = vsel %vm3181, %v4072, 0
        %v5012 = vsel %vm3181, %v4087, 0
        %5014 = vmatpush.msra.mxu0 0.0
        %5015 = vmatpush.msra.mxu0 0.0
        %5016 = vmatpush.msra.mxu0 0.0
        %5017 = vmatpush.msra.mxu0 0.0
        %5018 = vmatpush.msra.mxu0 0.0
        %5019 = vmatpush.msra.mxu0 0.0
        %5020 = vmatpush.msra.mxu0 0.0
        %5021 = vmatpush.msra.mxu0 0.0
        %5022 = vmatpush.msra.mxu0 0.0
        %5023 = vmatpush.msra.mxu0 0.0
        %5024 = vmatpush.msra.mxu0 0.0
        %5025 = vmatpush.msra.mxu0 0.0
        %5026 = vmatpush.msra.mxu0 0.0
        %5027 = vmatpush.msra.mxu0 0.0
        %5028 = vmatpush.msra.mxu0 %v2055
        %5029 = vmatpush.msra.mxu0 %v2053
        %5030 = vmatmul.f32.gmra.mxu0 %v5009
        %v5031 = vpop.f32.mrf.mxu0
        %v5032 = vadd.f32 0.0, %v5031
        %5033 = vmatmul.f32.gmra.mxu0 %v5012
        %v5034 = vpop.f32.mrf.mxu0
        %v5035 = vadd.f32 0.0, %v5034
        %5036 = vdwg.mxu0
        %v5038 = vsel %vm3181, %v4102, 0
        %v5041 = vsel %vm3181, %v4117, 0
        %5043 = vmatpush.msra.mxu0 0.0
        %5044 = vmatpush.msra.mxu0 0.0
        %5045 = vmatpush.msra.mxu0 0.0
        %5046 = vmatpush.msra.mxu0 0.0
        %5047 = vmatpush.msra.mxu0 0.0
        %5048 = vmatpush.msra.mxu0 0.0
        %5049 = vmatpush.msra.mxu0 0.0
        %5050 = vmatpush.msra.mxu0 0.0
        %5051 = vmatpush.msra.mxu0 0.0
        %5052 = vmatpush.msra.mxu0 0.0
        %5053 = vmatpush.msra.mxu0 0.0
        %5054 = vmatpush.msra.mxu0 0.0
        %5055 = vmatpush.msra.mxu0 0.0
        %5056 = vmatpush.msra.mxu0 0.0
        %5057 = vmatpush.msra.mxu0 %v2059
        %5058 = vmatpush.msra.mxu0 %v2057
        %5059 = vmatmul.f32.gmra.mxu0 %v5038
        %v5060 = vpop.f32.mrf.mxu0
        %v5061 = vadd.f32 0.0, %v5060
        %5062 = vmatmul.f32.gmra.mxu0 %v5041
        %v5063 = vpop.f32.mrf.mxu0
        %v5064 = vadd.f32 0.0, %v5063
        %5065 = vdwg.mxu0
        %v5067 = vsel %vm3181, %v4132, 0
        %v5070 = vsel %vm3181, %v4147, 0
        %5072 = vmatpush.msra.mxu0 0.0
        %5073 = vmatpush.msra.mxu0 0.0
        %5074 = vmatpush.msra.mxu0 0.0
        %5075 = vmatpush.msra.mxu0 0.0
        %5076 = vmatpush.msra.mxu0 0.0
        %5077 = vmatpush.msra.mxu0 0.0
        %5078 = vmatpush.msra.mxu0 0.0
        %5079 = vmatpush.msra.mxu0 0.0
        %5080 = vmatpush.msra.mxu0 0.0
        %5081 = vmatpush.msra.mxu0 0.0
        %5082 = vmatpush.msra.mxu0 0.0
        %5083 = vmatpush.msra.mxu0 0.0
        %5084 = vmatpush.msra.mxu0 0.0
        %5085 = vmatpush.msra.mxu0 0.0
        %5086 = vmatpush.msra.mxu0 %v2063
        %5087 = vmatpush.msra.mxu0 %v2061
        %5088 = vmatmul.f32.gmra.mxu0 %v5067
        %v5089 = vpop.f32.mrf.mxu0
        %v5090 = vadd.f32 0.0, %v5089
        %5091 = vmatmul.f32.gmra.mxu0 %v5070
        %v5092 = vpop.f32.mrf.mxu0
        %v5093 = vadd.f32 0.0, %v5092
        %5094 = vdwg.mxu0
        %v5096 = vsel %vm3181, %v4162, 0
        %v5099 = vsel %vm3181, %v4177, 0
        %5101 = vmatpush.msra.mxu0 0.0
        %5102 = vmatpush.msra.mxu0 0.0
        %5103 = vmatpush.msra.mxu0 0.0
        %5104 = vmatpush.msra.mxu0 0.0
        %5105 = vmatpush.msra.mxu0 0.0
        %5106 = vmatpush.msra.mxu0 0.0
        %5107 = vmatpush.msra.mxu0 0.0
        %5108 = vmatpush.msra.mxu0 0.0
        %5109 = vmatpush.msra.mxu0 0.0
        %5110 = vmatpush.msra.mxu0 0.0
        %5111 = vmatpush.msra.mxu0 0.0
        %5112 = vmatpush.msra.mxu0 0.0
        %5113 = vmatpush.msra.mxu0 0.0
        %5114 = vmatpush.msra.mxu0 0.0
        %5115 = vmatpush.msra.mxu0 %v2067
        %5116 = vmatpush.msra.mxu0 %v2065
        %5117 = vmatmul.f32.gmra.mxu0 %v5096
        %v5118 = vpop.f32.mrf.mxu0
        %v5119 = vadd.f32 0.0, %v5118
        %5120 = vmatmul.f32.gmra.mxu0 %v5099
        %v5121 = vpop.f32.mrf.mxu0
        %v5122 = vadd.f32 0.0, %v5121
        %5123 = vdwg.mxu0
        %v5125 = vsel %vm3181, %v4192, 0
        %v5128 = vsel %vm3181, %v4207, 0
        %5130 = vmatpush.msra.mxu0 0.0
        %5131 = vmatpush.msra.mxu0 0.0
        %5132 = vmatpush.msra.mxu0 0.0
        %5133 = vmatpush.msra.mxu0 0.0
        %5134 = vmatpush.msra.mxu0 0.0
        %5135 = vmatpush.msra.mxu0 0.0
        %5136 = vmatpush.msra.mxu0 0.0
        %5137 = vmatpush.msra.mxu0 0.0
        %5138 = vmatpush.msra.mxu0 0.0
        %5139 = vmatpush.msra.mxu0 0.0
        %5140 = vmatpush.msra.mxu0 0.0
        %5141 = vmatpush.msra.mxu0 0.0
        %5142 = vmatpush.msra.mxu0 0.0
        %5143 = vmatpush.msra.mxu0 0.0
        %5144 = vmatpush.msra.mxu0 %v2071
        %5145 = vmatpush.msra.mxu0 %v2069
        %5146 = vmatmul.f32.gmra.mxu0 %v5125
        %v5147 = vpop.f32.mrf.mxu0
        %v5148 = vadd.f32 0.0, %v5147
        %5149 = vmatmul.f32.gmra.mxu0 %v5128
        %v5150 = vpop.f32.mrf.mxu0
        %v5151 = vadd.f32 0.0, %v5150
        %5152 = vdwg.mxu0
        %v5154 = vsel %vm3181, %v4222, 0
        %v5157 = vsel %vm3181, %v4237, 0
        %5159 = vmatpush.msra.mxu0 0.0
        %5160 = vmatpush.msra.mxu0 0.0
        %5161 = vmatpush.msra.mxu0 0.0
        %5162 = vmatpush.msra.mxu0 0.0
        %5163 = vmatpush.msra.mxu0 0.0
        %5164 = vmatpush.msra.mxu0 0.0
        %5165 = vmatpush.msra.mxu0 0.0
        %5166 = vmatpush.msra.mxu0 0.0
        %5167 = vmatpush.msra.mxu0 0.0
        %5168 = vmatpush.msra.mxu0 0.0
        %5169 = vmatpush.msra.mxu0 0.0
        %5170 = vmatpush.msra.mxu0 0.0
        %5171 = vmatpush.msra.mxu0 0.0
        %5172 = vmatpush.msra.mxu0 0.0
        %5173 = vmatpush.msra.mxu0 %v2075
        %5174 = vmatpush.msra.mxu0 %v2073
        %5175 = vmatmul.f32.gmra.mxu0 %v5154
        %v5176 = vpop.f32.mrf.mxu0
        %v5177 = vadd.f32 0.0, %v5176
        %5178 = vmatmul.f32.gmra.mxu0 %v5157
        %v5179 = vpop.f32.mrf.mxu0
        %v5180 = vadd.f32 0.0, %v5179
        %5181 = vdwg.mxu0
        %v5183 = vsel %vm3181, %v4252, 0
        %v5186 = vsel %vm3181, %v4267, 0
        %5188 = vmatpush.msra.mxu0 0.0
        %5189 = vmatpush.msra.mxu0 0.0
        %5190 = vmatpush.msra.mxu0 0.0
        %5191 = vmatpush.msra.mxu0 0.0
        %5192 = vmatpush.msra.mxu0 0.0
        %5193 = vmatpush.msra.mxu0 0.0
        %5194 = vmatpush.msra.mxu0 0.0
        %5195 = vmatpush.msra.mxu0 0.0
        %5196 = vmatpush.msra.mxu0 0.0
        %5197 = vmatpush.msra.mxu0 0.0
        %5198 = vmatpush.msra.mxu0 0.0
        %5199 = vmatpush.msra.mxu0 0.0
        %5200 = vmatpush.msra.mxu0 0.0
        %5201 = vmatpush.msra.mxu0 0.0
        %5202 = vmatpush.msra.mxu0 %v2095
        %5203 = vmatpush.msra.mxu0 %v2093
        %5204 = vmatmul.f32.gmra.mxu0 %v5183
        %v5205 = vpop.f32.mrf.mxu0
        %v5206 = vadd.f32 0.0, %v5205
        %5207 = vmatmul.f32.gmra.mxu0 %v5186
        %v5208 = vpop.f32.mrf.mxu0
        %v5209 = vadd.f32 0.0, %v5208
        %5210 = vdwg.mxu0
        %v5212 = vsel %vm3181, %v4282, 0
        %v5215 = vsel %vm3181, %v4297, 0
        %5217 = vmatpush.msra.mxu0 0.0
        %5218 = vmatpush.msra.mxu0 0.0
        %5219 = vmatpush.msra.mxu0 0.0
        %5220 = vmatpush.msra.mxu0 0.0
        %5221 = vmatpush.msra.mxu0 0.0
        %5222 = vmatpush.msra.mxu0 0.0
        %5223 = vmatpush.msra.mxu0 0.0
        %5224 = vmatpush.msra.mxu0 0.0
        %5225 = vmatpush.msra.mxu0 0.0
        %5226 = vmatpush.msra.mxu0 0.0
        %5227 = vmatpush.msra.mxu0 0.0
        %5228 = vmatpush.msra.mxu0 0.0
        %5229 = vmatpush.msra.mxu0 0.0
        %5230 = vmatpush.msra.mxu0 0.0
        %5231 = vmatpush.msra.mxu0 %v2099
        %5232 = vmatpush.msra.mxu0 %v2097
        %5233 = vmatmul.f32.gmra.mxu0 %v5212
        %v5234 = vpop.f32.mrf.mxu0
        %v5235 = vadd.f32 0.0, %v5234
        %5236 = vmatmul.f32.gmra.mxu0 %v5215
        %v5237 = vpop.f32.mrf.mxu0
        %v5238 = vadd.f32 0.0, %v5237
        %5239 = vdwg.mxu0
        %v5241 = vsel %vm3181, %v4312, 0
        %v5244 = vsel %vm3181, %v4327, 0
        %5246 = vmatpush.msra.mxu0 0.0
        %5247 = vmatpush.msra.mxu0 0.0
        %5248 = vmatpush.msra.mxu0 0.0
        %5249 = vmatpush.msra.mxu0 0.0
        %5250 = vmatpush.msra.mxu0 0.0
        %5251 = vmatpush.msra.mxu0 0.0
        %5252 = vmatpush.msra.mxu0 0.0
        %5253 = vmatpush.msra.mxu0 0.0
        %5254 = vmatpush.msra.mxu0 0.0
        %5255 = vmatpush.msra.mxu0 0.0
        %5256 = vmatpush.msra.mxu0 0.0
        %5257 = vmatpush.msra.mxu0 0.0
        %5258 = vmatpush.msra.mxu0 0.0
        %5259 = vmatpush.msra.mxu0 0.0
        %5260 = vmatpush.msra.mxu0 %v2103
        %5261 = vmatpush.msra.mxu0 %v2101
        %5262 = vmatmul.f32.gmra.mxu0 %v5241
        %v5263 = vpop.f32.mrf.mxu0
        %v5264 = vadd.f32 0.0, %v5263
        %5265 = vmatmul.f32.gmra.mxu0 %v5244
        %v5266 = vpop.f32.mrf.mxu0
        %v5267 = vadd.f32 0.0, %v5266
        %5268 = vdwg.mxu0
        %v5270 = vsel %vm3181, %v4342, 0
        %v5273 = vsel %vm3181, %v4357, 0
        %5275 = vmatpush.msra.mxu0 0.0
        %5276 = vmatpush.msra.mxu0 0.0
        %5277 = vmatpush.msra.mxu0 0.0
        %5278 = vmatpush.msra.mxu0 0.0
        %5279 = vmatpush.msra.mxu0 0.0
        %5280 = vmatpush.msra.mxu0 0.0
        %5281 = vmatpush.msra.mxu0 0.0
        %5282 = vmatpush.msra.mxu0 0.0
        %5283 = vmatpush.msra.mxu0 0.0
        %5284 = vmatpush.msra.mxu0 0.0
        %5285 = vmatpush.msra.mxu0 0.0
        %5286 = vmatpush.msra.mxu0 0.0
        %5287 = vmatpush.msra.mxu0 0.0
        %5288 = vmatpush.msra.mxu0 0.0
        %5289 = vmatpush.msra.mxu0 %v2107
        %5290 = vmatpush.msra.mxu0 %v2105
        %5291 = vmatmul.f32.gmra.mxu0 %v5270
        %v5292 = vpop.f32.mrf.mxu0
        %v5293 = vadd.f32 0.0, %v5292
        %5294 = vmatmul.f32.gmra.mxu0 %v5273
        %v5295 = vpop.f32.mrf.mxu0
        %v5296 = vadd.f32 0.0, %v5295
        %5297 = vdwg.mxu0
        %v5299 = vsel %vm3181, %v4372, 0
        %v5302 = vsel %vm3181, %v4387, 0
        %5304 = vmatpush.msra.mxu0 0.0
        %5305 = vmatpush.msra.mxu0 0.0
        %5306 = vmatpush.msra.mxu0 0.0
        %5307 = vmatpush.msra.mxu0 0.0
        %5308 = vmatpush.msra.mxu0 0.0
        %5309 = vmatpush.msra.mxu0 0.0
        %5310 = vmatpush.msra.mxu0 0.0
        %5311 = vmatpush.msra.mxu0 0.0
        %5312 = vmatpush.msra.mxu0 0.0
        %5313 = vmatpush.msra.mxu0 0.0
        %5314 = vmatpush.msra.mxu0 0.0
        %5315 = vmatpush.msra.mxu0 0.0
        %5316 = vmatpush.msra.mxu0 0.0
        %5317 = vmatpush.msra.mxu0 0.0
        %5318 = vmatpush.msra.mxu0 %v2111
        %5319 = vmatpush.msra.mxu0 %v2109
        %5320 = vmatmul.f32.gmra.mxu0 %v5299
        %v5321 = vpop.f32.mrf.mxu0
        %v5322 = vadd.f32 0.0, %v5321
        %5323 = vmatmul.f32.gmra.mxu0 %v5302
        %v5324 = vpop.f32.mrf.mxu0
        %v5325 = vadd.f32 0.0, %v5324
        %5326 = vdwg.mxu0
        %v5328 = vsel %vm3181, %v4402, 0
        %v5331 = vsel %vm3181, %v4417, 0
        %5333 = vmatpush.msra.mxu0 0.0
        %5334 = vmatpush.msra.mxu0 0.0
        %5335 = vmatpush.msra.mxu0 0.0
        %5336 = vmatpush.msra.mxu0 0.0
        %5337 = vmatpush.msra.mxu0 0.0
        %5338 = vmatpush.msra.mxu0 0.0
        %5339 = vmatpush.msra.mxu0 0.0
        %5340 = vmatpush.msra.mxu0 0.0
        %5341 = vmatpush.msra.mxu0 0.0
        %5342 = vmatpush.msra.mxu0 0.0
        %5343 = vmatpush.msra.mxu0 0.0
        %5344 = vmatpush.msra.mxu0 0.0
        %5345 = vmatpush.msra.mxu0 0.0
        %5346 = vmatpush.msra.mxu0 0.0
        %5347 = vmatpush.msra.mxu0 %v2115
        %5348 = vmatpush.msra.mxu0 %v2113
        %5349 = vmatmul.f32.gmra.mxu0 %v5328
        %v5350 = vpop.f32.mrf.mxu0
        %v5351 = vadd.f32 0.0, %v5350
        %5352 = vmatmul.f32.gmra.mxu0 %v5331
        %v5353 = vpop.f32.mrf.mxu0
        %v5354 = vadd.f32 0.0, %v5353
        %5355 = vdwg.mxu0
        %v5357 = vsel %vm3181, %v4432, 0
        %v5360 = vsel %vm3181, %v4447, 0
        %5362 = vmatpush.msra.mxu0 0.0
        %5363 = vmatpush.msra.mxu0 0.0
        %5364 = vmatpush.msra.mxu0 0.0
        %5365 = vmatpush.msra.mxu0 0.0
        %5366 = vmatpush.msra.mxu0 0.0
        %5367 = vmatpush.msra.mxu0 0.0
        %5368 = vmatpush.msra.mxu0 0.0
        %5369 = vmatpush.msra.mxu0 0.0
        %5370 = vmatpush.msra.mxu0 0.0
        %5371 = vmatpush.msra.mxu0 0.0
        %5372 = vmatpush.msra.mxu0 0.0
        %5373 = vmatpush.msra.mxu0 0.0
        %5374 = vmatpush.msra.mxu0 0.0
        %5375 = vmatpush.msra.mxu0 0.0
        %5376 = vmatpush.msra.mxu0 %v2119
        %5377 = vmatpush.msra.mxu0 %v2117
        %5378 = vmatmul.f32.gmra.mxu0 %v5357
        %v5379 = vpop.f32.mrf.mxu0
        %v5380 = vadd.f32 0.0, %v5379
        %5381 = vmatmul.f32.gmra.mxu0 %v5360
        %v5382 = vpop.f32.mrf.mxu0
        %v5383 = vadd.f32 0.0, %v5382
        %5384 = vdwg.mxu0
        %v5386 = vsel %vm3181, %v4462, 0
        %v5389 = vsel %vm3181, %v4477, 0
        %5391 = vmatpush.msra.mxu0 0.0
        %5392 = vmatpush.msra.mxu0 0.0
        %5393 = vmatpush.msra.mxu0 0.0
        %5394 = vmatpush.msra.mxu0 0.0
        %5395 = vmatpush.msra.mxu0 0.0
        %5396 = vmatpush.msra.mxu0 0.0
        %5397 = vmatpush.msra.mxu0 0.0
        %5398 = vmatpush.msra.mxu0 0.0
        %5399 = vmatpush.msra.mxu0 0.0
        %5400 = vmatpush.msra.mxu0 0.0
        %5401 = vmatpush.msra.mxu0 0.0
        %5402 = vmatpush.msra.mxu0 0.0
        %5403 = vmatpush.msra.mxu0 0.0
        %5404 = vmatpush.msra.mxu0 0.0
        %5405 = vmatpush.msra.mxu0 %v2123
        %5406 = vmatpush.msra.mxu0 %v2121
        %5407 = vmatmul.f32.gmra.mxu0 %v5386
        %v5408 = vpop.f32.mrf.mxu0
        %v5409 = vadd.f32 0.0, %v5408
        %5410 = vmatmul.f32.gmra.mxu0 %v5389
        %v5411 = vpop.f32.mrf.mxu0
        %v5412 = vadd.f32 0.0, %v5411
        %5413 = vdwg.mxu0
        %v5415 = vsel %vm3181, %v4492, 0
        %v5418 = vsel %vm3181, %v4507, 0
        %5420 = vmatpush.msra.mxu0 0.0
        %5421 = vmatpush.msra.mxu0 0.0
        %5422 = vmatpush.msra.mxu0 0.0
        %5423 = vmatpush.msra.mxu0 0.0
        %5424 = vmatpush.msra.mxu0 0.0
        %5425 = vmatpush.msra.mxu0 0.0
        %5426 = vmatpush.msra.mxu0 0.0
        %5427 = vmatpush.msra.mxu0 0.0
        %5428 = vmatpush.msra.mxu0 0.0
        %5429 = vmatpush.msra.mxu0 0.0
        %5430 = vmatpush.msra.mxu0 0.0
        %5431 = vmatpush.msra.mxu0 0.0
        %5432 = vmatpush.msra.mxu0 0.0
        %5433 = vmatpush.msra.mxu0 0.0
        %5434 = vmatpush.msra.mxu0 %v2143
        %5435 = vmatpush.msra.mxu0 %v2141
        %5436 = vmatmul.f32.gmra.mxu0 %v5415
        %v5437 = vpop.f32.mrf.mxu0
        %v5438 = vadd.f32 0.0, %v5437
        %5439 = vmatmul.f32.gmra.mxu0 %v5418
        %v5440 = vpop.f32.mrf.mxu0
        %v5441 = vadd.f32 0.0, %v5440
        %5442 = vdwg.mxu0
        %v5444 = vsel %vm3181, %v4522, 0
        %v5447 = vsel %vm3181, %v4537, 0
        %5449 = vmatpush.msra.mxu0 0.0
        %5450 = vmatpush.msra.mxu0 0.0
        %5451 = vmatpush.msra.mxu0 0.0
        %5452 = vmatpush.msra.mxu0 0.0
        %5453 = vmatpush.msra.mxu0 0.0
        %5454 = vmatpush.msra.mxu0 0.0
        %5455 = vmatpush.msra.mxu0 0.0
        %5456 = vmatpush.msra.mxu0 0.0
        %5457 = vmatpush.msra.mxu0 0.0
        %5458 = vmatpush.msra.mxu0 0.0
        %5459 = vmatpush.msra.mxu0 0.0
        %5460 = vmatpush.msra.mxu0 0.0
        %5461 = vmatpush.msra.mxu0 0.0
        %5462 = vmatpush.msra.mxu0 0.0
        %5463 = vmatpush.msra.mxu0 %v2147
        %5464 = vmatpush.msra.mxu0 %v2145
        %5465 = vmatmul.f32.gmra.mxu0 %v5444
        %v5466 = vpop.f32.mrf.mxu0
        %v5467 = vadd.f32 0.0, %v5466
        %5468 = vmatmul.f32.gmra.mxu0 %v5447
        %v5469 = vpop.f32.mrf.mxu0
        %v5470 = vadd.f32 0.0, %v5469
        %5471 = vdwg.mxu0
        %v5473 = vsel %vm3181, %v4552, 0
        %v5476 = vsel %vm3181, %v4567, 0
        %5478 = vmatpush.msra.mxu0 0.0
        %5479 = vmatpush.msra.mxu0 0.0
        %5480 = vmatpush.msra.mxu0 0.0
        %5481 = vmatpush.msra.mxu0 0.0
        %5482 = vmatpush.msra.mxu0 0.0
        %5483 = vmatpush.msra.mxu0 0.0
        %5484 = vmatpush.msra.mxu0 0.0
        %5485 = vmatpush.msra.mxu0 0.0
        %5486 = vmatpush.msra.mxu0 0.0
        %5487 = vmatpush.msra.mxu0 0.0
        %5488 = vmatpush.msra.mxu0 0.0
        %5489 = vmatpush.msra.mxu0 0.0
        %5490 = vmatpush.msra.mxu0 0.0
        %5491 = vmatpush.msra.mxu0 0.0
        %5492 = vmatpush.msra.mxu0 %v2151
        %5493 = vmatpush.msra.mxu0 %v2149
        %5494 = vmatmul.f32.gmra.mxu0 %v5473
        %v5495 = vpop.f32.mrf.mxu0
        %v5496 = vadd.f32 0.0, %v5495
        %5497 = vmatmul.f32.gmra.mxu0 %v5476
        %v5498 = vpop.f32.mrf.mxu0
        %v5499 = vadd.f32 0.0, %v5498
        %5500 = vdwg.mxu0
        %v5502 = vsel %vm3181, %v4582, 0
        %v5505 = vsel %vm3181, %v4597, 0
        %5507 = vmatpush.msra.mxu0 0.0
        %5508 = vmatpush.msra.mxu0 0.0
        %5509 = vmatpush.msra.mxu0 0.0
        %5510 = vmatpush.msra.mxu0 0.0
        %5511 = vmatpush.msra.mxu0 0.0
        %5512 = vmatpush.msra.mxu0 0.0
        %5513 = vmatpush.msra.mxu0 0.0
        %5514 = vmatpush.msra.mxu0 0.0
        %5515 = vmatpush.msra.mxu0 0.0
        %5516 = vmatpush.msra.mxu0 0.0
        %5517 = vmatpush.msra.mxu0 0.0
        %5518 = vmatpush.msra.mxu0 0.0
        %5519 = vmatpush.msra.mxu0 0.0
        %5520 = vmatpush.msra.mxu0 0.0
        %5521 = vmatpush.msra.mxu0 %v2155
        %5522 = vmatpush.msra.mxu0 %v2153
        %5523 = vmatmul.f32.gmra.mxu0 %v5502
        %v5524 = vpop.f32.mrf.mxu0
        %v5525 = vadd.f32 0.0, %v5524
        %5526 = vmatmul.f32.gmra.mxu0 %v5505
        %v5527 = vpop.f32.mrf.mxu0
        %v5528 = vadd.f32 0.0, %v5527
        %5529 = vdwg.mxu0
        %v5531 = vsel %vm3181, %v4612, 0
        %v5534 = vsel %vm3181, %v4627, 0
        %5536 = vmatpush.msra.mxu0 0.0
        %5537 = vmatpush.msra.mxu0 0.0
        %5538 = vmatpush.msra.mxu0 0.0
        %5539 = vmatpush.msra.mxu0 0.0
        %5540 = vmatpush.msra.mxu0 0.0
        %5541 = vmatpush.msra.mxu0 0.0
        %5542 = vmatpush.msra.mxu0 0.0
        %5543 = vmatpush.msra.mxu0 0.0
        %5544 = vmatpush.msra.mxu0 0.0
        %5545 = vmatpush.msra.mxu0 0.0
        %5546 = vmatpush.msra.mxu0 0.0
        %5547 = vmatpush.msra.mxu0 0.0
        %5548 = vmatpush.msra.mxu0 0.0
        %5549 = vmatpush.msra.mxu0 0.0
        %5550 = vmatpush.msra.mxu0 %v2159
        %5551 = vmatpush.msra.mxu0 %v2157
        %5552 = vmatmul.f32.gmra.mxu0 %v5531
        %v5553 = vpop.f32.mrf.mxu0
        %v5554 = vadd.f32 0.0, %v5553
        %5555 = vmatmul.f32.gmra.mxu0 %v5534
        %v5556 = vpop.f32.mrf.mxu0
        %v5557 = vadd.f32 0.0, %v5556
        %5558 = vdwg.mxu0
        %v5560 = vsel %vm3181, %v4642, 0
        %v5563 = vsel %vm3181, %v4657, 0
        %5565 = vmatpush.msra.mxu0 0.0
        %5566 = vmatpush.msra.mxu0 0.0
        %5567 = vmatpush.msra.mxu0 0.0
        %5568 = vmatpush.msra.mxu0 0.0
        %5569 = vmatpush.msra.mxu0 0.0
        %5570 = vmatpush.msra.mxu0 0.0
        %5571 = vmatpush.msra.mxu0 0.0
        %5572 = vmatpush.msra.mxu0 0.0
        %5573 = vmatpush.msra.mxu0 0.0
        %5574 = vmatpush.msra.mxu0 0.0
        %5575 = vmatpush.msra.mxu0 0.0
        %5576 = vmatpush.msra.mxu0 0.0
        %5577 = vmatpush.msra.mxu0 0.0
        %5578 = vmatpush.msra.mxu0 0.0
        %5579 = vmatpush.msra.mxu0 %v2163
        %5580 = vmatpush.msra.mxu0 %v2161
        %5581 = vmatmul.f32.gmra.mxu0 %v5560
        %v5582 = vpop.f32.mrf.mxu0
        %v5583 = vadd.f32 0.0, %v5582
        %5584 = vmatmul.f32.gmra.mxu0 %v5563
        %v5585 = vpop.f32.mrf.mxu0
        %v5586 = vadd.f32 0.0, %v5585
        %5587 = vdwg.mxu0
        %v5589 = vsel %vm3181, %v4672, 0
        %v5592 = vsel %vm3181, %v4687, 0
        %5594 = vmatpush.msra.mxu0 0.0
        %5595 = vmatpush.msra.mxu0 0.0
        %5596 = vmatpush.msra.mxu0 0.0
        %5597 = vmatpush.msra.mxu0 0.0
        %5598 = vmatpush.msra.mxu0 0.0
        %5599 = vmatpush.msra.mxu0 0.0
        %5600 = vmatpush.msra.mxu0 0.0
        %5601 = vmatpush.msra.mxu0 0.0
        %5602 = vmatpush.msra.mxu0 0.0
        %5603 = vmatpush.msra.mxu0 0.0
        %5604 = vmatpush.msra.mxu0 0.0
        %5605 = vmatpush.msra.mxu0 0.0
        %5606 = vmatpush.msra.mxu0 0.0
        %5607 = vmatpush.msra.mxu0 0.0
        %5608 = vmatpush.msra.mxu0 %v2167
        %5609 = vmatpush.msra.mxu0 %v2165
        %5610 = vmatmul.f32.gmra.mxu0 %v5589
        %v5611 = vpop.f32.mrf.mxu0
        %v5612 = vadd.f32 0.0, %v5611
        %5613 = vmatmul.f32.gmra.mxu0 %v5592
        %v5614 = vpop.f32.mrf.mxu0
        %v5615 = vadd.f32 0.0, %v5614
        %5616 = vdwg.mxu0
        %v5618 = vsel %vm3181, %v4702, 0
        %v5621 = vsel %vm3181, %v4717, 0
        %5623 = vmatpush.msra.mxu0 0.0
        %5624 = vmatpush.msra.mxu0 0.0
        %5625 = vmatpush.msra.mxu0 0.0
        %5626 = vmatpush.msra.mxu0 0.0
        %5627 = vmatpush.msra.mxu0 0.0
        %5628 = vmatpush.msra.mxu0 0.0
        %5629 = vmatpush.msra.mxu0 0.0
        %5630 = vmatpush.msra.mxu0 0.0
        %5631 = vmatpush.msra.mxu0 0.0
        %5632 = vmatpush.msra.mxu0 0.0
        %5633 = vmatpush.msra.mxu0 0.0
        %5634 = vmatpush.msra.mxu0 0.0
        %5635 = vmatpush.msra.mxu0 0.0
        %5636 = vmatpush.msra.mxu0 0.0
        %5637 = vmatpush.msra.mxu0 %v2171
        %5638 = vmatpush.msra.mxu0 %v2169
        %5639 = vmatmul.f32.gmra.mxu0 %v5618
        %v5640 = vpop.f32.mrf.mxu0
        %v5641 = vadd.f32 0.0, %v5640
        %5642 = vmatmul.f32.gmra.mxu0 %v5621
        %v5643 = vpop.f32.mrf.mxu0
        %v5644 = vadd.f32 0.0, %v5643
        %5645 = vdwg.mxu0
        %5662 = vrot.lane.b32.xlu0 %v4974, 32
        %v5663 = vpop.permute.xlu0 %5662
        %5664 = vrot.lane.b32.xlu0 %v4977, 32
        %v5665 = vpop.permute.xlu0 %5664
        %5666 = vrot.lane.b32.xlu0 %v5003, 32
        %v5667 = vpop.permute.xlu0 %5666
        %5668 = vrot.lane.b32.xlu0 %v5006, 32
        %v5669 = vpop.permute.xlu0 %5668
        %5670 = vrot.lane.b32.xlu0 %v5032, 32
        %v5671 = vpop.permute.xlu0 %5670
        %5672 = vrot.lane.b32.xlu0 %v5035, 32
        %v5673 = vpop.permute.xlu0 %5672
        %5674 = vrot.lane.b32.xlu0 %v5061, 32
        %v5675 = vpop.permute.xlu0 %5674
        %5676 = vrot.lane.b32.xlu0 %v5064, 32
        %v5677 = vpop.permute.xlu0 %5676
        %5678 = vrot.lane.b32.xlu0 %v5090, 32
        %v5679 = vpop.permute.xlu0 %5678
        %5680 = vrot.lane.b32.xlu0 %v5093, 32
        %v5681 = vpop.permute.xlu0 %5680
        %5682 = vrot.lane.b32.xlu0 %v5119, 32
        %v5683 = vpop.permute.xlu0 %5682
        %5684 = vrot.lane.b32.xlu0 %v5122, 32
        %v5685 = vpop.permute.xlu0 %5684
        %5686 = vrot.lane.b32.xlu0 %v5148, 32
        %v5687 = vpop.permute.xlu0 %5686
        %5688 = vrot.lane.b32.xlu0 %v5151, 32
        %v5689 = vpop.permute.xlu0 %5688
        %5690 = vrot.lane.b32.xlu0 %v5177, 32
        %v5691 = vpop.permute.xlu0 %5690
        %5692 = vrot.lane.b32.xlu0 %v5180, 32
        %v5693 = vpop.permute.xlu0 %5692
        %5726 = vrot.lane.b32.xlu0 %v5206, 64
        %v5727 = vpop.permute.xlu0 %5726
        %5728 = vrot.lane.b32.xlu0 %v5209, 64
        %v5729 = vpop.permute.xlu0 %5728
        %5730 = vrot.lane.b32.xlu0 %v5235, 64
        %v5731 = vpop.permute.xlu0 %5730
        %5732 = vrot.lane.b32.xlu0 %v5238, 64
        %v5733 = vpop.permute.xlu0 %5732
        %5734 = vrot.lane.b32.xlu0 %v5264, 64
        %v5735 = vpop.permute.xlu0 %5734
        %5736 = vrot.lane.b32.xlu0 %v5267, 64
        %v5737 = vpop.permute.xlu0 %5736
        %5738 = vrot.lane.b32.xlu0 %v5293, 64
        %v5739 = vpop.permute.xlu0 %5738
        %5740 = vrot.lane.b32.xlu0 %v5296, 64
        %v5741 = vpop.permute.xlu0 %5740
        %5742 = vrot.lane.b32.xlu0 %v5322, 64
        %v5743 = vpop.permute.xlu0 %5742
        %5744 = vrot.lane.b32.xlu0 %v5325, 64
        %v5745 = vpop.permute.xlu0 %5744
        %5746 = vrot.lane.b32.xlu0 %v5351, 64
        %v5747 = vpop.permute.xlu0 %5746
        %5748 = vrot.lane.b32.xlu0 %v5354, 64
        %v5749 = vpop.permute.xlu0 %5748
        %5750 = vrot.lane.b32.xlu0 %v5380, 64
        %v5751 = vpop.permute.xlu0 %5750
        %5752 = vrot.lane.b32.xlu0 %v5383, 64
        %v5753 = vpop.permute.xlu0 %5752
        %5754 = vrot.lane.b32.xlu0 %v5409, 64
        %v5755 = vpop.permute.xlu0 %5754
        %5756 = vrot.lane.b32.xlu0 %v5412, 64
        %v5757 = vpop.permute.xlu0 %5756
        %5790 = vrot.lane.b32.xlu0 %v5438, 96
        %v5791 = vpop.permute.xlu0 %5790
        %5792 = vrot.lane.b32.xlu0 %v5441, 96
        %v5793 = vpop.permute.xlu0 %5792
        %5794 = vrot.lane.b32.xlu0 %v5467, 96
        %v5795 = vpop.permute.xlu0 %5794
        %5796 = vrot.lane.b32.xlu0 %v5470, 96
        %v5797 = vpop.permute.xlu0 %5796
        %5798 = vrot.lane.b32.xlu0 %v5496, 96
        %v5799 = vpop.permute.xlu0 %5798
        %5800 = vrot.lane.b32.xlu0 %v5499, 96
        %v5801 = vpop.permute.xlu0 %5800
        %5802 = vrot.lane.b32.xlu0 %v5525, 96
        %v5803 = vpop.permute.xlu0 %5802
        %5804 = vrot.lane.b32.xlu0 %v5528, 96
        %v5805 = vpop.permute.xlu0 %5804
        %5806 = vrot.lane.b32.xlu0 %v5554, 96
        %v5807 = vpop.permute.xlu0 %5806
        %5808 = vrot.lane.b32.xlu0 %v5557, 96
        %v5809 = vpop.permute.xlu0 %5808
        %5810 = vrot.lane.b32.xlu0 %v5583, 96
        %v5811 = vpop.permute.xlu0 %5810
        %5812 = vrot.lane.b32.xlu0 %v5586, 96
        %v5813 = vpop.permute.xlu0 %5812
        %5814 = vrot.lane.b32.xlu0 %v5612, 96
        %v5815 = vpop.permute.xlu0 %5814
        %5816 = vrot.lane.b32.xlu0 %v5615, 96
        %v5817 = vpop.permute.xlu0 %5816
        %5818 = vrot.lane.b32.xlu0 %v5641, 96
        %v5819 = vpop.permute.xlu0 %5818
        %5820 = vrot.lane.b32.xlu0 %v5644, 96
        %v5821 = vpop.permute.xlu0 %5820
        %v5838 = vsel %vm2188, %v4742, %v5663
        %v5839 = vsel %vm2188, %v4745, %v5665
        %v5840 = vsel %vm2188, %v4771, %v5667
        %v5841 = vsel %vm2188, %v4774, %v5669
        %v5842 = vsel %vm2188, %v4800, %v5671
        %v5843 = vsel %vm2188, %v4803, %v5673
        %v5844 = vsel %vm2188, %v4829, %v5675
        %v5845 = vsel %vm2188, %v4832, %v5677
        %v5846 = vsel %vm2188, %v4858, %v5679
        %v5847 = vsel %vm2188, %v4861, %v5681
        %v5848 = vsel %vm2188, %v4887, %v5683
        %v5849 = vsel %vm2188, %v4890, %v5685
        %v5850 = vsel %vm2188, %v4916, %v5687
        %v5851 = vsel %vm2188, %v4919, %v5689
        %v5852 = vsel %vm2188, %v4945, %v5691
        %v5853 = vsel %vm2188, %v4948, %v5693
        %vm5854 = vcmask 523264
        %v5855 = vsel %vm5854, %v5838, %v5727
        %v5856 = vsel %vm5854, %v5839, %v5729
        %v5857 = vsel %vm5854, %v5840, %v5731
        %v5858 = vsel %vm5854, %v5841, %v5733
        %v5859 = vsel %vm5854, %v5842, %v5735
        %v5860 = vsel %vm5854, %v5843, %v5737
        %v5861 = vsel %vm5854, %v5844, %v5739
        %v5862 = vsel %vm5854, %v5845, %v5741
        %v5863 = vsel %vm5854, %v5846, %v5743
        %v5864 = vsel %vm5854, %v5847, %v5745
        %v5865 = vsel %vm5854, %v5848, %v5747
        %v5866 = vsel %vm5854, %v5849, %v5749
        %v5867 = vsel %vm5854, %v5850, %v5751
        %v5868 = vsel %vm5854, %v5851, %v5753
        %v5869 = vsel %vm5854, %v5852, %v5755
        %v5870 = vsel %vm5854, %v5853, %v5757
        %vm5871 = vcmask 785408
        %v5872 = vsel %vm5871, %v5855, %v5791
        %v5873 = vsel %vm5871, %v5856, %v5793
        %v5874 = vsel %vm5871, %v5857, %v5795
        %v5875 = vsel %vm5871, %v5858, %v5797
        %v5876 = vsel %vm5871, %v5859, %v5799
        %v5877 = vsel %vm5871, %v5860, %v5801
        %v5878 = vsel %vm5871, %v5861, %v5803
        %v5879 = vsel %vm5871, %v5862, %v5805
        %v5880 = vsel %vm5871, %v5863, %v5807
        %v5881 = vsel %vm5871, %v5864, %v5809
        %v5882 = vsel %vm5871, %v5865, %v5811
        %v5883 = vsel %vm5871, %v5866, %v5813
        %v5884 = vsel %vm5871, %v5867, %v5815
        %v5885 = vsel %vm5871, %v5868, %v5817
        %v5886 = vsel %vm5871, %v5869, %v5819
        %v5887 = vsel %vm5871, %v5870, %v5821
        %v5888 = vld [vmem:[%s747] sm:$0xff]
        %v5889 = vld [vmem:[%s747 + $0x8] sm:$0xff]
        %v5890 = vld [vmem:[%s747 + $0x10] sm:$0xff]
        %v5891 = vld [vmem:[%s747 + $0x18] sm:$0xff]
        %v5892 = vld [vmem:[%s747 + $0x20] sm:$0xff]
        %v5893 = vld [vmem:[%s747 + $0x28] sm:$0xff]
        %v5894 = vld [vmem:[%s747 + $0x30] sm:$0xff]
        %v5895 = vld [vmem:[%s747 + $0x38] sm:$0xff]
        %v5896 = vld [vmem:[%s747 + $0x40] sm:$0xff]
        %v5897 = vld [vmem:[%s747 + $0x48] sm:$0xff]
        %v5898 = vld [vmem:[%s747 + $0x50] sm:$0xff]
        %v5899 = vld [vmem:[%s747 + $0x58] sm:$0xff]
        %v5900 = vld [vmem:[%s747 + $0x60] sm:$0xff]
        %v5901 = vld [vmem:[%s747 + $0x68] sm:$0xff]
        %v5902 = vld [vmem:[%s747 + $0x70] sm:$0xff]
        %v5903 = vld [vmem:[%s747 + $0x78] sm:$0xff]
        %5904 = vmatpush.msra.mxu0 %v5903
        %5905 = vmatpush.msra.mxu0 %v5902
        %5906 = vmatpush.msra.mxu0 %v5901
        %5907 = vmatpush.msra.mxu0 %v5900
        %5908 = vmatpush.msra.mxu0 %v5899
        %5909 = vmatpush.msra.mxu0 %v5898
        %5910 = vmatpush.msra.mxu0 %v5897
        %5911 = vmatpush.msra.mxu0 %v5896
        %5912 = vmatpush.msra.mxu0 %v5895
        %5913 = vmatpush.msra.mxu0 %v5894
        %5914 = vmatpush.msra.mxu0 %v5893
        %5915 = vmatpush.msra.mxu0 %v5892
        %5916 = vmatpush.msra.mxu0 %v5891
        %5917 = vmatpush.msra.mxu0 %v5890
        %5918 = vmatpush.msra.mxu0 %v5889
        %5919 = vmatpush.msra.mxu0 %v5888
        %5920 = vmatmul.f32.gmra.mxu0 %v5872
        %v5921 = vpop.f32.mrf.mxu0
        %v5922 = vadd.f32 0.0, %v5921
        %5923 = vmatmul.f32.gmra.mxu0 %v5873
        %v5924 = vpop.f32.mrf.mxu0
        %v5925 = vadd.f32 0.0, %v5924
        %5926 = vmatmul.f32.gmra.mxu0 %v5874
        %v5927 = vpop.f32.mrf.mxu0
        %v5928 = vadd.f32 0.0, %v5927
        %5929 = vmatmul.f32.gmra.mxu0 %v5875
        %v5930 = vpop.f32.mrf.mxu0
        %v5931 = vadd.f32 0.0, %v5930
        %5932 = vmatmul.f32.gmra.mxu0 %v5876
        %v5933 = vpop.f32.mrf.mxu0
        %v5934 = vadd.f32 0.0, %v5933
        %5935 = vmatmul.f32.gmra.mxu0 %v5877
        %v5936 = vpop.f32.mrf.mxu0
        %v5937 = vadd.f32 0.0, %v5936
        %5938 = vmatmul.f32.gmra.mxu0 %v5878
        %v5939 = vpop.f32.mrf.mxu0
        %v5940 = vadd.f32 0.0, %v5939
        %5941 = vmatmul.f32.gmra.mxu0 %v5879
        %v5942 = vpop.f32.mrf.mxu0
        %v5943 = vadd.f32 0.0, %v5942
        %5944 = vmatmul.f32.gmra.mxu0 %v5880
        %v5945 = vpop.f32.mrf.mxu0
        %v5946 = vadd.f32 0.0, %v5945
        %5947 = vmatmul.f32.gmra.mxu0 %v5881
        %v5948 = vpop.f32.mrf.mxu0
        %v5949 = vadd.f32 0.0, %v5948
        %5950 = vmatmul.f32.gmra.mxu0 %v5882
        %v5951 = vpop.f32.mrf.mxu0
        %v5952 = vadd.f32 0.0, %v5951
        %5953 = vmatmul.f32.gmra.mxu0 %v5883
        %v5954 = vpop.f32.mrf.mxu0
        %v5955 = vadd.f32 0.0, %v5954
        %5956 = vmatmul.f32.gmra.mxu0 %v5884
        %v5957 = vpop.f32.mrf.mxu0
        %v5958 = vadd.f32 0.0, %v5957
        %5959 = vmatmul.f32.gmra.mxu0 %v5885
        %v5960 = vpop.f32.mrf.mxu0
        %v5961 = vadd.f32 0.0, %v5960
        %5962 = vmatmul.f32.gmra.mxu0 %v5886
        %v5963 = vpop.f32.mrf.mxu0
        %v5964 = vadd.f32 0.0, %v5963
        %5965 = vmatmul.f32.gmra.mxu0 %v5887
        %v5966 = vpop.f32.mrf.mxu0
        %v5967 = vadd.f32 0.0, %v5966
        %5968 = vdwg.mxu0
        %v5969 = vadd.f32 %v1170, %v5922
        %v5970 = vadd.f32 %v1171, %v5925
        %v5971 = vadd.f32 %v1172, %v5928
        %v5972 = vadd.f32 %v1173, %v5931
        %v5973 = vadd.f32 %v1174, %v5934
        %v5974 = vadd.f32 %v1175, %v5937
        %v5975 = vadd.f32 %v1176, %v5940
        %v5976 = vadd.f32 %v1177, %v5943
        %v5977 = vadd.f32 %v1178, %v5946
        %v5978 = vadd.f32 %v1179, %v5949
        %v5979 = vadd.f32 %v1180, %v5952
        %v5980 = vadd.f32 %v1181, %v5955
        %v5981 = vadd.f32 %v1182, %v5958
        %v5982 = vadd.f32 %v1183, %v5961
        %v5983 = vadd.f32 %v1184, %v5964
        %v5984 = vadd.f32 %v1185, %v5967
        %v5985 = vld [vmem:[%s756] sm:$0x1]
        %v5987 = vperm.slane %v5985, 0
        %v5989 = vadd.f32 %v5969, %v5987
        %v5990 = vadd.f32 %v5970, %v5987
        %v5991 = vadd.f32 %v5971, %v5987
        %v5992 = vadd.f32 %v5972, %v5987
        %v5993 = vadd.f32 %v5973, %v5987
        %v5994 = vadd.f32 %v5974, %v5987
        %v5995 = vadd.f32 %v5975, %v5987
        %v5996 = vadd.f32 %v5976, %v5987
        %v5997 = vadd.f32 %v5977, %v5987
        %v5998 = vadd.f32 %v5978, %v5987
        %v5999 = vadd.f32 %v5979, %v5987
        %v6000 = vadd.f32 %v5980, %v5987
        %v6001 = vadd.f32 %v5981, %v5987
        %v6002 = vadd.f32 %v5982, %v5987
        %v6003 = vadd.f32 %v5983, %v5987
        %v6004 = vadd.f32 %v5984, %v5987
        %6005 = vadd.xlane.f32.xlu0 %v5989
        %v6006 = vpop.xlane.xlu0 %6005
        %6007 = vadd.xlane.f32.xlu0 %v5990
        %v6008 = vpop.xlane.xlu0 %6007
        %6009 = vadd.xlane.f32.xlu0 %v5991
        %v6010 = vpop.xlane.xlu0 %6009
        %6011 = vadd.xlane.f32.xlu0 %v5992
        %v6012 = vpop.xlane.xlu0 %6011
        %6013 = vadd.xlane.f32.xlu0 %v5993
        %v6014 = vpop.xlane.xlu0 %6013
        %6015 = vadd.xlane.f32.xlu0 %v5994
        %v6016 = vpop.xlane.xlu0 %6015
        %6017 = vadd.xlane.f32.xlu0 %v5995
        %v6018 = vpop.xlane.xlu0 %6017
        %6019 = vadd.xlane.f32.xlu0 %v5996
        %v6020 = vpop.xlane.xlu0 %6019
        %6021 = vadd.xlane.f32.xlu0 %v5997
        %v6022 = vpop.xlane.xlu0 %6021
        %6023 = vadd.xlane.f32.xlu0 %v5998
        %v6024 = vpop.xlane.xlu0 %6023
        %6025 = vadd.xlane.f32.xlu0 %v5999
        %v6026 = vpop.xlane.xlu0 %6025
        %6027 = vadd.xlane.f32.xlu0 %v6000
        %v6028 = vpop.xlane.xlu0 %6027
        %6029 = vadd.xlane.f32.xlu0 %v6001
        %v6030 = vpop.xlane.xlu0 %6029
        %6031 = vadd.xlane.f32.xlu0 %v6002
        %v6032 = vpop.xlane.xlu0 %6031
        %6033 = vadd.xlane.f32.xlu0 %v6003
        %v6034 = vpop.xlane.xlu0 %6033
        %6035 = vadd.xlane.f32.xlu0 %v6004
        %v6036 = vpop.xlane.xlu0 %6035
        %v6037 = vmul.f32 %v6006, %v1224
        %v6038 = vmul.f32 %v6008, %v1224
        %v6039 = vmul.f32 %v6010, %v1224
        %v6040 = vmul.f32 %v6012, %v1224
        %v6041 = vmul.f32 %v6014, %v1224
        %v6042 = vmul.f32 %v6016, %v1224
        %v6043 = vmul.f32 %v6018, %v1224
        %v6044 = vmul.f32 %v6020, %v1224
        %v6045 = vmul.f32 %v6022, %v1224
        %v6046 = vmul.f32 %v6024, %v1224
        %v6047 = vmul.f32 %v6026, %v1224
        %v6048 = vmul.f32 %v6028, %v1224
        %v6049 = vmul.f32 %v6030, %v1224
        %v6050 = vmul.f32 %v6032, %v1224
        %v6051 = vmul.f32 %v6034, %v1224
        %v6052 = vmul.f32 %v6036, %v1224
        %v6053 = vsub.f32 %v5989, %v6037
        %v6054 = vsub.f32 %v5990, %v6038
        %v6055 = vsub.f32 %v5991, %v6039
        %v6056 = vsub.f32 %v5992, %v6040
        %v6057 = vsub.f32 %v5993, %v6041
        %v6058 = vsub.f32 %v5994, %v6042
        %v6059 = vsub.f32 %v5995, %v6043
        %v6060 = vsub.f32 %v5996, %v6044
        %v6061 = vsub.f32 %v5997, %v6045
        %v6062 = vsub.f32 %v5998, %v6046
        %v6063 = vsub.f32 %v5999, %v6047
        %v6064 = vsub.f32 %v6000, %v6048
        %v6065 = vsub.f32 %v6001, %v6049
        %v6066 = vsub.f32 %v6002, %v6050
        %v6067 = vsub.f32 %v6003, %v6051
        %v6068 = vsub.f32 %v6004, %v6052
        %v6069 = vmul.f32 %v6053, %v6053
        %v6070 = vmul.f32 %v6054, %v6054
        %v6071 = vmul.f32 %v6055, %v6055
        %v6072 = vmul.f32 %v6056, %v6056
        %v6073 = vmul.f32 %v6057, %v6057
        %v6074 = vmul.f32 %v6058, %v6058
        %v6075 = vmul.f32 %v6059, %v6059
        %v6076 = vmul.f32 %v6060, %v6060
        %v6077 = vmul.f32 %v6061, %v6061
        %v6078 = vmul.f32 %v6062, %v6062
        %v6079 = vmul.f32 %v6063, %v6063
        %v6080 = vmul.f32 %v6064, %v6064
        %v6081 = vmul.f32 %v6065, %v6065
        %v6082 = vmul.f32 %v6066, %v6066
        %v6083 = vmul.f32 %v6067, %v6067
        %v6084 = vmul.f32 %v6068, %v6068
        %6085 = vadd.xlane.f32.xlu0 %v6069
        %v6086 = vpop.xlane.xlu0 %6085
        %6087 = vadd.xlane.f32.xlu0 %v6070
        %v6088 = vpop.xlane.xlu0 %6087
        %6089 = vadd.xlane.f32.xlu0 %v6071
        %v6090 = vpop.xlane.xlu0 %6089
        %6091 = vadd.xlane.f32.xlu0 %v6072
        %v6092 = vpop.xlane.xlu0 %6091
        %6093 = vadd.xlane.f32.xlu0 %v6073
        %v6094 = vpop.xlane.xlu0 %6093
        %6095 = vadd.xlane.f32.xlu0 %v6074
        %v6096 = vpop.xlane.xlu0 %6095
        %6097 = vadd.xlane.f32.xlu0 %v6075
        %v6098 = vpop.xlane.xlu0 %6097
        %6099 = vadd.xlane.f32.xlu0 %v6076
        %v6100 = vpop.xlane.xlu0 %6099
        %6101 = vadd.xlane.f32.xlu0 %v6077
        %v6102 = vpop.xlane.xlu0 %6101
        %6103 = vadd.xlane.f32.xlu0 %v6078
        %v6104 = vpop.xlane.xlu0 %6103
        %6105 = vadd.xlane.f32.xlu0 %v6079
        %v6106 = vpop.xlane.xlu0 %6105
        %6107 = vadd.xlane.f32.xlu0 %v6080
        %v6108 = vpop.xlane.xlu0 %6107
        %6109 = vadd.xlane.f32.xlu0 %v6081
        %v6110 = vpop.xlane.xlu0 %6109
        %6111 = vadd.xlane.f32.xlu0 %v6082
        %v6112 = vpop.xlane.xlu0 %6111
        %6113 = vadd.xlane.f32.xlu0 %v6083
        %v6114 = vpop.xlane.xlu0 %6113
        %6115 = vadd.xlane.f32.xlu0 %v6084
        %v6116 = vpop.xlane.xlu0 %6115
        %v6117 = vmul.f32 %v6086, %v1224
        %v6118 = vmul.f32 %v6088, %v1224
        %v6119 = vmul.f32 %v6090, %v1224
        %v6120 = vmul.f32 %v6092, %v1224
        %v6121 = vmul.f32 %v6094, %v1224
        %v6122 = vmul.f32 %v6096, %v1224
        %v6123 = vmul.f32 %v6098, %v1224
        %v6124 = vmul.f32 %v6100, %v1224
        %v6125 = vmul.f32 %v6102, %v1224
        %v6126 = vmul.f32 %v6104, %v1224
        %v6127 = vmul.f32 %v6106, %v1224
        %v6128 = vmul.f32 %v6108, %v1224
        %v6129 = vmul.f32 %v6110, %v1224
        %v6130 = vmul.f32 %v6112, %v1224
        %v6131 = vmul.f32 %v6114, %v1224
        %v6132 = vmul.f32 %v6116, %v1224
        %v6133 = vld [vmem:[%s765] sm:$0x1]
        %v6134 = vadd.f32 %v6117, 1e-12
        %v6135 = vadd.f32 %v6118, 1e-12
        %v6136 = vadd.f32 %v6119, 1e-12
        %v6137 = vadd.f32 %v6120, 1e-12
        %v6138 = vadd.f32 %v6121, 1e-12
        %v6139 = vadd.f32 %v6122, 1e-12
        %v6140 = vadd.f32 %v6123, 1e-12
        %v6141 = vadd.f32 %v6124, 1e-12
        %v6142 = vadd.f32 %v6125, 1e-12
        %v6143 = vadd.f32 %v6126, 1e-12
        %v6144 = vadd.f32 %v6127, 1e-12
        %v6145 = vadd.f32 %v6128, 1e-12
        %v6146 = vadd.f32 %v6129, 1e-12
        %v6147 = vadd.f32 %v6130, 1e-12
        %v6148 = vadd.f32 %v6131, 1e-12
        %v6149 = vadd.f32 %v6132, 1e-12
        %v6150 = vrsqrt.pop %v6134
        %v6151 = vmul.f32 %v6150, %v6134
        %v6152 = vmul.f32 %v6151, %v6150
        %v6153 = vmul.f32 0.5, %v6152
        %v6154 = vsub.f32 1.5, %v6153
        %v6155 = vmul.f32 %v6150, %v6154
        %vm6156 = vweird.f32 %v6134
        %vm6157 = vweird.f32 %v6150
        %vm6158 = vmor %vm6156, %vm6157
        %v6159 = vsel %vm6158, %v6150, %v6155
        %v6160 = vrsqrt.pop %v6135
        %v6161 = vmul.f32 %v6160, %v6135
        %v6162 = vmul.f32 %v6161, %v6160
        %v6163 = vmul.f32 0.5, %v6162
        %v6164 = vsub.f32 1.5, %v6163
        %v6165 = vmul.f32 %v6160, %v6164
        %vm6166 = vweird.f32 %v6135
        %vm6167 = vweird.f32 %v6160
        %vm6168 = vmor %vm6166, %vm6167
        %v6169 = vsel %vm6168, %v6160, %v6165
        %v6170 = vrsqrt.pop %v6136
        %v6171 = vmul.f32 %v6170, %v6136
        %v6172 = vmul.f32 %v6171, %v6170
        %v6173 = vmul.f32 0.5, %v6172
        %v6174 = vsub.f32 1.5, %v6173
        %v6175 = vmul.f32 %v6170, %v6174
        %vm6176 = vweird.f32 %v6136
        %vm6177 = vweird.f32 %v6170
        %vm6178 = vmor %vm6176, %vm6177
        %v6179 = vsel %vm6178, %v6170, %v6175
        %v6180 = vrsqrt.pop %v6137
        %v6181 = vmul.f32 %v6180, %v6137
        %v6182 = vmul.f32 %v6181, %v6180
        %v6183 = vmul.f32 0.5, %v6182
        %v6184 = vsub.f32 1.5, %v6183
        %v6185 = vmul.f32 %v6180, %v6184
        %vm6186 = vweird.f32 %v6137
        %vm6187 = vweird.f32 %v6180
        %vm6188 = vmor %vm6186, %vm6187
        %v6189 = vsel %vm6188, %v6180, %v6185
        %v6190 = vrsqrt.pop %v6138
        %v6191 = vmul.f32 %v6190, %v6138
        %v6192 = vmul.f32 %v6191, %v6190
        %v6193 = vmul.f32 0.5, %v6192
        %v6194 = vsub.f32 1.5, %v6193
        %v6195 = vmul.f32 %v6190, %v6194
        %vm6196 = vweird.f32 %v6138
        %vm6197 = vweird.f32 %v6190
        %vm6198 = vmor %vm6196, %vm6197
        %v6199 = vsel %vm6198, %v6190, %v6195
        %v6200 = vrsqrt.pop %v6139
        %v6201 = vmul.f32 %v6200, %v6139
        %v6202 = vmul.f32 %v6201, %v6200
        %v6203 = vmul.f32 0.5, %v6202
        %v6204 = vsub.f32 1.5, %v6203
        %v6205 = vmul.f32 %v6200, %v6204
        %vm6206 = vweird.f32 %v6139
        %vm6207 = vweird.f32 %v6200
        %vm6208 = vmor %vm6206, %vm6207
        %v6209 = vsel %vm6208, %v6200, %v6205
        %v6210 = vrsqrt.pop %v6140
        %v6211 = vmul.f32 %v6210, %v6140
        %v6212 = vmul.f32 %v6211, %v6210
        %v6213 = vmul.f32 0.5, %v6212
        %v6214 = vsub.f32 1.5, %v6213
        %v6215 = vmul.f32 %v6210, %v6214
        %vm6216 = vweird.f32 %v6140
        %vm6217 = vweird.f32 %v6210
        %vm6218 = vmor %vm6216, %vm6217
        %v6219 = vsel %vm6218, %v6210, %v6215
        %v6220 = vrsqrt.pop %v6141
        %v6221 = vmul.f32 %v6220, %v6141
        %v6222 = vmul.f32 %v6221, %v6220
        %v6223 = vmul.f32 0.5, %v6222
        %v6224 = vsub.f32 1.5, %v6223
        %v6225 = vmul.f32 %v6220, %v6224
        %vm6226 = vweird.f32 %v6141
        %vm6227 = vweird.f32 %v6220
        %vm6228 = vmor %vm6226, %vm6227
        %v6229 = vsel %vm6228, %v6220, %v6225
        %v6230 = vrsqrt.pop %v6142
        %v6231 = vmul.f32 %v6230, %v6142
        %v6232 = vmul.f32 %v6231, %v6230
        %v6233 = vmul.f32 0.5, %v6232
        %v6234 = vsub.f32 1.5, %v6233
        %v6235 = vmul.f32 %v6230, %v6234
        %vm6236 = vweird.f32 %v6142
        %vm6237 = vweird.f32 %v6230
        %vm6238 = vmor %vm6236, %vm6237
        %v6239 = vsel %vm6238, %v6230, %v6235
        %v6240 = vrsqrt.pop %v6143
        %v6241 = vmul.f32 %v6240, %v6143
        %v6242 = vmul.f32 %v6241, %v6240
        %v6243 = vmul.f32 0.5, %v6242
        %v6244 = vsub.f32 1.5, %v6243
        %v6245 = vmul.f32 %v6240, %v6244
        %vm6246 = vweird.f32 %v6143
        %vm6247 = vweird.f32 %v6240
        %vm6248 = vmor %vm6246, %vm6247
        %v6249 = vsel %vm6248, %v6240, %v6245
        %v6250 = vrsqrt.pop %v6144
        %v6251 = vmul.f32 %v6250, %v6144
        %v6252 = vmul.f32 %v6251, %v6250
        %v6253 = vmul.f32 0.5, %v6252
        %v6254 = vsub.f32 1.5, %v6253
        %v6255 = vmul.f32 %v6250, %v6254
        %vm6256 = vweird.f32 %v6144
        %vm6257 = vweird.f32 %v6250
        %vm6258 = vmor %vm6256, %vm6257
        %v6259 = vsel %vm6258, %v6250, %v6255
        %v6260 = vrsqrt.pop %v6145
        %v6261 = vmul.f32 %v6260, %v6145
        %v6262 = vmul.f32 %v6261, %v6260
        %v6263 = vmul.f32 0.5, %v6262
        %v6264 = vsub.f32 1.5, %v6263
        %v6265 = vmul.f32 %v6260, %v6264
        %vm6266 = vweird.f32 %v6145
        %vm6267 = vweird.f32 %v6260
        %vm6268 = vmor %vm6266, %vm6267
        %v6269 = vsel %vm6268, %v6260, %v6265
        %v6270 = vrsqrt.pop %v6146
        %v6271 = vmul.f32 %v6270, %v6146
        %v6272 = vmul.f32 %v6271, %v6270
        %v6273 = vmul.f32 0.5, %v6272
        %v6274 = vsub.f32 1.5, %v6273
        %v6275 = vmul.f32 %v6270, %v6274
        %vm6276 = vweird.f32 %v6146
        %vm6277 = vweird.f32 %v6270
        %vm6278 = vmor %vm6276, %vm6277
        %v6279 = vsel %vm6278, %v6270, %v6275
        %v6280 = vrsqrt.pop %v6147
        %v6281 = vmul.f32 %v6280, %v6147
        %v6282 = vmul.f32 %v6281, %v6280
        %v6283 = vmul.f32 0.5, %v6282
        %v6284 = vsub.f32 1.5, %v6283
        %v6285 = vmul.f32 %v6280, %v6284
        %vm6286 = vweird.f32 %v6147
        %vm6287 = vweird.f32 %v6280
        %vm6288 = vmor %vm6286, %vm6287
        %v6289 = vsel %vm6288, %v6280, %v6285
        %v6290 = vrsqrt.pop %v6148
        %v6291 = vmul.f32 %v6290, %v6148
        %v6292 = vmul.f32 %v6291, %v6290
        %v6293 = vmul.f32 0.5, %v6292
        %v6294 = vsub.f32 1.5, %v6293
        %v6295 = vmul.f32 %v6290, %v6294
        %vm6296 = vweird.f32 %v6148
        %vm6297 = vweird.f32 %v6290
        %vm6298 = vmor %vm6296, %vm6297
        %v6299 = vsel %vm6298, %v6290, %v6295
        %v6300 = vrsqrt.pop %v6149
        %v6301 = vmul.f32 %v6300, %v6149
        %v6302 = vmul.f32 %v6301, %v6300
        %v6303 = vmul.f32 0.5, %v6302
        %v6304 = vsub.f32 1.5, %v6303
        %v6305 = vmul.f32 %v6300, %v6304
        %vm6306 = vweird.f32 %v6149
        %vm6307 = vweird.f32 %v6300
        %vm6308 = vmor %vm6306, %vm6307
        %v6309 = vsel %vm6308, %v6300, %v6305
        %v6310 = vmul.f32 %v6053, %v6159
        %v6311 = vmul.f32 %v6054, %v6169
        %v6312 = vmul.f32 %v6055, %v6179
        %v6313 = vmul.f32 %v6056, %v6189
        %v6314 = vmul.f32 %v6057, %v6199
        %v6315 = vmul.f32 %v6058, %v6209
        %v6316 = vmul.f32 %v6059, %v6219
        %v6317 = vmul.f32 %v6060, %v6229
        %v6318 = vmul.f32 %v6061, %v6239
        %v6319 = vmul.f32 %v6062, %v6249
        %v6320 = vmul.f32 %v6063, %v6259
        %v6321 = vmul.f32 %v6064, %v6269
        %v6322 = vmul.f32 %v6065, %v6279
        %v6323 = vmul.f32 %v6066, %v6289
        %v6324 = vmul.f32 %v6067, %v6299
        %v6325 = vmul.f32 %v6068, %v6309
        %v6327 = vperm.slane %v6133, 0
        %v6329 = vmul.f32 %v6327, %v6310
        %v6330 = vmul.f32 %v6327, %v6311
        %v6331 = vmul.f32 %v6327, %v6312
        %v6332 = vmul.f32 %v6327, %v6313
        %v6333 = vmul.f32 %v6327, %v6314
        %v6334 = vmul.f32 %v6327, %v6315
        %v6335 = vmul.f32 %v6327, %v6316
        %v6336 = vmul.f32 %v6327, %v6317
        %v6337 = vmul.f32 %v6327, %v6318
        %v6338 = vmul.f32 %v6327, %v6319
        %v6339 = vmul.f32 %v6327, %v6320
        %v6340 = vmul.f32 %v6327, %v6321
        %v6341 = vmul.f32 %v6327, %v6322
        %v6342 = vmul.f32 %v6327, %v6323
        %v6343 = vmul.f32 %v6327, %v6324
        %v6344 = vmul.f32 %v6327, %v6325
        %v6345 = vld [vmem:[%s774] sm:$0x1]
        %v6347 = vperm.slane %v6345, 0
        %v6349 = vadd.f32 %v6329, %v6347
        %v6350 = vadd.f32 %v6330, %v6347
        %v6351 = vadd.f32 %v6331, %v6347
        %v6352 = vadd.f32 %v6332, %v6347
        %v6353 = vadd.f32 %v6333, %v6347
        %v6354 = vadd.f32 %v6334, %v6347
        %v6355 = vadd.f32 %v6335, %v6347
        %v6356 = vadd.f32 %v6336, %v6347
        %v6357 = vadd.f32 %v6337, %v6347
        %v6358 = vadd.f32 %v6338, %v6347
        %v6359 = vadd.f32 %v6339, %v6347
        %v6360 = vadd.f32 %v6340, %v6347
        %v6361 = vadd.f32 %v6341, %v6347
        %v6362 = vadd.f32 %v6342, %v6347
        %v6363 = vadd.f32 %v6343, %v6347
        %v6364 = vadd.f32 %v6344, %v6347
        %v6365 = vld [vmem:[%s784] sm:$0xff]
        %v6366 = vld [vmem:[%s784 + $0x8] sm:$0xff]
        %v6367 = vld [vmem:[%s784 + $0x10] sm:$0xff]
        %v6368 = vld [vmem:[%s784 + $0x18] sm:$0xff]
        %v6369 = vld [vmem:[%s784 + $0x20] sm:$0xff]
        %v6370 = vld [vmem:[%s784 + $0x28] sm:$0xff]
        %v6371 = vld [vmem:[%s784 + $0x30] sm:$0xff]
        %v6372 = vld [vmem:[%s784 + $0x38] sm:$0xff]
        %v6373 = vld [vmem:[%s784 + $0x40] sm:$0xff]
        %v6374 = vld [vmem:[%s784 + $0x48] sm:$0xff]
        %v6375 = vld [vmem:[%s784 + $0x50] sm:$0xff]
        %v6376 = vld [vmem:[%s784 + $0x58] sm:$0xff]
        %v6377 = vld [vmem:[%s784 + $0x60] sm:$0xff]
        %v6378 = vld [vmem:[%s784 + $0x68] sm:$0xff]
        %v6379 = vld [vmem:[%s784 + $0x70] sm:$0xff]
        %v6380 = vld [vmem:[%s784 + $0x78] sm:$0xff]
        %v6381 = vld [vmem:[%s784 + $0x80] sm:$0xff]
        %v6382 = vld [vmem:[%s784 + $0x88] sm:$0xff]
        %v6383 = vld [vmem:[%s784 + $0x90] sm:$0xff]
        %v6384 = vld [vmem:[%s784 + $0x98] sm:$0xff]
        %v6385 = vld [vmem:[%s784 + $0xa0] sm:$0xff]
        %v6386 = vld [vmem:[%s784 + $0xa8] sm:$0xff]
        %v6387 = vld [vmem:[%s784 + $0xb0] sm:$0xff]
        %v6388 = vld [vmem:[%s784 + $0xb8] sm:$0xff]
        %v6389 = vld [vmem:[%s784 + $0xc0] sm:$0xff]
        %v6390 = vld [vmem:[%s784 + $0xc8] sm:$0xff]
        %v6391 = vld [vmem:[%s784 + $0xd0] sm:$0xff]
        %v6392 = vld [vmem:[%s784 + $0xd8] sm:$0xff]
        %v6393 = vld [vmem:[%s784 + $0xe0] sm:$0xff]
        %v6394 = vld [vmem:[%s784 + $0xe8] sm:$0xff]
        %v6395 = vld [vmem:[%s784 + $0xf0] sm:$0xff]
        %v6396 = vld [vmem:[%s784 + $0xf8] sm:$0xff]
        %v6397 = vld [vmem:[%s784 + $0x100] sm:$0xff]
        %v6398 = vld [vmem:[%s784 + $0x108] sm:$0xff]
        %v6399 = vld [vmem:[%s784 + $0x110] sm:$0xff]
        %v6400 = vld [vmem:[%s784 + $0x118] sm:$0xff]
        %v6401 = vld [vmem:[%s784 + $0x120] sm:$0xff]
        %v6402 = vld [vmem:[%s784 + $0x128] sm:$0xff]
        %v6403 = vld [vmem:[%s784 + $0x130] sm:$0xff]
        %v6404 = vld [vmem:[%s784 + $0x138] sm:$0xff]
        %v6405 = vld [vmem:[%s784 + $0x140] sm:$0xff]
        %v6406 = vld [vmem:[%s784 + $0x148] sm:$0xff]
        %v6407 = vld [vmem:[%s784 + $0x150] sm:$0xff]
        %v6408 = vld [vmem:[%s784 + $0x158] sm:$0xff]
        %v6409 = vld [vmem:[%s784 + $0x160] sm:$0xff]
        %v6410 = vld [vmem:[%s784 + $0x168] sm:$0xff]
        %v6411 = vld [vmem:[%s784 + $0x170] sm:$0xff]
        %v6412 = vld [vmem:[%s784 + $0x178] sm:$0xff]
        %v6413 = vld [vmem:[%s784 + $0x180] sm:$0xff]
        %v6414 = vld [vmem:[%s784 + $0x188] sm:$0xff]
        %v6415 = vld [vmem:[%s784 + $0x190] sm:$0xff]
        %v6416 = vld [vmem:[%s784 + $0x198] sm:$0xff]
        %v6417 = vld [vmem:[%s784 + $0x1a0] sm:$0xff]
        %v6418 = vld [vmem:[%s784 + $0x1a8] sm:$0xff]
        %v6419 = vld [vmem:[%s784 + $0x1b0] sm:$0xff]
        %v6420 = vld [vmem:[%s784 + $0x1b8] sm:$0xff]
        %v6421 = vld [vmem:[%s784 + $0x1c0] sm:$0xff]
        %v6422 = vld [vmem:[%s784 + $0x1c8] sm:$0xff]
        %v6423 = vld [vmem:[%s784 + $0x1d0] sm:$0xff]
        %v6424 = vld [vmem:[%s784 + $0x1d8] sm:$0xff]
        %v6425 = vld [vmem:[%s784 + $0x1e0] sm:$0xff]
        %v6426 = vld [vmem:[%s784 + $0x1e8] sm:$0xff]
        %v6427 = vld [vmem:[%s784 + $0x1f0] sm:$0xff]
        %v6428 = vld [vmem:[%s784 + $0x1f8] sm:$0xff]
        %v6429 = vld [vmem:[%s897] sm:$0xf]
        %v6431 = vperm.slane %v6429, 0
        %v6432 = vperm.slane %v6429, 1
        %v6433 = vperm.slane %v6429, 2
        %v6434 = vperm.slane %v6429, 3
        %6439 = vmatpush.msra.mxu0 %v6425
        %6440 = vmatpush.msra.mxu0 %v6421
        %6441 = vmatpush.msra.mxu0 %v6417
        %6442 = vmatpush.msra.mxu0 %v6413
        %6443 = vmatpush.msra.mxu0 %v6409
        %6444 = vmatpush.msra.mxu0 %v6405
        %6445 = vmatpush.msra.mxu0 %v6401
        %6446 = vmatpush.msra.mxu0 %v6397
        %6447 = vmatpush.msra.mxu0 %v6393
        %6448 = vmatpush.msra.mxu0 %v6389
        %6449 = vmatpush.msra.mxu0 %v6385
        %6450 = vmatpush.msra.mxu0 %v6381
        %6451 = vmatpush.msra.mxu0 %v6377
        %6452 = vmatpush.msra.mxu0 %v6373
        %6453 = vmatpush.msra.mxu0 %v6369
        %6454 = vmatpush.msra.mxu0 %v6365
        %6455 = vmatmul.f32.gmra.mxu0 %v6349
        %v6456 = vpop.f32.mrf.mxu0
        %v6457 = vadd.f32 %v6431, %v6456
        %6458 = vmatmul.f32.gmra.mxu0 %v6350
        %v6459 = vpop.f32.mrf.mxu0
        %v6460 = vadd.f32 %v6431, %v6459
        %6461 = vmatmul.f32.gmra.mxu0 %v6351
        %v6462 = vpop.f32.mrf.mxu0
        %v6463 = vadd.f32 %v6431, %v6462
        %6464 = vmatmul.f32.gmra.mxu0 %v6352
        %v6465 = vpop.f32.mrf.mxu0
        %v6466 = vadd.f32 %v6431, %v6465
        %6467 = vmatmul.f32.gmra.mxu0 %v6353
        %v6468 = vpop.f32.mrf.mxu0
        %v6469 = vadd.f32 %v6431, %v6468
        %6470 = vmatmul.f32.gmra.mxu0 %v6354
        %v6471 = vpop.f32.mrf.mxu0
        %v6472 = vadd.f32 %v6431, %v6471
        %6473 = vmatmul.f32.gmra.mxu0 %v6355
        %v6474 = vpop.f32.mrf.mxu0
        %v6475 = vadd.f32 %v6431, %v6474
        %6476 = vmatmul.f32.gmra.mxu0 %v6356
        %v6477 = vpop.f32.mrf.mxu0
        %v6478 = vadd.f32 %v6431, %v6477
        %6479 = vmatmul.f32.gmra.mxu0 %v6357
        %v6480 = vpop.f32.mrf.mxu0
        %v6481 = vadd.f32 %v6431, %v6480
        %6482 = vmatmul.f32.gmra.mxu0 %v6358
        %v6483 = vpop.f32.mrf.mxu0
        %v6484 = vadd.f32 %v6431, %v6483
        %6485 = vmatmul.f32.gmra.mxu0 %v6359
        %v6486 = vpop.f32.mrf.mxu0
        %v6487 = vadd.f32 %v6431, %v6486
        %6488 = vmatmul.f32.gmra.mxu0 %v6360
        %v6489 = vpop.f32.mrf.mxu0
        %v6490 = vadd.f32 %v6431, %v6489
        %6491 = vmatmul.f32.gmra.mxu0 %v6361
        %v6492 = vpop.f32.mrf.mxu0
        %v6493 = vadd.f32 %v6431, %v6492
        %6494 = vmatmul.f32.gmra.mxu0 %v6362
        %v6495 = vpop.f32.mrf.mxu0
        %v6496 = vadd.f32 %v6431, %v6495
        %6497 = vmatmul.f32.gmra.mxu0 %v6363
        %v6498 = vpop.f32.mrf.mxu0
        %v6499 = vadd.f32 %v6431, %v6498
        %6500 = vmatmul.f32.gmra.mxu0 %v6364
        %v6501 = vpop.f32.mrf.mxu0
        %v6502 = vadd.f32 %v6431, %v6501
        %6503 = vdwg.mxu0
        %6504 = vmatpush.msra.mxu0 %v6426
        %6505 = vmatpush.msra.mxu0 %v6422
        %6506 = vmatpush.msra.mxu0 %v6418
        %6507 = vmatpush.msra.mxu0 %v6414
        %6508 = vmatpush.msra.mxu0 %v6410
        %6509 = vmatpush.msra.mxu0 %v6406
        %6510 = vmatpush.msra.mxu0 %v6402
        %6511 = vmatpush.msra.mxu0 %v6398
        %6512 = vmatpush.msra.mxu0 %v6394
        %6513 = vmatpush.msra.mxu0 %v6390
        %6514 = vmatpush.msra.mxu0 %v6386
        %6515 = vmatpush.msra.mxu0 %v6382
        %6516 = vmatpush.msra.mxu0 %v6378
        %6517 = vmatpush.msra.mxu0 %v6374
        %6518 = vmatpush.msra.mxu0 %v6370
        %6519 = vmatpush.msra.mxu0 %v6366
        %6520 = vmatmul.f32.gmra.mxu0 %v6349
        %v6521 = vpop.f32.mrf.mxu0
        %v6522 = vadd.f32 %v6432, %v6521
        %6523 = vmatmul.f32.gmra.mxu0 %v6350
        %v6524 = vpop.f32.mrf.mxu0
        %v6525 = vadd.f32 %v6432, %v6524
        %6526 = vmatmul.f32.gmra.mxu0 %v6351
        %v6527 = vpop.f32.mrf.mxu0
        %v6528 = vadd.f32 %v6432, %v6527
        %6529 = vmatmul.f32.gmra.mxu0 %v6352
        %v6530 = vpop.f32.mrf.mxu0
        %v6531 = vadd.f32 %v6432, %v6530
        %6532 = vmatmul.f32.gmra.mxu0 %v6353
        %v6533 = vpop.f32.mrf.mxu0
        %v6534 = vadd.f32 %v6432, %v6533
        %6535 = vmatmul.f32.gmra.mxu0 %v6354
        %v6536 = vpop.f32.mrf.mxu0
        %v6537 = vadd.f32 %v6432, %v6536
        %6538 = vmatmul.f32.gmra.mxu0 %v6355
        %v6539 = vpop.f32.mrf.mxu0
        %v6540 = vadd.f32 %v6432, %v6539
        %6541 = vmatmul.f32.gmra.mxu0 %v6356
        %v6542 = vpop.f32.mrf.mxu0
        %v6543 = vadd.f32 %v6432, %v6542
        %6544 = vmatmul.f32.gmra.mxu0 %v6357
        %v6545 = vpop.f32.mrf.mxu0
        %v6546 = vadd.f32 %v6432, %v6545
        %6547 = vmatmul.f32.gmra.mxu0 %v6358
        %v6548 = vpop.f32.mrf.mxu0
        %v6549 = vadd.f32 %v6432, %v6548
        %6550 = vmatmul.f32.gmra.mxu0 %v6359
        %v6551 = vpop.f32.mrf.mxu0
        %v6552 = vadd.f32 %v6432, %v6551
        %6553 = vmatmul.f32.gmra.mxu0 %v6360
        %v6554 = vpop.f32.mrf.mxu0
        %v6555 = vadd.f32 %v6432, %v6554
        %6556 = vmatmul.f32.gmra.mxu0 %v6361
        %v6557 = vpop.f32.mrf.mxu0
        %v6558 = vadd.f32 %v6432, %v6557
        %6559 = vmatmul.f32.gmra.mxu0 %v6362
        %v6560 = vpop.f32.mrf.mxu0
        %v6561 = vadd.f32 %v6432, %v6560
        %6562 = vmatmul.f32.gmra.mxu0 %v6363
        %v6563 = vpop.f32.mrf.mxu0
        %v6564 = vadd.f32 %v6432, %v6563
        %6565 = vmatmul.f32.gmra.mxu0 %v6364
        %v6566 = vpop.f32.mrf.mxu0
        %v6567 = vadd.f32 %v6432, %v6566
        %6568 = vdwg.mxu0
        %6569 = vmatpush.msra.mxu0 %v6427
        %6570 = vmatpush.msra.mxu0 %v6423
        %6571 = vmatpush.msra.mxu0 %v6419
        %6572 = vmatpush.msra.mxu0 %v6415
        %6573 = vmatpush.msra.mxu0 %v6411
        %6574 = vmatpush.msra.mxu0 %v6407
        %6575 = vmatpush.msra.mxu0 %v6403
        %6576 = vmatpush.msra.mxu0 %v6399
        %6577 = vmatpush.msra.mxu0 %v6395
        %6578 = vmatpush.msra.mxu0 %v6391
        %6579 = vmatpush.msra.mxu0 %v6387
        %6580 = vmatpush.msra.mxu0 %v6383
        %6581 = vmatpush.msra.mxu0 %v6379
        %6582 = vmatpush.msra.mxu0 %v6375
        %6583 = vmatpush.msra.mxu0 %v6371
        %6584 = vmatpush.msra.mxu0 %v6367
        %6585 = vmatmul.f32.gmra.mxu0 %v6349
        %v6586 = vpop.f32.mrf.mxu0
        %v6587 = vadd.f32 %v6433, %v6586
        %6588 = vmatmul.f32.gmra.mxu0 %v6350
        %v6589 = vpop.f32.mrf.mxu0
        %v6590 = vadd.f32 %v6433, %v6589
        %6591 = vmatmul.f32.gmra.mxu0 %v6351
        %v6592 = vpop.f32.mrf.mxu0
        %v6593 = vadd.f32 %v6433, %v6592
        %6594 = vmatmul.f32.gmra.mxu0 %v6352
        %v6595 = vpop.f32.mrf.mxu0
        %v6596 = vadd.f32 %v6433, %v6595
        %6597 = vmatmul.f32.gmra.mxu0 %v6353
        %v6598 = vpop.f32.mrf.mxu0
        %v6599 = vadd.f32 %v6433, %v6598
        %6600 = vmatmul.f32.gmra.mxu0 %v6354
        %v6601 = vpop.f32.mrf.mxu0
        %v6602 = vadd.f32 %v6433, %v6601
        %6603 = vmatmul.f32.gmra.mxu0 %v6355
        %v6604 = vpop.f32.mrf.mxu0
        %v6605 = vadd.f32 %v6433, %v6604
        %6606 = vmatmul.f32.gmra.mxu0 %v6356
        %v6607 = vpop.f32.mrf.mxu0
        %v6608 = vadd.f32 %v6433, %v6607
        %6609 = vmatmul.f32.gmra.mxu0 %v6357
        %v6610 = vpop.f32.mrf.mxu0
        %v6611 = vadd.f32 %v6433, %v6610
        %6612 = vmatmul.f32.gmra.mxu0 %v6358
        %v6613 = vpop.f32.mrf.mxu0
        %v6614 = vadd.f32 %v6433, %v6613
        %6615 = vmatmul.f32.gmra.mxu0 %v6359
        %v6616 = vpop.f32.mrf.mxu0
        %v6617 = vadd.f32 %v6433, %v6616
        %6618 = vmatmul.f32.gmra.mxu0 %v6360
        %v6619 = vpop.f32.mrf.mxu0
        %v6620 = vadd.f32 %v6433, %v6619
        %6621 = vmatmul.f32.gmra.mxu0 %v6361
        %v6622 = vpop.f32.mrf.mxu0
        %v6623 = vadd.f32 %v6433, %v6622
        %6624 = vmatmul.f32.gmra.mxu0 %v6362
        %v6625 = vpop.f32.mrf.mxu0
        %v6626 = vadd.f32 %v6433, %v6625
        %6627 = vmatmul.f32.gmra.mxu0 %v6363
        %v6628 = vpop.f32.mrf.mxu0
        %v6629 = vadd.f32 %v6433, %v6628
        %6630 = vmatmul.f32.gmra.mxu0 %v6364
        %v6631 = vpop.f32.mrf.mxu0
        %v6632 = vadd.f32 %v6433, %v6631
        %6633 = vdwg.mxu0
        %6634 = vmatpush.msra.mxu0 %v6428
        %6635 = vmatpush.msra.mxu0 %v6424
        %6636 = vmatpush.msra.mxu0 %v6420
        %6637 = vmatpush.msra.mxu0 %v6416
        %6638 = vmatpush.msra.mxu0 %v6412
        %6639 = vmatpush.msra.mxu0 %v6408
        %6640 = vmatpush.msra.mxu0 %v6404
        %6641 = vmatpush.msra.mxu0 %v6400
        %6642 = vmatpush.msra.mxu0 %v6396
        %6643 = vmatpush.msra.mxu0 %v6392
        %6644 = vmatpush.msra.mxu0 %v6388
        %6645 = vmatpush.msra.mxu0 %v6384
        %6646 = vmatpush.msra.mxu0 %v6380
        %6647 = vmatpush.msra.mxu0 %v6376
        %6648 = vmatpush.msra.mxu0 %v6372
        %6649 = vmatpush.msra.mxu0 %v6368
        %6650 = vmatmul.f32.gmra.mxu0 %v6349
        %v6651 = vpop.f32.mrf.mxu0
        %v6652 = vadd.f32 %v6434, %v6651
        %6653 = vmatmul.f32.gmra.mxu0 %v6350
        %v6654 = vpop.f32.mrf.mxu0
        %v6655 = vadd.f32 %v6434, %v6654
        %6656 = vmatmul.f32.gmra.mxu0 %v6351
        %v6657 = vpop.f32.mrf.mxu0
        %v6658 = vadd.f32 %v6434, %v6657
        %6659 = vmatmul.f32.gmra.mxu0 %v6352
        %v6660 = vpop.f32.mrf.mxu0
        %v6661 = vadd.f32 %v6434, %v6660
        %6662 = vmatmul.f32.gmra.mxu0 %v6353
        %v6663 = vpop.f32.mrf.mxu0
        %v6664 = vadd.f32 %v6434, %v6663
        %6665 = vmatmul.f32.gmra.mxu0 %v6354
        %v6666 = vpop.f32.mrf.mxu0
        %v6667 = vadd.f32 %v6434, %v6666
        %6668 = vmatmul.f32.gmra.mxu0 %v6355
        %v6669 = vpop.f32.mrf.mxu0
        %v6670 = vadd.f32 %v6434, %v6669
        %6671 = vmatmul.f32.gmra.mxu0 %v6356
        %v6672 = vpop.f32.mrf.mxu0
        %v6673 = vadd.f32 %v6434, %v6672
        %6674 = vmatmul.f32.gmra.mxu0 %v6357
        %v6675 = vpop.f32.mrf.mxu0
        %v6676 = vadd.f32 %v6434, %v6675
        %6677 = vmatmul.f32.gmra.mxu0 %v6358
        %v6678 = vpop.f32.mrf.mxu0
        %v6679 = vadd.f32 %v6434, %v6678
        %6680 = vmatmul.f32.gmra.mxu0 %v6359
        %v6681 = vpop.f32.mrf.mxu0
        %v6682 = vadd.f32 %v6434, %v6681
        %6683 = vmatmul.f32.gmra.mxu0 %v6360
        %v6684 = vpop.f32.mrf.mxu0
        %v6685 = vadd.f32 %v6434, %v6684
        %6686 = vmatmul.f32.gmra.mxu0 %v6361
        %v6687 = vpop.f32.mrf.mxu0
        %v6688 = vadd.f32 %v6434, %v6687
        %6689 = vmatmul.f32.gmra.mxu0 %v6362
        %v6690 = vpop.f32.mrf.mxu0
        %v6691 = vadd.f32 %v6434, %v6690
        %6692 = vmatmul.f32.gmra.mxu0 %v6363
        %v6693 = vpop.f32.mrf.mxu0
        %v6694 = vadd.f32 %v6434, %v6693
        %6695 = vmatmul.f32.gmra.mxu0 %v6364
        %v6696 = vpop.f32.mrf.mxu0
        %v6697 = vadd.f32 %v6434, %v6696
        %6698 = vdwg.mxu0
        %v6699 = vmul.f32 %v6457, 1.702
        %v6700 = vmul.f32 %v6522, 1.702
        %v6701 = vmul.f32 %v6587, 1.702
        %v6702 = vmul.f32 %v6652, 1.702
        %v6703 = vmul.f32 %v6460, 1.702
        %v6704 = vmul.f32 %v6525, 1.702
        %v6705 = vmul.f32 %v6590, 1.702
        %v6706 = vmul.f32 %v6655, 1.702
        %v6707 = vmul.f32 %v6463, 1.702
        %v6708 = vmul.f32 %v6528, 1.702
        %v6709 = vmul.f32 %v6593, 1.702
        %v6710 = vmul.f32 %v6658, 1.702
        %v6711 = vmul.f32 %v6466, 1.702
        %v6712 = vmul.f32 %v6531, 1.702
        %v6713 = vmul.f32 %v6596, 1.702
        %v6714 = vmul.f32 %v6661, 1.702
        %v6715 = vmul.f32 %v6469, 1.702
        %v6716 = vmul.f32 %v6534, 1.702
        %v6717 = vmul.f32 %v6599, 1.702
        %v6718 = vmul.f32 %v6664, 1.702
        %v6719 = vmul.f32 %v6472, 1.702
        %v6720 = vmul.f32 %v6537, 1.702
        %v6721 = vmul.f32 %v6602, 1.702
        %v6722 = vmul.f32 %v6667, 1.702
        %v6723 = vmul.f32 %v6475, 1.702
        %v6724 = vmul.f32 %v6540, 1.702
        %v6725 = vmul.f32 %v6605, 1.702
        %v6726 = vmul.f32 %v6670, 1.702
        %v6727 = vmul.f32 %v6478, 1.702
        %v6728 = vmul.f32 %v6543, 1.702
        %v6729 = vmul.f32 %v6608, 1.702
        %v6730 = vmul.f32 %v6673, 1.702
        %v6731 = vmul.f32 %v6481, 1.702
        %v6732 = vmul.f32 %v6546, 1.702
        %v6733 = vmul.f32 %v6611, 1.702
        %v6734 = vmul.f32 %v6676, 1.702
        %v6735 = vmul.f32 %v6484, 1.702
        %v6736 = vmul.f32 %v6549, 1.702
        %v6737 = vmul.f32 %v6614, 1.702
        %v6738 = vmul.f32 %v6679, 1.702
        %v6739 = vmul.f32 %v6487, 1.702
        %v6740 = vmul.f32 %v6552, 1.702
        %v6741 = vmul.f32 %v6617, 1.702
        %v6742 = vmul.f32 %v6682, 1.702
        %v6743 = vmul.f32 %v6490, 1.702
        %v6744 = vmul.f32 %v6555, 1.702
        %v6745 = vmul.f32 %v6620, 1.702
        %v6746 = vmul.f32 %v6685, 1.702
        %v6747 = vmul.f32 %v6493, 1.702
        %v6748 = vmul.f32 %v6558, 1.702
        %v6749 = vmul.f32 %v6623, 1.702
        %v6750 = vmul.f32 %v6688, 1.702
        %v6751 = vmul.f32 %v6496, 1.702
        %v6752 = vmul.f32 %v6561, 1.702
        %v6753 = vmul.f32 %v6626, 1.702
        %v6754 = vmul.f32 %v6691, 1.702
        %v6755 = vmul.f32 %v6499, 1.702
        %v6756 = vmul.f32 %v6564, 1.702
        %v6757 = vmul.f32 %v6629, 1.702
        %v6758 = vmul.f32 %v6694, 1.702
        %v6759 = vmul.f32 %v6502, 1.702
        %v6760 = vmul.f32 %v6567, 1.702
        %v6761 = vmul.f32 %v6632, 1.702
        %v6762 = vmul.f32 %v6697, 1.702
        %v6763 = vxor.u32 %v6699, 2147483648
        %v6764 = vxor.u32 %v6700, 2147483648
        %v6765 = vxor.u32 %v6701, 2147483648
        %v6766 = vxor.u32 %v6702, 2147483648
        %v6767 = vxor.u32 %v6703, 2147483648
        %v6768 = vxor.u32 %v6704, 2147483648
        %v6769 = vxor.u32 %v6705, 2147483648
        %v6770 = vxor.u32 %v6706, 2147483648
        %v6771 = vxor.u32 %v6707, 2147483648
        %v6772 = vxor.u32 %v6708, 2147483648
        %v6773 = vxor.u32 %v6709, 2147483648
        %v6774 = vxor.u32 %v6710, 2147483648
        %v6775 = vxor.u32 %v6711, 2147483648
        %v6776 = vxor.u32 %v6712, 2147483648
        %v6777 = vxor.u32 %v6713, 2147483648
        %v6778 = vxor.u32 %v6714, 2147483648
        %v6779 = vxor.u32 %v6715, 2147483648
        %v6780 = vxor.u32 %v6716, 2147483648
        %v6781 = vxor.u32 %v6717, 2147483648
        %v6782 = vxor.u32 %v6718, 2147483648
        %v6783 = vxor.u32 %v6719, 2147483648
        %v6784 = vxor.u32 %v6720, 2147483648
        %v6785 = vxor.u32 %v6721, 2147483648
        %v6786 = vxor.u32 %v6722, 2147483648
        %v6787 = vxor.u32 %v6723, 2147483648
        %v6788 = vxor.u32 %v6724, 2147483648
        %v6789 = vxor.u32 %v6725, 2147483648
        %v6790 = vxor.u32 %v6726, 2147483648
        %v6791 = vxor.u32 %v6727, 2147483648
        %v6792 = vxor.u32 %v6728, 2147483648
        %v6793 = vxor.u32 %v6729, 2147483648
        %v6794 = vxor.u32 %v6730, 2147483648
        %v6795 = vxor.u32 %v6731, 2147483648
        %v6796 = vxor.u32 %v6732, 2147483648
        %v6797 = vxor.u32 %v6733, 2147483648
        %v6798 = vxor.u32 %v6734, 2147483648
        %v6799 = vxor.u32 %v6735, 2147483648
        %v6800 = vxor.u32 %v6736, 2147483648
        %v6801 = vxor.u32 %v6737, 2147483648
        %v6802 = vxor.u32 %v6738, 2147483648
        %v6803 = vxor.u32 %v6739, 2147483648
        %v6804 = vxor.u32 %v6740, 2147483648
        %v6805 = vxor.u32 %v6741, 2147483648
        %v6806 = vxor.u32 %v6742, 2147483648
        %v6807 = vxor.u32 %v6743, 2147483648
        %v6808 = vxor.u32 %v6744, 2147483648
        %v6809 = vxor.u32 %v6745, 2147483648
        %v6810 = vxor.u32 %v6746, 2147483648
        %v6811 = vxor.u32 %v6747, 2147483648
        %v6812 = vxor.u32 %v6748, 2147483648
        %v6813 = vxor.u32 %v6749, 2147483648
        %v6814 = vxor.u32 %v6750, 2147483648
        %v6815 = vxor.u32 %v6751, 2147483648
        %v6816 = vxor.u32 %v6752, 2147483648
        %v6817 = vxor.u32 %v6753, 2147483648
        %v6818 = vxor.u32 %v6754, 2147483648
        %v6819 = vxor.u32 %v6755, 2147483648
        %v6820 = vxor.u32 %v6756, 2147483648
        %v6821 = vxor.u32 %v6757, 2147483648
        %v6822 = vxor.u32 %v6758, 2147483648
        %v6823 = vxor.u32 %v6759, 2147483648
        %v6824 = vxor.u32 %v6760, 2147483648
        %v6825 = vxor.u32 %v6761, 2147483648
        %v6826 = vxor.u32 %v6762, 2147483648
        %v6827 = vmul.f32 %v6763, 1.442695
        %v6828 = vpow.pop %v6827
        %v6829 = vmul.f32 %v6764, 1.442695
        %v6830 = vpow.pop %v6829
        %v6831 = vmul.f32 %v6765, 1.442695
        %v6832 = vpow.pop %v6831
        %v6833 = vmul.f32 %v6766, 1.442695
        %v6834 = vpow.pop %v6833
        %v6835 = vmul.f32 %v6767, 1.442695
        %v6836 = vpow.pop %v6835
        %v6837 = vmul.f32 %v6768, 1.442695
        %v6838 = vpow.pop %v6837
        %v6839 = vmul.f32 %v6769, 1.442695
        %v6840 = vpow.pop %v6839
        %v6841 = vmul.f32 %v6770, 1.442695
        %v6842 = vpow.pop %v6841
        %v6843 = vmul.f32 %v6771, 1.442695
        %v6844 = vpow.pop %v6843
        %v6845 = vmul.f32 %v6772, 1.442695
        %v6846 = vpow.pop %v6845
        %v6847 = vmul.f32 %v6773, 1.442695
        %v6848 = vpow.pop %v6847
        %v6849 = vmul.f32 %v6774, 1.442695
        %v6850 = vpow.pop %v6849
        %v6851 = vmul.f32 %v6775, 1.442695
        %v6852 = vpow.pop %v6851
        %v6853 = vmul.f32 %v6776, 1.442695
        %v6854 = vpow.pop %v6853
        %v6855 = vmul.f32 %v6777, 1.442695
        %v6856 = vpow.pop %v6855
        %v6857 = vmul.f32 %v6778, 1.442695
        %v6858 = vpow.pop %v6857
        %v6859 = vmul.f32 %v6779, 1.442695
        %v6860 = vpow.pop %v6859
        %v6861 = vmul.f32 %v6780, 1.442695
        %v6862 = vpow.pop %v6861
        %v6863 = vmul.f32 %v6781, 1.442695
        %v6864 = vpow.pop %v6863
        %v6865 = vmul.f32 %v6782, 1.442695
        %v6866 = vpow.pop %v6865
        %v6867 = vmul.f32 %v6783, 1.442695
        %v6868 = vpow.pop %v6867
        %v6869 = vmul.f32 %v6784, 1.442695
        %v6870 = vpow.pop %v6869
        %v6871 = vmul.f32 %v6785, 1.442695
        %v6872 = vpow.pop %v6871
        %v6873 = vmul.f32 %v6786, 1.442695
        %v6874 = vpow.pop %v6873
        %v6875 = vmul.f32 %v6787, 1.442695
        %v6876 = vpow.pop %v6875
        %v6877 = vmul.f32 %v6788, 1.442695
        %v6878 = vpow.pop %v6877
        %v6879 = vmul.f32 %v6789, 1.442695
        %v6880 = vpow.pop %v6879
        %v6881 = vmul.f32 %v6790, 1.442695
        %v6882 = vpow.pop %v6881
        %v6883 = vmul.f32 %v6791, 1.442695
        %v6884 = vpow.pop %v6883
        %v6885 = vmul.f32 %v6792, 1.442695
        %v6886 = vpow.pop %v6885
        %v6887 = vmul.f32 %v6793, 1.442695
        %v6888 = vpow.pop %v6887
        %v6889 = vmul.f32 %v6794, 1.442695
        %v6890 = vpow.pop %v6889
        %v6891 = vmul.f32 %v6795, 1.442695
        %v6892 = vpow.pop %v6891
        %v6893 = vmul.f32 %v6796, 1.442695
        %v6894 = vpow.pop %v6893
        %v6895 = vmul.f32 %v6797, 1.442695
        %v6896 = vpow.pop %v6895
        %v6897 = vmul.f32 %v6798, 1.442695
        %v6898 = vpow.pop %v6897
        %v6899 = vmul.f32 %v6799, 1.442695
        %v6900 = vpow.pop %v6899
        %v6901 = vmul.f32 %v6800, 1.442695
        %v6902 = vpow.pop %v6901
        %v6903 = vmul.f32 %v6801, 1.442695
        %v6904 = vpow.pop %v6903
        %v6905 = vmul.f32 %v6802, 1.442695
        %v6906 = vpow.pop %v6905
        %v6907 = vmul.f32 %v6803, 1.442695
        %v6908 = vpow.pop %v6907
        %v6909 = vmul.f32 %v6804, 1.442695
        %v6910 = vpow.pop %v6909
        %v6911 = vmul.f32 %v6805, 1.442695
        %v6912 = vpow.pop %v6911
        %v6913 = vmul.f32 %v6806, 1.442695
        %v6914 = vpow.pop %v6913
        %v6915 = vmul.f32 %v6807, 1.442695
        %v6916 = vpow.pop %v6915
        %v6917 = vmul.f32 %v6808, 1.442695
        %v6918 = vpow.pop %v6917
        %v6919 = vmul.f32 %v6809, 1.442695
        %v6920 = vpow.pop %v6919
        %v6921 = vmul.f32 %v6810, 1.442695
        %v6922 = vpow.pop %v6921
        %v6923 = vmul.f32 %v6811, 1.442695
        %v6924 = vpow.pop %v6923
        %v6925 = vmul.f32 %v6812, 1.442695
        %v6926 = vpow.pop %v6925
        %v6927 = vmul.f32 %v6813, 1.442695
        %v6928 = vpow.pop %v6927
        %v6929 = vmul.f32 %v6814, 1.442695
        %v6930 = vpow.pop %v6929
        %v6931 = vmul.f32 %v6815, 1.442695
        %v6932 = vpow.pop %v6931
        %v6933 = vmul.f32 %v6816, 1.442695
        %v6934 = vpow.pop %v6933
        %v6935 = vmul.f32 %v6817, 1.442695
        %v6936 = vpow.pop %v6935
        %v6937 = vmul.f32 %v6818, 1.442695
        %v6938 = vpow.pop %v6937
        %v6939 = vmul.f32 %v6819, 1.442695
        %v6940 = vpow.pop %v6939
        %v6941 = vmul.f32 %v6820, 1.442695
        %v6942 = vpow.pop %v6941
        %v6943 = vmul.f32 %v6821, 1.442695
        %v6944 = vpow.pop %v6943
        %v6945 = vmul.f32 %v6822, 1.442695
        %v6946 = vpow.pop %v6945
        %v6947 = vmul.f32 %v6823, 1.442695
        %v6948 = vpow.pop %v6947
        %v6949 = vmul.f32 %v6824, 1.442695
        %v6950 = vpow.pop %v6949
        %v6951 = vmul.f32 %v6825, 1.442695
        %v6952 = vpow.pop %v6951
        %v6953 = vmul.f32 %v6826, 1.442695
        %v6954 = vpow.pop %v6953
        %v6955 = vadd.f32 %v6828, 1.0
        %v6956 = vadd.f32 %v6830, 1.0
        %v6957 = vadd.f32 %v6832, 1.0
        %v6958 = vadd.f32 %v6834, 1.0
        %v6959 = vadd.f32 %v6836, 1.0
        %v6960 = vadd.f32 %v6838, 1.0
        %v6961 = vadd.f32 %v6840, 1.0
        %v6962 = vadd.f32 %v6842, 1.0
        %v6963 = vadd.f32 %v6844, 1.0
        %v6964 = vadd.f32 %v6846, 1.0
        %v6965 = vadd.f32 %v6848, 1.0
        %v6966 = vadd.f32 %v6850, 1.0
        %v6967 = vadd.f32 %v6852, 1.0
        %v6968 = vadd.f32 %v6854, 1.0
        %v6969 = vadd.f32 %v6856, 1.0
        %v6970 = vadd.f32 %v6858, 1.0
        %v6971 = vadd.f32 %v6860, 1.0
        %v6972 = vadd.f32 %v6862, 1.0
        %v6973 = vadd.f32 %v6864, 1.0
        %v6974 = vadd.f32 %v6866, 1.0
        %v6975 = vadd.f32 %v6868, 1.0
        %v6976 = vadd.f32 %v6870, 1.0
        %v6977 = vadd.f32 %v6872, 1.0
        %v6978 = vadd.f32 %v6874, 1.0
        %v6979 = vadd.f32 %v6876, 1.0
        %v6980 = vadd.f32 %v6878, 1.0
        %v6981 = vadd.f32 %v6880, 1.0
        %v6982 = vadd.f32 %v6882, 1.0
        %v6983 = vadd.f32 %v6884, 1.0
        %v6984 = vadd.f32 %v6886, 1.0
        %v6985 = vadd.f32 %v6888, 1.0
        %v6986 = vadd.f32 %v6890, 1.0
        %v6987 = vadd.f32 %v6892, 1.0
        %v6988 = vadd.f32 %v6894, 1.0
        %v6989 = vadd.f32 %v6896, 1.0
        %v6990 = vadd.f32 %v6898, 1.0
        %v6991 = vadd.f32 %v6900, 1.0
        %v6992 = vadd.f32 %v6902, 1.0
        %v6993 = vadd.f32 %v6904, 1.0
        %v6994 = vadd.f32 %v6906, 1.0
        %v6995 = vadd.f32 %v6908, 1.0
        %v6996 = vadd.f32 %v6910, 1.0
        %v6997 = vadd.f32 %v6912, 1.0
        %v6998 = vadd.f32 %v6914, 1.0
        %v6999 = vadd.f32 %v6916, 1.0
        %v7000 = vadd.f32 %v6918, 1.0
        %v7001 = vadd.f32 %v6920, 1.0
        %v7002 = vadd.f32 %v6922, 1.0
        %v7003 = vadd.f32 %v6924, 1.0
        %v7004 = vadd.f32 %v6926, 1.0
        %v7005 = vadd.f32 %v6928, 1.0
        %v7006 = vadd.f32 %v6930, 1.0
        %v7007 = vadd.f32 %v6932, 1.0
        %v7008 = vadd.f32 %v6934, 1.0
        %v7009 = vadd.f32 %v6936, 1.0
        %v7010 = vadd.f32 %v6938, 1.0
        %v7011 = vadd.f32 %v6940, 1.0
        %v7012 = vadd.f32 %v6942, 1.0
        %v7013 = vadd.f32 %v6944, 1.0
        %v7014 = vadd.f32 %v6946, 1.0
        %v7015 = vadd.f32 %v6948, 1.0
        %v7016 = vadd.f32 %v6950, 1.0
        %v7017 = vadd.f32 %v6952, 1.0
        %v7018 = vadd.f32 %v6954, 1.0
        %v7019 = vrcp.pop %v6955
        %v7020 = vmul.f32 %v6955, %v7019
        %v7021 = vsub.f32 1.0, %v7020
        %v7022 = vmul.f32 %v7019, %v7021
        %v7023 = vadd.f32 %v7019, %v7022
        %vm7024 = vweird.f32 %v6955
        %vm7025 = vweird.f32 %v7019
        %vm7026 = vmor %vm7024, %vm7025
        %v7027 = vsel %vm7026, %v7019, %v7023
        %v7028 = vand.u32 2147483647, %v6955
        %vm7029 = vcmp.eq.f32.partialorder %v7028, 8.507059e+37
        %v7030 = vand.u32 %v6955, 2147483648
        %v7031 = vor.u32 1.1754944e-38, %v7030
        %v7032 = vsel %vm7029, %v7031, %v7027
        %v7033 = vmul.f32 1.0, %v7032
        %v7034 = vrcp.pop %v6956
        %v7035 = vmul.f32 %v6956, %v7034
        %v7036 = vsub.f32 1.0, %v7035
        %v7037 = vmul.f32 %v7034, %v7036
        %v7038 = vadd.f32 %v7034, %v7037
        %vm7039 = vweird.f32 %v6956
        %vm7040 = vweird.f32 %v7034
        %vm7041 = vmor %vm7039, %vm7040
        %v7042 = vsel %vm7041, %v7034, %v7038
        %v7043 = vand.u32 2147483647, %v6956
        %vm7044 = vcmp.eq.f32.partialorder %v7043, 8.507059e+37
        %v7045 = vand.u32 %v6956, 2147483648
        %v7046 = vor.u32 1.1754944e-38, %v7045
        %v7047 = vsel %vm7044, %v7046, %v7042
        %v7048 = vmul.f32 1.0, %v7047
        %v7049 = vrcp.pop %v6957
        %v7050 = vmul.f32 %v6957, %v7049
        %v7051 = vsub.f32 1.0, %v7050
        %v7052 = vmul.f32 %v7049, %v7051
        %v7053 = vadd.f32 %v7049, %v7052
        %vm7054 = vweird.f32 %v6957
        %vm7055 = vweird.f32 %v7049
        %vm7056 = vmor %vm7054, %vm7055
        %v7057 = vsel %vm7056, %v7049, %v7053
        %v7058 = vand.u32 2147483647, %v6957
        %vm7059 = vcmp.eq.f32.partialorder %v7058, 8.507059e+37
        %v7060 = vand.u32 %v6957, 2147483648
        %v7061 = vor.u32 1.1754944e-38, %v7060
        %v7062 = vsel %vm7059, %v7061, %v7057
        %v7063 = vmul.f32 1.0, %v7062
        %v7064 = vrcp.pop %v6958
        %v7065 = vmul.f32 %v6958, %v7064
        %v7066 = vsub.f32 1.0, %v7065
        %v7067 = vmul.f32 %v7064, %v7066
        %v7068 = vadd.f32 %v7064, %v7067
        %vm7069 = vweird.f32 %v6958
        %vm7070 = vweird.f32 %v7064
        %vm7071 = vmor %vm7069, %vm7070
        %v7072 = vsel %vm7071, %v7064, %v7068
        %v7073 = vand.u32 2147483647, %v6958
        %vm7074 = vcmp.eq.f32.partialorder %v7073, 8.507059e+37
        %v7075 = vand.u32 %v6958, 2147483648
        %v7076 = vor.u32 1.1754944e-38, %v7075
        %v7077 = vsel %vm7074, %v7076, %v7072
        %v7078 = vmul.f32 1.0, %v7077
        %v7079 = vrcp.pop %v6959
        %v7080 = vmul.f32 %v6959, %v7079
        %v7081 = vsub.f32 1.0, %v7080
        %v7082 = vmul.f32 %v7079, %v7081
        %v7083 = vadd.f32 %v7079, %v7082
        %vm7084 = vweird.f32 %v6959
        %vm7085 = vweird.f32 %v7079
        %vm7086 = vmor %vm7084, %vm7085
        %v7087 = vsel %vm7086, %v7079, %v7083
        %v7088 = vand.u32 2147483647, %v6959
        %vm7089 = vcmp.eq.f32.partialorder %v7088, 8.507059e+37
        %v7090 = vand.u32 %v6959, 2147483648
        %v7091 = vor.u32 1.1754944e-38, %v7090
        %v7092 = vsel %vm7089, %v7091, %v7087
        %v7093 = vmul.f32 1.0, %v7092
        %v7094 = vrcp.pop %v6960
        %v7095 = vmul.f32 %v6960, %v7094
        %v7096 = vsub.f32 1.0, %v7095
        %v7097 = vmul.f32 %v7094, %v7096
        %v7098 = vadd.f32 %v7094, %v7097
        %vm7099 = vweird.f32 %v6960
        %vm7100 = vweird.f32 %v7094
        %vm7101 = vmor %vm7099, %vm7100
        %v7102 = vsel %vm7101, %v7094, %v7098
        %v7103 = vand.u32 2147483647, %v6960
        %vm7104 = vcmp.eq.f32.partialorder %v7103, 8.507059e+37
        %v7105 = vand.u32 %v6960, 2147483648
        %v7106 = vor.u32 1.1754944e-38, %v7105
        %v7107 = vsel %vm7104, %v7106, %v7102
        %v7108 = vmul.f32 1.0, %v7107
        %v7109 = vrcp.pop %v6961
        %v7110 = vmul.f32 %v6961, %v7109
        %v7111 = vsub.f32 1.0, %v7110
        %v7112 = vmul.f32 %v7109, %v7111
        %v7113 = vadd.f32 %v7109, %v7112
        %vm7114 = vweird.f32 %v6961
        %vm7115 = vweird.f32 %v7109
        %vm7116 = vmor %vm7114, %vm7115
        %v7117 = vsel %vm7116, %v7109, %v7113
        %v7118 = vand.u32 2147483647, %v6961
        %vm7119 = vcmp.eq.f32.partialorder %v7118, 8.507059e+37
        %v7120 = vand.u32 %v6961, 2147483648
        %v7121 = vor.u32 1.1754944e-38, %v7120
        %v7122 = vsel %vm7119, %v7121, %v7117
        %v7123 = vmul.f32 1.0, %v7122
        %v7124 = vrcp.pop %v6962
        %v7125 = vmul.f32 %v6962, %v7124
        %v7126 = vsub.f32 1.0, %v7125
        %v7127 = vmul.f32 %v7124, %v7126
        %v7128 = vadd.f32 %v7124, %v7127
        %vm7129 = vweird.f32 %v6962
        %vm7130 = vweird.f32 %v7124
        %vm7131 = vmor %vm7129, %vm7130
        %v7132 = vsel %vm7131, %v7124, %v7128
        %v7133 = vand.u32 2147483647, %v6962
        %vm7134 = vcmp.eq.f32.partialorder %v7133, 8.507059e+37
        %v7135 = vand.u32 %v6962, 2147483648
        %v7136 = vor.u32 1.1754944e-38, %v7135
        %v7137 = vsel %vm7134, %v7136, %v7132
        %v7138 = vmul.f32 1.0, %v7137
        %v7139 = vrcp.pop %v6963
        %v7140 = vmul.f32 %v6963, %v7139
        %v7141 = vsub.f32 1.0, %v7140
        %v7142 = vmul.f32 %v7139, %v7141
        %v7143 = vadd.f32 %v7139, %v7142
        %vm7144 = vweird.f32 %v6963
        %vm7145 = vweird.f32 %v7139
        %vm7146 = vmor %vm7144, %vm7145
        %v7147 = vsel %vm7146, %v7139, %v7143
        %v7148 = vand.u32 2147483647, %v6963
        %vm7149 = vcmp.eq.f32.partialorder %v7148, 8.507059e+37
        %v7150 = vand.u32 %v6963, 2147483648
        %v7151 = vor.u32 1.1754944e-38, %v7150
        %v7152 = vsel %vm7149, %v7151, %v7147
        %v7153 = vmul.f32 1.0, %v7152
        %v7154 = vrcp.pop %v6964
        %v7155 = vmul.f32 %v6964, %v7154
        %v7156 = vsub.f32 1.0, %v7155
        %v7157 = vmul.f32 %v7154, %v7156
        %v7158 = vadd.f32 %v7154, %v7157
        %vm7159 = vweird.f32 %v6964
        %vm7160 = vweird.f32 %v7154
        %vm7161 = vmor %vm7159, %vm7160
        %v7162 = vsel %vm7161, %v7154, %v7158
        %v7163 = vand.u32 2147483647, %v6964
        %vm7164 = vcmp.eq.f32.partialorder %v7163, 8.507059e+37
        %v7165 = vand.u32 %v6964, 2147483648
        %v7166 = vor.u32 1.1754944e-38, %v7165
        %v7167 = vsel %vm7164, %v7166, %v7162
        %v7168 = vmul.f32 1.0, %v7167
        %v7169 = vrcp.pop %v6965
        %v7170 = vmul.f32 %v6965, %v7169
        %v7171 = vsub.f32 1.0, %v7170
        %v7172 = vmul.f32 %v7169, %v7171
        %v7173 = vadd.f32 %v7169, %v7172
        %vm7174 = vweird.f32 %v6965
        %vm7175 = vweird.f32 %v7169
        %vm7176 = vmor %vm7174, %vm7175
        %v7177 = vsel %vm7176, %v7169, %v7173
        %v7178 = vand.u32 2147483647, %v6965
        %vm7179 = vcmp.eq.f32.partialorder %v7178, 8.507059e+37
        %v7180 = vand.u32 %v6965, 2147483648
        %v7181 = vor.u32 1.1754944e-38, %v7180
        %v7182 = vsel %vm7179, %v7181, %v7177
        %v7183 = vmul.f32 1.0, %v7182
        %v7184 = vrcp.pop %v6966
        %v7185 = vmul.f32 %v6966, %v7184
        %v7186 = vsub.f32 1.0, %v7185
        %v7187 = vmul.f32 %v7184, %v7186
        %v7188 = vadd.f32 %v7184, %v7187
        %vm7189 = vweird.f32 %v6966
        %vm7190 = vweird.f32 %v7184
        %vm7191 = vmor %vm7189, %vm7190
        %v7192 = vsel %vm7191, %v7184, %v7188
        %v7193 = vand.u32 2147483647, %v6966
        %vm7194 = vcmp.eq.f32.partialorder %v7193, 8.507059e+37
        %v7195 = vand.u32 %v6966, 2147483648
        %v7196 = vor.u32 1.1754944e-38, %v7195
        %v7197 = vsel %vm7194, %v7196, %v7192
        %v7198 = vmul.f32 1.0, %v7197
        %v7199 = vrcp.pop %v6967
        %v7200 = vmul.f32 %v6967, %v7199
        %v7201 = vsub.f32 1.0, %v7200
        %v7202 = vmul.f32 %v7199, %v7201
        %v7203 = vadd.f32 %v7199, %v7202
        %vm7204 = vweird.f32 %v6967
        %vm7205 = vweird.f32 %v7199
        %vm7206 = vmor %vm7204, %vm7205
        %v7207 = vsel %vm7206, %v7199, %v7203
        %v7208 = vand.u32 2147483647, %v6967
        %vm7209 = vcmp.eq.f32.partialorder %v7208, 8.507059e+37
        %v7210 = vand.u32 %v6967, 2147483648
        %v7211 = vor.u32 1.1754944e-38, %v7210
        %v7212 = vsel %vm7209, %v7211, %v7207
        %v7213 = vmul.f32 1.0, %v7212
        %v7214 = vrcp.pop %v6968
        %v7215 = vmul.f32 %v6968, %v7214
        %v7216 = vsub.f32 1.0, %v7215
        %v7217 = vmul.f32 %v7214, %v7216
        %v7218 = vadd.f32 %v7214, %v7217
        %vm7219 = vweird.f32 %v6968
        %vm7220 = vweird.f32 %v7214
        %vm7221 = vmor %vm7219, %vm7220
        %v7222 = vsel %vm7221, %v7214, %v7218
        %v7223 = vand.u32 2147483647, %v6968
        %vm7224 = vcmp.eq.f32.partialorder %v7223, 8.507059e+37
        %v7225 = vand.u32 %v6968, 2147483648
        %v7226 = vor.u32 1.1754944e-38, %v7225
        %v7227 = vsel %vm7224, %v7226, %v7222
        %v7228 = vmul.f32 1.0, %v7227
        %v7229 = vrcp.pop %v6969
        %v7230 = vmul.f32 %v6969, %v7229
        %v7231 = vsub.f32 1.0, %v7230
        %v7232 = vmul.f32 %v7229, %v7231
        %v7233 = vadd.f32 %v7229, %v7232
        %vm7234 = vweird.f32 %v6969
        %vm7235 = vweird.f32 %v7229
        %vm7236 = vmor %vm7234, %vm7235
        %v7237 = vsel %vm7236, %v7229, %v7233
        %v7238 = vand.u32 2147483647, %v6969
        %vm7239 = vcmp.eq.f32.partialorder %v7238, 8.507059e+37
        %v7240 = vand.u32 %v6969, 2147483648
        %v7241 = vor.u32 1.1754944e-38, %v7240
        %v7242 = vsel %vm7239, %v7241, %v7237
        %v7243 = vmul.f32 1.0, %v7242
        %v7244 = vrcp.pop %v6970
        %v7245 = vmul.f32 %v6970, %v7244
        %v7246 = vsub.f32 1.0, %v7245
        %v7247 = vmul.f32 %v7244, %v7246
        %v7248 = vadd.f32 %v7244, %v7247
        %vm7249 = vweird.f32 %v6970
        %vm7250 = vweird.f32 %v7244
        %vm7251 = vmor %vm7249, %vm7250
        %v7252 = vsel %vm7251, %v7244, %v7248
        %v7253 = vand.u32 2147483647, %v6970
        %vm7254 = vcmp.eq.f32.partialorder %v7253, 8.507059e+37
        %v7255 = vand.u32 %v6970, 2147483648
        %v7256 = vor.u32 1.1754944e-38, %v7255
        %v7257 = vsel %vm7254, %v7256, %v7252
        %v7258 = vmul.f32 1.0, %v7257
        %v7259 = vrcp.pop %v6971
        %v7260 = vmul.f32 %v6971, %v7259
        %v7261 = vsub.f32 1.0, %v7260
        %v7262 = vmul.f32 %v7259, %v7261
        %v7263 = vadd.f32 %v7259, %v7262
        %vm7264 = vweird.f32 %v6971
        %vm7265 = vweird.f32 %v7259
        %vm7266 = vmor %vm7264, %vm7265
        %v7267 = vsel %vm7266, %v7259, %v7263
        %v7268 = vand.u32 2147483647, %v6971
        %vm7269 = vcmp.eq.f32.partialorder %v7268, 8.507059e+37
        %v7270 = vand.u32 %v6971, 2147483648
        %v7271 = vor.u32 1.1754944e-38, %v7270
        %v7272 = vsel %vm7269, %v7271, %v7267
        %v7273 = vmul.f32 1.0, %v7272
        %v7274 = vrcp.pop %v6972
        %v7275 = vmul.f32 %v6972, %v7274
        %v7276 = vsub.f32 1.0, %v7275
        %v7277 = vmul.f32 %v7274, %v7276
        %v7278 = vadd.f32 %v7274, %v7277
        %vm7279 = vweird.f32 %v6972
        %vm7280 = vweird.f32 %v7274
        %vm7281 = vmor %vm7279, %vm7280
        %v7282 = vsel %vm7281, %v7274, %v7278
        %v7283 = vand.u32 2147483647, %v6972
        %vm7284 = vcmp.eq.f32.partialorder %v7283, 8.507059e+37
        %v7285 = vand.u32 %v6972, 2147483648
        %v7286 = vor.u32 1.1754944e-38, %v7285
        %v7287 = vsel %vm7284, %v7286, %v7282
        %v7288 = vmul.f32 1.0, %v7287
        %v7289 = vrcp.pop %v6973
        %v7290 = vmul.f32 %v6973, %v7289
        %v7291 = vsub.f32 1.0, %v7290
        %v7292 = vmul.f32 %v7289, %v7291
        %v7293 = vadd.f32 %v7289, %v7292
        %vm7294 = vweird.f32 %v6973
        %vm7295 = vweird.f32 %v7289
        %vm7296 = vmor %vm7294, %vm7295
        %v7297 = vsel %vm7296, %v7289, %v7293
        %v7298 = vand.u32 2147483647, %v6973
        %vm7299 = vcmp.eq.f32.partialorder %v7298, 8.507059e+37
        %v7300 = vand.u32 %v6973, 2147483648
        %v7301 = vor.u32 1.1754944e-38, %v7300
        %v7302 = vsel %vm7299, %v7301, %v7297
        %v7303 = vmul.f32 1.0, %v7302
        %v7304 = vrcp.pop %v6974
        %v7305 = vmul.f32 %v6974, %v7304
        %v7306 = vsub.f32 1.0, %v7305
        %v7307 = vmul.f32 %v7304, %v7306
        %v7308 = vadd.f32 %v7304, %v7307
        %vm7309 = vweird.f32 %v6974
        %vm7310 = vweird.f32 %v7304
        %vm7311 = vmor %vm7309, %vm7310
        %v7312 = vsel %vm7311, %v7304, %v7308
        %v7313 = vand.u32 2147483647, %v6974
        %vm7314 = vcmp.eq.f32.partialorder %v7313, 8.507059e+37
        %v7315 = vand.u32 %v6974, 2147483648
        %v7316 = vor.u32 1.1754944e-38, %v7315
        %v7317 = vsel %vm7314, %v7316, %v7312
        %v7318 = vmul.f32 1.0, %v7317
        %v7319 = vrcp.pop %v6975
        %v7320 = vmul.f32 %v6975, %v7319
        %v7321 = vsub.f32 1.0, %v7320
        %v7322 = vmul.f32 %v7319, %v7321
        %v7323 = vadd.f32 %v7319, %v7322
        %vm7324 = vweird.f32 %v6975
        %vm7325 = vweird.f32 %v7319
        %vm7326 = vmor %vm7324, %vm7325
        %v7327 = vsel %vm7326, %v7319, %v7323
        %v7328 = vand.u32 2147483647, %v6975
        %vm7329 = vcmp.eq.f32.partialorder %v7328, 8.507059e+37
        %v7330 = vand.u32 %v6975, 2147483648
        %v7331 = vor.u32 1.1754944e-38, %v7330
        %v7332 = vsel %vm7329, %v7331, %v7327
        %v7333 = vmul.f32 1.0, %v7332
        %v7334 = vrcp.pop %v6976
        %v7335 = vmul.f32 %v6976, %v7334
        %v7336 = vsub.f32 1.0, %v7335
        %v7337 = vmul.f32 %v7334, %v7336
        %v7338 = vadd.f32 %v7334, %v7337
        %vm7339 = vweird.f32 %v6976
        %vm7340 = vweird.f32 %v7334
        %vm7341 = vmor %vm7339, %vm7340
        %v7342 = vsel %vm7341, %v7334, %v7338
        %v7343 = vand.u32 2147483647, %v6976
        %vm7344 = vcmp.eq.f32.partialorder %v7343, 8.507059e+37
        %v7345 = vand.u32 %v6976, 2147483648
        %v7346 = vor.u32 1.1754944e-38, %v7345
        %v7347 = vsel %vm7344, %v7346, %v7342
        %v7348 = vmul.f32 1.0, %v7347
        %v7349 = vrcp.pop %v6977
        %v7350 = vmul.f32 %v6977, %v7349
        %v7351 = vsub.f32 1.0, %v7350
        %v7352 = vmul.f32 %v7349, %v7351
        %v7353 = vadd.f32 %v7349, %v7352
        %vm7354 = vweird.f32 %v6977
        %vm7355 = vweird.f32 %v7349
        %vm7356 = vmor %vm7354, %vm7355
        %v7357 = vsel %vm7356, %v7349, %v7353
        %v7358 = vand.u32 2147483647, %v6977
        %vm7359 = vcmp.eq.f32.partialorder %v7358, 8.507059e+37
        %v7360 = vand.u32 %v6977, 2147483648
        %v7361 = vor.u32 1.1754944e-38, %v7360
        %v7362 = vsel %vm7359, %v7361, %v7357
        %v7363 = vmul.f32 1.0, %v7362
        %v7364 = vrcp.pop %v6978
        %v7365 = vmul.f32 %v6978, %v7364
        %v7366 = vsub.f32 1.0, %v7365
        %v7367 = vmul.f32 %v7364, %v7366
        %v7368 = vadd.f32 %v7364, %v7367
        %vm7369 = vweird.f32 %v6978
        %vm7370 = vweird.f32 %v7364
        %vm7371 = vmor %vm7369, %vm7370
        %v7372 = vsel %vm7371, %v7364, %v7368
        %v7373 = vand.u32 2147483647, %v6978
        %vm7374 = vcmp.eq.f32.partialorder %v7373, 8.507059e+37
        %v7375 = vand.u32 %v6978, 2147483648
        %v7376 = vor.u32 1.1754944e-38, %v7375
        %v7377 = vsel %vm7374, %v7376, %v7372
        %v7378 = vmul.f32 1.0, %v7377
        %v7379 = vrcp.pop %v6979
        %v7380 = vmul.f32 %v6979, %v7379
        %v7381 = vsub.f32 1.0, %v7380
        %v7382 = vmul.f32 %v7379, %v7381
        %v7383 = vadd.f32 %v7379, %v7382
        %vm7384 = vweird.f32 %v6979
        %vm7385 = vweird.f32 %v7379
        %vm7386 = vmor %vm7384, %vm7385
        %v7387 = vsel %vm7386, %v7379, %v7383
        %v7388 = vand.u32 2147483647, %v6979
        %vm7389 = vcmp.eq.f32.partialorder %v7388, 8.507059e+37
        %v7390 = vand.u32 %v6979, 2147483648
        %v7391 = vor.u32 1.1754944e-38, %v7390
        %v7392 = vsel %vm7389, %v7391, %v7387
        %v7393 = vmul.f32 1.0, %v7392
        %v7394 = vrcp.pop %v6980
        %v7395 = vmul.f32 %v6980, %v7394
        %v7396 = vsub.f32 1.0, %v7395
        %v7397 = vmul.f32 %v7394, %v7396
        %v7398 = vadd.f32 %v7394, %v7397
        %vm7399 = vweird.f32 %v6980
        %vm7400 = vweird.f32 %v7394
        %vm7401 = vmor %vm7399, %vm7400
        %v7402 = vsel %vm7401, %v7394, %v7398
        %v7403 = vand.u32 2147483647, %v6980
        %vm7404 = vcmp.eq.f32.partialorder %v7403, 8.507059e+37
        %v7405 = vand.u32 %v6980, 2147483648
        %v7406 = vor.u32 1.1754944e-38, %v7405
        %v7407 = vsel %vm7404, %v7406, %v7402
        %v7408 = vmul.f32 1.0, %v7407
        %v7409 = vrcp.pop %v6981
        %v7410 = vmul.f32 %v6981, %v7409
        %v7411 = vsub.f32 1.0, %v7410
        %v7412 = vmul.f32 %v7409, %v7411
        %v7413 = vadd.f32 %v7409, %v7412
        %vm7414 = vweird.f32 %v6981
        %vm7415 = vweird.f32 %v7409
        %vm7416 = vmor %vm7414, %vm7415
        %v7417 = vsel %vm7416, %v7409, %v7413
        %v7418 = vand.u32 2147483647, %v6981
        %vm7419 = vcmp.eq.f32.partialorder %v7418, 8.507059e+37
        %v7420 = vand.u32 %v6981, 2147483648
        %v7421 = vor.u32 1.1754944e-38, %v7420
        %v7422 = vsel %vm7419, %v7421, %v7417
        %v7423 = vmul.f32 1.0, %v7422
        %v7424 = vrcp.pop %v6982
        %v7425 = vmul.f32 %v6982, %v7424
        %v7426 = vsub.f32 1.0, %v7425
        %v7427 = vmul.f32 %v7424, %v7426
        %v7428 = vadd.f32 %v7424, %v7427
        %vm7429 = vweird.f32 %v6982
        %vm7430 = vweird.f32 %v7424
        %vm7431 = vmor %vm7429, %vm7430
        %v7432 = vsel %vm7431, %v7424, %v7428
        %v7433 = vand.u32 2147483647, %v6982
        %vm7434 = vcmp.eq.f32.partialorder %v7433, 8.507059e+37
        %v7435 = vand.u32 %v6982, 2147483648
        %v7436 = vor.u32 1.1754944e-38, %v7435
        %v7437 = vsel %vm7434, %v7436, %v7432
        %v7438 = vmul.f32 1.0, %v7437
        %v7439 = vrcp.pop %v6983
        %v7440 = vmul.f32 %v6983, %v7439
        %v7441 = vsub.f32 1.0, %v7440
        %v7442 = vmul.f32 %v7439, %v7441
        %v7443 = vadd.f32 %v7439, %v7442
        %vm7444 = vweird.f32 %v6983
        %vm7445 = vweird.f32 %v7439
        %vm7446 = vmor %vm7444, %vm7445
        %v7447 = vsel %vm7446, %v7439, %v7443
        %v7448 = vand.u32 2147483647, %v6983
        %vm7449 = vcmp.eq.f32.partialorder %v7448, 8.507059e+37
        %v7450 = vand.u32 %v6983, 2147483648
        %v7451 = vor.u32 1.1754944e-38, %v7450
        %v7452 = vsel %vm7449, %v7451, %v7447
        %v7453 = vmul.f32 1.0, %v7452
        %v7454 = vrcp.pop %v6984
        %v7455 = vmul.f32 %v6984, %v7454
        %v7456 = vsub.f32 1.0, %v7455
        %v7457 = vmul.f32 %v7454, %v7456
        %v7458 = vadd.f32 %v7454, %v7457
        %vm7459 = vweird.f32 %v6984
        %vm7460 = vweird.f32 %v7454
        %vm7461 = vmor %vm7459, %vm7460
        %v7462 = vsel %vm7461, %v7454, %v7458
        %v7463 = vand.u32 2147483647, %v6984
        %vm7464 = vcmp.eq.f32.partialorder %v7463, 8.507059e+37
        %v7465 = vand.u32 %v6984, 2147483648
        %v7466 = vor.u32 1.1754944e-38, %v7465
        %v7467 = vsel %vm7464, %v7466, %v7462
        %v7468 = vmul.f32 1.0, %v7467
        %v7469 = vrcp.pop %v6985
        %v7470 = vmul.f32 %v6985, %v7469
        %v7471 = vsub.f32 1.0, %v7470
        %v7472 = vmul.f32 %v7469, %v7471
        %v7473 = vadd.f32 %v7469, %v7472
        %vm7474 = vweird.f32 %v6985
        %vm7475 = vweird.f32 %v7469
        %vm7476 = vmor %vm7474, %vm7475
        %v7477 = vsel %vm7476, %v7469, %v7473
        %v7478 = vand.u32 2147483647, %v6985
        %vm7479 = vcmp.eq.f32.partialorder %v7478, 8.507059e+37
        %v7480 = vand.u32 %v6985, 2147483648
        %v7481 = vor.u32 1.1754944e-38, %v7480
        %v7482 = vsel %vm7479, %v7481, %v7477
        %v7483 = vmul.f32 1.0, %v7482
        %v7484 = vrcp.pop %v6986
        %v7485 = vmul.f32 %v6986, %v7484
        %v7486 = vsub.f32 1.0, %v7485
        %v7487 = vmul.f32 %v7484, %v7486
        %v7488 = vadd.f32 %v7484, %v7487
        %vm7489 = vweird.f32 %v6986
        %vm7490 = vweird.f32 %v7484
        %vm7491 = vmor %vm7489, %vm7490
        %v7492 = vsel %vm7491, %v7484, %v7488
        %v7493 = vand.u32 2147483647, %v6986
        %vm7494 = vcmp.eq.f32.partialorder %v7493, 8.507059e+37
        %v7495 = vand.u32 %v6986, 2147483648
        %v7496 = vor.u32 1.1754944e-38, %v7495
        %v7497 = vsel %vm7494, %v7496, %v7492
        %v7498 = vmul.f32 1.0, %v7497
        %v7499 = vrcp.pop %v6987
        %v7500 = vmul.f32 %v6987, %v7499
        %v7501 = vsub.f32 1.0, %v7500
        %v7502 = vmul.f32 %v7499, %v7501
        %v7503 = vadd.f32 %v7499, %v7502
        %vm7504 = vweird.f32 %v6987
        %vm7505 = vweird.f32 %v7499
        %vm7506 = vmor %vm7504, %vm7505
        %v7507 = vsel %vm7506, %v7499, %v7503
        %v7508 = vand.u32 2147483647, %v6987
        %vm7509 = vcmp.eq.f32.partialorder %v7508, 8.507059e+37
        %v7510 = vand.u32 %v6987, 2147483648
        %v7511 = vor.u32 1.1754944e-38, %v7510
        %v7512 = vsel %vm7509, %v7511, %v7507
        %v7513 = vmul.f32 1.0, %v7512
        %v7514 = vrcp.pop %v6988
        %v7515 = vmul.f32 %v6988, %v7514
        %v7516 = vsub.f32 1.0, %v7515
        %v7517 = vmul.f32 %v7514, %v7516
        %v7518 = vadd.f32 %v7514, %v7517
        %vm7519 = vweird.f32 %v6988
        %vm7520 = vweird.f32 %v7514
        %vm7521 = vmor %vm7519, %vm7520
        %v7522 = vsel %vm7521, %v7514, %v7518
        %v7523 = vand.u32 2147483647, %v6988
        %vm7524 = vcmp.eq.f32.partialorder %v7523, 8.507059e+37
        %v7525 = vand.u32 %v6988, 2147483648
        %v7526 = vor.u32 1.1754944e-38, %v7525
        %v7527 = vsel %vm7524, %v7526, %v7522
        %v7528 = vmul.f32 1.0, %v7527
        %v7529 = vrcp.pop %v6989
        %v7530 = vmul.f32 %v6989, %v7529
        %v7531 = vsub.f32 1.0, %v7530
        %v7532 = vmul.f32 %v7529, %v7531
        %v7533 = vadd.f32 %v7529, %v7532
        %vm7534 = vweird.f32 %v6989
        %vm7535 = vweird.f32 %v7529
        %vm7536 = vmor %vm7534, %vm7535
        %v7537 = vsel %vm7536, %v7529, %v7533
        %v7538 = vand.u32 2147483647, %v6989
        %vm7539 = vcmp.eq.f32.partialorder %v7538, 8.507059e+37
        %v7540 = vand.u32 %v6989, 2147483648
        %v7541 = vor.u32 1.1754944e-38, %v7540
        %v7542 = vsel %vm7539, %v7541, %v7537
        %v7543 = vmul.f32 1.0, %v7542
        %v7544 = vrcp.pop %v6990
        %v7545 = vmul.f32 %v6990, %v7544
        %v7546 = vsub.f32 1.0, %v7545
        %v7547 = vmul.f32 %v7544, %v7546
        %v7548 = vadd.f32 %v7544, %v7547
        %vm7549 = vweird.f32 %v6990
        %vm7550 = vweird.f32 %v7544
        %vm7551 = vmor %vm7549, %vm7550
        %v7552 = vsel %vm7551, %v7544, %v7548
        %v7553 = vand.u32 2147483647, %v6990
        %vm7554 = vcmp.eq.f32.partialorder %v7553, 8.507059e+37
        %v7555 = vand.u32 %v6990, 2147483648
        %v7556 = vor.u32 1.1754944e-38, %v7555
        %v7557 = vsel %vm7554, %v7556, %v7552
        %v7558 = vmul.f32 1.0, %v7557
        %v7559 = vrcp.pop %v6991
        %v7560 = vmul.f32 %v6991, %v7559
        %v7561 = vsub.f32 1.0, %v7560
        %v7562 = vmul.f32 %v7559, %v7561
        %v7563 = vadd.f32 %v7559, %v7562
        %vm7564 = vweird.f32 %v6991
        %vm7565 = vweird.f32 %v7559
        %vm7566 = vmor %vm7564, %vm7565
        %v7567 = vsel %vm7566, %v7559, %v7563
        %v7568 = vand.u32 2147483647, %v6991
        %vm7569 = vcmp.eq.f32.partialorder %v7568, 8.507059e+37
        %v7570 = vand.u32 %v6991, 2147483648
        %v7571 = vor.u32 1.1754944e-38, %v7570
        %v7572 = vsel %vm7569, %v7571, %v7567
        %v7573 = vmul.f32 1.0, %v7572
        %v7574 = vrcp.pop %v6992
        %v7575 = vmul.f32 %v6992, %v7574
        %v7576 = vsub.f32 1.0, %v7575
        %v7577 = vmul.f32 %v7574, %v7576
        %v7578 = vadd.f32 %v7574, %v7577
        %vm7579 = vweird.f32 %v6992
        %vm7580 = vweird.f32 %v7574
        %vm7581 = vmor %vm7579, %vm7580
        %v7582 = vsel %vm7581, %v7574, %v7578
        %v7583 = vand.u32 2147483647, %v6992
        %vm7584 = vcmp.eq.f32.partialorder %v7583, 8.507059e+37
        %v7585 = vand.u32 %v6992, 2147483648
        %v7586 = vor.u32 1.1754944e-38, %v7585
        %v7587 = vsel %vm7584, %v7586, %v7582
        %v7588 = vmul.f32 1.0, %v7587
        %v7589 = vrcp.pop %v6993
        %v7590 = vmul.f32 %v6993, %v7589
        %v7591 = vsub.f32 1.0, %v7590
        %v7592 = vmul.f32 %v7589, %v7591
        %v7593 = vadd.f32 %v7589, %v7592
        %vm7594 = vweird.f32 %v6993
        %vm7595 = vweird.f32 %v7589
        %vm7596 = vmor %vm7594, %vm7595
        %v7597 = vsel %vm7596, %v7589, %v7593
        %v7598 = vand.u32 2147483647, %v6993
        %vm7599 = vcmp.eq.f32.partialorder %v7598, 8.507059e+37
        %v7600 = vand.u32 %v6993, 2147483648
        %v7601 = vor.u32 1.1754944e-38, %v7600
        %v7602 = vsel %vm7599, %v7601, %v7597
        %v7603 = vmul.f32 1.0, %v7602
        %v7604 = vrcp.pop %v6994
        %v7605 = vmul.f32 %v6994, %v7604
        %v7606 = vsub.f32 1.0, %v7605
        %v7607 = vmul.f32 %v7604, %v7606
        %v7608 = vadd.f32 %v7604, %v7607
        %vm7609 = vweird.f32 %v6994
        %vm7610 = vweird.f32 %v7604
        %vm7611 = vmor %vm7609, %vm7610
        %v7612 = vsel %vm7611, %v7604, %v7608
        %v7613 = vand.u32 2147483647, %v6994
        %vm7614 = vcmp.eq.f32.partialorder %v7613, 8.507059e+37
        %v7615 = vand.u32 %v6994, 2147483648
        %v7616 = vor.u32 1.1754944e-38, %v7615
        %v7617 = vsel %vm7614, %v7616, %v7612
        %v7618 = vmul.f32 1.0, %v7617
        %v7619 = vrcp.pop %v6995
        %v7620 = vmul.f32 %v6995, %v7619
        %v7621 = vsub.f32 1.0, %v7620
        %v7622 = vmul.f32 %v7619, %v7621
        %v7623 = vadd.f32 %v7619, %v7622
        %vm7624 = vweird.f32 %v6995
        %vm7625 = vweird.f32 %v7619
        %vm7626 = vmor %vm7624, %vm7625
        %v7627 = vsel %vm7626, %v7619, %v7623
        %v7628 = vand.u32 2147483647, %v6995
        %vm7629 = vcmp.eq.f32.partialorder %v7628, 8.507059e+37
        %v7630 = vand.u32 %v6995, 2147483648
        %v7631 = vor.u32 1.1754944e-38, %v7630
        %v7632 = vsel %vm7629, %v7631, %v7627
        %v7633 = vmul.f32 1.0, %v7632
        %v7634 = vrcp.pop %v6996
        %v7635 = vmul.f32 %v6996, %v7634
        %v7636 = vsub.f32 1.0, %v7635
        %v7637 = vmul.f32 %v7634, %v7636
        %v7638 = vadd.f32 %v7634, %v7637
        %vm7639 = vweird.f32 %v6996
        %vm7640 = vweird.f32 %v7634
        %vm7641 = vmor %vm7639, %vm7640
        %v7642 = vsel %vm7641, %v7634, %v7638
        %v7643 = vand.u32 2147483647, %v6996
        %vm7644 = vcmp.eq.f32.partialorder %v7643, 8.507059e+37
        %v7645 = vand.u32 %v6996, 2147483648
        %v7646 = vor.u32 1.1754944e-38, %v7645
        %v7647 = vsel %vm7644, %v7646, %v7642
        %v7648 = vmul.f32 1.0, %v7647
        %v7649 = vrcp.pop %v6997
        %v7650 = vmul.f32 %v6997, %v7649
        %v7651 = vsub.f32 1.0, %v7650
        %v7652 = vmul.f32 %v7649, %v7651
        %v7653 = vadd.f32 %v7649, %v7652
        %vm7654 = vweird.f32 %v6997
        %vm7655 = vweird.f32 %v7649
        %vm7656 = vmor %vm7654, %vm7655
        %v7657 = vsel %vm7656, %v7649, %v7653
        %v7658 = vand.u32 2147483647, %v6997
        %vm7659 = vcmp.eq.f32.partialorder %v7658, 8.507059e+37
        %v7660 = vand.u32 %v6997, 2147483648
        %v7661 = vor.u32 1.1754944e-38, %v7660
        %v7662 = vsel %vm7659, %v7661, %v7657
        %v7663 = vmul.f32 1.0, %v7662
        %v7664 = vrcp.pop %v6998
        %v7665 = vmul.f32 %v6998, %v7664
        %v7666 = vsub.f32 1.0, %v7665
        %v7667 = vmul.f32 %v7664, %v7666
        %v7668 = vadd.f32 %v7664, %v7667
        %vm7669 = vweird.f32 %v6998
        %vm7670 = vweird.f32 %v7664
        %vm7671 = vmor %vm7669, %vm7670
        %v7672 = vsel %vm7671, %v7664, %v7668
        %v7673 = vand.u32 2147483647, %v6998
        %vm7674 = vcmp.eq.f32.partialorder %v7673, 8.507059e+37
        %v7675 = vand.u32 %v6998, 2147483648
        %v7676 = vor.u32 1.1754944e-38, %v7675
        %v7677 = vsel %vm7674, %v7676, %v7672
        %v7678 = vmul.f32 1.0, %v7677
        %v7679 = vrcp.pop %v6999
        %v7680 = vmul.f32 %v6999, %v7679
        %v7681 = vsub.f32 1.0, %v7680
        %v7682 = vmul.f32 %v7679, %v7681
        %v7683 = vadd.f32 %v7679, %v7682
        %vm7684 = vweird.f32 %v6999
        %vm7685 = vweird.f32 %v7679
        %vm7686 = vmor %vm7684, %vm7685
        %v7687 = vsel %vm7686, %v7679, %v7683
        %v7688 = vand.u32 2147483647, %v6999
        %vm7689 = vcmp.eq.f32.partialorder %v7688, 8.507059e+37
        %v7690 = vand.u32 %v6999, 2147483648
        %v7691 = vor.u32 1.1754944e-38, %v7690
        %v7692 = vsel %vm7689, %v7691, %v7687
        %v7693 = vmul.f32 1.0, %v7692
        %v7694 = vrcp.pop %v7000
        %v7695 = vmul.f32 %v7000, %v7694
        %v7696 = vsub.f32 1.0, %v7695
        %v7697 = vmul.f32 %v7694, %v7696
        %v7698 = vadd.f32 %v7694, %v7697
        %vm7699 = vweird.f32 %v7000
        %vm7700 = vweird.f32 %v7694
        %vm7701 = vmor %vm7699, %vm7700
        %v7702 = vsel %vm7701, %v7694, %v7698
        %v7703 = vand.u32 2147483647, %v7000
        %vm7704 = vcmp.eq.f32.partialorder %v7703, 8.507059e+37
        %v7705 = vand.u32 %v7000, 2147483648
        %v7706 = vor.u32 1.1754944e-38, %v7705
        %v7707 = vsel %vm7704, %v7706, %v7702
        %v7708 = vmul.f32 1.0, %v7707
        %v7709 = vrcp.pop %v7001
        %v7710 = vmul.f32 %v7001, %v7709
        %v7711 = vsub.f32 1.0, %v7710
        %v7712 = vmul.f32 %v7709, %v7711
        %v7713 = vadd.f32 %v7709, %v7712
        %vm7714 = vweird.f32 %v7001
        %vm7715 = vweird.f32 %v7709
        %vm7716 = vmor %vm7714, %vm7715
        %v7717 = vsel %vm7716, %v7709, %v7713
        %v7718 = vand.u32 2147483647, %v7001
        %vm7719 = vcmp.eq.f32.partialorder %v7718, 8.507059e+37
        %v7720 = vand.u32 %v7001, 2147483648
        %v7721 = vor.u32 1.1754944e-38, %v7720
        %v7722 = vsel %vm7719, %v7721, %v7717
        %v7723 = vmul.f32 1.0, %v7722
        %v7724 = vrcp.pop %v7002
        %v7725 = vmul.f32 %v7002, %v7724
        %v7726 = vsub.f32 1.0, %v7725
        %v7727 = vmul.f32 %v7724, %v7726
        %v7728 = vadd.f32 %v7724, %v7727
        %vm7729 = vweird.f32 %v7002
        %vm7730 = vweird.f32 %v7724
        %vm7731 = vmor %vm7729, %vm7730
        %v7732 = vsel %vm7731, %v7724, %v7728
        %v7733 = vand.u32 2147483647, %v7002
        %vm7734 = vcmp.eq.f32.partialorder %v7733, 8.507059e+37
        %v7735 = vand.u32 %v7002, 2147483648
        %v7736 = vor.u32 1.1754944e-38, %v7735
        %v7737 = vsel %vm7734, %v7736, %v7732
        %v7738 = vmul.f32 1.0, %v7737
        %v7739 = vrcp.pop %v7003
        %v7740 = vmul.f32 %v7003, %v7739
        %v7741 = vsub.f32 1.0, %v7740
        %v7742 = vmul.f32 %v7739, %v7741
        %v7743 = vadd.f32 %v7739, %v7742
        %vm7744 = vweird.f32 %v7003
        %vm7745 = vweird.f32 %v7739
        %vm7746 = vmor %vm7744, %vm7745
        %v7747 = vsel %vm7746, %v7739, %v7743
        %v7748 = vand.u32 2147483647, %v7003
        %vm7749 = vcmp.eq.f32.partialorder %v7748, 8.507059e+37
        %v7750 = vand.u32 %v7003, 2147483648
        %v7751 = vor.u32 1.1754944e-38, %v7750
        %v7752 = vsel %vm7749, %v7751, %v7747
        %v7753 = vmul.f32 1.0, %v7752
        %v7754 = vrcp.pop %v7004
        %v7755 = vmul.f32 %v7004, %v7754
        %v7756 = vsub.f32 1.0, %v7755
        %v7757 = vmul.f32 %v7754, %v7756
        %v7758 = vadd.f32 %v7754, %v7757
        %vm7759 = vweird.f32 %v7004
        %vm7760 = vweird.f32 %v7754
        %vm7761 = vmor %vm7759, %vm7760
        %v7762 = vsel %vm7761, %v7754, %v7758
        %v7763 = vand.u32 2147483647, %v7004
        %vm7764 = vcmp.eq.f32.partialorder %v7763, 8.507059e+37
        %v7765 = vand.u32 %v7004, 2147483648
        %v7766 = vor.u32 1.1754944e-38, %v7765
        %v7767 = vsel %vm7764, %v7766, %v7762
        %v7768 = vmul.f32 1.0, %v7767
        %v7769 = vrcp.pop %v7005
        %v7770 = vmul.f32 %v7005, %v7769
        %v7771 = vsub.f32 1.0, %v7770
        %v7772 = vmul.f32 %v7769, %v7771
        %v7773 = vadd.f32 %v7769, %v7772
        %vm7774 = vweird.f32 %v7005
        %vm7775 = vweird.f32 %v7769
        %vm7776 = vmor %vm7774, %vm7775
        %v7777 = vsel %vm7776, %v7769, %v7773
        %v7778 = vand.u32 2147483647, %v7005
        %vm7779 = vcmp.eq.f32.partialorder %v7778, 8.507059e+37
        %v7780 = vand.u32 %v7005, 2147483648
        %v7781 = vor.u32 1.1754944e-38, %v7780
        %v7782 = vsel %vm7779, %v7781, %v7777
        %v7783 = vmul.f32 1.0, %v7782
        %v7784 = vrcp.pop %v7006
        %v7785 = vmul.f32 %v7006, %v7784
        %v7786 = vsub.f32 1.0, %v7785
        %v7787 = vmul.f32 %v7784, %v7786
        %v7788 = vadd.f32 %v7784, %v7787
        %vm7789 = vweird.f32 %v7006
        %vm7790 = vweird.f32 %v7784
        %vm7791 = vmor %vm7789, %vm7790
        %v7792 = vsel %vm7791, %v7784, %v7788
        %v7793 = vand.u32 2147483647, %v7006
        %vm7794 = vcmp.eq.f32.partialorder %v7793, 8.507059e+37
        %v7795 = vand.u32 %v7006, 2147483648
        %v7796 = vor.u32 1.1754944e-38, %v7795
        %v7797 = vsel %vm7794, %v7796, %v7792
        %v7798 = vmul.f32 1.0, %v7797
        %v7799 = vrcp.pop %v7007
        %v7800 = vmul.f32 %v7007, %v7799
        %v7801 = vsub.f32 1.0, %v7800
        %v7802 = vmul.f32 %v7799, %v7801
        %v7803 = vadd.f32 %v7799, %v7802
        %vm7804 = vweird.f32 %v7007
        %vm7805 = vweird.f32 %v7799
        %vm7806 = vmor %vm7804, %vm7805
        %v7807 = vsel %vm7806, %v7799, %v7803
        %v7808 = vand.u32 2147483647, %v7007
        %vm7809 = vcmp.eq.f32.partialorder %v7808, 8.507059e+37
        %v7810 = vand.u32 %v7007, 2147483648
        %v7811 = vor.u32 1.1754944e-38, %v7810
        %v7812 = vsel %vm7809, %v7811, %v7807
        %v7813 = vmul.f32 1.0, %v7812
        %v7814 = vrcp.pop %v7008
        %v7815 = vmul.f32 %v7008, %v7814
        %v7816 = vsub.f32 1.0, %v7815
        %v7817 = vmul.f32 %v7814, %v7816
        %v7818 = vadd.f32 %v7814, %v7817
        %vm7819 = vweird.f32 %v7008
        %vm7820 = vweird.f32 %v7814
        %vm7821 = vmor %vm7819, %vm7820
        %v7822 = vsel %vm7821, %v7814, %v7818
        %v7823 = vand.u32 2147483647, %v7008
        %vm7824 = vcmp.eq.f32.partialorder %v7823, 8.507059e+37
        %v7825 = vand.u32 %v7008, 2147483648
        %v7826 = vor.u32 1.1754944e-38, %v7825
        %v7827 = vsel %vm7824, %v7826, %v7822
        %v7828 = vmul.f32 1.0, %v7827
        %v7829 = vrcp.pop %v7009
        %v7830 = vmul.f32 %v7009, %v7829
        %v7831 = vsub.f32 1.0, %v7830
        %v7832 = vmul.f32 %v7829, %v7831
        %v7833 = vadd.f32 %v7829, %v7832
        %vm7834 = vweird.f32 %v7009
        %vm7835 = vweird.f32 %v7829
        %vm7836 = vmor %vm7834, %vm7835
        %v7837 = vsel %vm7836, %v7829, %v7833
        %v7838 = vand.u32 2147483647, %v7009
        %vm7839 = vcmp.eq.f32.partialorder %v7838, 8.507059e+37
        %v7840 = vand.u32 %v7009, 2147483648
        %v7841 = vor.u32 1.1754944e-38, %v7840
        %v7842 = vsel %vm7839, %v7841, %v7837
        %v7843 = vmul.f32 1.0, %v7842
        %v7844 = vrcp.pop %v7010
        %v7845 = vmul.f32 %v7010, %v7844
        %v7846 = vsub.f32 1.0, %v7845
        %v7847 = vmul.f32 %v7844, %v7846
        %v7848 = vadd.f32 %v7844, %v7847
        %vm7849 = vweird.f32 %v7010
        %vm7850 = vweird.f32 %v7844
        %vm7851 = vmor %vm7849, %vm7850
        %v7852 = vsel %vm7851, %v7844, %v7848
        %v7853 = vand.u32 2147483647, %v7010
        %vm7854 = vcmp.eq.f32.partialorder %v7853, 8.507059e+37
        %v7855 = vand.u32 %v7010, 2147483648
        %v7856 = vor.u32 1.1754944e-38, %v7855
        %v7857 = vsel %vm7854, %v7856, %v7852
        %v7858 = vmul.f32 1.0, %v7857
        %v7859 = vrcp.pop %v7011
        %v7860 = vmul.f32 %v7011, %v7859
        %v7861 = vsub.f32 1.0, %v7860
        %v7862 = vmul.f32 %v7859, %v7861
        %v7863 = vadd.f32 %v7859, %v7862
        %vm7864 = vweird.f32 %v7011
        %vm7865 = vweird.f32 %v7859
        %vm7866 = vmor %vm7864, %vm7865
        %v7867 = vsel %vm7866, %v7859, %v7863
        %v7868 = vand.u32 2147483647, %v7011
        %vm7869 = vcmp.eq.f32.partialorder %v7868, 8.507059e+37
        %v7870 = vand.u32 %v7011, 2147483648
        %v7871 = vor.u32 1.1754944e-38, %v7870
        %v7872 = vsel %vm7869, %v7871, %v7867
        %v7873 = vmul.f32 1.0, %v7872
        %v7874 = vrcp.pop %v7012
        %v7875 = vmul.f32 %v7012, %v7874
        %v7876 = vsub.f32 1.0, %v7875
        %v7877 = vmul.f32 %v7874, %v7876
        %v7878 = vadd.f32 %v7874, %v7877
        %vm7879 = vweird.f32 %v7012
        %vm7880 = vweird.f32 %v7874
        %vm7881 = vmor %vm7879, %vm7880
        %v7882 = vsel %vm7881, %v7874, %v7878
        %v7883 = vand.u32 2147483647, %v7012
        %vm7884 = vcmp.eq.f32.partialorder %v7883, 8.507059e+37
        %v7885 = vand.u32 %v7012, 2147483648
        %v7886 = vor.u32 1.1754944e-38, %v7885
        %v7887 = vsel %vm7884, %v7886, %v7882
        %v7888 = vmul.f32 1.0, %v7887
        %v7889 = vrcp.pop %v7013
        %v7890 = vmul.f32 %v7013, %v7889
        %v7891 = vsub.f32 1.0, %v7890
        %v7892 = vmul.f32 %v7889, %v7891
        %v7893 = vadd.f32 %v7889, %v7892
        %vm7894 = vweird.f32 %v7013
        %vm7895 = vweird.f32 %v7889
        %vm7896 = vmor %vm7894, %vm7895
        %v7897 = vsel %vm7896, %v7889, %v7893
        %v7898 = vand.u32 2147483647, %v7013
        %vm7899 = vcmp.eq.f32.partialorder %v7898, 8.507059e+37
        %v7900 = vand.u32 %v7013, 2147483648
        %v7901 = vor.u32 1.1754944e-38, %v7900
        %v7902 = vsel %vm7899, %v7901, %v7897
        %v7903 = vmul.f32 1.0, %v7902
        %v7904 = vrcp.pop %v7014
        %v7905 = vmul.f32 %v7014, %v7904
        %v7906 = vsub.f32 1.0, %v7905
        %v7907 = vmul.f32 %v7904, %v7906
        %v7908 = vadd.f32 %v7904, %v7907
        %vm7909 = vweird.f32 %v7014
        %vm7910 = vweird.f32 %v7904
        %vm7911 = vmor %vm7909, %vm7910
        %v7912 = vsel %vm7911, %v7904, %v7908
        %v7913 = vand.u32 2147483647, %v7014
        %vm7914 = vcmp.eq.f32.partialorder %v7913, 8.507059e+37
        %v7915 = vand.u32 %v7014, 2147483648
        %v7916 = vor.u32 1.1754944e-38, %v7915
        %v7917 = vsel %vm7914, %v7916, %v7912
        %v7918 = vmul.f32 1.0, %v7917
        %v7919 = vrcp.pop %v7015
        %v7920 = vmul.f32 %v7015, %v7919
        %v7921 = vsub.f32 1.0, %v7920
        %v7922 = vmul.f32 %v7919, %v7921
        %v7923 = vadd.f32 %v7919, %v7922
        %vm7924 = vweird.f32 %v7015
        %vm7925 = vweird.f32 %v7919
        %vm7926 = vmor %vm7924, %vm7925
        %v7927 = vsel %vm7926, %v7919, %v7923
        %v7928 = vand.u32 2147483647, %v7015
        %vm7929 = vcmp.eq.f32.partialorder %v7928, 8.507059e+37
        %v7930 = vand.u32 %v7015, 2147483648
        %v7931 = vor.u32 1.1754944e-38, %v7930
        %v7932 = vsel %vm7929, %v7931, %v7927
        %v7933 = vmul.f32 1.0, %v7932
        %v7934 = vrcp.pop %v7016
        %v7935 = vmul.f32 %v7016, %v7934
        %v7936 = vsub.f32 1.0, %v7935
        %v7937 = vmul.f32 %v7934, %v7936
        %v7938 = vadd.f32 %v7934, %v7937
        %vm7939 = vweird.f32 %v7016
        %vm7940 = vweird.f32 %v7934
        %vm7941 = vmor %vm7939, %vm7940
        %v7942 = vsel %vm7941, %v7934, %v7938
        %v7943 = vand.u32 2147483647, %v7016
        %vm7944 = vcmp.eq.f32.partialorder %v7943, 8.507059e+37
        %v7945 = vand.u32 %v7016, 2147483648
        %v7946 = vor.u32 1.1754944e-38, %v7945
        %v7947 = vsel %vm7944, %v7946, %v7942
        %v7948 = vmul.f32 1.0, %v7947
        %v7949 = vrcp.pop %v7017
        %v7950 = vmul.f32 %v7017, %v7949
        %v7951 = vsub.f32 1.0, %v7950
        %v7952 = vmul.f32 %v7949, %v7951
        %v7953 = vadd.f32 %v7949, %v7952
        %vm7954 = vweird.f32 %v7017
        %vm7955 = vweird.f32 %v7949
        %vm7956 = vmor %vm7954, %vm7955
        %v7957 = vsel %vm7956, %v7949, %v7953
        %v7958 = vand.u32 2147483647, %v7017
        %vm7959 = vcmp.eq.f32.partialorder %v7958, 8.507059e+37
        %v7960 = vand.u32 %v7017, 2147483648
        %v7961 = vor.u32 1.1754944e-38, %v7960
        %v7962 = vsel %vm7959, %v7961, %v7957
        %v7963 = vmul.f32 1.0, %v7962
        %v7964 = vrcp.pop %v7018
        %v7965 = vmul.f32 %v7018, %v7964
        %v7966 = vsub.f32 1.0, %v7965
        %v7967 = vmul.f32 %v7964, %v7966
        %v7968 = vadd.f32 %v7964, %v7967
        %vm7969 = vweird.f32 %v7018
        %vm7970 = vweird.f32 %v7964
        %vm7971 = vmor %vm7969, %vm7970
        %v7972 = vsel %vm7971, %v7964, %v7968
        %v7973 = vand.u32 2147483647, %v7018
        %vm7974 = vcmp.eq.f32.partialorder %v7973, 8.507059e+37
        %v7975 = vand.u32 %v7018, 2147483648
        %v7976 = vor.u32 1.1754944e-38, %v7975
        %v7977 = vsel %vm7974, %v7976, %v7972
        %v7978 = vmul.f32 1.0, %v7977
        %v7979 = vmul.f32 %v6457, %v7033
        %v7980 = vmul.f32 %v6522, %v7048
        %v7981 = vmul.f32 %v6587, %v7063
        %v7982 = vmul.f32 %v6652, %v7078
        %v7983 = vmul.f32 %v6460, %v7093
        %v7984 = vmul.f32 %v6525, %v7108
        %v7985 = vmul.f32 %v6590, %v7123
        %v7986 = vmul.f32 %v6655, %v7138
        %v7987 = vmul.f32 %v6463, %v7153
        %v7988 = vmul.f32 %v6528, %v7168
        %v7989 = vmul.f32 %v6593, %v7183
        %v7990 = vmul.f32 %v6658, %v7198
        %v7991 = vmul.f32 %v6466, %v7213
        %v7992 = vmul.f32 %v6531, %v7228
        %v7993 = vmul.f32 %v6596, %v7243
        %v7994 = vmul.f32 %v6661, %v7258
        %v7995 = vmul.f32 %v6469, %v7273
        %v7996 = vmul.f32 %v6534, %v7288
        %v7997 = vmul.f32 %v6599, %v7303
        %v7998 = vmul.f32 %v6664, %v7318
        %v7999 = vmul.f32 %v6472, %v7333
        %v8000 = vmul.f32 %v6537, %v7348
        %v8001 = vmul.f32 %v6602, %v7363
        %v8002 = vmul.f32 %v6667, %v7378
        %v8003 = vmul.f32 %v6475, %v7393
        %v8004 = vmul.f32 %v6540, %v7408
        %v8005 = vmul.f32 %v6605, %v7423
        %v8006 = vmul.f32 %v6670, %v7438
        %v8007 = vmul.f32 %v6478, %v7453
        %v8008 = vmul.f32 %v6543, %v7468
        %v8009 = vmul.f32 %v6608, %v7483
        %v8010 = vmul.f32 %v6673, %v7498
        %v8011 = vmul.f32 %v6481, %v7513
        %v8012 = vmul.f32 %v6546, %v7528
        %v8013 = vmul.f32 %v6611, %v7543
        %v8014 = vmul.f32 %v6676, %v7558
        %v8015 = vmul.f32 %v6484, %v7573
        %v8016 = vmul.f32 %v6549, %v7588
        %v8017 = vmul.f32 %v6614, %v7603
        %v8018 = vmul.f32 %v6679, %v7618
        %v8019 = vmul.f32 %v6487, %v7633
        %v8020 = vmul.f32 %v6552, %v7648
        %v8021 = vmul.f32 %v6617, %v7663
        %v8022 = vmul.f32 %v6682, %v7678
        %v8023 = vmul.f32 %v6490, %v7693
        %v8024 = vmul.f32 %v6555, %v7708
        %v8025 = vmul.f32 %v6620, %v7723
        %v8026 = vmul.f32 %v6685, %v7738
        %v8027 = vmul.f32 %v6493, %v7753
        %v8028 = vmul.f32 %v6558, %v7768
        %v8029 = vmul.f32 %v6623, %v7783
        %v8030 = vmul.f32 %v6688, %v7798
        %v8031 = vmul.f32 %v6496, %v7813
        %v8032 = vmul.f32 %v6561, %v7828
        %v8033 = vmul.f32 %v6626, %v7843
        %v8034 = vmul.f32 %v6691, %v7858
        %v8035 = vmul.f32 %v6499, %v7873
        %v8036 = vmul.f32 %v6564, %v7888
        %v8037 = vmul.f32 %v6629, %v7903
        %v8038 = vmul.f32 %v6694, %v7918
        %v8039 = vmul.f32 %v6502, %v7933
        %v8040 = vmul.f32 %v6567, %v7948
        %v8041 = vmul.f32 %v6632, %v7963
        %v8042 = vmul.f32 %v6697, %v7978
        %v8043 = vld [vmem:[%s794] sm:$0xff]
        %v8044 = vld [vmem:[%s794 + $0x8] sm:$0xff]
        %v8045 = vld [vmem:[%s794 + $0x10] sm:$0xff]
        %v8046 = vld [vmem:[%s794 + $0x18] sm:$0xff]
        %v8047 = vld [vmem:[%s794 + $0x20] sm:$0xff]
        %v8048 = vld [vmem:[%s794 + $0x28] sm:$0xff]
        %v8049 = vld [vmem:[%s794 + $0x30] sm:$0xff]
        %v8050 = vld [vmem:[%s794 + $0x38] sm:$0xff]
        %v8051 = vld [vmem:[%s794 + $0x40] sm:$0xff]
        %v8052 = vld [vmem:[%s794 + $0x48] sm:$0xff]
        %v8053 = vld [vmem:[%s794 + $0x50] sm:$0xff]
        %v8054 = vld [vmem:[%s794 + $0x58] sm:$0xff]
        %v8055 = vld [vmem:[%s794 + $0x60] sm:$0xff]
        %v8056 = vld [vmem:[%s794 + $0x68] sm:$0xff]
        %v8057 = vld [vmem:[%s794 + $0x70] sm:$0xff]
        %v8058 = vld [vmem:[%s794 + $0x78] sm:$0xff]
        %v8059 = vld [vmem:[%s794 + $0x80] sm:$0xff]
        %v8060 = vld [vmem:[%s794 + $0x88] sm:$0xff]
        %v8061 = vld [vmem:[%s794 + $0x90] sm:$0xff]
        %v8062 = vld [vmem:[%s794 + $0x98] sm:$0xff]
        %v8063 = vld [vmem:[%s794 + $0xa0] sm:$0xff]
        %v8064 = vld [vmem:[%s794 + $0xa8] sm:$0xff]
        %v8065 = vld [vmem:[%s794 + $0xb0] sm:$0xff]
        %v8066 = vld [vmem:[%s794 + $0xb8] sm:$0xff]
        %v8067 = vld [vmem:[%s794 + $0xc0] sm:$0xff]
        %v8068 = vld [vmem:[%s794 + $0xc8] sm:$0xff]
        %v8069 = vld [vmem:[%s794 + $0xd0] sm:$0xff]
        %v8070 = vld [vmem:[%s794 + $0xd8] sm:$0xff]
        %v8071 = vld [vmem:[%s794 + $0xe0] sm:$0xff]
        %v8072 = vld [vmem:[%s794 + $0xe8] sm:$0xff]
        %v8073 = vld [vmem:[%s794 + $0xf0] sm:$0xff]
        %v8074 = vld [vmem:[%s794 + $0xf8] sm:$0xff]
        %v8075 = vld [vmem:[%s794 + $0x100] sm:$0xff]
        %v8076 = vld [vmem:[%s794 + $0x108] sm:$0xff]
        %v8077 = vld [vmem:[%s794 + $0x110] sm:$0xff]
        %v8078 = vld [vmem:[%s794 + $0x118] sm:$0xff]
        %v8079 = vld [vmem:[%s794 + $0x120] sm:$0xff]
        %v8080 = vld [vmem:[%s794 + $0x128] sm:$0xff]
        %v8081 = vld [vmem:[%s794 + $0x130] sm:$0xff]
        %v8082 = vld [vmem:[%s794 + $0x138] sm:$0xff]
        %v8083 = vld [vmem:[%s794 + $0x140] sm:$0xff]
        %v8084 = vld [vmem:[%s794 + $0x148] sm:$0xff]
        %v8085 = vld [vmem:[%s794 + $0x150] sm:$0xff]
        %v8086 = vld [vmem:[%s794 + $0x158] sm:$0xff]
        %v8087 = vld [vmem:[%s794 + $0x160] sm:$0xff]
        %v8088 = vld [vmem:[%s794 + $0x168] sm:$0xff]
        %v8089 = vld [vmem:[%s794 + $0x170] sm:$0xff]
        %v8090 = vld [vmem:[%s794 + $0x178] sm:$0xff]
        %v8091 = vld [vmem:[%s794 + $0x180] sm:$0xff]
        %v8092 = vld [vmem:[%s794 + $0x188] sm:$0xff]
        %v8093 = vld [vmem:[%s794 + $0x190] sm:$0xff]
        %v8094 = vld [vmem:[%s794 + $0x198] sm:$0xff]
        %v8095 = vld [vmem:[%s794 + $0x1a0] sm:$0xff]
        %v8096 = vld [vmem:[%s794 + $0x1a8] sm:$0xff]
        %v8097 = vld [vmem:[%s794 + $0x1b0] sm:$0xff]
        %v8098 = vld [vmem:[%s794 + $0x1b8] sm:$0xff]
        %v8099 = vld [vmem:[%s794 + $0x1c0] sm:$0xff]
        %v8100 = vld [vmem:[%s794 + $0x1c8] sm:$0xff]
        %v8101 = vld [vmem:[%s794 + $0x1d0] sm:$0xff]
        %v8102 = vld [vmem:[%s794 + $0x1d8] sm:$0xff]
        %v8103 = vld [vmem:[%s794 + $0x1e0] sm:$0xff]
        %v8104 = vld [vmem:[%s794 + $0x1e8] sm:$0xff]
        %v8105 = vld [vmem:[%s794 + $0x1f0] sm:$0xff]
        %v8106 = vld [vmem:[%s794 + $0x1f8] sm:$0xff]
        %8107 = vmatpush.msra.mxu0 %v8058
        %8108 = vmatpush.msra.mxu0 %v8057
        %8109 = vmatpush.msra.mxu0 %v8056
        %8110 = vmatpush.msra.mxu0 %v8055
        %8111 = vmatpush.msra.mxu0 %v8054
        %8112 = vmatpush.msra.mxu0 %v8053
        %8113 = vmatpush.msra.mxu0 %v8052
        %8114 = vmatpush.msra.mxu0 %v8051
        %8115 = vmatpush.msra.mxu0 %v8050
        %8116 = vmatpush.msra.mxu0 %v8049
        %8117 = vmatpush.msra.mxu0 %v8048
        %8118 = vmatpush.msra.mxu0 %v8047
        %8119 = vmatpush.msra.mxu0 %v8046
        %8120 = vmatpush.msra.mxu0 %v8045
        %8121 = vmatpush.msra.mxu0 %v8044
        %8122 = vmatpush.msra.mxu0 %v8043
        %8123 = vmatmul.f32.gmra.mxu0 %v7979
        %v8124 = vpop.f32.mrf.mxu0
        %v8125 = vadd.f32 0.0, %v8124
        %8126 = vmatmul.f32.gmra.mxu0 %v7983
        %v8127 = vpop.f32.mrf.mxu0
        %v8128 = vadd.f32 0.0, %v8127
        %8129 = vmatmul.f32.gmra.mxu0 %v7987
        %v8130 = vpop.f32.mrf.mxu0
        %v8131 = vadd.f32 0.0, %v8130
        %8132 = vmatmul.f32.gmra.mxu0 %v7991
        %v8133 = vpop.f32.mrf.mxu0
        %v8134 = vadd.f32 0.0, %v8133
        %8135 = vmatmul.f32.gmra.mxu0 %v7995
        %v8136 = vpop.f32.mrf.mxu0
        %v8137 = vadd.f32 0.0, %v8136
        %8138 = vmatmul.f32.gmra.mxu0 %v7999
        %v8139 = vpop.f32.mrf.mxu0
        %v8140 = vadd.f32 0.0, %v8139
        %8141 = vmatmul.f32.gmra.mxu0 %v8003
        %v8142 = vpop.f32.mrf.mxu0
        %v8143 = vadd.f32 0.0, %v8142
        %8144 = vmatmul.f32.gmra.mxu0 %v8007
        %v8145 = vpop.f32.mrf.mxu0
        %v8146 = vadd.f32 0.0, %v8145
        %8147 = vmatmul.f32.gmra.mxu0 %v8011
        %v8148 = vpop.f32.mrf.mxu0
        %v8149 = vadd.f32 0.0, %v8148
        %8150 = vmatmul.f32.gmra.mxu0 %v8015
        %v8151 = vpop.f32.mrf.mxu0
        %v8152 = vadd.f32 0.0, %v8151
        %8153 = vmatmul.f32.gmra.mxu0 %v8019
        %v8154 = vpop.f32.mrf.mxu0
        %v8155 = vadd.f32 0.0, %v8154
        %8156 = vmatmul.f32.gmra.mxu0 %v8023
        %v8157 = vpop.f32.mrf.mxu0
        %v8158 = vadd.f32 0.0, %v8157
        %8159 = vmatmul.f32.gmra.mxu0 %v8027
        %v8160 = vpop.f32.mrf.mxu0
        %v8161 = vadd.f32 0.0, %v8160
        %8162 = vmatmul.f32.gmra.mxu0 %v8031
        %v8163 = vpop.f32.mrf.mxu0
        %v8164 = vadd.f32 0.0, %v8163
        %8165 = vmatmul.f32.gmra.mxu0 %v8035
        %v8166 = vpop.f32.mrf.mxu0
        %v8167 = vadd.f32 0.0, %v8166
        %8168 = vmatmul.f32.gmra.mxu0 %v8039
        %v8169 = vpop.f32.mrf.mxu0
        %v8170 = vadd.f32 0.0, %v8169
        %8171 = vdwg.mxu0
        %8172 = vmatpush.msra.mxu0 %v8074
        %8173 = vmatpush.msra.mxu0 %v8073
        %8174 = vmatpush.msra.mxu0 %v8072
        %8175 = vmatpush.msra.mxu0 %v8071
        %8176 = vmatpush.msra.mxu0 %v8070
        %8177 = vmatpush.msra.mxu0 %v8069
        %8178 = vmatpush.msra.mxu0 %v8068
        %8179 = vmatpush.msra.mxu0 %v8067
        %8180 = vmatpush.msra.mxu0 %v8066
        %8181 = vmatpush.msra.mxu0 %v8065
        %8182 = vmatpush.msra.mxu0 %v8064
        %8183 = vmatpush.msra.mxu0 %v8063
        %8184 = vmatpush.msra.mxu0 %v8062
        %8185 = vmatpush.msra.mxu0 %v8061
        %8186 = vmatpush.msra.mxu0 %v8060
        %8187 = vmatpush.msra.mxu0 %v8059
        %8188 = vmatmul.f32.gmra.mxu0 %v7980
        %v8189 = vpop.f32.mrf.mxu0
        %v8190 = vadd.f32 %v8125, %v8189
        %8191 = vmatmul.f32.gmra.mxu0 %v7984
        %v8192 = vpop.f32.mrf.mxu0
        %v8193 = vadd.f32 %v8128, %v8192
        %8194 = vmatmul.f32.gmra.mxu0 %v7988
        %v8195 = vpop.f32.mrf.mxu0
        %v8196 = vadd.f32 %v8131, %v8195
        %8197 = vmatmul.f32.gmra.mxu0 %v7992
        %v8198 = vpop.f32.mrf.mxu0
        %v8199 = vadd.f32 %v8134, %v8198
        %8200 = vmatmul.f32.gmra.mxu0 %v7996
        %v8201 = vpop.f32.mrf.mxu0
        %v8202 = vadd.f32 %v8137, %v8201
        %8203 = vmatmul.f32.gmra.mxu0 %v8000
        %v8204 = vpop.f32.mrf.mxu0
        %v8205 = vadd.f32 %v8140, %v8204
        %8206 = vmatmul.f32.gmra.mxu0 %v8004
        %v8207 = vpop.f32.mrf.mxu0
        %v8208 = vadd.f32 %v8143, %v8207
        %8209 = vmatmul.f32.gmra.mxu0 %v8008
        %v8210 = vpop.f32.mrf.mxu0
        %v8211 = vadd.f32 %v8146, %v8210
        %8212 = vmatmul.f32.gmra.mxu0 %v8012
        %v8213 = vpop.f32.mrf.mxu0
        %v8214 = vadd.f32 %v8149, %v8213
        %8215 = vmatmul.f32.gmra.mxu0 %v8016
        %v8216 = vpop.f32.mrf.mxu0
        %v8217 = vadd.f32 %v8152, %v8216
        %8218 = vmatmul.f32.gmra.mxu0 %v8020
        %v8219 = vpop.f32.mrf.mxu0
        %v8220 = vadd.f32 %v8155, %v8219
        %8221 = vmatmul.f32.gmra.mxu0 %v8024
        %v8222 = vpop.f32.mrf.mxu0
        %v8223 = vadd.f32 %v8158, %v8222
        %8224 = vmatmul.f32.gmra.mxu0 %v8028
        %v8225 = vpop.f32.mrf.mxu0
        %v8226 = vadd.f32 %v8161, %v8225
        %8227 = vmatmul.f32.gmra.mxu0 %v8032
        %v8228 = vpop.f32.mrf.mxu0
        %v8229 = vadd.f32 %v8164, %v8228
        %8230 = vmatmul.f32.gmra.mxu0 %v8036
        %v8231 = vpop.f32.mrf.mxu0
        %v8232 = vadd.f32 %v8167, %v8231
        %8233 = vmatmul.f32.gmra.mxu0 %v8040
        %v8234 = vpop.f32.mrf.mxu0
        %v8235 = vadd.f32 %v8170, %v8234
        %8236 = vdwg.mxu0
        %8237 = vmatpush.msra.mxu0 %v8090
        %8238 = vmatpush.msra.mxu0 %v8089
        %8239 = vmatpush.msra.mxu0 %v8088
        %8240 = vmatpush.msra.mxu0 %v8087
        %8241 = vmatpush.msra.mxu0 %v8086
        %8242 = vmatpush.msra.mxu0 %v8085
        %8243 = vmatpush.msra.mxu0 %v8084
        %8244 = vmatpush.msra.mxu0 %v8083
        %8245 = vmatpush.msra.mxu0 %v8082
        %8246 = vmatpush.msra.mxu0 %v8081
        %8247 = vmatpush.msra.mxu0 %v8080
        %8248 = vmatpush.msra.mxu0 %v8079
        %8249 = vmatpush.msra.mxu0 %v8078
        %8250 = vmatpush.msra.mxu0 %v8077
        %8251 = vmatpush.msra.mxu0 %v8076
        %8252 = vmatpush.msra.mxu0 %v8075
        %8253 = vmatmul.f32.gmra.mxu0 %v7981
        %v8254 = vpop.f32.mrf.mxu0
        %v8255 = vadd.f32 %v8190, %v8254
        %8256 = vmatmul.f32.gmra.mxu0 %v7985
        %v8257 = vpop.f32.mrf.mxu0
        %v8258 = vadd.f32 %v8193, %v8257
        %8259 = vmatmul.f32.gmra.mxu0 %v7989
        %v8260 = vpop.f32.mrf.mxu0
        %v8261 = vadd.f32 %v8196, %v8260
        %8262 = vmatmul.f32.gmra.mxu0 %v7993
        %v8263 = vpop.f32.mrf.mxu0
        %v8264 = vadd.f32 %v8199, %v8263
        %8265 = vmatmul.f32.gmra.mxu0 %v7997
        %v8266 = vpop.f32.mrf.mxu0
        %v8267 = vadd.f32 %v8202, %v8266
        %8268 = vmatmul.f32.gmra.mxu0 %v8001
        %v8269 = vpop.f32.mrf.mxu0
        %v8270 = vadd.f32 %v8205, %v8269
        %8271 = vmatmul.f32.gmra.mxu0 %v8005
        %v8272 = vpop.f32.mrf.mxu0
        %v8273 = vadd.f32 %v8208, %v8272
        %8274 = vmatmul.f32.gmra.mxu0 %v8009
        %v8275 = vpop.f32.mrf.mxu0
        %v8276 = vadd.f32 %v8211, %v8275
        %8277 = vmatmul.f32.gmra.mxu0 %v8013
        %v8278 = vpop.f32.mrf.mxu0
        %v8279 = vadd.f32 %v8214, %v8278
        %8280 = vmatmul.f32.gmra.mxu0 %v8017
        %v8281 = vpop.f32.mrf.mxu0
        %v8282 = vadd.f32 %v8217, %v8281
        %8283 = vmatmul.f32.gmra.mxu0 %v8021
        %v8284 = vpop.f32.mrf.mxu0
        %v8285 = vadd.f32 %v8220, %v8284
        %8286 = vmatmul.f32.gmra.mxu0 %v8025
        %v8287 = vpop.f32.mrf.mxu0
        %v8288 = vadd.f32 %v8223, %v8287
        %8289 = vmatmul.f32.gmra.mxu0 %v8029
        %v8290 = vpop.f32.mrf.mxu0
        %v8291 = vadd.f32 %v8226, %v8290
        %8292 = vmatmul.f32.gmra.mxu0 %v8033
        %v8293 = vpop.f32.mrf.mxu0
        %v8294 = vadd.f32 %v8229, %v8293
        %8295 = vmatmul.f32.gmra.mxu0 %v8037
        %v8296 = vpop.f32.mrf.mxu0
        %v8297 = vadd.f32 %v8232, %v8296
        %8298 = vmatmul.f32.gmra.mxu0 %v8041
        %v8299 = vpop.f32.mrf.mxu0
        %v8300 = vadd.f32 %v8235, %v8299
        %8301 = vdwg.mxu0
        %8302 = vmatpush.msra.mxu0 %v8106
        %8303 = vmatpush.msra.mxu0 %v8105
        %8304 = vmatpush.msra.mxu0 %v8104
        %8305 = vmatpush.msra.mxu0 %v8103
        %8306 = vmatpush.msra.mxu0 %v8102
        %8307 = vmatpush.msra.mxu0 %v8101
        %8308 = vmatpush.msra.mxu0 %v8100
        %8309 = vmatpush.msra.mxu0 %v8099
        %8310 = vmatpush.msra.mxu0 %v8098
        %8311 = vmatpush.msra.mxu0 %v8097
        %8312 = vmatpush.msra.mxu0 %v8096
        %8313 = vmatpush.msra.mxu0 %v8095
        %8314 = vmatpush.msra.mxu0 %v8094
        %8315 = vmatpush.msra.mxu0 %v8093
        %8316 = vmatpush.msra.mxu0 %v8092
        %8317 = vmatpush.msra.mxu0 %v8091
        %8318 = vmatmul.f32.gmra.mxu0 %v7982
        %v8319 = vpop.f32.mrf.mxu0
        %v8320 = vadd.f32 %v8255, %v8319
        %8321 = vmatmul.f32.gmra.mxu0 %v7986
        %v8322 = vpop.f32.mrf.mxu0
        %v8323 = vadd.f32 %v8258, %v8322
        %8324 = vmatmul.f32.gmra.mxu0 %v7990
        %v8325 = vpop.f32.mrf.mxu0
        %v8326 = vadd.f32 %v8261, %v8325
        %8327 = vmatmul.f32.gmra.mxu0 %v7994
        %v8328 = vpop.f32.mrf.mxu0
        %v8329 = vadd.f32 %v8264, %v8328
        %8330 = vmatmul.f32.gmra.mxu0 %v7998
        %v8331 = vpop.f32.mrf.mxu0
        %v8332 = vadd.f32 %v8267, %v8331
        %8333 = vmatmul.f32.gmra.mxu0 %v8002
        %v8334 = vpop.f32.mrf.mxu0
        %v8335 = vadd.f32 %v8270, %v8334
        %8336 = vmatmul.f32.gmra.mxu0 %v8006
        %v8337 = vpop.f32.mrf.mxu0
        %v8338 = vadd.f32 %v8273, %v8337
        %8339 = vmatmul.f32.gmra.mxu0 %v8010
        %v8340 = vpop.f32.mrf.mxu0
        %v8341 = vadd.f32 %v8276, %v8340
        %8342 = vmatmul.f32.gmra.mxu0 %v8014
        %v8343 = vpop.f32.mrf.mxu0
        %v8344 = vadd.f32 %v8279, %v8343
        %8345 = vmatmul.f32.gmra.mxu0 %v8018
        %v8346 = vpop.f32.mrf.mxu0
        %v8347 = vadd.f32 %v8282, %v8346
        %8348 = vmatmul.f32.gmra.mxu0 %v8022
        %v8349 = vpop.f32.mrf.mxu0
        %v8350 = vadd.f32 %v8285, %v8349
        %8351 = vmatmul.f32.gmra.mxu0 %v8026
        %v8352 = vpop.f32.mrf.mxu0
        %v8353 = vadd.f32 %v8288, %v8352
        %8354 = vmatmul.f32.gmra.mxu0 %v8030
        %v8355 = vpop.f32.mrf.mxu0
        %v8356 = vadd.f32 %v8291, %v8355
        %8357 = vmatmul.f32.gmra.mxu0 %v8034
        %v8358 = vpop.f32.mrf.mxu0
        %v8359 = vadd.f32 %v8294, %v8358
        %8360 = vmatmul.f32.gmra.mxu0 %v8038
        %v8361 = vpop.f32.mrf.mxu0
        %v8362 = vadd.f32 %v8297, %v8361
        %8363 = vmatmul.f32.gmra.mxu0 %v8042
        %v8364 = vpop.f32.mrf.mxu0
        %v8365 = vadd.f32 %v8300, %v8364
        %8366 = vdwg.mxu0
        %v8367 = vadd.f32 %v5989, %v8320
        %v8368 = vadd.f32 %v5990, %v8323
        %v8369 = vadd.f32 %v5991, %v8326
        %v8370 = vadd.f32 %v5992, %v8329
        %v8371 = vadd.f32 %v5993, %v8332
        %v8372 = vadd.f32 %v5994, %v8335
        %v8373 = vadd.f32 %v5995, %v8338
        %v8374 = vadd.f32 %v5996, %v8341
        %v8375 = vadd.f32 %v5997, %v8344
        %v8376 = vadd.f32 %v5998, %v8347
        %v8377 = vadd.f32 %v5999, %v8350
        %v8378 = vadd.f32 %v6000, %v8353
        %v8379 = vadd.f32 %v6001, %v8356
        %v8380 = vadd.f32 %v6002, %v8359
        %v8381 = vadd.f32 %v6003, %v8362
        %v8382 = vadd.f32 %v6004, %v8365
        %v8383 = vld [vmem:[%s900] sm:$0x1]
        %v8385 = vperm.slane %v8383, 0
        %v8387 = vadd.f32 %v8367, %v8385
        %v8388 = vadd.f32 %v8368, %v8385
        %v8389 = vadd.f32 %v8369, %v8385
        %v8390 = vadd.f32 %v8370, %v8385
        %v8391 = vadd.f32 %v8371, %v8385
        %v8392 = vadd.f32 %v8372, %v8385
        %v8393 = vadd.f32 %v8373, %v8385
        %v8394 = vadd.f32 %v8374, %v8385
        %v8395 = vadd.f32 %v8375, %v8385
        %v8396 = vadd.f32 %v8376, %v8385
        %v8397 = vadd.f32 %v8377, %v8385
        %v8398 = vadd.f32 %v8378, %v8385
        %v8399 = vadd.f32 %v8379, %v8385
        %v8400 = vadd.f32 %v8380, %v8385
        %v8401 = vadd.f32 %v8381, %v8385
        %v8402 = vadd.f32 %v8382, %v8385
        %8403 = vst [vmem:[%s1169] sm:$0xff] %v8387
        %8404 = vst [vmem:[%s1169 + $0x8] sm:$0xff] %v8388
        %8405 = vst [vmem:[%s1169 + $0x10] sm:$0xff] %v8389
        %8406 = vst [vmem:[%s1169 + $0x18] sm:$0xff] %v8390
        %8407 = vst [vmem:[%s1169 + $0x20] sm:$0xff] %v8391
        %8408 = vst [vmem:[%s1169 + $0x28] sm:$0xff] %v8392
        %8409 = vst [vmem:[%s1169 + $0x30] sm:$0xff] %v8393
        %8410 = vst [vmem:[%s1169 + $0x38] sm:$0xff] %v8394
        %8411 = vst [vmem:[%s1169 + $0x40] sm:$0xff] %v8395
        %8412 = vst [vmem:[%s1169 + $0x48] sm:$0xff] %v8396
        %8413 = vst [vmem:[%s1169 + $0x50] sm:$0xff] %v8397
        %8414 = vst [vmem:[%s1169 + $0x58] sm:$0xff] %v8398
        %8415 = vst [vmem:[%s1169 + $0x60] sm:$0xff] %v8399
        %8416 = vst [vmem:[%s1169 + $0x68] sm:$0xff] %v8400
        %8417 = vst [vmem:[%s1169 + $0x70] sm:$0xff] %v8401
        %8418 = vst [vmem:[%s1169 + $0x78] sm:$0xff] %v8402
        %p8419 = scmp.eq.s32.totalorder %s51, 1
        // Predicated region
        $region121: #{tpu_custom_call.1} parent=71 // pred_check
          %p8420 = pneg %p8419
        $region122: #{tpu_custom_call.1} parent=71 // pred_check_branch
          %8422 = sbr.rel (%p8420) target = $region124
        $region123: #{tpu_custom_call.1} parent=71 // pred_region
          %v8423 = vrot.slane %v8391, 4
          %vm8424 = vcmask 1047556
          %v8425 = vsel %vm8424, %v8423, %v8387
          %v8426 = vrot.slane %v8387, 4
          %v8427 = vsel %vm8424, %v8391, %v8426
          %v8429 = vunpack.c.l.s4 1983009808
          %v8430 = vunpack.c.0.s8 %v8429
          %v8431 = vperm.slane %v8425, %v8430
          %v8433 = vunpack.c.l.s4 1983009808
          %v8434 = vunpack.c.0.s8 %v8433
          %v8435 = vperm.slane %v8427, %v8434
          %v8436 = vrot.slane %v8393, 4
          %v8437 = vsel %vm8424, %v8436, %v8389
          %v8438 = vrot.slane %v8389, 4
          %v8439 = vsel %vm8424, %v8393, %v8438
          %v8441 = vunpack.c.l.s4 1983009808
          %v8442 = vunpack.c.0.s8 %v8441
          %v8443 = vperm.slane %v8437, %v8442
          %v8445 = vunpack.c.l.s4 1983009808
          %v8446 = vunpack.c.0.s8 %v8445
          %v8447 = vperm.slane %v8439, %v8446
          %v8448 = vrot.slane %v8399, 4
          %v8449 = vsel %vm8424, %v8448, %v8395
          %v8450 = vrot.slane %v8395, 4
          %v8451 = vsel %vm8424, %v8399, %v8450
          %v8453 = vunpack.c.l.s4 1983009808
          %v8454 = vunpack.c.0.s8 %v8453
          %v8455 = vperm.slane %v8449, %v8454
          %v8457 = vunpack.c.l.s4 1983009808
          %v8458 = vunpack.c.0.s8 %v8457
          %v8459 = vperm.slane %v8451, %v8458
          %v8460 = vrot.slane %v8401, 4
          %v8461 = vsel %vm8424, %v8460, %v8397
          %v8462 = vrot.slane %v8397, 4
          %v8463 = vsel %vm8424, %v8401, %v8462
          %v8465 = vunpack.c.l.s4 1983009808
          %v8466 = vunpack.c.0.s8 %v8465
          %v8467 = vperm.slane %v8461, %v8466
          %v8469 = vunpack.c.l.s4 1983009808
          %v8470 = vunpack.c.0.s8 %v8469
          %v8471 = vperm.slane %v8463, %v8470
          %v8472 = vrot.slane %v8443, 4
          %v8473 = vsel %vm8424, %v8472, %v8431
          %v8474 = vrot.slane %v8431, 4
          %v8475 = vsel %vm8424, %v8443, %v8474
          %v8477 = vunpack.c.l.s4 1934713408
          %v8478 = vunpack.c.0.s8 %v8477
          %v8479 = vperm.slane %v8473, %v8478
          %v8481 = vunpack.c.l.s4 1934713408
          %v8482 = vunpack.c.0.s8 %v8481
          %v8483 = vperm.slane %v8475, %v8482
          %v8484 = vrot.slane %v8447, 4
          %v8485 = vsel %vm8424, %v8484, %v8435
          %v8486 = vrot.slane %v8435, 4
          %v8487 = vsel %vm8424, %v8447, %v8486
          %v8489 = vunpack.c.l.s4 1934713408
          %v8490 = vunpack.c.0.s8 %v8489
          %v8491 = vperm.slane %v8485, %v8490
          %v8493 = vunpack.c.l.s4 1934713408
          %v8494 = vunpack.c.0.s8 %v8493
          %v8495 = vperm.slane %v8487, %v8494
          %v8496 = vrot.slane %v8467, 4
          %v8497 = vsel %vm8424, %v8496, %v8455
          %v8498 = vrot.slane %v8455, 4
          %v8499 = vsel %vm8424, %v8467, %v8498
          %v8501 = vunpack.c.l.s4 1934713408
          %v8502 = vunpack.c.0.s8 %v8501
          %v8503 = vperm.slane %v8497, %v8502
          %v8505 = vunpack.c.l.s4 1934713408
          %v8506 = vunpack.c.0.s8 %v8505
          %v8507 = vperm.slane %v8499, %v8506
          %v8508 = vrot.slane %v8471, 4
          %v8509 = vsel %vm8424, %v8508, %v8459
          %v8510 = vrot.slane %v8459, 4
          %v8511 = vsel %vm8424, %v8471, %v8510
          %v8513 = vunpack.c.l.s4 1934713408
          %v8514 = vunpack.c.0.s8 %v8513
          %v8515 = vperm.slane %v8509, %v8514
          %v8517 = vunpack.c.l.s4 1934713408
          %v8518 = vunpack.c.0.s8 %v8517
          %v8519 = vperm.slane %v8511, %v8518
          %v8520 = vrot.slane %v8503, 4
          %v8521 = vsel %vm8424, %v8520, %v8479
          %v8522 = vrot.slane %v8479, 4
          %v8523 = vsel %vm8424, %v8503, %v8522
          %v8524 = vrot.slane %v8507, 4
          %v8525 = vsel %vm8424, %v8524, %v8483
          %v8526 = vrot.slane %v8483, 4
          %v8527 = vsel %vm8424, %v8507, %v8526
          %v8528 = vrot.slane %v8515, 4
          %v8529 = vsel %vm8424, %v8528, %v8491
          %v8530 = vrot.slane %v8491, 4
          %v8531 = vsel %vm8424, %v8515, %v8530
          %v8532 = vrot.slane %v8519, 4
          %v8533 = vsel %vm8424, %v8532, %v8495
          %v8534 = vrot.slane %v8495, 4
          %v8535 = vsel %vm8424, %v8519, %v8534
          %v8536 = vrot.slane %v8392, 4
          %v8537 = vsel %vm8424, %v8536, %v8388
          %v8538 = vrot.slane %v8388, 4
          %v8539 = vsel %vm8424, %v8392, %v8538
          %v8541 = vunpack.c.l.s4 1983009808
          %v8542 = vunpack.c.0.s8 %v8541
          %v8543 = vperm.slane %v8537, %v8542
          %v8545 = vunpack.c.l.s4 1983009808
          %v8546 = vunpack.c.0.s8 %v8545
          %v8547 = vperm.slane %v8539, %v8546
          %v8548 = vrot.slane %v8394, 4
          %v8549 = vsel %vm8424, %v8548, %v8390
          %v8550 = vrot.slane %v8390, 4
          %v8551 = vsel %vm8424, %v8394, %v8550
          %v8553 = vunpack.c.l.s4 1983009808
          %v8554 = vunpack.c.0.s8 %v8553
          %v8555 = vperm.slane %v8549, %v8554
          %v8557 = vunpack.c.l.s4 1983009808
          %v8558 = vunpack.c.0.s8 %v8557
          %v8559 = vperm.slane %v8551, %v8558
          %v8560 = vrot.slane %v8400, 4
          %v8561 = vsel %vm8424, %v8560, %v8396
          %v8562 = vrot.slane %v8396, 4
          %v8563 = vsel %vm8424, %v8400, %v8562
          %v8565 = vunpack.c.l.s4 1983009808
          %v8566 = vunpack.c.0.s8 %v8565
          %v8567 = vperm.slane %v8561, %v8566
          %v8569 = vunpack.c.l.s4 1983009808
          %v8570 = vunpack.c.0.s8 %v8569
          %v8571 = vperm.slane %v8563, %v8570
          %v8572 = vrot.slane %v8402, 4
          %v8573 = vsel %vm8424, %v8572, %v8398
          %v8574 = vrot.slane %v8398, 4
          %v8575 = vsel %vm8424, %v8402, %v8574
          %v8577 = vunpack.c.l.s4 1983009808
          %v8578 = vunpack.c.0.s8 %v8577
          %v8579 = vperm.slane %v8573, %v8578
          %v8581 = vunpack.c.l.s4 1983009808
          %v8582 = vunpack.c.0.s8 %v8581
          %v8583 = vperm.slane %v8575, %v8582
          %v8584 = vrot.slane %v8555, 4
          %v8585 = vsel %vm8424, %v8584, %v8543
          %v8586 = vrot.slane %v8543, 4
          %v8587 = vsel %vm8424, %v8555, %v8586
          %v8589 = vunpack.c.l.s4 1934713408
          %v8590 = vunpack.c.0.s8 %v8589
          %v8591 = vperm.slane %v8585, %v8590
          %v8593 = vunpack.c.l.s4 1934713408
          %v8594 = vunpack.c.0.s8 %v8593
          %v8595 = vperm.slane %v8587, %v8594
          %v8596 = vrot.slane %v8559, 4
          %v8597 = vsel %vm8424, %v8596, %v8547
          %v8598 = vrot.slane %v8547, 4
          %v8599 = vsel %vm8424, %v8559, %v8598
          %v8601 = vunpack.c.l.s4 1934713408
          %v8602 = vunpack.c.0.s8 %v8601
          %v8603 = vperm.slane %v8597, %v8602
          %v8605 = vunpack.c.l.s4 1934713408
          %v8606 = vunpack.c.0.s8 %v8605
          %v8607 = vperm.slane %v8599, %v8606
          %v8608 = vrot.slane %v8579, 4
          %v8609 = vsel %vm8424, %v8608, %v8567
          %v8610 = vrot.slane %v8567, 4
          %v8611 = vsel %vm8424, %v8579, %v8610
          %v8613 = vunpack.c.l.s4 1934713408
          %v8614 = vunpack.c.0.s8 %v8613
          %v8615 = vperm.slane %v8609, %v8614
          %v8617 = vunpack.c.l.s4 1934713408
          %v8618 = vunpack.c.0.s8 %v8617
          %v8619 = vperm.slane %v8611, %v8618
          %v8620 = vrot.slane %v8583, 4
          %v8621 = vsel %vm8424, %v8620, %v8571
          %v8622 = vrot.slane %v8571, 4
          %v8623 = vsel %vm8424, %v8583, %v8622
          %v8625 = vunpack.c.l.s4 1934713408
          %v8626 = vunpack.c.0.s8 %v8625
          %v8627 = vperm.slane %v8621, %v8626
          %v8629 = vunpack.c.l.s4 1934713408
          %v8630 = vunpack.c.0.s8 %v8629
          %v8631 = vperm.slane %v8623, %v8630
          %v8632 = vrot.slane %v8615, 4
          %v8633 = vsel %vm8424, %v8632, %v8591
          %v8634 = vrot.slane %v8591, 4
          %v8635 = vsel %vm8424, %v8615, %v8634
          %v8636 = vrot.slane %v8619, 4
          %v8637 = vsel %vm8424, %v8636, %v8595
          %v8638 = vrot.slane %v8595, 4
          %v8639 = vsel %vm8424, %v8619, %v8638
          %v8640 = vrot.slane %v8627, 4
          %v8641 = vsel %vm8424, %v8640, %v8603
          %v8642 = vrot.slane %v8603, 4
          %v8643 = vsel %vm8424, %v8627, %v8642
          %v8644 = vrot.slane %v8631, 4
          %v8645 = vsel %vm8424, %v8644, %v8607
          %v8646 = vrot.slane %v8607, 4
          %v8647 = vsel %vm8424, %v8631, %v8646
          %8648 = vst [vmem:[%s889] sm:$0xff] %v8521
          %8649 = vst [vmem:[%s889 + $0x8] sm:$0xff] %v8523
          %8650 = vst [vmem:[%s889 + $0x10] sm:$0xff] %v8525
          %8651 = vst [vmem:[%s889 + $0x18] sm:$0xff] %v8527
          %8652 = vst [vmem:[%s889 + $0x20] sm:$0xff] %v8529
          %8653 = vst [vmem:[%s889 + $0x28] sm:$0xff] %v8531
          %8654 = vst [vmem:[%s889 + $0x30] sm:$0xff] %v8533
          %8655 = vst [vmem:[%s889 + $0x38] sm:$0xff] %v8535
          %8656 = vst [vmem:[%s889 + $0x40] sm:$0xff] %v8633
          %8657 = vst [vmem:[%s889 + $0x48] sm:$0xff] %v8635
          %8658 = vst [vmem:[%s889 + $0x50] sm:$0xff] %v8637
          %8659 = vst [vmem:[%s889 + $0x58] sm:$0xff] %v8639
          %8660 = vst [vmem:[%s889 + $0x60] sm:$0xff] %v8641
          %8661 = vst [vmem:[%s889 + $0x68] sm:$0xff] %v8643
          %8662 = vst [vmem:[%s889 + $0x70] sm:$0xff] %v8645
          %8663 = vst [vmem:[%s889 + $0x78] sm:$0xff] %v8647
        $region124: #{tpu_custom_call.1} parent=71 // pred_fallthru
          _
        %s8664 = sand.u32 %s426, 1
        %s8665 = scalar_lea.sflag [#allocation5], %s8664
        %s8666 = sand.u32 %s426, 1
        %s8667 = smul.addr %s8666, 128
        %s8668 = scalar_lea.vmem [#allocation21], %s8667
        // Predicated region
        $region125: #{tpu_custom_call.1} parent=71 // pred_check
          %p8669 = pneg %p436
        $region126: #{tpu_custom_call.1} parent=71 // pred_check_branch
          %8671 = sbr.rel (%p8669) target = $region128
        $region127: #{tpu_custom_call.1} parent=71 // pred_region
          %p8672 = scmp.eq.s32.totalorder %s51, 1
          %s8673 = smul.u32 %s50, 2
          %s8674 = sadd.s32 %s8673, %s52
          %s8675 = scalar_select %p8672, %s8674, %s8673
          %8677 = vsyncadd %s8665, 0
          %s8678 = smul.addr %s8675, 8
          %s8679 = scalar_lea.hbm %s13, %s8678
          %s8680 = sshll.u32 %s8668, 4
          %s8681 = int_to_ptr.vmem [resolvable:$true] %s8680
          %s8682 = sshll.u32 %s8679, 4
          %s8683 = int_to_ptr.hbm [resolvable:$true] %s8682
          %8688 = dma.vmem_to_hbm [thread:$0]  %s8681, 2048, %s8683, %s8665, 128, 256, 8
        $region128: #{tpu_custom_call.1} parent=71 // pred_fallthru
          _
      $region72: #{tpu_custom_call.1} parent=5 // pred_fallthru
        _
      %p8689 = scmp.le.s32.totalorder 2, %s40
      // Predicated region
      $region129: #{tpu_custom_call.1} parent=5 // pred_check
        %p8690 = pneg %p8689
      $region130: #{tpu_custom_call.1} parent=5 // pred_check_branch
        %8692 = sbr.rel (%p8690) target = $region132
      $region131: #{tpu_custom_call.1} parent=5 // pred_region
        %s8693 = ssub.s32 %s40, 2
        // Predicated region
        $region133: #{tpu_custom_call.1} parent=131 // pred_check
          %p8694 = pneg %p442
        $region134: #{tpu_custom_call.1} parent=131 // pred_check_branch
          %8696 = sbr.rel (%p8694) target = $region136
        $region135: #{tpu_custom_call.1} parent=131 // pred_region
          %s8697 = sand.u32 %s427, 1
          %s8698 = scalar_lea.sflag [#allocation5], %s8697
          %s8699 = sand.u32 %s427, 1
          %s8700 = smul.addr %s8699, 128
          %s8701 = scalar_lea.vmem [#allocation21], %s8700
          %8703 = dma.done %s8698, 2048
        $region136: #{tpu_custom_call.1} parent=131 // pred_fallthru
          _
      $region132: #{tpu_custom_call.1} parent=5 // pred_fallthru
        _
    $region6: #{tpu_custom_call.1} parent=1 // loop_footer
      %s44 = sadd.s32 1, %s40
    $region7: #{tpu_custom_call.1} parent=1 // loop_footer_branch
      %39 = sbr.rel target = $region3
    $region8: #{tpu_custom_call.1} parent=1 // loop_exit
      _
    %8704 = vsyncpa [#allocation4], 1
    %s8705 = scalar_lea.sflag [#allocation4], 1
    %8706 = vsyncpa %s8705, 1
    %8707 = vsyncpa [#allocation7], 1
    %s8708 = scalar_lea.sflag [#allocation7], 1
    %8709 = vsyncpa %s8708, 1
    %8710 = vsyncpa [#allocation10], 1
    %s8711 = scalar_lea.sflag [#allocation10], 1
    %8712 = vsyncpa %s8711, 1
    %8713 = vsyncpa [#allocation13], 1
    %s8714 = scalar_lea.sflag [#allocation13], 1
    %8715 = vsyncpa %s8714, 1
    %8716 = vsyncpa [#allocation16], 1
    %s8717 = scalar_lea.sflag [#allocation16], 1
    %8718 = vsyncpa %s8717, 1
    %8719 = vsyncpa [#allocation19], 1
    %s8720 = scalar_lea.sflag [#allocation19], 1
    %8721 = vsyncpa %s8720, 1
    %8722 = vsyncpa [#allocation5], 1
    %s8723 = scalar_lea.sflag [#allocation5], 1
    %8724 = vsyncpa %s8723, 1

</llo_original>
